<compile_context>
chip_gen: v6e
topology: v6e:2x2x1
jax: 0.10.0
libtpu: 0.0.40
codegen_flags: <defaults>
</compile_context>

<pallas_src>
import functools

import jax
import jax.numpy as jnp
from jax.experimental import pallas as pl
from jax.experimental.pallas import tpu as pltpu


# ----------------------------------------------------------------------------
# Fused kernel: conv stack + LSTM (last hidden) + FC, single invocation.
# ----------------------------------------------------------------------------
def _fused_kernel(xc_ref,
                  bd1_ref, s1_ref, h1_ref,
                  bd2_ref, s2_ref, h2_ref,
                  bd3_ref, s3_ref, h3_ref,
                  wih_ref, whh_ref, bl_ref, wfc_ref, bfc_ref,
                  out_ref,
                  a1_scr, a2_scr, a3_scr,
                  *, n_frames, seq_len, batch, hidden, cins, ho3):
    N = n_frames

    def conv_bn(src_ref, bd_ref, scale_ref, shift_ref, dst_ref, cin, relu):
        rows = dst_ref.shape[0]        # Hvalid_out * N
        klanes = bd_ref.shape[1]       # Wvalid_out * Cin
        acc = None
        for kh in range(3):
            for kw in range(3):
                patch = src_ref[kh * N:kh * N + rows,
                                kw * cin:kw * cin + klanes]
                d = jnp.dot(patch.astype(bd_ref.dtype),
                            bd_ref[kh * 3 + kw],
                            preferred_element_type=jnp.float32)
                acc = d if acc is None else acc + d
        y = acc * scale_ref[...] + shift_ref[...]     # folded BN (per-channel)
        if relu:
            y = jnp.maximum(y, 0.0)
        dst_ref[...] = y.astype(dst_ref.dtype)

    # --- conv stack (all B*T frames at once, lane-dense canvases) -----------
    conv_bn(xc_ref, bd1_ref, s1_ref, h1_ref, a1_scr, cins[0], True)
    conv_bn(a1_scr, bd2_ref, s2_ref, h2_ref, a2_scr, cins[1], True)
    conv_bn(a2_scr, bd3_ref, s3_ref, h3_ref, a3_scr, cins[2], False)

    # --- LSTM input projection hoisted out of the recurrence -----------------
    # gx[n, :] = flatten_CHW(conv3_out[n]) @ W_ih   (n = t*B + b)
    gx = None
    for h in range(ho3):
        d = jnp.dot(a3_scr[h * N:(h + 1) * N, :].astype(wih_ref.dtype),
                    wih_ref[h], preferred_element_type=jnp.float32)
        gx = d if gx is None else gx + d              # (N, 4H) f32

    # --- unrolled LSTM recurrence (PyTorch gate order i, f, g, o) ------------
    bias = bl_ref[...]                                # (1, 4H)
    whh = whh_ref[...]                                # (H, 4H) f32
    hs = jnp.zeros((batch, hidden), jnp.float32)
    cs = jnp.zeros((batch, hidden), jnp.float32)
    for t in range(seq_len):
        gates = (gx[t * batch:(t + 1) * batch, :]
                 + jnp.dot(hs, whh, preferred_element_type=jnp.float32)
                 + bias)                              # (B, 4H)
        i = jax.nn.sigmoid(gates[:, 0 * hidden:1 * hidden])
        f = jax.nn.sigmoid(gates[:, 1 * hidden:2 * hidden])
        g = jnp.tanh(gates[:, 2 * hidden:3 * hidden])
        o = jax.nn.sigmoid(gates[:, 3 * hidden:4 * hidden])
        cs = f * cs + i * g
        hs = o * jnp.tanh(cs)

    # --- fused final Linear ---------------------------------------------------
    out_ref[...] = (jnp.dot(hs, wfc_ref[...], preferred_element_type=jnp.float32)
                    + bfc_ref[...]).astype(out_ref.dtype)


# ----------------------------------------------------------------------------
# Forward wrapper: builds the input canvas and launches the fused kernel.
# ----------------------------------------------------------------------------
def rsna_forward(x_btchw, packed):
    B, T, C, H, W = x_btchw.shape
    N = B * T
    hidden = packed["whh"].shape[0]
    nc = packed["wfc"].shape[1]
    c1 = packed["s1"].shape[1] // (W - 2)
    c2 = packed["s2"].shape[1] // (W - 4)
    c3 = packed["s3"].shape[1] // (W - 6)
    ho3, wo3 = H - 6, W - 6

    # Input canvas: rows r = h*N + (t*B + b), lanes l = w*C + c.
    xc = x_btchw.transpose(3, 1, 0, 4, 2).reshape(H * N, W * C)

    operands = (xc,
                packed["bd1"], packed["s1"], packed["h1"],
                packed["bd2"], packed["s2"], packed["h2"],
                packed["bd3"], packed["s3"], packed["h3"],
                packed["wih"], packed["whh"], packed["bl"],
                packed["wfc"], packed["bfc"])

    def full_spec(a):
        nd = a.ndim
        return pl.BlockSpec(a.shape, lambda *_: (0,) * nd)

    kern = functools.partial(_fused_kernel, n_frames=N, seq_len=T, batch=B,
                             hidden=hidden, cins=(C, c1, c2), ho3=ho3)

    return pl.pallas_call(
        kern,
        out_shape=jax.ShapeDtypeStruct((B, nc), jnp.float32),
        grid=(1,),
        in_specs=[full_spec(a) for a in operands],
        out_specs=pl.BlockSpec((B, nc), lambda *_: (0, 0)),
        scratch_shapes=[
            pltpu.VMEM(((H - 2) * N, (W - 2) * c1), jnp.float32),  # conv1 out
            pltpu.VMEM(((H - 4) * N, (W - 4) * c2), jnp.float32),  # conv2 out
            pltpu.VMEM((ho3 * N, wo3 * c3), jnp.float32),          # conv3 out
        ],
        compiler_params=pltpu.CompilerParams(
            dimension_semantics=("arbitrary",)),
    )(*operands)


# ----------------------------------------------------------------------------
# Parameter construction (deterministic, synthetic) + host-side packing.
# ----------------------------------------------------------------------------
def fold_bn(key, c):
    kg, kb, km, kv = jax.random.split(key, 4)
    gamma = 1.0 + 0.1 * jax.random.normal(kg, (c,), jnp.float32)
    beta = 0.1 * jax.random.normal(kb, (c,), jnp.float32)
    mean = 0.1 * jax.random.normal(km, (c,), jnp.float32)
    var = 0.5 + 0.5 * jnp.abs(jax.random.normal(kv, (c,), jnp.float32))
    scale = gamma * jax.lax.rsqrt(var + 1e-5)
    shift = beta - mean * scale
    return scale, shift


def init_params(key, *, cin, cout, img_hw, lstm_hidden, num_classes):
    ks = jax.random.split(key, 10)
    c1, c2, c3 = cout, cout * 2, cout * 4
    ho, wo = img_hw[0] - 6, img_hw[1] - 6
    feat = c3 * ho * wo                              # == self._to_lstm
    p = {}
    p["w1"] = 0.1 * jax.random.normal(ks[0], (3, 3, cin, c1), jnp.float32)
    p["bn1"] = fold_bn(ks[1], c1)
    p["w2"] = 0.1 * jax.random.normal(ks[2], (3, 3, c1, c2), jnp.float32)
    p["bn2"] = fold_bn(ks[3], c2)
    p["w3"] = 0.1 * jax.random.normal(ks[4], (3, 3, c2, c3), jnp.float32)
    p["bn3"] = fold_bn(ks[5], c3)
    # w_ih input features are in PyTorch C,H,W flatten order.
    p["w_ih"] = 0.05 * jax.random.normal(ks[6], (feat, 4 * lstm_hidden),
                                         jnp.float32)
    p["w_hh"] = 0.05 * jax.random.normal(ks[7], (lstm_hidden, 4 * lstm_hidden),
                                         jnp.float32)
    p["b_lstm"] = 0.05 * jax.random.normal(ks[8], (4 * lstm_hidden,),
                                           jnp.float32)   # b_ih + b_hh folded
    p["w_fc"] = 0.05 * jax.random.normal(ks[9], (lstm_hidden, num_classes),
                                         jnp.float32)
    p["b_fc"] = jnp.zeros((num_classes,), jnp.float32)
    return p


def pack_params(p, *, img_hw, lstm_hidden):
    """Re-pack natural-layout params into the kernel's canvas layout."""
    H, W = img_hw
    c3 = p["w3"].shape[-1]
    ho, wo = H - 6, W - 6

    def block_diag(w, wv):   # (3,3,Cin,Cout) -> (9, wv*Cin, wv*Cout) bf16
        eye = jnp.eye(wv, dtype=w.dtype)
        taps = [jnp.kron(eye, w[kh, kw]) for kh in range(3) for kw in range(3)]
        return jnp.stack(taps).astype(jnp.bfloat16)

    def tile_bn(bn, wv):
        sc, sh = bn
        return jnp.tile(sc, wv)[None, :], jnp.tile(sh, wv)[None, :]

    s1, h1 = tile_bn(p["bn1"], W - 2)
    s2, h2 = tile_bn(p["bn2"], W - 4)
    s3, h3 = tile_bn(p["bn3"], W - 6)
    # W_ih: (C3*Ho*Wo, 4H) in CHW order -> (Ho, Wo*C3, 4H) canvas-row form.
    wih = (p["w_ih"].reshape(c3, ho, wo, 4 * lstm_hidden)
           .transpose(1, 2, 0, 3)
           .reshape(ho, wo * c3, 4 * lstm_hidden)
           .astype(jnp.bfloat16))
    return {
        "bd1": block_diag(p["w1"], W - 2), "s1": s1, "h1": h1,
        "bd2": block_diag(p["w2"], W - 4), "s2": s2, "h2": h2,
        "bd3": block_diag(p["w3"], W - 6), "s3": s3, "h3": h3,
        "wih": wih,
        "whh": p["w_hh"],
        "bl": p["b_lstm"][None, :],
        "wfc": p["w_fc"],
        "bfc": p["b_fc"][None, :],
    }


if __name__ == "__main__":
    # Small shapes consistent with the module (args):
    batch_size = 2
    sequence_length = 3
    input_channels = 4
    output_channels = 8
    img_shape = (16, 16)
    lstm_hidden_size = 32
    num_classes = 5

    key = jax.random.PRNGKey(0)
    kx, kp = jax.random.split(key)
    x = jax.random.normal(
        kx, (batch_size, sequence_length, input_channels, *img_shape),
        jnp.float32)
    params = init_params(kp, cin=input_channels, cout=output_channels,
                         img_hw=img_shape, lstm_hidden=lstm_hidden_size,
                         num_classes=num_classes)
    packed = pack_params(params, img_hw=img_shape,
                         lstm_hidden=lstm_hidden_size)

    out = jax.jit(rsna_forward)(x, packed)
    out = jax.block_until_ready(out)
    assert out.shape == (batch_size, num_classes), out.shape
    assert bool(jnp.all(jnp.isfinite(out)))
    print("KERNEL_OK")
</pallas_src>

<mosaic_0001>
module attributes {stable_mosaic.version = 11 : i64} {
  func.func @_fused_kernel(%arg0: i32, %arg1: memref<96x64xf32, #tpu.memory_space<vmem>>, %arg2: memref<9x56x112xbf16, #tpu.memory_space<vmem>>, %arg3: memref<1x112xf32, #tpu.memory_space<vmem>>, %arg4: memref<1x112xf32, #tpu.memory_space<vmem>>, %arg5: memref<9x96x192xbf16, #tpu.memory_space<vmem>>, %arg6: memref<1x192xf32, #tpu.memory_space<vmem>>, %arg7: memref<1x192xf32, #tpu.memory_space<vmem>>, %arg8: memref<9x160x320xbf16, #tpu.memory_space<vmem>>, %arg9: memref<1x320xf32, #tpu.memory_space<vmem>>, %arg10: memref<1x320xf32, #tpu.memory_space<vmem>>, %arg11: memref<10x320x128xbf16, #tpu.memory_space<vmem>>, %arg12: memref<32x128xf32, #tpu.memory_space<vmem>>, %arg13: memref<1x128xf32, #tpu.memory_space<vmem>>, %arg14: memref<32x5xf32, #tpu.memory_space<vmem>>, %arg15: memref<1x5xf32, #tpu.memory_space<vmem>>, %arg16: memref<2x5xf32, #tpu.memory_space<vmem>>, %arg17: memref<84x112xf32, #tpu.memory_space<vmem>>, %arg18: memref<72x192xf32, #tpu.memory_space<vmem>>, %arg19: memref<60x320xf32, #tpu.memory_space<vmem>>) attributes {dimension_semantics = [#tpu.dimension_semantics<arbitrary>], iteration_bounds = array<i64: 1>, scalar_prefetch = 0 : i64, scratch_operands = 3 : i64, tpu.core_type = #tpu.core_type<tc>, window_params = [{pipeline_mode = #tpu.pipeline_mode<synchronous>, transform_indices = @transform_0, window_bounds = array<i64: 96, 64>}, {pipeline_mode = #tpu.pipeline_mode<synchronous>, transform_indices = @transform_1, window_bounds = array<i64: 9, 56, 112>}, {pipeline_mode = #tpu.pipeline_mode<synchronous>, transform_indices = @transform_2, window_bounds = array<i64: 1, 112>}, {pipeline_mode = #tpu.pipeline_mode<synchronous>, transform_indices = @transform_3, window_bounds = array<i64: 1, 112>}, {pipeline_mode = #tpu.pipeline_mode<synchronous>, transform_indices = @transform_4, window_bounds = array<i64: 9, 96, 192>}, {pipeline_mode = #tpu.pipeline_mode<synchronous>, transform_indices = @transform_5, window_bounds = array<i64: 1, 192>}, {pipeline_mode = #tpu.pipeline_mode<synchronous>, transform_indices = @transform_6, window_bounds = array<i64: 1, 192>}, {pipeline_mode = #tpu.pipeline_mode<synchronous>, transform_indices = @transform_7, window_bounds = array<i64: 9, 160, 320>}, {pipeline_mode = #tpu.pipeline_mode<synchronous>, transform_indices = @transform_8, window_bounds = array<i64: 1, 320>}, {pipeline_mode = #tpu.pipeline_mode<synchronous>, transform_indices = @transform_9, window_bounds = array<i64: 1, 320>}, {pipeline_mode = #tpu.pipeline_mode<synchronous>, transform_indices = @transform_10, window_bounds = array<i64: 10, 320, 128>}, {pipeline_mode = #tpu.pipeline_mode<synchronous>, transform_indices = @transform_11, window_bounds = array<i64: 32, 128>}, {pipeline_mode = #tpu.pipeline_mode<synchronous>, transform_indices = @transform_12, window_bounds = array<i64: 1, 128>}, {pipeline_mode = #tpu.pipeline_mode<synchronous>, transform_indices = @transform_13, window_bounds = array<i64: 32, 5>}, {pipeline_mode = #tpu.pipeline_mode<synchronous>, transform_indices = @transform_14, window_bounds = array<i64: 1, 5>}, {pipeline_mode = #tpu.pipeline_mode<synchronous>, transform_indices = @transform_15, window_bounds = array<i64: 2, 5>}]} {
    %c0 = arith.constant 0 : index
    %c0_0 = arith.constant 0 : index
    %0 = vector.load %arg1[%c0, %c0_0] : memref<96x64xf32, #tpu.memory_space<vmem>>, vector<84x56xf32>
    %1 = arith.truncf %0 : vector<84x56xf32> to vector<84x56xbf16>
    %c0_1 = arith.constant 0 : index
    %c0_2 = arith.constant 0 : index
    %c0_3 = arith.constant 0 : index
    %2 = vector.load %arg2[%c0_1, %c0_2, %c0_3] : memref<9x56x112xbf16, #tpu.memory_space<vmem>>, vector<1x56x112xbf16>
    %3 = vector.shape_cast %2 : vector<1x56x112xbf16> to vector<56x112xbf16>
    %cst = arith.constant dense<0.000000e+00> : vector<84x112xf32>
    %4 = tpu.matmul %1, %3, %cst {dimension_numbers = #tpu.dot_dimension_numbers<[1], [0], [0], [1], [0, 0, 1, 1], [], []>} : vector<84x56xbf16>, vector<56x112xbf16>, vector<84x112xf32> -> vector<84x112xf32>
    %c0_4 = arith.constant 0 : index
    %c4 = arith.constant 4 : index
    %5 = vector.load %arg1[%c0_4, %c4] : memref<96x64xf32, #tpu.memory_space<vmem>>, vector<84x56xf32>
    %6 = arith.truncf %5 : vector<84x56xf32> to vector<84x56xbf16>
    %c1 = arith.constant 1 : index
    %c0_5 = arith.constant 0 : index
    %c0_6 = arith.constant 0 : index
    %7 = vector.load %arg2[%c1, %c0_5, %c0_6] : memref<9x56x112xbf16, #tpu.memory_space<vmem>>, vector<1x56x112xbf16>
    %8 = vector.shape_cast %7 : vector<1x56x112xbf16> to vector<56x112xbf16>
    %cst_7 = arith.constant dense<0.000000e+00> : vector<84x112xf32>
    %9 = tpu.matmul %6, %8, %cst_7 {dimension_numbers = #tpu.dot_dimension_numbers<[1], [0], [0], [1], [0, 0, 1, 1], [], []>} : vector<84x56xbf16>, vector<56x112xbf16>, vector<84x112xf32> -> vector<84x112xf32>
    %10 = arith.addf %4, %9 : vector<84x112xf32>
    %c0_8 = arith.constant 0 : index
    %c8 = arith.constant 8 : index
    %11 = vector.load %arg1[%c0_8, %c8] : memref<96x64xf32, #tpu.memory_space<vmem>>, vector<84x56xf32>
    %12 = arith.truncf %11 : vector<84x56xf32> to vector<84x56xbf16>
    %c2 = arith.constant 2 : index
    %c0_9 = arith.constant 0 : index
    %c0_10 = arith.constant 0 : index
    %13 = vector.load %arg2[%c2, %c0_9, %c0_10] : memref<9x56x112xbf16, #tpu.memory_space<vmem>>, vector<1x56x112xbf16>
    %14 = vector.shape_cast %13 : vector<1x56x112xbf16> to vector<56x112xbf16>
    %cst_11 = arith.constant dense<0.000000e+00> : vector<84x112xf32>
    %15 = tpu.matmul %12, %14, %cst_11 {dimension_numbers = #tpu.dot_dimension_numbers<[1], [0], [0], [1], [0, 0, 1, 1], [], []>} : vector<84x56xbf16>, vector<56x112xbf16>, vector<84x112xf32> -> vector<84x112xf32>
    %16 = arith.addf %10, %15 : vector<84x112xf32>
    %c6 = arith.constant 6 : index
    %c0_12 = arith.constant 0 : index
    %17 = vector.load %arg1[%c6, %c0_12] : memref<96x64xf32, #tpu.memory_space<vmem>>, vector<84x56xf32>
    %18 = arith.truncf %17 : vector<84x56xf32> to vector<84x56xbf16>
    %c3 = arith.constant 3 : index
    %c0_13 = arith.constant 0 : index
    %c0_14 = arith.constant 0 : index
    %19 = vector.load %arg2[%c3, %c0_13, %c0_14] : memref<9x56x112xbf16, #tpu.memory_space<vmem>>, vector<1x56x112xbf16>
    %20 = vector.shape_cast %19 : vector<1x56x112xbf16> to vector<56x112xbf16>
    %cst_15 = arith.constant dense<0.000000e+00> : vector<84x112xf32>
    %21 = tpu.matmul %18, %20, %cst_15 {dimension_numbers = #tpu.dot_dimension_numbers<[1], [0], [0], [1], [0, 0, 1, 1], [], []>} : vector<84x56xbf16>, vector<56x112xbf16>, vector<84x112xf32> -> vector<84x112xf32>
    %22 = arith.addf %16, %21 : vector<84x112xf32>
    %c6_16 = arith.constant 6 : index
    %c4_17 = arith.constant 4 : index
    %23 = vector.load %arg1[%c6_16, %c4_17] : memref<96x64xf32, #tpu.memory_space<vmem>>, vector<84x56xf32>
    %24 = arith.truncf %23 : vector<84x56xf32> to vector<84x56xbf16>
    %c4_18 = arith.constant 4 : index
    %c0_19 = arith.constant 0 : index
    %c0_20 = arith.constant 0 : index
    %25 = vector.load %arg2[%c4_18, %c0_19, %c0_20] : memref<9x56x112xbf16, #tpu.memory_space<vmem>>, vector<1x56x112xbf16>
    %26 = vector.shape_cast %25 : vector<1x56x112xbf16> to vector<56x112xbf16>
    %cst_21 = arith.constant dense<0.000000e+00> : vector<84x112xf32>
    %27 = tpu.matmul %24, %26, %cst_21 {dimension_numbers = #tpu.dot_dimension_numbers<[1], [0], [0], [1], [0, 0, 1, 1], [], []>} : vector<84x56xbf16>, vector<56x112xbf16>, vector<84x112xf32> -> vector<84x112xf32>
    %28 = arith.addf %22, %27 : vector<84x112xf32>
    %c6_22 = arith.constant 6 : index
    %c8_23 = arith.constant 8 : index
    %29 = vector.load %arg1[%c6_22, %c8_23] : memref<96x64xf32, #tpu.memory_space<vmem>>, vector<84x56xf32>
    %30 = arith.truncf %29 : vector<84x56xf32> to vector<84x56xbf16>
    %c5 = arith.constant 5 : index
    %c0_24 = arith.constant 0 : index
    %c0_25 = arith.constant 0 : index
    %31 = vector.load %arg2[%c5, %c0_24, %c0_25] : memref<9x56x112xbf16, #tpu.memory_space<vmem>>, vector<1x56x112xbf16>
    %32 = vector.shape_cast %31 : vector<1x56x112xbf16> to vector<56x112xbf16>
    %cst_26 = arith.constant dense<0.000000e+00> : vector<84x112xf32>
    %33 = tpu.matmul %30, %32, %cst_26 {dimension_numbers = #tpu.dot_dimension_numbers<[1], [0], [0], [1], [0, 0, 1, 1], [], []>} : vector<84x56xbf16>, vector<56x112xbf16>, vector<84x112xf32> -> vector<84x112xf32>
    %34 = arith.addf %28, %33 : vector<84x112xf32>
    %c12 = arith.constant 12 : index
    %c0_27 = arith.constant 0 : index
    %35 = vector.load %arg1[%c12, %c0_27] : memref<96x64xf32, #tpu.memory_space<vmem>>, vector<84x56xf32>
    %36 = arith.truncf %35 : vector<84x56xf32> to vector<84x56xbf16>
    %c6_28 = arith.constant 6 : index
    %c0_29 = arith.constant 0 : index
    %c0_30 = arith.constant 0 : index
    %37 = vector.load %arg2[%c6_28, %c0_29, %c0_30] : memref<9x56x112xbf16, #tpu.memory_space<vmem>>, vector<1x56x112xbf16>
    %38 = vector.shape_cast %37 : vector<1x56x112xbf16> to vector<56x112xbf16>
    %cst_31 = arith.constant dense<0.000000e+00> : vector<84x112xf32>
    %39 = tpu.matmul %36, %38, %cst_31 {dimension_numbers = #tpu.dot_dimension_numbers<[1], [0], [0], [1], [0, 0, 1, 1], [], []>} : vector<84x56xbf16>, vector<56x112xbf16>, vector<84x112xf32> -> vector<84x112xf32>
    %40 = arith.addf %34, %39 : vector<84x112xf32>
    %c12_32 = arith.constant 12 : index
    %c4_33 = arith.constant 4 : index
    %41 = vector.load %arg1[%c12_32, %c4_33] : memref<96x64xf32, #tpu.memory_space<vmem>>, vector<84x56xf32>
    %42 = arith.truncf %41 : vector<84x56xf32> to vector<84x56xbf16>
    %c7 = arith.constant 7 : index
    %c0_34 = arith.constant 0 : index
    %c0_35 = arith.constant 0 : index
    %43 = vector.load %arg2[%c7, %c0_34, %c0_35] : memref<9x56x112xbf16, #tpu.memory_space<vmem>>, vector<1x56x112xbf16>
    %44 = vector.shape_cast %43 : vector<1x56x112xbf16> to vector<56x112xbf16>
    %cst_36 = arith.constant dense<0.000000e+00> : vector<84x112xf32>
    %45 = tpu.matmul %42, %44, %cst_36 {dimension_numbers = #tpu.dot_dimension_numbers<[1], [0], [0], [1], [0, 0, 1, 1], [], []>} : vector<84x56xbf16>, vector<56x112xbf16>, vector<84x112xf32> -> vector<84x112xf32>
    %46 = arith.addf %40, %45 : vector<84x112xf32>
    %c12_37 = arith.constant 12 : index
    %c8_38 = arith.constant 8 : index
    %47 = vector.load %arg1[%c12_37, %c8_38] : memref<96x64xf32, #tpu.memory_space<vmem>>, vector<84x56xf32>
    %48 = arith.truncf %47 : vector<84x56xf32> to vector<84x56xbf16>
    %c8_39 = arith.constant 8 : index
    %c0_40 = arith.constant 0 : index
    %c0_41 = arith.constant 0 : index
    %49 = vector.load %arg2[%c8_39, %c0_40, %c0_41] : memref<9x56x112xbf16, #tpu.memory_space<vmem>>, vector<1x56x112xbf16>
    %50 = vector.shape_cast %49 : vector<1x56x112xbf16> to vector<56x112xbf16>
    %cst_42 = arith.constant dense<0.000000e+00> : vector<84x112xf32>
    %51 = tpu.matmul %48, %50, %cst_42 {dimension_numbers = #tpu.dot_dimension_numbers<[1], [0], [0], [1], [0, 0, 1, 1], [], []>} : vector<84x56xbf16>, vector<56x112xbf16>, vector<84x112xf32> -> vector<84x112xf32>
    %52 = arith.addf %46, %51 : vector<84x112xf32>
    %c0_43 = arith.constant 0 : index
    %c0_44 = arith.constant 0 : index
    %53 = vector.load %arg3[%c0_43, %c0_44] : memref<1x112xf32, #tpu.memory_space<vmem>>, vector<1x112xf32>
    %54 = vector.broadcast %53 : vector<1x112xf32> to vector<84x112xf32>
    %55 = arith.mulf %52, %54 : vector<84x112xf32>
    %c0_45 = arith.constant 0 : index
    %c0_46 = arith.constant 0 : index
    %56 = vector.load %arg4[%c0_45, %c0_46] : memref<1x112xf32, #tpu.memory_space<vmem>>, vector<1x112xf32>
    %57 = vector.broadcast %56 : vector<1x112xf32> to vector<84x112xf32>
    %58 = arith.addf %55, %57 : vector<84x112xf32>
    %cst_47 = arith.constant 0.000000e+00 : f32
    %59 = vector.broadcast %cst_47 : f32 to vector<84x112xf32>
    %60 = arith.maximumf %58, %59 : vector<84x112xf32>
    %c0_48 = arith.constant 0 : index
    %c0_49 = arith.constant 0 : index
    %61 = vector.load %arg17[%c0_48, %c0_49] : memref<84x112xf32, #tpu.memory_space<vmem>>, vector<84x112xf32>
    tpu.vector_store %arg17[%c0_48, %c0_49], %60 {strides = array<i32>} : memref<84x112xf32, #tpu.memory_space<vmem>>, vector<84x112xf32>,
    %c0_50 = arith.constant 0 : index
    %c0_51 = arith.constant 0 : index
    %62 = vector.load %arg17[%c0_50, %c0_51] : memref<84x112xf32, #tpu.memory_space<vmem>>, vector<72x96xf32>
    %63 = arith.truncf %62 : vector<72x96xf32> to vector<72x96xbf16>
    %c0_52 = arith.constant 0 : index
    %c0_53 = arith.constant 0 : index
    %c0_54 = arith.constant 0 : index
    %64 = vector.load %arg5[%c0_52, %c0_53, %c0_54] : memref<9x96x192xbf16, #tpu.memory_space<vmem>>, vector<1x96x192xbf16>
    %65 = vector.shape_cast %64 : vector<1x96x192xbf16> to vector<96x192xbf16>
    %cst_55 = arith.constant dense<0.000000e+00> : vector<72x192xf32>
    %66 = tpu.matmul %63, %65, %cst_55 {dimension_numbers = #tpu.dot_dimension_numbers<[1], [0], [0], [1], [0, 0, 1, 1], [], []>} : vector<72x96xbf16>, vector<96x192xbf16>, vector<72x192xf32> -> vector<72x192xf32>
    %c0_56 = arith.constant 0 : index
    %c8_57 = arith.constant 8 : index
    %67 = vector.load %arg17[%c0_56, %c8_57] : memref<84x112xf32, #tpu.memory_space<vmem>>, vector<72x96xf32>
    %68 = arith.truncf %67 : vector<72x96xf32> to vector<72x96xbf16>
    %c1_58 = arith.constant 1 : index
    %c0_59 = arith.constant 0 : index
    %c0_60 = arith.constant 0 : index
    %69 = vector.load %arg5[%c1_58, %c0_59, %c0_60] : memref<9x96x192xbf16, #tpu.memory_space<vmem>>, vector<1x96x192xbf16>
    %70 = vector.shape_cast %69 : vector<1x96x192xbf16> to vector<96x192xbf16>
    %cst_61 = arith.constant dense<0.000000e+00> : vector<72x192xf32>
    %71 = tpu.matmul %68, %70, %cst_61 {dimension_numbers = #tpu.dot_dimension_numbers<[1], [0], [0], [1], [0, 0, 1, 1], [], []>} : vector<72x96xbf16>, vector<96x192xbf16>, vector<72x192xf32> -> vector<72x192xf32>
    %72 = arith.addf %66, %71 : vector<72x192xf32>
    %c0_62 = arith.constant 0 : index
    %c16 = arith.constant 16 : index
    %73 = vector.load %arg17[%c0_62, %c16] : memref<84x112xf32, #tpu.memory_space<vmem>>, vector<72x96xf32>
    %74 = arith.truncf %73 : vector<72x96xf32> to vector<72x96xbf16>
    %c2_63 = arith.constant 2 : index
    %c0_64 = arith.constant 0 : index
    %c0_65 = arith.constant 0 : index
    %75 = vector.load %arg5[%c2_63, %c0_64, %c0_65] : memref<9x96x192xbf16, #tpu.memory_space<vmem>>, vector<1x96x192xbf16>
    %76 = vector.shape_cast %75 : vector<1x96x192xbf16> to vector<96x192xbf16>
    %cst_66 = arith.constant dense<0.000000e+00> : vector<72x192xf32>
    %77 = tpu.matmul %74, %76, %cst_66 {dimension_numbers = #tpu.dot_dimension_numbers<[1], [0], [0], [1], [0, 0, 1, 1], [], []>} : vector<72x96xbf16>, vector<96x192xbf16>, vector<72x192xf32> -> vector<72x192xf32>
    %78 = arith.addf %72, %77 : vector<72x192xf32>
    %c6_67 = arith.constant 6 : index
    %c0_68 = arith.constant 0 : index
    %79 = vector.load %arg17[%c6_67, %c0_68] : memref<84x112xf32, #tpu.memory_space<vmem>>, vector<72x96xf32>
    %80 = arith.truncf %79 : vector<72x96xf32> to vector<72x96xbf16>
    %c3_69 = arith.constant 3 : index
    %c0_70 = arith.constant 0 : index
    %c0_71 = arith.constant 0 : index
    %81 = vector.load %arg5[%c3_69, %c0_70, %c0_71] : memref<9x96x192xbf16, #tpu.memory_space<vmem>>, vector<1x96x192xbf16>
    %82 = vector.shape_cast %81 : vector<1x96x192xbf16> to vector<96x192xbf16>
    %cst_72 = arith.constant dense<0.000000e+00> : vector<72x192xf32>
    %83 = tpu.matmul %80, %82, %cst_72 {dimension_numbers = #tpu.dot_dimension_numbers<[1], [0], [0], [1], [0, 0, 1, 1], [], []>} : vector<72x96xbf16>, vector<96x192xbf16>, vector<72x192xf32> -> vector<72x192xf32>
    %84 = arith.addf %78, %83 : vector<72x192xf32>
    %c6_73 = arith.constant 6 : index
    %c8_74 = arith.constant 8 : index
    %85 = vector.load %arg17[%c6_73, %c8_74] : memref<84x112xf32, #tpu.memory_space<vmem>>, vector<72x96xf32>
    %86 = arith.truncf %85 : vector<72x96xf32> to vector<72x96xbf16>
    %c4_75 = arith.constant 4 : index
    %c0_76 = arith.constant 0 : index
    %c0_77 = arith.constant 0 : index
    %87 = vector.load %arg5[%c4_75, %c0_76, %c0_77] : memref<9x96x192xbf16, #tpu.memory_space<vmem>>, vector<1x96x192xbf16>
    %88 = vector.shape_cast %87 : vector<1x96x192xbf16> to vector<96x192xbf16>
    %cst_78 = arith.constant dense<0.000000e+00> : vector<72x192xf32>
    %89 = tpu.matmul %86, %88, %cst_78 {dimension_numbers = #tpu.dot_dimension_numbers<[1], [0], [0], [1], [0, 0, 1, 1], [], []>} : vector<72x96xbf16>, vector<96x192xbf16>, vector<72x192xf32> -> vector<72x192xf32>
    %90 = arith.addf %84, %89 : vector<72x192xf32>
    %c6_79 = arith.constant 6 : index
    %c16_80 = arith.constant 16 : index
    %91 = vector.load %arg17[%c6_79, %c16_80] : memref<84x112xf32, #tpu.memory_space<vmem>>, vector<72x96xf32>
    %92 = arith.truncf %91 : vector<72x96xf32> to vector<72x96xbf16>
    %c5_81 = arith.constant 5 : index
    %c0_82 = arith.constant 0 : index
    %c0_83 = arith.constant 0 : index
    %93 = vector.load %arg5[%c5_81, %c0_82, %c0_83] : memref<9x96x192xbf16, #tpu.memory_space<vmem>>, vector<1x96x192xbf16>
    %94 = vector.shape_cast %93 : vector<1x96x192xbf16> to vector<96x192xbf16>
    %cst_84 = arith.constant dense<0.000000e+00> : vector<72x192xf32>
    %95 = tpu.matmul %92, %94, %cst_84 {dimension_numbers = #tpu.dot_dimension_numbers<[1], [0], [0], [1], [0, 0, 1, 1], [], []>} : vector<72x96xbf16>, vector<96x192xbf16>, vector<72x192xf32> -> vector<72x192xf32>
    %96 = arith.addf %90, %95 : vector<72x192xf32>
    %c12_85 = arith.constant 12 : index
    %c0_86 = arith.constant 0 : index
    %97 = vector.load %arg17[%c12_85, %c0_86] : memref<84x112xf32, #tpu.memory_space<vmem>>, vector<72x96xf32>
    %98 = arith.truncf %97 : vector<72x96xf32> to vector<72x96xbf16>
    %c6_87 = arith.constant 6 : index
    %c0_88 = arith.constant 0 : index
    %c0_89 = arith.constant 0 : index
    %99 = vector.load %arg5[%c6_87, %c0_88, %c0_89] : memref<9x96x192xbf16, #tpu.memory_space<vmem>>, vector<1x96x192xbf16>
    %100 = vector.shape_cast %99 : vector<1x96x192xbf16> to vector<96x192xbf16>
    %cst_90 = arith.constant dense<0.000000e+00> : vector<72x192xf32>
    %101 = tpu.matmul %98, %100, %cst_90 {dimension_numbers = #tpu.dot_dimension_numbers<[1], [0], [0], [1], [0, 0, 1, 1], [], []>} : vector<72x96xbf16>, vector<96x192xbf16>, vector<72x192xf32> -> vector<72x192xf32>
    %102 = arith.addf %96, %101 : vector<72x192xf32>
    %c12_91 = arith.constant 12 : index
    %c8_92 = arith.constant 8 : index
    %103 = vector.load %arg17[%c12_91, %c8_92] : memref<84x112xf32, #tpu.memory_space<vmem>>, vector<72x96xf32>
    %104 = arith.truncf %103 : vector<72x96xf32> to vector<72x96xbf16>
    %c7_93 = arith.constant 7 : index
    %c0_94 = arith.constant 0 : index
    %c0_95 = arith.constant 0 : index
    %105 = vector.load %arg5[%c7_93, %c0_94, %c0_95] : memref<9x96x192xbf16, #tpu.memory_space<vmem>>, vector<1x96x192xbf16>
    %106 = vector.shape_cast %105 : vector<1x96x192xbf16> to vector<96x192xbf16>
    %cst_96 = arith.constant dense<0.000000e+00> : vector<72x192xf32>
    %107 = tpu.matmul %104, %106, %cst_96 {dimension_numbers = #tpu.dot_dimension_numbers<[1], [0], [0], [1], [0, 0, 1, 1], [], []>} : vector<72x96xbf16>, vector<96x192xbf16>, vector<72x192xf32> -> vector<72x192xf32>
    %108 = arith.addf %102, %107 : vector<72x192xf32>
    %c12_97 = arith.constant 12 : index
    %c16_98 = arith.constant 16 : index
    %109 = vector.load %arg17[%c12_97, %c16_98] : memref<84x112xf32, #tpu.memory_space<vmem>>, vector<72x96xf32>
    %110 = arith.truncf %109 : vector<72x96xf32> to vector<72x96xbf16>
    %c8_99 = arith.constant 8 : index
    %c0_100 = arith.constant 0 : index
    %c0_101 = arith.constant 0 : index
    %111 = vector.load %arg5[%c8_99, %c0_100, %c0_101] : memref<9x96x192xbf16, #tpu.memory_space<vmem>>, vector<1x96x192xbf16>
    %112 = vector.shape_cast %111 : vector<1x96x192xbf16> to vector<96x192xbf16>
    %cst_102 = arith.constant dense<0.000000e+00> : vector<72x192xf32>
    %113 = tpu.matmul %110, %112, %cst_102 {dimension_numbers = #tpu.dot_dimension_numbers<[1], [0], [0], [1], [0, 0, 1, 1], [], []>} : vector<72x96xbf16>, vector<96x192xbf16>, vector<72x192xf32> -> vector<72x192xf32>
    %114 = arith.addf %108, %113 : vector<72x192xf32>
    %c0_103 = arith.constant 0 : index
    %c0_104 = arith.constant 0 : index
    %115 = vector.load %arg6[%c0_103, %c0_104] : memref<1x192xf32, #tpu.memory_space<vmem>>, vector<1x192xf32>
    %116 = vector.broadcast %115 : vector<1x192xf32> to vector<72x192xf32>
    %117 = arith.mulf %114, %116 : vector<72x192xf32>
    %c0_105 = arith.constant 0 : index
    %c0_106 = arith.constant 0 : index
    %118 = vector.load %arg7[%c0_105, %c0_106] : memref<1x192xf32, #tpu.memory_space<vmem>>, vector<1x192xf32>
    %119 = vector.broadcast %118 : vector<1x192xf32> to vector<72x192xf32>
    %120 = arith.addf %117, %119 : vector<72x192xf32>
    %cst_107 = arith.constant 0.000000e+00 : f32
    %121 = vector.broadcast %cst_107 : f32 to vector<72x192xf32>
    %122 = arith.maximumf %120, %121 : vector<72x192xf32>
    %c0_108 = arith.constant 0 : index
    %c0_109 = arith.constant 0 : index
    %123 = vector.load %arg18[%c0_108, %c0_109] : memref<72x192xf32, #tpu.memory_space<vmem>>, vector<72x192xf32>
    tpu.vector_store %arg18[%c0_108, %c0_109], %122 {strides = array<i32>} : memref<72x192xf32, #tpu.memory_space<vmem>>, vector<72x192xf32>,
    %c0_110 = arith.constant 0 : index
    %c0_111 = arith.constant 0 : index
    %124 = vector.load %arg18[%c0_110, %c0_111] : memref<72x192xf32, #tpu.memory_space<vmem>>, vector<60x160xf32>
    %125 = arith.truncf %124 : vector<60x160xf32> to vector<60x160xbf16>
    %c0_112 = arith.constant 0 : index
    %c0_113 = arith.constant 0 : index
    %c0_114 = arith.constant 0 : index
    %126 = vector.load %arg8[%c0_112, %c0_113, %c0_114] : memref<9x160x320xbf16, #tpu.memory_space<vmem>>, vector<1x160x320xbf16>
    %127 = vector.shape_cast %126 : vector<1x160x320xbf16> to vector<160x320xbf16>
    %cst_115 = arith.constant dense<0.000000e+00> : vector<60x320xf32>
    %128 = tpu.matmul %125, %127, %cst_115 {dimension_numbers = #tpu.dot_dimension_numbers<[1], [0], [0], [1], [0, 0, 1, 1], [], []>} : vector<60x160xbf16>, vector<160x320xbf16>, vector<60x320xf32> -> vector<60x320xf32>
    %c0_116 = arith.constant 0 : index
    %c16_117 = arith.constant 16 : index
    %129 = vector.load %arg18[%c0_116, %c16_117] : memref<72x192xf32, #tpu.memory_space<vmem>>, vector<60x160xf32>
    %130 = arith.truncf %129 : vector<60x160xf32> to vector<60x160xbf16>
    %c1_118 = arith.constant 1 : index
    %c0_119 = arith.constant 0 : index
    %c0_120 = arith.constant 0 : index
    %131 = vector.load %arg8[%c1_118, %c0_119, %c0_120] : memref<9x160x320xbf16, #tpu.memory_space<vmem>>, vector<1x160x320xbf16>
    %132 = vector.shape_cast %131 : vector<1x160x320xbf16> to vector<160x320xbf16>
    %cst_121 = arith.constant dense<0.000000e+00> : vector<60x320xf32>
    %133 = tpu.matmul %130, %132, %cst_121 {dimension_numbers = #tpu.dot_dimension_numbers<[1], [0], [0], [1], [0, 0, 1, 1], [], []>} : vector<60x160xbf16>, vector<160x320xbf16>, vector<60x320xf32> -> vector<60x320xf32>
    %134 = arith.addf %128, %133 : vector<60x320xf32>
    %c0_122 = arith.constant 0 : index
    %c32 = arith.constant 32 : index
    %135 = vector.load %arg18[%c0_122, %c32] : memref<72x192xf32, #tpu.memory_space<vmem>>, vector<60x160xf32>
    %136 = arith.truncf %135 : vector<60x160xf32> to vector<60x160xbf16>
    %c2_123 = arith.constant 2 : index
    %c0_124 = arith.constant 0 : index
    %c0_125 = arith.constant 0 : index
    %137 = vector.load %arg8[%c2_123, %c0_124, %c0_125] : memref<9x160x320xbf16, #tpu.memory_space<vmem>>, vector<1x160x320xbf16>
    %138 = vector.shape_cast %137 : vector<1x160x320xbf16> to vector<160x320xbf16>
    %cst_126 = arith.constant dense<0.000000e+00> : vector<60x320xf32>
    %139 = tpu.matmul %136, %138, %cst_126 {dimension_numbers = #tpu.dot_dimension_numbers<[1], [0], [0], [1], [0, 0, 1, 1], [], []>} : vector<60x160xbf16>, vector<160x320xbf16>, vector<60x320xf32> -> vector<60x320xf32>
    %140 = arith.addf %134, %139 : vector<60x320xf32>
    %c6_127 = arith.constant 6 : index
    %c0_128 = arith.constant 0 : index
    %141 = vector.load %arg18[%c6_127, %c0_128] : memref<72x192xf32, #tpu.memory_space<vmem>>, vector<60x160xf32>
    %142 = arith.truncf %141 : vector<60x160xf32> to vector<60x160xbf16>
    %c3_129 = arith.constant 3 : index
    %c0_130 = arith.constant 0 : index
    %c0_131 = arith.constant 0 : index
    %143 = vector.load %arg8[%c3_129, %c0_130, %c0_131] : memref<9x160x320xbf16, #tpu.memory_space<vmem>>, vector<1x160x320xbf16>
    %144 = vector.shape_cast %143 : vector<1x160x320xbf16> to vector<160x320xbf16>
    %cst_132 = arith.constant dense<0.000000e+00> : vector<60x320xf32>
    %145 = tpu.matmul %142, %144, %cst_132 {dimension_numbers = #tpu.dot_dimension_numbers<[1], [0], [0], [1], [0, 0, 1, 1], [], []>} : vector<60x160xbf16>, vector<160x320xbf16>, vector<60x320xf32> -> vector<60x320xf32>
    %146 = arith.addf %140, %145 : vector<60x320xf32>
    %c6_133 = arith.constant 6 : index
    %c16_134 = arith.constant 16 : index
    %147 = vector.load %arg18[%c6_133, %c16_134] : memref<72x192xf32, #tpu.memory_space<vmem>>, vector<60x160xf32>
    %148 = arith.truncf %147 : vector<60x160xf32> to vector<60x160xbf16>
    %c4_135 = arith.constant 4 : index
    %c0_136 = arith.constant 0 : index
    %c0_137 = arith.constant 0 : index
    %149 = vector.load %arg8[%c4_135, %c0_136, %c0_137] : memref<9x160x320xbf16, #tpu.memory_space<vmem>>, vector<1x160x320xbf16>
    %150 = vector.shape_cast %149 : vector<1x160x320xbf16> to vector<160x320xbf16>
    %cst_138 = arith.constant dense<0.000000e+00> : vector<60x320xf32>
    %151 = tpu.matmul %148, %150, %cst_138 {dimension_numbers = #tpu.dot_dimension_numbers<[1], [0], [0], [1], [0, 0, 1, 1], [], []>} : vector<60x160xbf16>, vector<160x320xbf16>, vector<60x320xf32> -> vector<60x320xf32>
    %152 = arith.addf %146, %151 : vector<60x320xf32>
    %c6_139 = arith.constant 6 : index
    %c32_140 = arith.constant 32 : index
    %153 = vector.load %arg18[%c6_139, %c32_140] : memref<72x192xf32, #tpu.memory_space<vmem>>, vector<60x160xf32>
    %154 = arith.truncf %153 : vector<60x160xf32> to vector<60x160xbf16>
    %c5_141 = arith.constant 5 : index
    %c0_142 = arith.constant 0 : index
    %c0_143 = arith.constant 0 : index
    %155 = vector.load %arg8[%c5_141, %c0_142, %c0_143] : memref<9x160x320xbf16, #tpu.memory_space<vmem>>, vector<1x160x320xbf16>
    %156 = vector.shape_cast %155 : vector<1x160x320xbf16> to vector<160x320xbf16>
    %cst_144 = arith.constant dense<0.000000e+00> : vector<60x320xf32>
    %157 = tpu.matmul %154, %156, %cst_144 {dimension_numbers = #tpu.dot_dimension_numbers<[1], [0], [0], [1], [0, 0, 1, 1], [], []>} : vector<60x160xbf16>, vector<160x320xbf16>, vector<60x320xf32> -> vector<60x320xf32>
    %158 = arith.addf %152, %157 : vector<60x320xf32>
    %c12_145 = arith.constant 12 : index
    %c0_146 = arith.constant 0 : index
    %159 = vector.load %arg18[%c12_145, %c0_146] : memref<72x192xf32, #tpu.memory_space<vmem>>, vector<60x160xf32>
    %160 = arith.truncf %159 : vector<60x160xf32> to vector<60x160xbf16>
    %c6_147 = arith.constant 6 : index
    %c0_148 = arith.constant 0 : index
    %c0_149 = arith.constant 0 : index
    %161 = vector.load %arg8[%c6_147, %c0_148, %c0_149] : memref<9x160x320xbf16, #tpu.memory_space<vmem>>, vector<1x160x320xbf16>
    %162 = vector.shape_cast %161 : vector<1x160x320xbf16> to vector<160x320xbf16>
    %cst_150 = arith.constant dense<0.000000e+00> : vector<60x320xf32>
    %163 = tpu.matmul %160, %162, %cst_150 {dimension_numbers = #tpu.dot_dimension_numbers<[1], [0], [0], [1], [0, 0, 1, 1], [], []>} : vector<60x160xbf16>, vector<160x320xbf16>, vector<60x320xf32> -> vector<60x320xf32>
    %164 = arith.addf %158, %163 : vector<60x320xf32>
    %c12_151 = arith.constant 12 : index
    %c16_152 = arith.constant 16 : index
    %165 = vector.load %arg18[%c12_151, %c16_152] : memref<72x192xf32, #tpu.memory_space<vmem>>, vector<60x160xf32>
    %166 = arith.truncf %165 : vector<60x160xf32> to vector<60x160xbf16>
    %c7_153 = arith.constant 7 : index
    %c0_154 = arith.constant 0 : index
    %c0_155 = arith.constant 0 : index
    %167 = vector.load %arg8[%c7_153, %c0_154, %c0_155] : memref<9x160x320xbf16, #tpu.memory_space<vmem>>, vector<1x160x320xbf16>
    %168 = vector.shape_cast %167 : vector<1x160x320xbf16> to vector<160x320xbf16>
    %cst_156 = arith.constant dense<0.000000e+00> : vector<60x320xf32>
    %169 = tpu.matmul %166, %168, %cst_156 {dimension_numbers = #tpu.dot_dimension_numbers<[1], [0], [0], [1], [0, 0, 1, 1], [], []>} : vector<60x160xbf16>, vector<160x320xbf16>, vector<60x320xf32> -> vector<60x320xf32>
    %170 = arith.addf %164, %169 : vector<60x320xf32>
    %c12_157 = arith.constant 12 : index
    %c32_158 = arith.constant 32 : index
    %171 = vector.load %arg18[%c12_157, %c32_158] : memref<72x192xf32, #tpu.memory_space<vmem>>, vector<60x160xf32>
    %172 = arith.truncf %171 : vector<60x160xf32> to vector<60x160xbf16>
    %c8_159 = arith.constant 8 : index
    %c0_160 = arith.constant 0 : index
    %c0_161 = arith.constant 0 : index
    %173 = vector.load %arg8[%c8_159, %c0_160, %c0_161] : memref<9x160x320xbf16, #tpu.memory_space<vmem>>, vector<1x160x320xbf16>
    %174 = vector.shape_cast %173 : vector<1x160x320xbf16> to vector<160x320xbf16>
    %cst_162 = arith.constant dense<0.000000e+00> : vector<60x320xf32>
    %175 = tpu.matmul %172, %174, %cst_162 {dimension_numbers = #tpu.dot_dimension_numbers<[1], [0], [0], [1], [0, 0, 1, 1], [], []>} : vector<60x160xbf16>, vector<160x320xbf16>, vector<60x320xf32> -> vector<60x320xf32>
    %176 = arith.addf %170, %175 : vector<60x320xf32>
    %c0_163 = arith.constant 0 : index
    %c0_164 = arith.constant 0 : index
    %177 = vector.load %arg9[%c0_163, %c0_164] : memref<1x320xf32, #tpu.memory_space<vmem>>, vector<1x320xf32>
    %178 = vector.broadcast %177 : vector<1x320xf32> to vector<60x320xf32>
    %179 = arith.mulf %176, %178 : vector<60x320xf32>
    %c0_165 = arith.constant 0 : index
    %c0_166 = arith.constant 0 : index
    %180 = vector.load %arg10[%c0_165, %c0_166] : memref<1x320xf32, #tpu.memory_space<vmem>>, vector<1x320xf32>
    %181 = vector.broadcast %180 : vector<1x320xf32> to vector<60x320xf32>
    %182 = arith.addf %179, %181 : vector<60x320xf32>
    %c0_167 = arith.constant 0 : index
    %c0_168 = arith.constant 0 : index
    %183 = vector.load %arg19[%c0_167, %c0_168] : memref<60x320xf32, #tpu.memory_space<vmem>>, vector<60x320xf32>
    tpu.vector_store %arg19[%c0_167, %c0_168], %182 {strides = array<i32>} : memref<60x320xf32, #tpu.memory_space<vmem>>, vector<60x320xf32>,
    %c0_169 = arith.constant 0 : index
    %c0_170 = arith.constant 0 : index
    %184 = vector.load %arg19[%c0_169, %c0_170] : memref<60x320xf32, #tpu.memory_space<vmem>>, vector<6x320xf32>
    %185 = arith.truncf %184 : vector<6x320xf32> to vector<6x320xbf16>
    %c0_171 = arith.constant 0 : index
    %c0_172 = arith.constant 0 : index
    %c0_173 = arith.constant 0 : index
    %186 = vector.load %arg11[%c0_171, %c0_172, %c0_173] : memref<10x320x128xbf16, #tpu.memory_space<vmem>>, vector<1x320x128xbf16>
    %187 = vector.shape_cast %186 : vector<1x320x128xbf16> to vector<320x128xbf16>
    %cst_174 = arith.constant dense<0.000000e+00> : vector<6x128xf32>
    %188 = tpu.matmul %185, %187, %cst_174 {dimension_numbers = #tpu.dot_dimension_numbers<[1], [0], [0], [1], [0, 0, 1, 1], [], []>} : vector<6x320xbf16>, vector<320x128xbf16>, vector<6x128xf32> -> vector<6x128xf32>
    %c6_175 = arith.constant 6 : index
    %c0_176 = arith.constant 0 : index
    %189 = vector.load %arg19[%c6_175, %c0_176] : memref<60x320xf32, #tpu.memory_space<vmem>>, vector<6x320xf32>
    %190 = arith.truncf %189 : vector<6x320xf32> to vector<6x320xbf16>
    %c1_177 = arith.constant 1 : index
    %c0_178 = arith.constant 0 : index
    %c0_179 = arith.constant 0 : index
    %191 = vector.load %arg11[%c1_177, %c0_178, %c0_179] : memref<10x320x128xbf16, #tpu.memory_space<vmem>>, vector<1x320x128xbf16>
    %192 = vector.shape_cast %191 : vector<1x320x128xbf16> to vector<320x128xbf16>
    %cst_180 = arith.constant dense<0.000000e+00> : vector<6x128xf32>
    %193 = tpu.matmul %190, %192, %cst_180 {dimension_numbers = #tpu.dot_dimension_numbers<[1], [0], [0], [1], [0, 0, 1, 1], [], []>} : vector<6x320xbf16>, vector<320x128xbf16>, vector<6x128xf32> -> vector<6x128xf32>
    %194 = arith.addf %188, %193 : vector<6x128xf32>
    %c12_181 = arith.constant 12 : index
    %c0_182 = arith.constant 0 : index
    %195 = vector.load %arg19[%c12_181, %c0_182] : memref<60x320xf32, #tpu.memory_space<vmem>>, vector<6x320xf32>
    %196 = arith.truncf %195 : vector<6x320xf32> to vector<6x320xbf16>
    %c2_183 = arith.constant 2 : index
    %c0_184 = arith.constant 0 : index
    %c0_185 = arith.constant 0 : index
    %197 = vector.load %arg11[%c2_183, %c0_184, %c0_185] : memref<10x320x128xbf16, #tpu.memory_space<vmem>>, vector<1x320x128xbf16>
    %198 = vector.shape_cast %197 : vector<1x320x128xbf16> to vector<320x128xbf16>
    %cst_186 = arith.constant dense<0.000000e+00> : vector<6x128xf32>
    %199 = tpu.matmul %196, %198, %cst_186 {dimension_numbers = #tpu.dot_dimension_numbers<[1], [0], [0], [1], [0, 0, 1, 1], [], []>} : vector<6x320xbf16>, vector<320x128xbf16>, vector<6x128xf32> -> vector<6x128xf32>
    %200 = arith.addf %194, %199 : vector<6x128xf32>
    %c18 = arith.constant 18 : index
    %c0_187 = arith.constant 0 : index
    %201 = vector.load %arg19[%c18, %c0_187] : memref<60x320xf32, #tpu.memory_space<vmem>>, vector<6x320xf32>
    %202 = arith.truncf %201 : vector<6x320xf32> to vector<6x320xbf16>
    %c3_188 = arith.constant 3 : index
    %c0_189 = arith.constant 0 : index
    %c0_190 = arith.constant 0 : index
    %203 = vector.load %arg11[%c3_188, %c0_189, %c0_190] : memref<10x320x128xbf16, #tpu.memory_space<vmem>>, vector<1x320x128xbf16>
    %204 = vector.shape_cast %203 : vector<1x320x128xbf16> to vector<320x128xbf16>
    %cst_191 = arith.constant dense<0.000000e+00> : vector<6x128xf32>
    %205 = tpu.matmul %202, %204, %cst_191 {dimension_numbers = #tpu.dot_dimension_numbers<[1], [0], [0], [1], [0, 0, 1, 1], [], []>} : vector<6x320xbf16>, vector<320x128xbf16>, vector<6x128xf32> -> vector<6x128xf32>
    %206 = arith.addf %200, %205 : vector<6x128xf32>
    %c24 = arith.constant 24 : index
    %c0_192 = arith.constant 0 : index
    %207 = vector.load %arg19[%c24, %c0_192] : memref<60x320xf32, #tpu.memory_space<vmem>>, vector<6x320xf32>
    %208 = arith.truncf %207 : vector<6x320xf32> to vector<6x320xbf16>
    %c4_193 = arith.constant 4 : index
    %c0_194 = arith.constant 0 : index
    %c0_195 = arith.constant 0 : index
    %209 = vector.load %arg11[%c4_193, %c0_194, %c0_195] : memref<10x320x128xbf16, #tpu.memory_space<vmem>>, vector<1x320x128xbf16>
    %210 = vector.shape_cast %209 : vector<1x320x128xbf16> to vector<320x128xbf16>
    %cst_196 = arith.constant dense<0.000000e+00> : vector<6x128xf32>
    %211 = tpu.matmul %208, %210, %cst_196 {dimension_numbers = #tpu.dot_dimension_numbers<[1], [0], [0], [1], [0, 0, 1, 1], [], []>} : vector<6x320xbf16>, vector<320x128xbf16>, vector<6x128xf32> -> vector<6x128xf32>
    %212 = arith.addf %206, %211 : vector<6x128xf32>
    %c30 = arith.constant 30 : index
    %c0_197 = arith.constant 0 : index
    %213 = vector.load %arg19[%c30, %c0_197] : memref<60x320xf32, #tpu.memory_space<vmem>>, vector<6x320xf32>
    %214 = arith.truncf %213 : vector<6x320xf32> to vector<6x320xbf16>
    %c5_198 = arith.constant 5 : index
    %c0_199 = arith.constant 0 : index
    %c0_200 = arith.constant 0 : index
    %215 = vector.load %arg11[%c5_198, %c0_199, %c0_200] : memref<10x320x128xbf16, #tpu.memory_space<vmem>>, vector<1x320x128xbf16>
    %216 = vector.shape_cast %215 : vector<1x320x128xbf16> to vector<320x128xbf16>
    %cst_201 = arith.constant dense<0.000000e+00> : vector<6x128xf32>
    %217 = tpu.matmul %214, %216, %cst_201 {dimension_numbers = #tpu.dot_dimension_numbers<[1], [0], [0], [1], [0, 0, 1, 1], [], []>} : vector<6x320xbf16>, vector<320x128xbf16>, vector<6x128xf32> -> vector<6x128xf32>
    %218 = arith.addf %212, %217 : vector<6x128xf32>
    %c36 = arith.constant 36 : index
    %c0_202 = arith.constant 0 : index
    %219 = vector.load %arg19[%c36, %c0_202] : memref<60x320xf32, #tpu.memory_space<vmem>>, vector<6x320xf32>
    %220 = arith.truncf %219 : vector<6x320xf32> to vector<6x320xbf16>
    %c6_203 = arith.constant 6 : index
    %c0_204 = arith.constant 0 : index
    %c0_205 = arith.constant 0 : index
    %221 = vector.load %arg11[%c6_203, %c0_204, %c0_205] : memref<10x320x128xbf16, #tpu.memory_space<vmem>>, vector<1x320x128xbf16>
    %222 = vector.shape_cast %221 : vector<1x320x128xbf16> to vector<320x128xbf16>
    %cst_206 = arith.constant dense<0.000000e+00> : vector<6x128xf32>
    %223 = tpu.matmul %220, %222, %cst_206 {dimension_numbers = #tpu.dot_dimension_numbers<[1], [0], [0], [1], [0, 0, 1, 1], [], []>} : vector<6x320xbf16>, vector<320x128xbf16>, vector<6x128xf32> -> vector<6x128xf32>
    %224 = arith.addf %218, %223 : vector<6x128xf32>
    %c42 = arith.constant 42 : index
    %c0_207 = arith.constant 0 : index
    %225 = vector.load %arg19[%c42, %c0_207] : memref<60x320xf32, #tpu.memory_space<vmem>>, vector<6x320xf32>
    %226 = arith.truncf %225 : vector<6x320xf32> to vector<6x320xbf16>
    %c7_208 = arith.constant 7 : index
    %c0_209 = arith.constant 0 : index
    %c0_210 = arith.constant 0 : index
    %227 = vector.load %arg11[%c7_208, %c0_209, %c0_210] : memref<10x320x128xbf16, #tpu.memory_space<vmem>>, vector<1x320x128xbf16>
    %228 = vector.shape_cast %227 : vector<1x320x128xbf16> to vector<320x128xbf16>
    %cst_211 = arith.constant dense<0.000000e+00> : vector<6x128xf32>
    %229 = tpu.matmul %226, %228, %cst_211 {dimension_numbers = #tpu.dot_dimension_numbers<[1], [0], [0], [1], [0, 0, 1, 1], [], []>} : vector<6x320xbf16>, vector<320x128xbf16>, vector<6x128xf32> -> vector<6x128xf32>
    %230 = arith.addf %224, %229 : vector<6x128xf32>
    %c48 = arith.constant 48 : index
    %c0_212 = arith.constant 0 : index
    %231 = vector.load %arg19[%c48, %c0_212] : memref<60x320xf32, #tpu.memory_space<vmem>>, vector<6x320xf32>
    %232 = arith.truncf %231 : vector<6x320xf32> to vector<6x320xbf16>
    %c8_213 = arith.constant 8 : index
    %c0_214 = arith.constant 0 : index
    %c0_215 = arith.constant 0 : index
    %233 = vector.load %arg11[%c8_213, %c0_214, %c0_215] : memref<10x320x128xbf16, #tpu.memory_space<vmem>>, vector<1x320x128xbf16>
    %234 = vector.shape_cast %233 : vector<1x320x128xbf16> to vector<320x128xbf16>
    %cst_216 = arith.constant dense<0.000000e+00> : vector<6x128xf32>
    %235 = tpu.matmul %232, %234, %cst_216 {dimension_numbers = #tpu.dot_dimension_numbers<[1], [0], [0], [1], [0, 0, 1, 1], [], []>} : vector<6x320xbf16>, vector<320x128xbf16>, vector<6x128xf32> -> vector<6x128xf32>
    %236 = arith.addf %230, %235 : vector<6x128xf32>
    %c54 = arith.constant 54 : index
    %c0_217 = arith.constant 0 : index
    %237 = vector.load %arg19[%c54, %c0_217] : memref<60x320xf32, #tpu.memory_space<vmem>>, vector<6x320xf32>
    %238 = arith.truncf %237 : vector<6x320xf32> to vector<6x320xbf16>
    %c9 = arith.constant 9 : index
    %c0_218 = arith.constant 0 : index
    %c0_219 = arith.constant 0 : index
    %239 = vector.load %arg11[%c9, %c0_218, %c0_219] : memref<10x320x128xbf16, #tpu.memory_space<vmem>>, vector<1x320x128xbf16>
    %240 = vector.shape_cast %239 : vector<1x320x128xbf16> to vector<320x128xbf16>
    %cst_220 = arith.constant dense<0.000000e+00> : vector<6x128xf32>
    %241 = tpu.matmul %238, %240, %cst_220 {dimension_numbers = #tpu.dot_dimension_numbers<[1], [0], [0], [1], [0, 0, 1, 1], [], []>} : vector<6x320xbf16>, vector<320x128xbf16>, vector<6x128xf32> -> vector<6x128xf32>
    %242 = arith.addf %236, %241 : vector<6x128xf32>
    %c0_221 = arith.constant 0 : index
    %c0_222 = arith.constant 0 : index
    %243 = vector.load %arg13[%c0_221, %c0_222] : memref<1x128xf32, #tpu.memory_space<vmem>>, vector<1x128xf32>
    %c0_223 = arith.constant 0 : index
    %c0_224 = arith.constant 0 : index
    %244 = vector.load %arg12[%c0_223, %c0_224] : memref<32x128xf32, #tpu.memory_space<vmem>>, vector<32x128xf32>
    %cst_225 = arith.constant 0.000000e+00 : f32
    %245 = vector.broadcast %cst_225 : f32 to vector<2x32xf32>
    %cst_226 = arith.constant 0.000000e+00 : f32
    %246 = vector.broadcast %cst_226 : f32 to vector<2x32xf32>
    %247 = vector.extract_strided_slice %242 {offsets = [0, 0], sizes = [2, 128], strides = [1, 1]} : vector<6x128xf32> to vector<2x128xf32>
    %cst_227 = arith.constant dense<0.000000e+00> : vector<2x128xf32>
    %248 = tpu.matmul %245, %244, %cst_227 {dimension_numbers = #tpu.dot_dimension_numbers<[1], [0], [0], [1], [0, 0, 1, 1], [], []>} : vector<2x32xf32>, vector<32x128xf32>, vector<2x128xf32> -> vector<2x128xf32>
    %249 = arith.addf %247, %248 : vector<2x128xf32>
    %250 = vector.broadcast %243 : vector<1x128xf32> to vector<2x128xf32>
    %251 = arith.addf %249, %250 : vector<2x128xf32>
    %252 = vector.extract_strided_slice %251 {offsets = [0, 0], sizes = [2, 32], strides = [1, 1]} : vector<2x128xf32> to vector<2x32xf32>
    %253 = arith.negf %252 : vector<2x32xf32>
    %254 = math.exp %253 : vector<2x32xf32>
    %cst_228 = arith.constant 1.000000e+00 : f32
    %255 = vector.broadcast %cst_228 : f32 to vector<2x32xf32>
    %256 = arith.addf %255, %254 : vector<2x32xf32>
    %257 = arith.divf %255, %256 : vector<2x32xf32>
    %258 = vector.extract_strided_slice %251 {offsets = [0, 32], sizes = [2, 32], strides = [1, 1]} : vector<2x128xf32> to vector<2x32xf32>
    %259 = arith.negf %258 : vector<2x32xf32>
    %260 = math.exp %259 : vector<2x32xf32>
    %cst_229 = arith.constant 1.000000e+00 : f32
    %261 = vector.broadcast %cst_229 : f32 to vector<2x32xf32>
    %262 = arith.addf %261, %260 : vector<2x32xf32>
    %263 = arith.divf %261, %262 : vector<2x32xf32>
    %264 = vector.extract_strided_slice %251 {offsets = [0, 64], sizes = [2, 32], strides = [1, 1]} : vector<2x128xf32> to vector<2x32xf32>
    %265 = math.tanh %264 : vector<2x32xf32>
    %266 = vector.extract_strided_slice %251 {offsets = [0, 96], sizes = [2, 32], strides = [1, 1]} : vector<2x128xf32> to vector<2x32xf32>
    %267 = arith.negf %266 : vector<2x32xf32>
    %268 = math.exp %267 : vector<2x32xf32>
    %cst_230 = arith.constant 1.000000e+00 : f32
    %269 = vector.broadcast %cst_230 : f32 to vector<2x32xf32>
    %270 = arith.addf %269, %268 : vector<2x32xf32>
    %271 = arith.divf %269, %270 : vector<2x32xf32>
    %272 = arith.mulf %263, %246 : vector<2x32xf32>
    %273 = arith.mulf %257, %265 : vector<2x32xf32>
    %274 = arith.addf %272, %273 : vector<2x32xf32>
    %275 = math.tanh %274 : vector<2x32xf32>
    %276 = arith.mulf %271, %275 : vector<2x32xf32>
    %277 = vector.extract_strided_slice %242 {offsets = [2, 0], sizes = [2, 128], strides = [1, 1]} : vector<6x128xf32> to vector<2x128xf32>
    %cst_231 = arith.constant dense<0.000000e+00> : vector<2x128xf32>
    %278 = tpu.matmul %276, %244, %cst_231 {dimension_numbers = #tpu.dot_dimension_numbers<[1], [0], [0], [1], [0, 0, 1, 1], [], []>} : vector<2x32xf32>, vector<32x128xf32>, vector<2x128xf32> -> vector<2x128xf32>
    %279 = arith.addf %277, %278 : vector<2x128xf32>
    %280 = vector.broadcast %243 : vector<1x128xf32> to vector<2x128xf32>
    %281 = arith.addf %279, %280 : vector<2x128xf32>
    %282 = vector.extract_strided_slice %281 {offsets = [0, 0], sizes = [2, 32], strides = [1, 1]} : vector<2x128xf32> to vector<2x32xf32>
    %283 = arith.negf %282 : vector<2x32xf32>
    %284 = math.exp %283 : vector<2x32xf32>
    %cst_232 = arith.constant 1.000000e+00 : f32
    %285 = vector.broadcast %cst_232 : f32 to vector<2x32xf32>
    %286 = arith.addf %285, %284 : vector<2x32xf32>
    %287 = arith.divf %285, %286 : vector<2x32xf32>
    %288 = vector.extract_strided_slice %281 {offsets = [0, 32], sizes = [2, 32], strides = [1, 1]} : vector<2x128xf32> to vector<2x32xf32>
    %289 = arith.negf %288 : vector<2x32xf32>
    %290 = math.exp %289 : vector<2x32xf32>
    %cst_233 = arith.constant 1.000000e+00 : f32
    %291 = vector.broadcast %cst_233 : f32 to vector<2x32xf32>
    %292 = arith.addf %291, %290 : vector<2x32xf32>
    %293 = arith.divf %291, %292 : vector<2x32xf32>
    %294 = vector.extract_strided_slice %281 {offsets = [0, 64], sizes = [2, 32], strides = [1, 1]} : vector<2x128xf32> to vector<2x32xf32>
    %295 = math.tanh %294 : vector<2x32xf32>
    %296 = vector.extract_strided_slice %281 {offsets = [0, 96], sizes = [2, 32], strides = [1, 1]} : vector<2x128xf32> to vector<2x32xf32>
    %297 = arith.negf %296 : vector<2x32xf32>
    %298 = math.exp %297 : vector<2x32xf32>
    %cst_234 = arith.constant 1.000000e+00 : f32
    %299 = vector.broadcast %cst_234 : f32 to vector<2x32xf32>
    %300 = arith.addf %299, %298 : vector<2x32xf32>
    %301 = arith.divf %299, %300 : vector<2x32xf32>
    %302 = arith.mulf %293, %274 : vector<2x32xf32>
    %303 = arith.mulf %287, %295 : vector<2x32xf32>
    %304 = arith.addf %302, %303 : vector<2x32xf32>
    %305 = math.tanh %304 : vector<2x32xf32>
    %306 = arith.mulf %301, %305 : vector<2x32xf32>
    %307 = vector.extract_strided_slice %242 {offsets = [4, 0], sizes = [2, 128], strides = [1, 1]} : vector<6x128xf32> to vector<2x128xf32>
    %cst_235 = arith.constant dense<0.000000e+00> : vector<2x128xf32>
    %308 = tpu.matmul %306, %244, %cst_235 {dimension_numbers = #tpu.dot_dimension_numbers<[1], [0], [0], [1], [0, 0, 1, 1], [], []>} : vector<2x32xf32>, vector<32x128xf32>, vector<2x128xf32> -> vector<2x128xf32>
    %309 = arith.addf %307, %308 : vector<2x128xf32>
    %310 = vector.broadcast %243 : vector<1x128xf32> to vector<2x128xf32>
    %311 = arith.addf %309, %310 : vector<2x128xf32>
    %312 = vector.extract_strided_slice %311 {offsets = [0, 0], sizes = [2, 32], strides = [1, 1]} : vector<2x128xf32> to vector<2x32xf32>
    %313 = arith.negf %312 : vector<2x32xf32>
    %314 = math.exp %313 : vector<2x32xf32>
    %cst_236 = arith.constant 1.000000e+00 : f32
    %315 = vector.broadcast %cst_236 : f32 to vector<2x32xf32>
    %316 = arith.addf %315, %314 : vector<2x32xf32>
    %317 = arith.divf %315, %316 : vector<2x32xf32>
    %318 = vector.extract_strided_slice %311 {offsets = [0, 32], sizes = [2, 32], strides = [1, 1]} : vector<2x128xf32> to vector<2x32xf32>
    %319 = arith.negf %318 : vector<2x32xf32>
    %320 = math.exp %319 : vector<2x32xf32>
    %cst_237 = arith.constant 1.000000e+00 : f32
    %321 = vector.broadcast %cst_237 : f32 to vector<2x32xf32>
    %322 = arith.addf %321, %320 : vector<2x32xf32>
    %323 = arith.divf %321, %322 : vector<2x32xf32>
    %324 = vector.extract_strided_slice %311 {offsets = [0, 64], sizes = [2, 32], strides = [1, 1]} : vector<2x128xf32> to vector<2x32xf32>
    %325 = math.tanh %324 : vector<2x32xf32>
    %326 = vector.extract_strided_slice %311 {offsets = [0, 96], sizes = [2, 32], strides = [1, 1]} : vector<2x128xf32> to vector<2x32xf32>
    %327 = arith.negf %326 : vector<2x32xf32>
    %328 = math.exp %327 : vector<2x32xf32>
    %cst_238 = arith.constant 1.000000e+00 : f32
    %329 = vector.broadcast %cst_238 : f32 to vector<2x32xf32>
    %330 = arith.addf %329, %328 : vector<2x32xf32>
    %331 = arith.divf %329, %330 : vector<2x32xf32>
    %332 = arith.mulf %323, %304 : vector<2x32xf32>
    %333 = arith.mulf %317, %325 : vector<2x32xf32>
    %334 = arith.addf %332, %333 : vector<2x32xf32>
    %335 = math.tanh %334 : vector<2x32xf32>
    %336 = arith.mulf %331, %335 : vector<2x32xf32>
    %c0_239 = arith.constant 0 : index
    %c0_240 = arith.constant 0 : index
    %337 = vector.load %arg14[%c0_239, %c0_240] : memref<32x5xf32, #tpu.memory_space<vmem>>, vector<32x5xf32>
    %cst_241 = arith.constant dense<0.000000e+00> : vector<2x5xf32>
    %338 = tpu.matmul %336, %337, %cst_241 {dimension_numbers = #tpu.dot_dimension_numbers<[1], [0], [0], [1], [0, 0, 1, 1], [], []>} : vector<2x32xf32>, vector<32x5xf32>, vector<2x5xf32> -> vector<2x5xf32>
    %c0_242 = arith.constant 0 : index
    %c0_243 = arith.constant 0 : index
    %339 = vector.load %arg15[%c0_242, %c0_243] : memref<1x5xf32, #tpu.memory_space<vmem>>, vector<1x5xf32>
    %340 = vector.broadcast %339 : vector<1x5xf32> to vector<2x5xf32>
    %341 = arith.addf %338, %340 : vector<2x5xf32>
    %c0_244 = arith.constant 0 : index
    %c0_245 = arith.constant 0 : index
    %342 = vector.load %arg16[%c0_244, %c0_245] : memref<2x5xf32, #tpu.memory_space<vmem>>, vector<2x5xf32>
    tpu.vector_store %arg16[%c0_244, %c0_245], %341 {strides = array<i32>} : memref<2x5xf32, #tpu.memory_space<vmem>>, vector<2x5xf32>,
    return
  }
  func.func @transform_0(%arg0: i32) -> (i32, i32) {
    %c0_i32 = arith.constant 0 : i32
    %c0_i32_0 = arith.constant 0 : i32
    %c0_i32_1 = arith.constant 0 : i32
    return %c0_i32, %c0_i32_0 : i32, i32
  }
  func.func @transform_1(%arg0: i32) -> (i32, i32, i32) {
    %c0_i32 = arith.constant 0 : i32
    %c0_i32_0 = arith.constant 0 : i32
    %c0_i32_1 = arith.constant 0 : i32
    %c0_i32_2 = arith.constant 0 : i32
    return %c0_i32, %c0_i32_0, %c0_i32_1 : i32, i32, i32
  }
  func.func @transform_2(%arg0: i32) -> (i32, i32) {
    %c0_i32 = arith.constant 0 : i32
    %c0_i32_0 = arith.constant 0 : i32
    %c0_i32_1 = arith.constant 0 : i32
    return %c0_i32, %c0_i32_0 : i32, i32
  }
  func.func @transform_3(%arg0: i32) -> (i32, i32) {
    %c0_i32 = arith.constant 0 : i32
    %c0_i32_0 = arith.constant 0 : i32
    %c0_i32_1 = arith.constant 0 : i32
    return %c0_i32, %c0_i32_0 : i32, i32
  }
  func.func @transform_4(%arg0: i32) -> (i32, i32, i32) {
    %c0_i32 = arith.constant 0 : i32
    %c0_i32_0 = arith.constant 0 : i32
    %c0_i32_1 = arith.constant 0 : i32
    %c0_i32_2 = arith.constant 0 : i32
    return %c0_i32, %c0_i32_0, %c0_i32_1 : i32, i32, i32
  }
  func.func @transform_5(%arg0: i32) -> (i32, i32) {
    %c0_i32 = arith.constant 0 : i32
    %c0_i32_0 = arith.constant 0 : i32
    %c0_i32_1 = arith.constant 0 : i32
    return %c0_i32, %c0_i32_0 : i32, i32
  }
  func.func @transform_6(%arg0: i32) -> (i32, i32) {
    %c0_i32 = arith.constant 0 : i32
    %c0_i32_0 = arith.constant 0 : i32
    %c0_i32_1 = arith.constant 0 : i32
    return %c0_i32, %c0_i32_0 : i32, i32
  }
  func.func @transform_7(%arg0: i32) -> (i32, i32, i32) {
    %c0_i32 = arith.constant 0 : i32
    %c0_i32_0 = arith.constant 0 : i32
    %c0_i32_1 = arith.constant 0 : i32
    %c0_i32_2 = arith.constant 0 : i32
    return %c0_i32, %c0_i32_0, %c0_i32_1 : i32, i32, i32
  }
  func.func @transform_8(%arg0: i32) -> (i32, i32) {
    %c0_i32 = arith.constant 0 : i32
    %c0_i32_0 = arith.constant 0 : i32
    %c0_i32_1 = arith.constant 0 : i32
    return %c0_i32, %c0_i32_0 : i32, i32
  }
  func.func @transform_9(%arg0: i32) -> (i32, i32) {
    %c0_i32 = arith.constant 0 : i32
    %c0_i32_0 = arith.constant 0 : i32
    %c0_i32_1 = arith.constant 0 : i32
    return %c0_i32, %c0_i32_0 : i32, i32
  }
  func.func @transform_10(%arg0: i32) -> (i32, i32, i32) {
    %c0_i32 = arith.constant 0 : i32
    %c0_i32_0 = arith.constant 0 : i32
    %c0_i32_1 = arith.constant 0 : i32
    %c0_i32_2 = arith.constant 0 : i32
    return %c0_i32, %c0_i32_0, %c0_i32_1 : i32, i32, i32
  }
  func.func @transform_11(%arg0: i32) -> (i32, i32) {
    %c0_i32 = arith.constant 0 : i32
    %c0_i32_0 = arith.constant 0 : i32
    %c0_i32_1 = arith.constant 0 : i32
    return %c0_i32, %c0_i32_0 : i32, i32
  }
  func.func @transform_12(%arg0: i32) -> (i32, i32) {
    %c0_i32 = arith.constant 0 : i32
    %c0_i32_0 = arith.constant 0 : i32
    %c0_i32_1 = arith.constant 0 : i32
    return %c0_i32, %c0_i32_0 : i32, i32
  }
  func.func @transform_13(%arg0: i32) -> (i32, i32) {
    %c0_i32 = arith.constant 0 : i32
    %c0_i32_0 = arith.constant 0 : i32
    %c0_i32_1 = arith.constant 0 : i32
    return %c0_i32, %c0_i32_0 : i32, i32
  }
  func.func @transform_14(%arg0: i32) -> (i32, i32) {
    %c0_i32 = arith.constant 0 : i32
    %c0_i32_0 = arith.constant 0 : i32
    %c0_i32_1 = arith.constant 0 : i32
    return %c0_i32, %c0_i32_0 : i32, i32
  }
  func.func @transform_15(%arg0: i32) -> (i32, i32) {
    %c0_i32 = arith.constant 0 : i32
    %c0_i32_0 = arith.constant 0 : i32
    %c0_i32_1 = arith.constant 0 : i32
    return %c0_i32, %c0_i32_0 : i32, i32
  }
}

</mosaic_0001>

<llo_original>
// kernel: rsna_forward.1
$region0: #{rsna_forward.1}
  #allocation0 [shape = 'u32[]', space=smem, size = 0x4, offset = 0x4, fixed_abs, tag = 'smem constant byte address 0x4 - core index']
  #allocation1 [shape = 'u32[144,128]{1,0:T(1,128)}', space=vmem, size = 0x12000, scoped, tag = 'internal scratch']
  #allocation2 [shape = 'f32[84,112]{1,0:T(8,128)}', space=vmem, size = 0xb000, scoped, tag = 'scratch operand']
  #allocation3 [shape = 'f32[72,192]{1,0:T(8,128)}', space=vmem, size = 0x12000, scoped, tag = 'scratch operand']
  #allocation4 [shape = 'f32[60,320]{1,0:T(8,128)}', space=vmem, size = 0x18000, scoped, tag = 'scratch operand']
  %s0 = inlined_call_operand.vmem [shape: f32[96,64], index: 0, kind: input, shape index: {}]
  %s1 = inlined_call_operand.vmem [shape: bf16[9,56,112], index: 1, kind: input, shape index: {}]
  %s2 = inlined_call_operand.vmem [shape: f32[1,112], index: 2, kind: input, shape index: {}]
  %s3 = inlined_call_operand.vmem [shape: f32[1,112], index: 3, kind: input, shape index: {}]
  %s4 = inlined_call_operand.vmem [shape: bf16[9,96,192], index: 4, kind: input, shape index: {}]
  %s5 = inlined_call_operand.vmem [shape: f32[1,192], index: 5, kind: input, shape index: {}]
  %s6 = inlined_call_operand.vmem [shape: f32[1,192], index: 6, kind: input, shape index: {}]
  %s7 = inlined_call_operand.vmem [shape: bf16[9,160,320], index: 7, kind: input, shape index: {}]
  %s8 = inlined_call_operand.vmem [shape: f32[1,320], index: 8, kind: input, shape index: {}]
  %s9 = inlined_call_operand.vmem [shape: f32[1,320], index: 9, kind: input, shape index: {}]
  %s10 = inlined_call_operand.hbm [shape: bf16[10,320,128], index: 10, kind: input, shape index: {}]
  %s11 = inlined_call_operand.vmem [shape: f32[32,128], index: 11, kind: input, shape index: {}]
  %s12 = inlined_call_operand.vmem [shape: f32[1,128], index: 12, kind: input, shape index: {}]
  %s13 = inlined_call_operand.vmem [shape: f32[32,5], index: 13, kind: input, shape index: {}]
  %s14 = inlined_call_operand.vmem [shape: f32[1,5], index: 14, kind: input, shape index: {}]
  %s15 = inlined_call_operand.hbm [shape: f32[2,5], index: 15, kind: output, shape index: {}]
  %s16 = sld [smem:[#allocation0]]
  $region74: #{rsna_forward.1} parent=0
    _
  %s18 = ssub.s32 1, %s16
  %s19 = scalar_select 0, %s18, %s16
  $region1: #{rsna_forward.1} parent=0
    #allocation5 [shape = 'u8[819200]{0}', space=vmem, size = 0xc8000, scoped, tag = 'input window, operand 10, single buffered']
    #allocation6 [shape = 's32[1]{0}', space=sflag, size = 0x4, scoped, tag = 'scoped memory for rsna_forward.1']
    #allocation7 [shape = 's32[1]{0}', space=sflag, size = 0x4, scoped, tag = 'scoped memory for rsna_forward.1']
    #allocation8 [shape = 'u8[1024]{0}', space=vmem, size = 0x400, scoped, tag = 'output window, operand 0, single buffered']
    %20 = vsyncpa [#allocation6], 0
    %21 = vsyncpa [#allocation7], 0
    // Predicated region
    $region2: #{rsna_forward.1} parent=1 // pred_check
      _
    $region3: #{rsna_forward.1} parent=1 // pred_check_branch
      %23 = sbr.rel (0) target = $region5
    $region4: #{rsna_forward.1} parent=1 // pred_region
      _
    $region5: #{rsna_forward.1} parent=1 // pred_fallthru
      _
    // Predicated region
    $region6: #{rsna_forward.1} parent=1 // pred_check
      _
    $region7: #{rsna_forward.1} parent=1 // pred_check_branch
      %25 = sbr.rel (0) target = $region9
    $region8: #{rsna_forward.1} parent=1 // pred_region
      _
    $region9: #{rsna_forward.1} parent=1 // pred_fallthru
      _
    // Predicated region
    $region10: #{rsna_forward.1} parent=1 // pred_check
      _
    $region11: #{rsna_forward.1} parent=1 // pred_check_branch
      %27 = sbr.rel (0) target = $region13
    $region12: #{rsna_forward.1} parent=1 // pred_region
      _
    $region13: #{rsna_forward.1} parent=1 // pred_fallthru
      _
    // Predicated region
    $region14: #{rsna_forward.1} parent=1 // pred_check
      _
    $region15: #{rsna_forward.1} parent=1 // pred_check_branch
      %29 = sbr.rel (0) target = $region17
    $region16: #{rsna_forward.1} parent=1 // pred_region
      _
    $region17: #{rsna_forward.1} parent=1 // pred_fallthru
      _
    // Predicated region
    $region18: #{rsna_forward.1} parent=1 // pred_check
      _
    $region19: #{rsna_forward.1} parent=1 // pred_check_branch
      %31 = sbr.rel (0) target = $region21
    $region20: #{rsna_forward.1} parent=1 // pred_region
      _
    $region21: #{rsna_forward.1} parent=1 // pred_fallthru
      _
    // Predicated region
    $region22: #{rsna_forward.1} parent=1 // pred_check
      _
    $region23: #{rsna_forward.1} parent=1 // pred_check_branch
      %33 = sbr.rel (0) target = $region25
    $region24: #{rsna_forward.1} parent=1 // pred_region
      _
    $region25: #{rsna_forward.1} parent=1 // pred_fallthru
      _
    // Predicated region
    $region26: #{rsna_forward.1} parent=1 // pred_check
      _
    $region27: #{rsna_forward.1} parent=1 // pred_check_branch
      %35 = sbr.rel (0) target = $region29
    $region28: #{rsna_forward.1} parent=1 // pred_region
      _
    $region29: #{rsna_forward.1} parent=1 // pred_fallthru
      _
    // Predicated region
    $region30: #{rsna_forward.1} parent=1 // pred_check
      _
    $region31: #{rsna_forward.1} parent=1 // pred_check_branch
      %37 = sbr.rel (0) target = $region33
    $region32: #{rsna_forward.1} parent=1 // pred_region
      _
    $region33: #{rsna_forward.1} parent=1 // pred_fallthru
      _
    // Predicated region
    $region34: #{rsna_forward.1} parent=1 // pred_check
      _
    $region35: #{rsna_forward.1} parent=1 // pred_check_branch
      %39 = sbr.rel (0) target = $region37
    $region36: #{rsna_forward.1} parent=1 // pred_region
      _
    $region37: #{rsna_forward.1} parent=1 // pred_fallthru
      _
    // Predicated region
    $region38: #{rsna_forward.1} parent=1 // pred_check
      _
    $region39: #{rsna_forward.1} parent=1 // pred_check_branch
      %41 = sbr.rel (0) target = $region41
    $region40: #{rsna_forward.1} parent=1 // pred_region
      _
    $region41: #{rsna_forward.1} parent=1 // pred_fallthru
      _
    // Predicated region
    $region42: #{rsna_forward.1} parent=1 // pred_check
      _
    $region43: #{rsna_forward.1} parent=1 // pred_check_branch
      %43 = sbr.rel (0) target = $region45
    $region44: #{rsna_forward.1} parent=1 // pred_region
      %s45 = ssub.s32 25600, 25600
      %46 = vsyncadd [#allocation6], %s45
      %s47 = sshll.u32 [#allocation5], 4
      %s48 = int_to_ptr.vmem [resolvable:$true] %s47
      %53 = dma.hbm_to_vmem [thread:$0]  %s10, 25600, %s48, [#allocation6], 64, 64, 4
    $region45: #{rsna_forward.1} parent=1 // pred_fallthru
      _
    // Predicated region
    $region46: #{rsna_forward.1} parent=1 // pred_check
      _
    $region47: #{rsna_forward.1} parent=1 // pred_check_branch
      %55 = sbr.rel (0) target = $region49
    $region48: #{rsna_forward.1} parent=1 // pred_region
      _
    $region49: #{rsna_forward.1} parent=1 // pred_fallthru
      _
    // Predicated region
    $region50: #{rsna_forward.1} parent=1 // pred_check
      _
    $region51: #{rsna_forward.1} parent=1 // pred_check_branch
      %57 = sbr.rel (0) target = $region53
    $region52: #{rsna_forward.1} parent=1 // pred_region
      _
    $region53: #{rsna_forward.1} parent=1 // pred_fallthru
      _
    // Predicated region
    $region54: #{rsna_forward.1} parent=1 // pred_check
      _
    $region55: #{rsna_forward.1} parent=1 // pred_check_branch
      %59 = sbr.rel (0) target = $region57
    $region56: #{rsna_forward.1} parent=1 // pred_region
      _
    $region57: #{rsna_forward.1} parent=1 // pred_fallthru
      _
    // Predicated region
    $region58: #{rsna_forward.1} parent=1 // pred_check
      _
    $region59: #{rsna_forward.1} parent=1 // pred_check_branch
      %61 = sbr.rel (0) target = $region61
    $region60: #{rsna_forward.1} parent=1 // pred_region
      _
    $region61: #{rsna_forward.1} parent=1 // pred_fallthru
      _
    // Predicated region
    $region62: #{rsna_forward.1} parent=1 // pred_check
      _
    $region63: #{rsna_forward.1} parent=1 // pred_check_branch
      %63 = sbr.rel (0) target = $region65
    $region64: #{rsna_forward.1} parent=1 // pred_region
      %64 = dma.done [#allocation6], 25600
    $region65: #{rsna_forward.1} parent=1 // pred_fallthru
      _
    %v66 = vld [vmem:[%s0] sm:$0xff]
    %v67 = vld [vmem:[%s0 + $0x8] sm:$0xff]
    %v68 = vld [vmem:[%s0 + $0x10] sm:$0xff]
    %v69 = vld [vmem:[%s0 + $0x18] sm:$0xff]
    %v70 = vld [vmem:[%s0 + $0x20] sm:$0xff]
    %v71 = vld [vmem:[%s0 + $0x28] sm:$0xff]
    %v72 = vld [vmem:[%s0 + $0x30] sm:$0xff]
    %v73 = vld [vmem:[%s0 + $0x38] sm:$0xff]
    %v74 = vld [vmem:[%s0 + $0x40] sm:$0xff]
    %v75 = vld [vmem:[%s0 + $0x48] sm:$0xff]
    %v76 = vld [vmem:[%s0 + $0x50] sm:$0xf]
    %v77 = vpack.c.bf16 %v67, %v66
    %v78 = vpack.c.bf16 %v69, %v68
    %v79 = vpack.c.bf16 %v71, %v70
    %v80 = vpack.c.bf16 %v73, %v72
    %v81 = vpack.c.bf16 %v75, %v74
    %v82 = vpack.c.bf16 %v76, %v76
    %v83 = vld [vmem:[%s1] sm:$0xf]
    %v84 = vld [vmem:[%s1 + $0x4] sm:$0xf]
    %v85 = vld [vmem:[%s1 + $0x8] sm:$0xf]
    %v86 = vld [vmem:[%s1 + $0xc] sm:$0xf]
    %v87 = vld [vmem:[%s1 + $0x10] sm:$0xf]
    %v88 = vld [vmem:[%s1 + $0x14] sm:$0xf]
    %v89 = vld [vmem:[%s1 + $0x18] sm:$0xf]
    %s90 = scalar_lea.vmem %s1, 28
    %v91 = vld [vmem:[%s90] sm:$0xf]
    %v92 = vld [vmem:[%s90 + $0x4] sm:$0xf]
    %v93 = vld [vmem:[%s90 + $0x8] sm:$0xf]
    %v94 = vld [vmem:[%s90 + $0xc] sm:$0xf]
    %v95 = vld [vmem:[%s90 + $0x10] sm:$0xf]
    %v96 = vld [vmem:[%s90 + $0x14] sm:$0xf]
    %v97 = vld [vmem:[%s90 + $0x18] sm:$0xf]
    %104 = vrot.lane.b32.xlu0 %v77, 124
    %v105 = vpop.permute.xlu0 %104
    %106 = vrot.lane.b32.xlu0 %v78, 124
    %v107 = vpop.permute.xlu0 %106
    %108 = vrot.lane.b32.xlu0 %v79, 124
    %v109 = vpop.permute.xlu0 %108
    %110 = vrot.lane.b32.xlu0 %v80, 124
    %v111 = vpop.permute.xlu0 %110
    %112 = vrot.lane.b32.xlu0 %v81, 124
    %v113 = vpop.permute.xlu0 %112
    %114 = vrot.lane.b32.xlu0 %v82, 124
    %v115 = vpop.permute.xlu0 %114
    %v123 = vunpack.c.l.b16 %v91
    %v124 = vunpack.c.l.b16 %v92
    %v125 = vunpack.c.l.b16 %v93
    %v126 = vunpack.c.l.b16 %v94
    %v127 = vunpack.c.l.b16 %v95
    %v128 = vunpack.c.l.b16 %v96
    %v129 = vunpack.c.l.b16 %v97
    %v130 = vpack.c.b16 %v124, %v123
    %v131 = vpack.c.b16 %v126, %v125
    %v132 = vpack.c.b16 %v128, %v127
    %v133 = vpack.c.b16 %v129, %v129
    %vm137 = vcmask 457728
    %v139 = vsel %vm137, %v105, 0
    %v142 = vsel %vm137, %v107, 0
    %v145 = vsel %vm137, %v109, 0
    %v148 = vsel %vm137, %v111, 0
    %v151 = vsel %vm137, %v113, 0
    %v154 = vsel %vm137, %v115, 0
    %vm156 = vcmask 1043456
    %v158 = vsel %vm156, %v133, 0
    %160 = vmatprep.subr.bf16.mxu0 0
    %161 = vmatpush1.bf16.msra.mxu0 0
    %162 = vmatprep.subr.bf16.mxu0 0
    %163 = vmatpush1.bf16.msra.mxu0 0
    %164 = vmatprep.subr.bf16.mxu0 0
    %165 = vmatpush1.bf16.msra.mxu0 0
    %166 = vmatprep.subr.bf16.mxu0 0
    %167 = vmatpush1.bf16.msra.mxu0 0
    %168 = vmatprep.subr.bf16.mxu0 0
    %169 = vmatpush1.bf16.msra.mxu0 %v158
    %170 = vmatprep.subr.bf16.mxu0 0
    %171 = vmatpush1.bf16.msra.mxu0 %v132
    %172 = vmatprep.subr.bf16.mxu0 0
    %173 = vmatpush1.bf16.msra.mxu0 %v131
    %174 = vmatprep.subr.bf16.mxu0 0
    %175 = vmatpush1.bf16.msra.mxu0 %v130
    %176 = vmatprep.subr.bf16.mxu0 0
    %177 = vmatpush2.bf16.msra.mxu0 0
    %178 = vmatprep.subr.bf16.mxu0 0
    %179 = vmatpush2.bf16.msra.mxu0 0
    %180 = vmatprep.subr.bf16.mxu0 0
    %181 = vmatpush2.bf16.msra.mxu0 0
    %182 = vmatprep.subr.bf16.mxu0 0
    %183 = vmatpush2.bf16.msra.mxu0 0
    %184 = vmatprep.subr.bf16.mxu0 0
    %185 = vmatpush2.bf16.msra.mxu0 0
    %186 = vmatprep.subr.bf16.mxu0 0
    %187 = vmatpush2.bf16.msra.mxu0 0
    %188 = vmatprep.subr.bf16.mxu0 0
    %189 = vmatpush2.bf16.msra.mxu0 0
    %190 = vmatprep.subr.bf16.mxu0 0
    %191 = vmatpush2.bf16.msra.mxu0 0
    %192 = vmatprep.mubr.bf16.mxu0 0
    %193 = vmatmul.mubr.bf16.gmra.mxu0 %v139
    %v194 = vpop.f32.mrf.mxu0
    %v195 = vadd.f32 0.0, %v194
    %v196 = vpop.f32.mrf.mxu0
    %v197 = vpop.f32.mrf.mxu0
    %v198 = vadd.f32 0.0, %v197
    %v199 = vpop.f32.mrf.mxu0
    %200 = vmatprep.mubr.bf16.mxu0 0
    %201 = vmatmul.mubr.bf16.gmra.mxu0 %v142
    %v202 = vpop.f32.mrf.mxu0
    %v203 = vadd.f32 0.0, %v202
    %v204 = vpop.f32.mrf.mxu0
    %v205 = vpop.f32.mrf.mxu0
    %v206 = vadd.f32 0.0, %v205
    %v207 = vpop.f32.mrf.mxu0
    %208 = vmatprep.mubr.bf16.mxu0 0
    %209 = vmatmul.mubr.bf16.gmra.mxu0 %v145
    %v210 = vpop.f32.mrf.mxu0
    %v211 = vadd.f32 0.0, %v210
    %v212 = vpop.f32.mrf.mxu0
    %v213 = vpop.f32.mrf.mxu0
    %v214 = vadd.f32 0.0, %v213
    %v215 = vpop.f32.mrf.mxu0
    %216 = vmatprep.mubr.bf16.mxu0 0
    %217 = vmatmul.mubr.bf16.gmra.mxu0 %v148
    %v218 = vpop.f32.mrf.mxu0
    %v219 = vadd.f32 0.0, %v218
    %v220 = vpop.f32.mrf.mxu0
    %v221 = vpop.f32.mrf.mxu0
    %v222 = vadd.f32 0.0, %v221
    %v223 = vpop.f32.mrf.mxu0
    %224 = vmatprep.mubr.bf16.mxu0 0
    %225 = vmatmul.mubr.bf16.gmra.mxu0 %v151
    %v226 = vpop.f32.mrf.mxu0
    %v227 = vadd.f32 0.0, %v226
    %v228 = vpop.f32.mrf.mxu0
    %v229 = vpop.f32.mrf.mxu0
    %v230 = vadd.f32 0.0, %v229
    %v231 = vpop.f32.mrf.mxu0
    %232 = vmatprep.mubr.bf16.mxu0 0
    %233 = vmatmul.mubr.bf16.gmra.mxu0 %v154
    %v234 = vpop.f32.mrf.mxu0
    %v235 = vadd.f32 0.0, %v234
    %v236 = vpop.f32.mrf.mxu0
    %v237 = vpop.f32.mrf.mxu0
    %v238 = vpop.f32.mrf.mxu0
    %239 = vdwg.mxu0
    %v247 = vunpack.c.l.b16 %v83
    %v248 = vunpack.c.l.b16 %v84
    %v249 = vunpack.c.l.b16 %v85
    %v250 = vunpack.c.l.b16 %v86
    %v251 = vunpack.c.l.b16 %v87
    %v252 = vunpack.c.l.b16 %v88
    %v253 = vunpack.c.l.b16 %v89
    %v254 = vpack.c.b16 %v248, %v247
    %v255 = vpack.c.b16 %v250, %v249
    %v256 = vpack.c.b16 %v252, %v251
    %v257 = vpack.c.b16 %v253, %v253
    %v262 = vsel %vm137, %v77, 0
    %v265 = vsel %vm137, %v78, 0
    %v268 = vsel %vm137, %v79, 0
    %v271 = vsel %vm137, %v80, 0
    %v274 = vsel %vm137, %v81, 0
    %v277 = vsel %vm137, %v82, 0
    %v280 = vsel %vm156, %v257, 0
    %282 = vmatprep.subr.bf16.mxu0 0
    %283 = vmatpush1.bf16.msra.mxu0 0
    %284 = vmatprep.subr.bf16.mxu0 0
    %285 = vmatpush1.bf16.msra.mxu0 0
    %286 = vmatprep.subr.bf16.mxu0 0
    %287 = vmatpush1.bf16.msra.mxu0 0
    %288 = vmatprep.subr.bf16.mxu0 0
    %289 = vmatpush1.bf16.msra.mxu0 0
    %290 = vmatprep.subr.bf16.mxu0 0
    %291 = vmatpush1.bf16.msra.mxu0 %v280
    %292 = vmatprep.subr.bf16.mxu0 0
    %293 = vmatpush1.bf16.msra.mxu0 %v256
    %294 = vmatprep.subr.bf16.mxu0 0
    %295 = vmatpush1.bf16.msra.mxu0 %v255
    %296 = vmatprep.subr.bf16.mxu0 0
    %297 = vmatpush1.bf16.msra.mxu0 %v254
    %298 = vmatprep.subr.bf16.mxu0 0
    %299 = vmatpush2.bf16.msra.mxu0 0
    %300 = vmatprep.subr.bf16.mxu0 0
    %301 = vmatpush2.bf16.msra.mxu0 0
    %302 = vmatprep.subr.bf16.mxu0 0
    %303 = vmatpush2.bf16.msra.mxu0 0
    %304 = vmatprep.subr.bf16.mxu0 0
    %305 = vmatpush2.bf16.msra.mxu0 0
    %306 = vmatprep.subr.bf16.mxu0 0
    %307 = vmatpush2.bf16.msra.mxu0 0
    %308 = vmatprep.subr.bf16.mxu0 0
    %309 = vmatpush2.bf16.msra.mxu0 0
    %310 = vmatprep.subr.bf16.mxu0 0
    %311 = vmatpush2.bf16.msra.mxu0 0
    %312 = vmatprep.subr.bf16.mxu0 0
    %313 = vmatpush2.bf16.msra.mxu0 0
    %314 = vmatprep.mubr.bf16.mxu0 0
    %315 = vmatmul.mubr.bf16.gmra.mxu0 %v262
    %v316 = vpop.f32.mrf.mxu0
    %v317 = vadd.f32 %v195, %v316
    %v318 = vpop.f32.mrf.mxu0
    %v319 = vpop.f32.mrf.mxu0
    %v320 = vadd.f32 %v198, %v319
    %v321 = vpop.f32.mrf.mxu0
    %322 = vmatprep.mubr.bf16.mxu0 0
    %323 = vmatmul.mubr.bf16.gmra.mxu0 %v265
    %v324 = vpop.f32.mrf.mxu0
    %v325 = vadd.f32 %v203, %v324
    %v326 = vpop.f32.mrf.mxu0
    %v327 = vpop.f32.mrf.mxu0
    %v328 = vadd.f32 %v206, %v327
    %v329 = vpop.f32.mrf.mxu0
    %330 = vmatprep.mubr.bf16.mxu0 0
    %331 = vmatmul.mubr.bf16.gmra.mxu0 %v268
    %v332 = vpop.f32.mrf.mxu0
    %v333 = vadd.f32 %v211, %v332
    %v334 = vpop.f32.mrf.mxu0
    %v335 = vpop.f32.mrf.mxu0
    %v336 = vadd.f32 %v214, %v335
    %v337 = vpop.f32.mrf.mxu0
    %338 = vmatprep.mubr.bf16.mxu0 0
    %339 = vmatmul.mubr.bf16.gmra.mxu0 %v271
    %v340 = vpop.f32.mrf.mxu0
    %v341 = vadd.f32 %v219, %v340
    %v342 = vpop.f32.mrf.mxu0
    %v343 = vpop.f32.mrf.mxu0
    %v344 = vadd.f32 %v222, %v343
    %v345 = vpop.f32.mrf.mxu0
    %346 = vmatprep.mubr.bf16.mxu0 0
    %347 = vmatmul.mubr.bf16.gmra.mxu0 %v274
    %v348 = vpop.f32.mrf.mxu0
    %v349 = vadd.f32 %v227, %v348
    %v350 = vpop.f32.mrf.mxu0
    %v351 = vpop.f32.mrf.mxu0
    %v352 = vadd.f32 %v230, %v351
    %v353 = vpop.f32.mrf.mxu0
    %354 = vmatprep.mubr.bf16.mxu0 0
    %355 = vmatmul.mubr.bf16.gmra.mxu0 %v277
    %v356 = vpop.f32.mrf.mxu0
    %v357 = vadd.f32 %v235, %v356
    %v358 = vpop.f32.mrf.mxu0
    %v359 = vpop.f32.mrf.mxu0
    %v360 = vpop.f32.mrf.mxu0
    %361 = vdwg.mxu0
    %s362 = scalar_lea.vmem %s1, 56
    %v363 = vld [vmem:[%s362] sm:$0xf]
    %v364 = vld [vmem:[%s362 + $0x4] sm:$0xf]
    %v365 = vld [vmem:[%s362 + $0x8] sm:$0xf]
    %v366 = vld [vmem:[%s362 + $0xc] sm:$0xf]
    %v367 = vld [vmem:[%s362 + $0x10] sm:$0xf]
    %v368 = vld [vmem:[%s362 + $0x14] sm:$0xf]
    %v369 = vld [vmem:[%s362 + $0x18] sm:$0xf]
    %370 = vrot.lane.b32.xlu0 %v77, 120
    %v371 = vpop.permute.xlu0 %370
    %372 = vrot.lane.b32.xlu0 %v78, 120
    %v373 = vpop.permute.xlu0 %372
    %374 = vrot.lane.b32.xlu0 %v79, 120
    %v375 = vpop.permute.xlu0 %374
    %376 = vrot.lane.b32.xlu0 %v80, 120
    %v377 = vpop.permute.xlu0 %376
    %378 = vrot.lane.b32.xlu0 %v81, 120
    %v379 = vpop.permute.xlu0 %378
    %380 = vrot.lane.b32.xlu0 %v82, 120
    %v381 = vpop.permute.xlu0 %380
    %v389 = vunpack.c.l.b16 %v363
    %v390 = vunpack.c.l.b16 %v364
    %v391 = vunpack.c.l.b16 %v365
    %v392 = vunpack.c.l.b16 %v366
    %v393 = vunpack.c.l.b16 %v367
    %v394 = vunpack.c.l.b16 %v368
    %v395 = vunpack.c.l.b16 %v369
    %v396 = vpack.c.b16 %v390, %v389
    %v397 = vpack.c.b16 %v392, %v391
    %v398 = vpack.c.b16 %v394, %v393
    %v399 = vpack.c.b16 %v395, %v395
    %v404 = vsel %vm137, %v371, 0
    %v407 = vsel %vm137, %v373, 0
    %v410 = vsel %vm137, %v375, 0
    %v413 = vsel %vm137, %v377, 0
    %v416 = vsel %vm137, %v379, 0
    %v419 = vsel %vm137, %v381, 0
    %v422 = vsel %vm156, %v399, 0
    %424 = vmatprep.subr.bf16.mxu0 0
    %425 = vmatpush1.bf16.msra.mxu0 0
    %426 = vmatprep.subr.bf16.mxu0 0
    %427 = vmatpush1.bf16.msra.mxu0 0
    %428 = vmatprep.subr.bf16.mxu0 0
    %429 = vmatpush1.bf16.msra.mxu0 0
    %430 = vmatprep.subr.bf16.mxu0 0
    %431 = vmatpush1.bf16.msra.mxu0 0
    %432 = vmatprep.subr.bf16.mxu0 0
    %433 = vmatpush1.bf16.msra.mxu0 %v422
    %434 = vmatprep.subr.bf16.mxu0 0
    %435 = vmatpush1.bf16.msra.mxu0 %v398
    %436 = vmatprep.subr.bf16.mxu0 0
    %437 = vmatpush1.bf16.msra.mxu0 %v397
    %438 = vmatprep.subr.bf16.mxu0 0
    %439 = vmatpush1.bf16.msra.mxu0 %v396
    %440 = vmatprep.subr.bf16.mxu0 0
    %441 = vmatpush2.bf16.msra.mxu0 0
    %442 = vmatprep.subr.bf16.mxu0 0
    %443 = vmatpush2.bf16.msra.mxu0 0
    %444 = vmatprep.subr.bf16.mxu0 0
    %445 = vmatpush2.bf16.msra.mxu0 0
    %446 = vmatprep.subr.bf16.mxu0 0
    %447 = vmatpush2.bf16.msra.mxu0 0
    %448 = vmatprep.subr.bf16.mxu0 0
    %449 = vmatpush2.bf16.msra.mxu0 0
    %450 = vmatprep.subr.bf16.mxu0 0
    %451 = vmatpush2.bf16.msra.mxu0 0
    %452 = vmatprep.subr.bf16.mxu0 0
    %453 = vmatpush2.bf16.msra.mxu0 0
    %454 = vmatprep.subr.bf16.mxu0 0
    %455 = vmatpush2.bf16.msra.mxu0 0
    %456 = vmatprep.mubr.bf16.mxu0 0
    %457 = vmatmul.mubr.bf16.gmra.mxu0 %v404
    %v458 = vpop.f32.mrf.mxu0
    %v459 = vadd.f32 0.0, %v458
    %v460 = vpop.f32.mrf.mxu0
    %v461 = vpop.f32.mrf.mxu0
    %v462 = vadd.f32 0.0, %v461
    %v463 = vpop.f32.mrf.mxu0
    %464 = vmatprep.mubr.bf16.mxu0 0
    %465 = vmatmul.mubr.bf16.gmra.mxu0 %v407
    %v466 = vpop.f32.mrf.mxu0
    %v467 = vadd.f32 0.0, %v466
    %v468 = vpop.f32.mrf.mxu0
    %v469 = vpop.f32.mrf.mxu0
    %v470 = vadd.f32 0.0, %v469
    %v471 = vpop.f32.mrf.mxu0
    %472 = vmatprep.mubr.bf16.mxu0 0
    %473 = vmatmul.mubr.bf16.gmra.mxu0 %v410
    %v474 = vpop.f32.mrf.mxu0
    %v475 = vadd.f32 0.0, %v474
    %v476 = vpop.f32.mrf.mxu0
    %v477 = vpop.f32.mrf.mxu0
    %v478 = vadd.f32 0.0, %v477
    %v479 = vpop.f32.mrf.mxu0
    %480 = vmatprep.mubr.bf16.mxu0 0
    %481 = vmatmul.mubr.bf16.gmra.mxu0 %v413
    %v482 = vpop.f32.mrf.mxu0
    %v483 = vadd.f32 0.0, %v482
    %v484 = vpop.f32.mrf.mxu0
    %v485 = vpop.f32.mrf.mxu0
    %v486 = vadd.f32 0.0, %v485
    %v487 = vpop.f32.mrf.mxu0
    %488 = vmatprep.mubr.bf16.mxu0 0
    %489 = vmatmul.mubr.bf16.gmra.mxu0 %v416
    %v490 = vpop.f32.mrf.mxu0
    %v491 = vadd.f32 0.0, %v490
    %v492 = vpop.f32.mrf.mxu0
    %v493 = vpop.f32.mrf.mxu0
    %v494 = vadd.f32 0.0, %v493
    %v495 = vpop.f32.mrf.mxu0
    %496 = vmatprep.mubr.bf16.mxu0 0
    %497 = vmatmul.mubr.bf16.gmra.mxu0 %v419
    %v498 = vpop.f32.mrf.mxu0
    %v499 = vadd.f32 0.0, %v498
    %v500 = vpop.f32.mrf.mxu0
    %v501 = vpop.f32.mrf.mxu0
    %v502 = vpop.f32.mrf.mxu0
    %503 = vdwg.mxu0
    %v504 = vadd.f32 %v317, %v459
    %v505 = vadd.f32 %v320, %v462
    %v506 = vadd.f32 %v325, %v467
    %v507 = vadd.f32 %v328, %v470
    %v508 = vadd.f32 %v333, %v475
    %v509 = vadd.f32 %v336, %v478
    %v510 = vadd.f32 %v341, %v483
    %v511 = vadd.f32 %v344, %v486
    %v512 = vadd.f32 %v349, %v491
    %v513 = vadd.f32 %v352, %v494
    %v514 = vadd.f32 %v357, %v499
    %v515 = vld [vmem:[%s0 + $0x6] sm:$0xff]
    %v516 = vld [vmem:[%s0 + $0xe] sm:$0xff]
    %v517 = vld [vmem:[%s0 + $0x16] sm:$0xff]
    %v518 = vld [vmem:[%s0 + $0x1e] sm:$0xff]
    %v519 = vld [vmem:[%s0 + $0x26] sm:$0xff]
    %v520 = vld [vmem:[%s0 + $0x2e] sm:$0xff]
    %v521 = vld [vmem:[%s0 + $0x36] sm:$0xff]
    %v522 = vld [vmem:[%s0 + $0x3e] sm:$0xff]
    %v523 = vld [vmem:[%s0 + $0x46] sm:$0xff]
    %v524 = vld [vmem:[%s0 + $0x4e] sm:$0xff]
    %v525 = vld [vmem:[%s0 + $0x56] sm:$0xf]
    %v526 = vpack.c.bf16 %v516, %v515
    %v527 = vpack.c.bf16 %v518, %v517
    %v528 = vpack.c.bf16 %v520, %v519
    %v529 = vpack.c.bf16 %v522, %v521
    %v530 = vpack.c.bf16 %v524, %v523
    %v531 = vpack.c.bf16 %v525, %v525
    %s532 = scalar_lea.vmem %s1, 84
    %v533 = vld [vmem:[%s532] sm:$0xf]
    %v534 = vld [vmem:[%s532 + $0x4] sm:$0xf]
    %v535 = vld [vmem:[%s532 + $0x8] sm:$0xf]
    %v536 = vld [vmem:[%s532 + $0xc] sm:$0xf]
    %v537 = vld [vmem:[%s532 + $0x10] sm:$0xf]
    %v538 = vld [vmem:[%s532 + $0x14] sm:$0xf]
    %v539 = vld [vmem:[%s532 + $0x18] sm:$0xf]
    %v547 = vunpack.c.l.b16 %v533
    %v548 = vunpack.c.l.b16 %v534
    %v549 = vunpack.c.l.b16 %v535
    %v550 = vunpack.c.l.b16 %v536
    %v551 = vunpack.c.l.b16 %v537
    %v552 = vunpack.c.l.b16 %v538
    %v553 = vunpack.c.l.b16 %v539
    %v554 = vpack.c.b16 %v548, %v547
    %v555 = vpack.c.b16 %v550, %v549
    %v556 = vpack.c.b16 %v552, %v551
    %v557 = vpack.c.b16 %v553, %v553
    %v562 = vsel %vm137, %v526, 0
    %v565 = vsel %vm137, %v527, 0
    %v568 = vsel %vm137, %v528, 0
    %v571 = vsel %vm137, %v529, 0
    %v574 = vsel %vm137, %v530, 0
    %v577 = vsel %vm137, %v531, 0
    %v580 = vsel %vm156, %v557, 0
    %582 = vmatprep.subr.bf16.mxu0 0
    %583 = vmatpush1.bf16.msra.mxu0 0
    %584 = vmatprep.subr.bf16.mxu0 0
    %585 = vmatpush1.bf16.msra.mxu0 0
    %586 = vmatprep.subr.bf16.mxu0 0
    %587 = vmatpush1.bf16.msra.mxu0 0
    %588 = vmatprep.subr.bf16.mxu0 0
    %589 = vmatpush1.bf16.msra.mxu0 0
    %590 = vmatprep.subr.bf16.mxu0 0
    %591 = vmatpush1.bf16.msra.mxu0 %v580
    %592 = vmatprep.subr.bf16.mxu0 0
    %593 = vmatpush1.bf16.msra.mxu0 %v556
    %594 = vmatprep.subr.bf16.mxu0 0
    %595 = vmatpush1.bf16.msra.mxu0 %v555
    %596 = vmatprep.subr.bf16.mxu0 0
    %597 = vmatpush1.bf16.msra.mxu0 %v554
    %598 = vmatprep.subr.bf16.mxu0 0
    %599 = vmatpush2.bf16.msra.mxu0 0
    %600 = vmatprep.subr.bf16.mxu0 0
    %601 = vmatpush2.bf16.msra.mxu0 0
    %602 = vmatprep.subr.bf16.mxu0 0
    %603 = vmatpush2.bf16.msra.mxu0 0
    %604 = vmatprep.subr.bf16.mxu0 0
    %605 = vmatpush2.bf16.msra.mxu0 0
    %606 = vmatprep.subr.bf16.mxu0 0
    %607 = vmatpush2.bf16.msra.mxu0 0
    %608 = vmatprep.subr.bf16.mxu0 0
    %609 = vmatpush2.bf16.msra.mxu0 0
    %610 = vmatprep.subr.bf16.mxu0 0
    %611 = vmatpush2.bf16.msra.mxu0 0
    %612 = vmatprep.subr.bf16.mxu0 0
    %613 = vmatpush2.bf16.msra.mxu0 0
    %614 = vmatprep.mubr.bf16.mxu0 0
    %615 = vmatmul.mubr.bf16.gmra.mxu0 %v562
    %v616 = vpop.f32.mrf.mxu0
    %v617 = vadd.f32 0.0, %v616
    %v618 = vpop.f32.mrf.mxu0
    %v619 = vpop.f32.mrf.mxu0
    %v620 = vadd.f32 0.0, %v619
    %v621 = vpop.f32.mrf.mxu0
    %622 = vmatprep.mubr.bf16.mxu0 0
    %623 = vmatmul.mubr.bf16.gmra.mxu0 %v565
    %v624 = vpop.f32.mrf.mxu0
    %v625 = vadd.f32 0.0, %v624
    %v626 = vpop.f32.mrf.mxu0
    %v627 = vpop.f32.mrf.mxu0
    %v628 = vadd.f32 0.0, %v627
    %v629 = vpop.f32.mrf.mxu0
    %630 = vmatprep.mubr.bf16.mxu0 0
    %631 = vmatmul.mubr.bf16.gmra.mxu0 %v568
    %v632 = vpop.f32.mrf.mxu0
    %v633 = vadd.f32 0.0, %v632
    %v634 = vpop.f32.mrf.mxu0
    %v635 = vpop.f32.mrf.mxu0
    %v636 = vadd.f32 0.0, %v635
    %v637 = vpop.f32.mrf.mxu0
    %638 = vmatprep.mubr.bf16.mxu0 0
    %639 = vmatmul.mubr.bf16.gmra.mxu0 %v571
    %v640 = vpop.f32.mrf.mxu0
    %v641 = vadd.f32 0.0, %v640
    %v642 = vpop.f32.mrf.mxu0
    %v643 = vpop.f32.mrf.mxu0
    %v644 = vadd.f32 0.0, %v643
    %v645 = vpop.f32.mrf.mxu0
    %646 = vmatprep.mubr.bf16.mxu0 0
    %647 = vmatmul.mubr.bf16.gmra.mxu0 %v574
    %v648 = vpop.f32.mrf.mxu0
    %v649 = vadd.f32 0.0, %v648
    %v650 = vpop.f32.mrf.mxu0
    %v651 = vpop.f32.mrf.mxu0
    %v652 = vadd.f32 0.0, %v651
    %v653 = vpop.f32.mrf.mxu0
    %654 = vmatprep.mubr.bf16.mxu0 0
    %655 = vmatmul.mubr.bf16.gmra.mxu0 %v577
    %v656 = vpop.f32.mrf.mxu0
    %v657 = vadd.f32 0.0, %v656
    %v658 = vpop.f32.mrf.mxu0
    %v659 = vpop.f32.mrf.mxu0
    %v660 = vpop.f32.mrf.mxu0
    %661 = vdwg.mxu0
    %v662 = vadd.f32 %v504, %v617
    %v663 = vadd.f32 %v505, %v620
    %v664 = vadd.f32 %v506, %v625
    %v665 = vadd.f32 %v507, %v628
    %v666 = vadd.f32 %v508, %v633
    %v667 = vadd.f32 %v509, %v636
    %v668 = vadd.f32 %v510, %v641
    %v669 = vadd.f32 %v511, %v644
    %v670 = vadd.f32 %v512, %v649
    %v671 = vadd.f32 %v513, %v652
    %v672 = vadd.f32 %v514, %v657
    %s673 = scalar_lea.vmem %s1, 112
    %v674 = vld [vmem:[%s673] sm:$0xf]
    %v675 = vld [vmem:[%s673 + $0x4] sm:$0xf]
    %v676 = vld [vmem:[%s673 + $0x8] sm:$0xf]
    %v677 = vld [vmem:[%s673 + $0xc] sm:$0xf]
    %v678 = vld [vmem:[%s673 + $0x10] sm:$0xf]
    %v679 = vld [vmem:[%s673 + $0x14] sm:$0xf]
    %v680 = vld [vmem:[%s673 + $0x18] sm:$0xf]
    %687 = vrot.lane.b32.xlu0 %v526, 124
    %v688 = vpop.permute.xlu0 %687
    %689 = vrot.lane.b32.xlu0 %v527, 124
    %v690 = vpop.permute.xlu0 %689
    %691 = vrot.lane.b32.xlu0 %v528, 124
    %v692 = vpop.permute.xlu0 %691
    %693 = vrot.lane.b32.xlu0 %v529, 124
    %v694 = vpop.permute.xlu0 %693
    %695 = vrot.lane.b32.xlu0 %v530, 124
    %v696 = vpop.permute.xlu0 %695
    %697 = vrot.lane.b32.xlu0 %v531, 124
    %v698 = vpop.permute.xlu0 %697
    %v706 = vunpack.c.l.b16 %v674
    %v707 = vunpack.c.l.b16 %v675
    %v708 = vunpack.c.l.b16 %v676
    %v709 = vunpack.c.l.b16 %v677
    %v710 = vunpack.c.l.b16 %v678
    %v711 = vunpack.c.l.b16 %v679
    %v712 = vunpack.c.l.b16 %v680
    %v713 = vpack.c.b16 %v707, %v706
    %v714 = vpack.c.b16 %v709, %v708
    %v715 = vpack.c.b16 %v711, %v710
    %v716 = vpack.c.b16 %v712, %v712
    %v721 = vsel %vm137, %v688, 0
    %v724 = vsel %vm137, %v690, 0
    %v727 = vsel %vm137, %v692, 0
    %v730 = vsel %vm137, %v694, 0
    %v733 = vsel %vm137, %v696, 0
    %v736 = vsel %vm137, %v698, 0
    %v739 = vsel %vm156, %v716, 0
    %741 = vmatprep.subr.bf16.mxu0 0
    %742 = vmatpush1.bf16.msra.mxu0 0
    %743 = vmatprep.subr.bf16.mxu0 0
    %744 = vmatpush1.bf16.msra.mxu0 0
    %745 = vmatprep.subr.bf16.mxu0 0
    %746 = vmatpush1.bf16.msra.mxu0 0
    %747 = vmatprep.subr.bf16.mxu0 0
    %748 = vmatpush1.bf16.msra.mxu0 0
    %749 = vmatprep.subr.bf16.mxu0 0
    %750 = vmatpush1.bf16.msra.mxu0 %v739
    %751 = vmatprep.subr.bf16.mxu0 0
    %752 = vmatpush1.bf16.msra.mxu0 %v715
    %753 = vmatprep.subr.bf16.mxu0 0
    %754 = vmatpush1.bf16.msra.mxu0 %v714
    %755 = vmatprep.subr.bf16.mxu0 0
    %756 = vmatpush1.bf16.msra.mxu0 %v713
    %757 = vmatprep.subr.bf16.mxu0 0
    %758 = vmatpush2.bf16.msra.mxu0 0
    %759 = vmatprep.subr.bf16.mxu0 0
    %760 = vmatpush2.bf16.msra.mxu0 0
    %761 = vmatprep.subr.bf16.mxu0 0
    %762 = vmatpush2.bf16.msra.mxu0 0
    %763 = vmatprep.subr.bf16.mxu0 0
    %764 = vmatpush2.bf16.msra.mxu0 0
    %765 = vmatprep.subr.bf16.mxu0 0
    %766 = vmatpush2.bf16.msra.mxu0 0
    %767 = vmatprep.subr.bf16.mxu0 0
    %768 = vmatpush2.bf16.msra.mxu0 0
    %769 = vmatprep.subr.bf16.mxu0 0
    %770 = vmatpush2.bf16.msra.mxu0 0
    %771 = vmatprep.subr.bf16.mxu0 0
    %772 = vmatpush2.bf16.msra.mxu0 0
    %773 = vmatprep.mubr.bf16.mxu0 0
    %774 = vmatmul.mubr.bf16.gmra.mxu0 %v721
    %v775 = vpop.f32.mrf.mxu0
    %v776 = vadd.f32 0.0, %v775
    %v777 = vpop.f32.mrf.mxu0
    %v778 = vpop.f32.mrf.mxu0
    %v779 = vadd.f32 0.0, %v778
    %v780 = vpop.f32.mrf.mxu0
    %781 = vmatprep.mubr.bf16.mxu0 0
    %782 = vmatmul.mubr.bf16.gmra.mxu0 %v724
    %v783 = vpop.f32.mrf.mxu0
    %v784 = vadd.f32 0.0, %v783
    %v785 = vpop.f32.mrf.mxu0
    %v786 = vpop.f32.mrf.mxu0
    %v787 = vadd.f32 0.0, %v786
    %v788 = vpop.f32.mrf.mxu0
    %789 = vmatprep.mubr.bf16.mxu0 0
    %790 = vmatmul.mubr.bf16.gmra.mxu0 %v727
    %v791 = vpop.f32.mrf.mxu0
    %v792 = vadd.f32 0.0, %v791
    %v793 = vpop.f32.mrf.mxu0
    %v794 = vpop.f32.mrf.mxu0
    %v795 = vadd.f32 0.0, %v794
    %v796 = vpop.f32.mrf.mxu0
    %797 = vmatprep.mubr.bf16.mxu0 0
    %798 = vmatmul.mubr.bf16.gmra.mxu0 %v730
    %v799 = vpop.f32.mrf.mxu0
    %v800 = vadd.f32 0.0, %v799
    %v801 = vpop.f32.mrf.mxu0
    %v802 = vpop.f32.mrf.mxu0
    %v803 = vadd.f32 0.0, %v802
    %v804 = vpop.f32.mrf.mxu0
    %805 = vmatprep.mubr.bf16.mxu0 0
    %806 = vmatmul.mubr.bf16.gmra.mxu0 %v733
    %v807 = vpop.f32.mrf.mxu0
    %v808 = vadd.f32 0.0, %v807
    %v809 = vpop.f32.mrf.mxu0
    %v810 = vpop.f32.mrf.mxu0
    %v811 = vadd.f32 0.0, %v810
    %v812 = vpop.f32.mrf.mxu0
    %813 = vmatprep.mubr.bf16.mxu0 0
    %814 = vmatmul.mubr.bf16.gmra.mxu0 %v736
    %v815 = vpop.f32.mrf.mxu0
    %v816 = vadd.f32 0.0, %v815
    %v817 = vpop.f32.mrf.mxu0
    %v818 = vpop.f32.mrf.mxu0
    %v819 = vpop.f32.mrf.mxu0
    %820 = vdwg.mxu0
    %v821 = vadd.f32 %v662, %v776
    %v822 = vadd.f32 %v663, %v779
    %v823 = vadd.f32 %v664, %v784
    %v824 = vadd.f32 %v665, %v787
    %v825 = vadd.f32 %v666, %v792
    %v826 = vadd.f32 %v667, %v795
    %v827 = vadd.f32 %v668, %v800
    %v828 = vadd.f32 %v669, %v803
    %v829 = vadd.f32 %v670, %v808
    %v830 = vadd.f32 %v671, %v811
    %v831 = vadd.f32 %v672, %v816
    %s832 = scalar_lea.vmem %s1, 140
    %v833 = vld [vmem:[%s832] sm:$0xf]
    %v834 = vld [vmem:[%s832 + $0x4] sm:$0xf]
    %v835 = vld [vmem:[%s832 + $0x8] sm:$0xf]
    %v836 = vld [vmem:[%s832 + $0xc] sm:$0xf]
    %v837 = vld [vmem:[%s832 + $0x10] sm:$0xf]
    %v838 = vld [vmem:[%s832 + $0x14] sm:$0xf]
    %v839 = vld [vmem:[%s832 + $0x18] sm:$0xf]
    %840 = vrot.lane.b32.xlu0 %v526, 120
    %v841 = vpop.permute.xlu0 %840
    %842 = vrot.lane.b32.xlu0 %v527, 120
    %v843 = vpop.permute.xlu0 %842
    %844 = vrot.lane.b32.xlu0 %v528, 120
    %v845 = vpop.permute.xlu0 %844
    %846 = vrot.lane.b32.xlu0 %v529, 120
    %v847 = vpop.permute.xlu0 %846
    %848 = vrot.lane.b32.xlu0 %v530, 120
    %v849 = vpop.permute.xlu0 %848
    %850 = vrot.lane.b32.xlu0 %v531, 120
    %v851 = vpop.permute.xlu0 %850
    %v859 = vunpack.c.l.b16 %v833
    %v860 = vunpack.c.l.b16 %v834
    %v861 = vunpack.c.l.b16 %v835
    %v862 = vunpack.c.l.b16 %v836
    %v863 = vunpack.c.l.b16 %v837
    %v864 = vunpack.c.l.b16 %v838
    %v865 = vunpack.c.l.b16 %v839
    %v866 = vpack.c.b16 %v860, %v859
    %v867 = vpack.c.b16 %v862, %v861
    %v868 = vpack.c.b16 %v864, %v863
    %v869 = vpack.c.b16 %v865, %v865
    %v874 = vsel %vm137, %v841, 0
    %v877 = vsel %vm137, %v843, 0
    %v880 = vsel %vm137, %v845, 0
    %v883 = vsel %vm137, %v847, 0
    %v886 = vsel %vm137, %v849, 0
    %v889 = vsel %vm137, %v851, 0
    %v892 = vsel %vm156, %v869, 0
    %894 = vmatprep.subr.bf16.mxu0 0
    %895 = vmatpush1.bf16.msra.mxu0 0
    %896 = vmatprep.subr.bf16.mxu0 0
    %897 = vmatpush1.bf16.msra.mxu0 0
    %898 = vmatprep.subr.bf16.mxu0 0
    %899 = vmatpush1.bf16.msra.mxu0 0
    %900 = vmatprep.subr.bf16.mxu0 0
    %901 = vmatpush1.bf16.msra.mxu0 0
    %902 = vmatprep.subr.bf16.mxu0 0
    %903 = vmatpush1.bf16.msra.mxu0 %v892
    %904 = vmatprep.subr.bf16.mxu0 0
    %905 = vmatpush1.bf16.msra.mxu0 %v868
    %906 = vmatprep.subr.bf16.mxu0 0
    %907 = vmatpush1.bf16.msra.mxu0 %v867
    %908 = vmatprep.subr.bf16.mxu0 0
    %909 = vmatpush1.bf16.msra.mxu0 %v866
    %910 = vmatprep.subr.bf16.mxu0 0
    %911 = vmatpush2.bf16.msra.mxu0 0
    %912 = vmatprep.subr.bf16.mxu0 0
    %913 = vmatpush2.bf16.msra.mxu0 0
    %914 = vmatprep.subr.bf16.mxu0 0
    %915 = vmatpush2.bf16.msra.mxu0 0
    %916 = vmatprep.subr.bf16.mxu0 0
    %917 = vmatpush2.bf16.msra.mxu0 0
    %918 = vmatprep.subr.bf16.mxu0 0
    %919 = vmatpush2.bf16.msra.mxu0 0
    %920 = vmatprep.subr.bf16.mxu0 0
    %921 = vmatpush2.bf16.msra.mxu0 0
    %922 = vmatprep.subr.bf16.mxu0 0
    %923 = vmatpush2.bf16.msra.mxu0 0
    %924 = vmatprep.subr.bf16.mxu0 0
    %925 = vmatpush2.bf16.msra.mxu0 0
    %926 = vmatprep.mubr.bf16.mxu0 0
    %927 = vmatmul.mubr.bf16.gmra.mxu0 %v874
    %v928 = vpop.f32.mrf.mxu0
    %v929 = vadd.f32 0.0, %v928
    %v930 = vpop.f32.mrf.mxu0
    %v931 = vpop.f32.mrf.mxu0
    %v932 = vadd.f32 0.0, %v931
    %v933 = vpop.f32.mrf.mxu0
    %934 = vmatprep.mubr.bf16.mxu0 0
    %935 = vmatmul.mubr.bf16.gmra.mxu0 %v877
    %v936 = vpop.f32.mrf.mxu0
    %v937 = vadd.f32 0.0, %v936
    %v938 = vpop.f32.mrf.mxu0
    %v939 = vpop.f32.mrf.mxu0
    %v940 = vadd.f32 0.0, %v939
    %v941 = vpop.f32.mrf.mxu0
    %942 = vmatprep.mubr.bf16.mxu0 0
    %943 = vmatmul.mubr.bf16.gmra.mxu0 %v880
    %v944 = vpop.f32.mrf.mxu0
    %v945 = vadd.f32 0.0, %v944
    %v946 = vpop.f32.mrf.mxu0
    %v947 = vpop.f32.mrf.mxu0
    %v948 = vadd.f32 0.0, %v947
    %v949 = vpop.f32.mrf.mxu0
    %950 = vmatprep.mubr.bf16.mxu0 0
    %951 = vmatmul.mubr.bf16.gmra.mxu0 %v883
    %v952 = vpop.f32.mrf.mxu0
    %v953 = vadd.f32 0.0, %v952
    %v954 = vpop.f32.mrf.mxu0
    %v955 = vpop.f32.mrf.mxu0
    %v956 = vadd.f32 0.0, %v955
    %v957 = vpop.f32.mrf.mxu0
    %958 = vmatprep.mubr.bf16.mxu0 0
    %959 = vmatmul.mubr.bf16.gmra.mxu0 %v886
    %v960 = vpop.f32.mrf.mxu0
    %v961 = vadd.f32 0.0, %v960
    %v962 = vpop.f32.mrf.mxu0
    %v963 = vpop.f32.mrf.mxu0
    %v964 = vadd.f32 0.0, %v963
    %v965 = vpop.f32.mrf.mxu0
    %966 = vmatprep.mubr.bf16.mxu0 0
    %967 = vmatmul.mubr.bf16.gmra.mxu0 %v889
    %v968 = vpop.f32.mrf.mxu0
    %v969 = vadd.f32 0.0, %v968
    %v970 = vpop.f32.mrf.mxu0
    %v971 = vpop.f32.mrf.mxu0
    %v972 = vpop.f32.mrf.mxu0
    %973 = vdwg.mxu0
    %v974 = vadd.f32 %v821, %v929
    %v975 = vadd.f32 %v822, %v932
    %v976 = vadd.f32 %v823, %v937
    %v977 = vadd.f32 %v824, %v940
    %v978 = vadd.f32 %v825, %v945
    %v979 = vadd.f32 %v826, %v948
    %v980 = vadd.f32 %v827, %v953
    %v981 = vadd.f32 %v828, %v956
    %v982 = vadd.f32 %v829, %v961
    %v983 = vadd.f32 %v830, %v964
    %v984 = vadd.f32 %v831, %v969
    %v985 = vld [vmem:[%s0 + $0xc] sm:$0xff]
    %v986 = vld [vmem:[%s0 + $0x14] sm:$0xff]
    %v987 = vld [vmem:[%s0 + $0x1c] sm:$0xff]
    %v988 = vld [vmem:[%s0 + $0x24] sm:$0xff]
    %v989 = vld [vmem:[%s0 + $0x2c] sm:$0xff]
    %v990 = vld [vmem:[%s0 + $0x34] sm:$0xff]
    %v991 = vld [vmem:[%s0 + $0x3c] sm:$0xff]
    %v992 = vld [vmem:[%s0 + $0x44] sm:$0xff]
    %v993 = vld [vmem:[%s0 + $0x4c] sm:$0xff]
    %v994 = vld [vmem:[%s0 + $0x54] sm:$0xff]
    %v995 = vld [vmem:[%s0 + $0x5c] sm:$0xf]
    %v996 = vpack.c.bf16 %v986, %v985
    %v997 = vpack.c.bf16 %v988, %v987
    %v998 = vpack.c.bf16 %v990, %v989
    %v999 = vpack.c.bf16 %v992, %v991
    %v1000 = vpack.c.bf16 %v994, %v993
    %v1001 = vpack.c.bf16 %v995, %v995
    %s1002 = scalar_lea.vmem %s1, 168
    %v1003 = vld [vmem:[%s1002] sm:$0xf]
    %v1004 = vld [vmem:[%s1002 + $0x4] sm:$0xf]
    %v1005 = vld [vmem:[%s1002 + $0x8] sm:$0xf]
    %v1006 = vld [vmem:[%s1002 + $0xc] sm:$0xf]
    %v1007 = vld [vmem:[%s1002 + $0x10] sm:$0xf]
    %v1008 = vld [vmem:[%s1002 + $0x14] sm:$0xf]
    %v1009 = vld [vmem:[%s1002 + $0x18] sm:$0xf]
    %v1017 = vunpack.c.l.b16 %v1003
    %v1018 = vunpack.c.l.b16 %v1004
    %v1019 = vunpack.c.l.b16 %v1005
    %v1020 = vunpack.c.l.b16 %v1006
    %v1021 = vunpack.c.l.b16 %v1007
    %v1022 = vunpack.c.l.b16 %v1008
    %v1023 = vunpack.c.l.b16 %v1009
    %v1024 = vpack.c.b16 %v1018, %v1017
    %v1025 = vpack.c.b16 %v1020, %v1019
    %v1026 = vpack.c.b16 %v1022, %v1021
    %v1027 = vpack.c.b16 %v1023, %v1023
    %v1032 = vsel %vm137, %v996, 0
    %v1035 = vsel %vm137, %v997, 0
    %v1038 = vsel %vm137, %v998, 0
    %v1041 = vsel %vm137, %v999, 0
    %v1044 = vsel %vm137, %v1000, 0
    %v1047 = vsel %vm137, %v1001, 0
    %v1050 = vsel %vm156, %v1027, 0
    %1052 = vmatprep.subr.bf16.mxu0 0
    %1053 = vmatpush1.bf16.msra.mxu0 0
    %1054 = vmatprep.subr.bf16.mxu0 0
    %1055 = vmatpush1.bf16.msra.mxu0 0
    %1056 = vmatprep.subr.bf16.mxu0 0
    %1057 = vmatpush1.bf16.msra.mxu0 0
    %1058 = vmatprep.subr.bf16.mxu0 0
    %1059 = vmatpush1.bf16.msra.mxu0 0
    %1060 = vmatprep.subr.bf16.mxu0 0
    %1061 = vmatpush1.bf16.msra.mxu0 %v1050
    %1062 = vmatprep.subr.bf16.mxu0 0
    %1063 = vmatpush1.bf16.msra.mxu0 %v1026
    %1064 = vmatprep.subr.bf16.mxu0 0
    %1065 = vmatpush1.bf16.msra.mxu0 %v1025
    %1066 = vmatprep.subr.bf16.mxu0 0
    %1067 = vmatpush1.bf16.msra.mxu0 %v1024
    %1068 = vmatprep.subr.bf16.mxu0 0
    %1069 = vmatpush2.bf16.msra.mxu0 0
    %1070 = vmatprep.subr.bf16.mxu0 0
    %1071 = vmatpush2.bf16.msra.mxu0 0
    %1072 = vmatprep.subr.bf16.mxu0 0
    %1073 = vmatpush2.bf16.msra.mxu0 0
    %1074 = vmatprep.subr.bf16.mxu0 0
    %1075 = vmatpush2.bf16.msra.mxu0 0
    %1076 = vmatprep.subr.bf16.mxu0 0
    %1077 = vmatpush2.bf16.msra.mxu0 0
    %1078 = vmatprep.subr.bf16.mxu0 0
    %1079 = vmatpush2.bf16.msra.mxu0 0
    %1080 = vmatprep.subr.bf16.mxu0 0
    %1081 = vmatpush2.bf16.msra.mxu0 0
    %1082 = vmatprep.subr.bf16.mxu0 0
    %1083 = vmatpush2.bf16.msra.mxu0 0
    %1084 = vmatprep.mubr.bf16.mxu0 0
    %1085 = vmatmul.mubr.bf16.gmra.mxu0 %v1032
    %v1086 = vpop.f32.mrf.mxu0
    %v1087 = vadd.f32 0.0, %v1086
    %v1088 = vpop.f32.mrf.mxu0
    %v1089 = vpop.f32.mrf.mxu0
    %v1090 = vadd.f32 0.0, %v1089
    %v1091 = vpop.f32.mrf.mxu0
    %1092 = vmatprep.mubr.bf16.mxu0 0
    %1093 = vmatmul.mubr.bf16.gmra.mxu0 %v1035
    %v1094 = vpop.f32.mrf.mxu0
    %v1095 = vadd.f32 0.0, %v1094
    %v1096 = vpop.f32.mrf.mxu0
    %v1097 = vpop.f32.mrf.mxu0
    %v1098 = vadd.f32 0.0, %v1097
    %v1099 = vpop.f32.mrf.mxu0
    %1100 = vmatprep.mubr.bf16.mxu0 0
    %1101 = vmatmul.mubr.bf16.gmra.mxu0 %v1038
    %v1102 = vpop.f32.mrf.mxu0
    %v1103 = vadd.f32 0.0, %v1102
    %v1104 = vpop.f32.mrf.mxu0
    %v1105 = vpop.f32.mrf.mxu0
    %v1106 = vadd.f32 0.0, %v1105
    %v1107 = vpop.f32.mrf.mxu0
    %1108 = vmatprep.mubr.bf16.mxu0 0
    %1109 = vmatmul.mubr.bf16.gmra.mxu0 %v1041
    %v1110 = vpop.f32.mrf.mxu0
    %v1111 = vadd.f32 0.0, %v1110
    %v1112 = vpop.f32.mrf.mxu0
    %v1113 = vpop.f32.mrf.mxu0
    %v1114 = vadd.f32 0.0, %v1113
    %v1115 = vpop.f32.mrf.mxu0
    %1116 = vmatprep.mubr.bf16.mxu0 0
    %1117 = vmatmul.mubr.bf16.gmra.mxu0 %v1044
    %v1118 = vpop.f32.mrf.mxu0
    %v1119 = vadd.f32 0.0, %v1118
    %v1120 = vpop.f32.mrf.mxu0
    %v1121 = vpop.f32.mrf.mxu0
    %v1122 = vadd.f32 0.0, %v1121
    %v1123 = vpop.f32.mrf.mxu0
    %1124 = vmatprep.mubr.bf16.mxu0 0
    %1125 = vmatmul.mubr.bf16.gmra.mxu0 %v1047
    %v1126 = vpop.f32.mrf.mxu0
    %v1127 = vadd.f32 0.0, %v1126
    %v1128 = vpop.f32.mrf.mxu0
    %v1129 = vpop.f32.mrf.mxu0
    %v1130 = vpop.f32.mrf.mxu0
    %1131 = vdwg.mxu0
    %v1132 = vadd.f32 %v974, %v1087
    %v1133 = vadd.f32 %v975, %v1090
    %v1134 = vadd.f32 %v976, %v1095
    %v1135 = vadd.f32 %v977, %v1098
    %v1136 = vadd.f32 %v978, %v1103
    %v1137 = vadd.f32 %v979, %v1106
    %v1138 = vadd.f32 %v980, %v1111
    %v1139 = vadd.f32 %v981, %v1114
    %v1140 = vadd.f32 %v982, %v1119
    %v1141 = vadd.f32 %v983, %v1122
    %v1142 = vadd.f32 %v984, %v1127
    %s1143 = scalar_lea.vmem %s1, 196
    %v1144 = vld [vmem:[%s1143] sm:$0xf]
    %v1145 = vld [vmem:[%s1143 + $0x4] sm:$0xf]
    %v1146 = vld [vmem:[%s1143 + $0x8] sm:$0xf]
    %v1147 = vld [vmem:[%s1143 + $0xc] sm:$0xf]
    %v1148 = vld [vmem:[%s1143 + $0x10] sm:$0xf]
    %v1149 = vld [vmem:[%s1143 + $0x14] sm:$0xf]
    %v1150 = vld [vmem:[%s1143 + $0x18] sm:$0xf]
    %1157 = vrot.lane.b32.xlu0 %v996, 124
    %v1158 = vpop.permute.xlu0 %1157
    %1159 = vrot.lane.b32.xlu0 %v997, 124
    %v1160 = vpop.permute.xlu0 %1159
    %1161 = vrot.lane.b32.xlu0 %v998, 124
    %v1162 = vpop.permute.xlu0 %1161
    %1163 = vrot.lane.b32.xlu0 %v999, 124
    %v1164 = vpop.permute.xlu0 %1163
    %1165 = vrot.lane.b32.xlu0 %v1000, 124
    %v1166 = vpop.permute.xlu0 %1165
    %1167 = vrot.lane.b32.xlu0 %v1001, 124
    %v1168 = vpop.permute.xlu0 %1167
    %v1176 = vunpack.c.l.b16 %v1144
    %v1177 = vunpack.c.l.b16 %v1145
    %v1178 = vunpack.c.l.b16 %v1146
    %v1179 = vunpack.c.l.b16 %v1147
    %v1180 = vunpack.c.l.b16 %v1148
    %v1181 = vunpack.c.l.b16 %v1149
    %v1182 = vunpack.c.l.b16 %v1150
    %v1183 = vpack.c.b16 %v1177, %v1176
    %v1184 = vpack.c.b16 %v1179, %v1178
    %v1185 = vpack.c.b16 %v1181, %v1180
    %v1186 = vpack.c.b16 %v1182, %v1182
    %v1191 = vsel %vm137, %v1158, 0
    %v1194 = vsel %vm137, %v1160, 0
    %v1197 = vsel %vm137, %v1162, 0
    %v1200 = vsel %vm137, %v1164, 0
    %v1203 = vsel %vm137, %v1166, 0
    %v1206 = vsel %vm137, %v1168, 0
    %v1209 = vsel %vm156, %v1186, 0
    %1211 = vmatprep.subr.bf16.mxu0 0
    %1212 = vmatpush1.bf16.msra.mxu0 0
    %1213 = vmatprep.subr.bf16.mxu0 0
    %1214 = vmatpush1.bf16.msra.mxu0 0
    %1215 = vmatprep.subr.bf16.mxu0 0
    %1216 = vmatpush1.bf16.msra.mxu0 0
    %1217 = vmatprep.subr.bf16.mxu0 0
    %1218 = vmatpush1.bf16.msra.mxu0 0
    %1219 = vmatprep.subr.bf16.mxu0 0
    %1220 = vmatpush1.bf16.msra.mxu0 %v1209
    %1221 = vmatprep.subr.bf16.mxu0 0
    %1222 = vmatpush1.bf16.msra.mxu0 %v1185
    %1223 = vmatprep.subr.bf16.mxu0 0
    %1224 = vmatpush1.bf16.msra.mxu0 %v1184
    %1225 = vmatprep.subr.bf16.mxu0 0
    %1226 = vmatpush1.bf16.msra.mxu0 %v1183
    %1227 = vmatprep.subr.bf16.mxu0 0
    %1228 = vmatpush2.bf16.msra.mxu0 0
    %1229 = vmatprep.subr.bf16.mxu0 0
    %1230 = vmatpush2.bf16.msra.mxu0 0
    %1231 = vmatprep.subr.bf16.mxu0 0
    %1232 = vmatpush2.bf16.msra.mxu0 0
    %1233 = vmatprep.subr.bf16.mxu0 0
    %1234 = vmatpush2.bf16.msra.mxu0 0
    %1235 = vmatprep.subr.bf16.mxu0 0
    %1236 = vmatpush2.bf16.msra.mxu0 0
    %1237 = vmatprep.subr.bf16.mxu0 0
    %1238 = vmatpush2.bf16.msra.mxu0 0
    %1239 = vmatprep.subr.bf16.mxu0 0
    %1240 = vmatpush2.bf16.msra.mxu0 0
    %1241 = vmatprep.subr.bf16.mxu0 0
    %1242 = vmatpush2.bf16.msra.mxu0 0
    %1243 = vmatprep.mubr.bf16.mxu0 0
    %1244 = vmatmul.mubr.bf16.gmra.mxu0 %v1191
    %v1245 = vpop.f32.mrf.mxu0
    %v1246 = vadd.f32 0.0, %v1245
    %v1247 = vpop.f32.mrf.mxu0
    %v1248 = vpop.f32.mrf.mxu0
    %v1249 = vadd.f32 0.0, %v1248
    %v1250 = vpop.f32.mrf.mxu0
    %1251 = vmatprep.mubr.bf16.mxu0 0
    %1252 = vmatmul.mubr.bf16.gmra.mxu0 %v1194
    %v1253 = vpop.f32.mrf.mxu0
    %v1254 = vadd.f32 0.0, %v1253
    %v1255 = vpop.f32.mrf.mxu0
    %v1256 = vpop.f32.mrf.mxu0
    %v1257 = vadd.f32 0.0, %v1256
    %v1258 = vpop.f32.mrf.mxu0
    %1259 = vmatprep.mubr.bf16.mxu0 0
    %1260 = vmatmul.mubr.bf16.gmra.mxu0 %v1197
    %v1261 = vpop.f32.mrf.mxu0
    %v1262 = vadd.f32 0.0, %v1261
    %v1263 = vpop.f32.mrf.mxu0
    %v1264 = vpop.f32.mrf.mxu0
    %v1265 = vadd.f32 0.0, %v1264
    %v1266 = vpop.f32.mrf.mxu0
    %1267 = vmatprep.mubr.bf16.mxu0 0
    %1268 = vmatmul.mubr.bf16.gmra.mxu0 %v1200
    %v1269 = vpop.f32.mrf.mxu0
    %v1270 = vadd.f32 0.0, %v1269
    %v1271 = vpop.f32.mrf.mxu0
    %v1272 = vpop.f32.mrf.mxu0
    %v1273 = vadd.f32 0.0, %v1272
    %v1274 = vpop.f32.mrf.mxu0
    %1275 = vmatprep.mubr.bf16.mxu0 0
    %1276 = vmatmul.mubr.bf16.gmra.mxu0 %v1203
    %v1277 = vpop.f32.mrf.mxu0
    %v1278 = vadd.f32 0.0, %v1277
    %v1279 = vpop.f32.mrf.mxu0
    %v1280 = vpop.f32.mrf.mxu0
    %v1281 = vadd.f32 0.0, %v1280
    %v1282 = vpop.f32.mrf.mxu0
    %1283 = vmatprep.mubr.bf16.mxu0 0
    %1284 = vmatmul.mubr.bf16.gmra.mxu0 %v1206
    %v1285 = vpop.f32.mrf.mxu0
    %v1286 = vadd.f32 0.0, %v1285
    %v1287 = vpop.f32.mrf.mxu0
    %v1288 = vpop.f32.mrf.mxu0
    %v1289 = vpop.f32.mrf.mxu0
    %1290 = vdwg.mxu0
    %v1291 = vadd.f32 %v1132, %v1246
    %v1292 = vadd.f32 %v1133, %v1249
    %v1293 = vadd.f32 %v1134, %v1254
    %v1294 = vadd.f32 %v1135, %v1257
    %v1295 = vadd.f32 %v1136, %v1262
    %v1296 = vadd.f32 %v1137, %v1265
    %v1297 = vadd.f32 %v1138, %v1270
    %v1298 = vadd.f32 %v1139, %v1273
    %v1299 = vadd.f32 %v1140, %v1278
    %v1300 = vadd.f32 %v1141, %v1281
    %v1301 = vadd.f32 %v1142, %v1286
    %s1302 = scalar_lea.vmem %s1, 224
    %v1303 = vld [vmem:[%s1302] sm:$0xf]
    %v1304 = vld [vmem:[%s1302 + $0x4] sm:$0xf]
    %v1305 = vld [vmem:[%s1302 + $0x8] sm:$0xf]
    %v1306 = vld [vmem:[%s1302 + $0xc] sm:$0xf]
    %v1307 = vld [vmem:[%s1302 + $0x10] sm:$0xf]
    %v1308 = vld [vmem:[%s1302 + $0x14] sm:$0xf]
    %v1309 = vld [vmem:[%s1302 + $0x18] sm:$0xf]
    %1310 = vrot.lane.b32.xlu0 %v996, 120
    %v1311 = vpop.permute.xlu0 %1310
    %1312 = vrot.lane.b32.xlu0 %v997, 120
    %v1313 = vpop.permute.xlu0 %1312
    %1314 = vrot.lane.b32.xlu0 %v998, 120
    %v1315 = vpop.permute.xlu0 %1314
    %1316 = vrot.lane.b32.xlu0 %v999, 120
    %v1317 = vpop.permute.xlu0 %1316
    %1318 = vrot.lane.b32.xlu0 %v1000, 120
    %v1319 = vpop.permute.xlu0 %1318
    %1320 = vrot.lane.b32.xlu0 %v1001, 120
    %v1321 = vpop.permute.xlu0 %1320
    %v1329 = vunpack.c.l.b16 %v1303
    %v1330 = vunpack.c.l.b16 %v1304
    %v1331 = vunpack.c.l.b16 %v1305
    %v1332 = vunpack.c.l.b16 %v1306
    %v1333 = vunpack.c.l.b16 %v1307
    %v1334 = vunpack.c.l.b16 %v1308
    %v1335 = vunpack.c.l.b16 %v1309
    %v1336 = vpack.c.b16 %v1330, %v1329
    %v1337 = vpack.c.b16 %v1332, %v1331
    %v1338 = vpack.c.b16 %v1334, %v1333
    %v1339 = vpack.c.b16 %v1335, %v1335
    %v1344 = vsel %vm137, %v1311, 0
    %v1347 = vsel %vm137, %v1313, 0
    %v1350 = vsel %vm137, %v1315, 0
    %v1353 = vsel %vm137, %v1317, 0
    %v1356 = vsel %vm137, %v1319, 0
    %v1359 = vsel %vm137, %v1321, 0
    %v1362 = vsel %vm156, %v1339, 0
    %1364 = vmatprep.subr.bf16.mxu0 0
    %1365 = vmatpush1.bf16.msra.mxu0 0
    %1366 = vmatprep.subr.bf16.mxu0 0
    %1367 = vmatpush1.bf16.msra.mxu0 0
    %1368 = vmatprep.subr.bf16.mxu0 0
    %1369 = vmatpush1.bf16.msra.mxu0 0
    %1370 = vmatprep.subr.bf16.mxu0 0
    %1371 = vmatpush1.bf16.msra.mxu0 0
    %1372 = vmatprep.subr.bf16.mxu0 0
    %1373 = vmatpush1.bf16.msra.mxu0 %v1362
    %1374 = vmatprep.subr.bf16.mxu0 0
    %1375 = vmatpush1.bf16.msra.mxu0 %v1338
    %1376 = vmatprep.subr.bf16.mxu0 0
    %1377 = vmatpush1.bf16.msra.mxu0 %v1337
    %1378 = vmatprep.subr.bf16.mxu0 0
    %1379 = vmatpush1.bf16.msra.mxu0 %v1336
    %1380 = vmatprep.subr.bf16.mxu0 0
    %1381 = vmatpush2.bf16.msra.mxu0 0
    %1382 = vmatprep.subr.bf16.mxu0 0
    %1383 = vmatpush2.bf16.msra.mxu0 0
    %1384 = vmatprep.subr.bf16.mxu0 0
    %1385 = vmatpush2.bf16.msra.mxu0 0
    %1386 = vmatprep.subr.bf16.mxu0 0
    %1387 = vmatpush2.bf16.msra.mxu0 0
    %1388 = vmatprep.subr.bf16.mxu0 0
    %1389 = vmatpush2.bf16.msra.mxu0 0
    %1390 = vmatprep.subr.bf16.mxu0 0
    %1391 = vmatpush2.bf16.msra.mxu0 0
    %1392 = vmatprep.subr.bf16.mxu0 0
    %1393 = vmatpush2.bf16.msra.mxu0 0
    %1394 = vmatprep.subr.bf16.mxu0 0
    %1395 = vmatpush2.bf16.msra.mxu0 0
    %1396 = vmatprep.mubr.bf16.mxu0 0
    %1397 = vmatmul.mubr.bf16.gmra.mxu0 %v1344
    %v1398 = vpop.f32.mrf.mxu0
    %v1399 = vadd.f32 0.0, %v1398
    %v1400 = vpop.f32.mrf.mxu0
    %v1401 = vpop.f32.mrf.mxu0
    %v1402 = vadd.f32 0.0, %v1401
    %v1403 = vpop.f32.mrf.mxu0
    %1404 = vmatprep.mubr.bf16.mxu0 0
    %1405 = vmatmul.mubr.bf16.gmra.mxu0 %v1347
    %v1406 = vpop.f32.mrf.mxu0
    %v1407 = vadd.f32 0.0, %v1406
    %v1408 = vpop.f32.mrf.mxu0
    %v1409 = vpop.f32.mrf.mxu0
    %v1410 = vadd.f32 0.0, %v1409
    %v1411 = vpop.f32.mrf.mxu0
    %1412 = vmatprep.mubr.bf16.mxu0 0
    %1413 = vmatmul.mubr.bf16.gmra.mxu0 %v1350
    %v1414 = vpop.f32.mrf.mxu0
    %v1415 = vadd.f32 0.0, %v1414
    %v1416 = vpop.f32.mrf.mxu0
    %v1417 = vpop.f32.mrf.mxu0
    %v1418 = vadd.f32 0.0, %v1417
    %v1419 = vpop.f32.mrf.mxu0
    %1420 = vmatprep.mubr.bf16.mxu0 0
    %1421 = vmatmul.mubr.bf16.gmra.mxu0 %v1353
    %v1422 = vpop.f32.mrf.mxu0
    %v1423 = vadd.f32 0.0, %v1422
    %v1424 = vpop.f32.mrf.mxu0
    %v1425 = vpop.f32.mrf.mxu0
    %v1426 = vadd.f32 0.0, %v1425
    %v1427 = vpop.f32.mrf.mxu0
    %1428 = vmatprep.mubr.bf16.mxu0 0
    %1429 = vmatmul.mubr.bf16.gmra.mxu0 %v1356
    %v1430 = vpop.f32.mrf.mxu0
    %v1431 = vadd.f32 0.0, %v1430
    %v1432 = vpop.f32.mrf.mxu0
    %v1433 = vpop.f32.mrf.mxu0
    %v1434 = vadd.f32 0.0, %v1433
    %v1435 = vpop.f32.mrf.mxu0
    %1436 = vmatprep.mubr.bf16.mxu0 0
    %1437 = vmatmul.mubr.bf16.gmra.mxu0 %v1359
    %v1438 = vpop.f32.mrf.mxu0
    %v1439 = vadd.f32 0.0, %v1438
    %v1440 = vpop.f32.mrf.mxu0
    %v1441 = vpop.f32.mrf.mxu0
    %v1442 = vpop.f32.mrf.mxu0
    %1443 = vdwg.mxu0
    %v1444 = vadd.f32 %v1291, %v1399
    %v1445 = vadd.f32 %v1292, %v1402
    %v1446 = vadd.f32 %v1293, %v1407
    %v1447 = vadd.f32 %v1294, %v1410
    %v1448 = vadd.f32 %v1295, %v1415
    %v1449 = vadd.f32 %v1296, %v1418
    %v1450 = vadd.f32 %v1297, %v1423
    %v1451 = vadd.f32 %v1298, %v1426
    %v1452 = vadd.f32 %v1299, %v1431
    %v1453 = vadd.f32 %v1300, %v1434
    %v1454 = vadd.f32 %v1301, %v1439
    %v1455 = vld [vmem:[%s2] sm:$0x1]
    %v1457 = vlaneseq
    %v1458 = vshrl.u32 %v1457, 7
    %v1459 = vsub.s32 0, %v1458
    %v1460 = vrot.slane %v1455, %v1459
    %v1462 = vmul.f32 %v1444, %v1460
    %v1463 = vmul.f32 %v1445, %v1460
    %v1464 = vmul.f32 %v1446, %v1460
    %v1465 = vmul.f32 %v1447, %v1460
    %v1466 = vmul.f32 %v1448, %v1460
    %v1467 = vmul.f32 %v1449, %v1460
    %v1468 = vmul.f32 %v1450, %v1460
    %v1469 = vmul.f32 %v1451, %v1460
    %v1470 = vmul.f32 %v1452, %v1460
    %v1471 = vmul.f32 %v1453, %v1460
    %v1472 = vmul.f32 %v1454, %v1460
    %v1473 = vld [vmem:[%s3] sm:$0x1]
    %v1475 = vlaneseq
    %v1476 = vshrl.u32 %v1475, 7
    %v1477 = vsub.s32 0, %v1476
    %v1478 = vrot.slane %v1473, %v1477
    %v1480 = vadd.f32 %v1462, %v1478
    %v1481 = vadd.f32 %v1463, %v1478
    %v1482 = vadd.f32 %v1464, %v1478
    %v1483 = vadd.f32 %v1465, %v1478
    %v1484 = vadd.f32 %v1466, %v1478
    %v1485 = vadd.f32 %v1467, %v1478
    %v1486 = vadd.f32 %v1468, %v1478
    %v1487 = vadd.f32 %v1469, %v1478
    %v1488 = vadd.f32 %v1470, %v1478
    %v1489 = vadd.f32 %v1471, %v1478
    %v1490 = vadd.f32 %v1472, %v1478
    %v1491 = vmax.f32 %v1480, 0.0
    %v1492 = vmax.f32 %v1481, 0.0
    %v1493 = vmax.f32 %v1482, 0.0
    %v1494 = vmax.f32 %v1483, 0.0
    %v1495 = vmax.f32 %v1484, 0.0
    %v1496 = vmax.f32 %v1485, 0.0
    %v1497 = vmax.f32 %v1486, 0.0
    %v1498 = vmax.f32 %v1487, 0.0
    %v1499 = vmax.f32 %v1488, 0.0
    %v1500 = vmax.f32 %v1489, 0.0
    %v1501 = vmax.f32 %v1490, 0.0
    %vm1502 = vcmask 916480
    %1503 = vst.msk [vmem:[#allocation2] sm:$0xff] %vm1502, %v1491
    %1504 = vst.msk [vmem:[#allocation2 + $0x8] sm:$0xff] %vm1502, %v1492
    %1505 = vst.msk [vmem:[#allocation2 + $0x10] sm:$0xff] %vm1502, %v1493
    %1506 = vst.msk [vmem:[#allocation2 + $0x18] sm:$0xff] %vm1502, %v1494
    %1507 = vst.msk [vmem:[#allocation2 + $0x20] sm:$0xff] %vm1502, %v1495
    %1508 = vst.msk [vmem:[#allocation2 + $0x28] sm:$0xff] %vm1502, %v1496
    %1509 = vst.msk [vmem:[#allocation2 + $0x30] sm:$0xff] %vm1502, %v1497
    %1510 = vst.msk [vmem:[#allocation2 + $0x38] sm:$0xff] %vm1502, %v1498
    %1511 = vst.msk [vmem:[#allocation2 + $0x40] sm:$0xff] %vm1502, %v1499
    %1512 = vst.msk [vmem:[#allocation2 + $0x48] sm:$0xff] %vm1502, %v1500
    %vm1513 = vcmask 912384
    %1514 = vst.msk [vmem:[#allocation2 + $0x50] sm:$0xf] %vm1513, %v1501
    %v1515 = vld [vmem:[#allocation2] sm:$0xff]
    %v1516 = vld [vmem:[#allocation2 + $0x8] sm:$0xff]
    %v1517 = vld [vmem:[#allocation2 + $0x10] sm:$0xff]
    %v1518 = vld [vmem:[#allocation2 + $0x18] sm:$0xff]
    %v1519 = vld [vmem:[#allocation2 + $0x20] sm:$0xff]
    %v1520 = vld [vmem:[#allocation2 + $0x28] sm:$0xff]
    %v1521 = vld [vmem:[#allocation2 + $0x30] sm:$0xff]
    %v1522 = vld [vmem:[#allocation2 + $0x38] sm:$0xff]
    %v1523 = vld [vmem:[#allocation2 + $0x40] sm:$0xff]
    %v1524 = vpack.c.bf16 %v1516, %v1515
    %v1525 = vpack.c.bf16 %v1518, %v1517
    %v1526 = vpack.c.bf16 %v1520, %v1519
    %v1527 = vpack.c.bf16 %v1522, %v1521
    %v1528 = vpack.c.bf16 %v1523, %v1523
    %v1529 = vld [vmem:[%s4] sm:$0xff]
    %v1530 = vld [vmem:[%s4 + $0x8] sm:$0xff]
    %v1531 = vld [vmem:[%s4 + $0x10] sm:$0xff]
    %v1532 = vld [vmem:[%s4 + $0x18] sm:$0xff]
    %v1533 = vld [vmem:[%s4 + $0x20] sm:$0xff]
    %v1534 = vld [vmem:[%s4 + $0x28] sm:$0xff]
    %v1535 = vld [vmem:[%s4 + $0x30] sm:$0xff]
    %v1536 = vld [vmem:[%s4 + $0x38] sm:$0xff]
    %v1537 = vld [vmem:[%s4 + $0x40] sm:$0xff]
    %v1538 = vld [vmem:[%s4 + $0x48] sm:$0xff]
    %v1539 = vld [vmem:[%s4 + $0x50] sm:$0xff]
    %v1540 = vld [vmem:[%s4 + $0x58] sm:$0xff]
    %s1541 = scalar_lea.vmem %s4, 96
    %v1542 = vld [vmem:[%s1541] sm:$0xff]
    %v1543 = vld [vmem:[%s1541 + $0x8] sm:$0xff]
    %v1544 = vld [vmem:[%s1541 + $0x10] sm:$0xff]
    %v1545 = vld [vmem:[%s1541 + $0x18] sm:$0xff]
    %v1546 = vld [vmem:[%s1541 + $0x20] sm:$0xff]
    %v1547 = vld [vmem:[%s1541 + $0x28] sm:$0xff]
    %v1548 = vld [vmem:[%s1541 + $0x30] sm:$0xff]
    %v1549 = vld [vmem:[%s1541 + $0x38] sm:$0xff]
    %v1550 = vld [vmem:[%s1541 + $0x40] sm:$0xff]
    %v1551 = vld [vmem:[%s1541 + $0x48] sm:$0xff]
    %v1552 = vld [vmem:[%s1541 + $0x50] sm:$0xff]
    %v1553 = vld [vmem:[%s1541 + $0x58] sm:$0xff]
    %1559 = vrot.lane.b32.xlu0 %v1524, 120
    %v1560 = vpop.permute.xlu0 %1559
    %1561 = vrot.lane.b32.xlu0 %v1525, 120
    %v1562 = vpop.permute.xlu0 %1561
    %1563 = vrot.lane.b32.xlu0 %v1526, 120
    %v1564 = vpop.permute.xlu0 %1563
    %1565 = vrot.lane.b32.xlu0 %v1527, 120
    %v1566 = vpop.permute.xlu0 %1565
    %1567 = vrot.lane.b32.xlu0 %v1528, 120
    %v1568 = vpop.permute.xlu0 %1567
    %v1581 = vunpack.c.l.b16 %v1542
    %v1582 = vunpack.c.h.b16 %v1542
    %v1583 = vunpack.c.l.b16 %v1543
    %v1584 = vunpack.c.h.b16 %v1543
    %v1585 = vunpack.c.l.b16 %v1544
    %v1586 = vunpack.c.h.b16 %v1544
    %v1587 = vunpack.c.l.b16 %v1545
    %v1588 = vunpack.c.h.b16 %v1545
    %v1589 = vunpack.c.l.b16 %v1546
    %v1590 = vunpack.c.h.b16 %v1546
    %v1591 = vunpack.c.l.b16 %v1547
    %v1592 = vunpack.c.h.b16 %v1547
    %v1593 = vunpack.c.l.b16 %v1548
    %v1594 = vunpack.c.h.b16 %v1548
    %v1595 = vunpack.c.l.b16 %v1549
    %v1596 = vunpack.c.h.b16 %v1549
    %v1597 = vunpack.c.l.b16 %v1550
    %v1598 = vunpack.c.h.b16 %v1550
    %v1599 = vunpack.c.l.b16 %v1551
    %v1600 = vunpack.c.h.b16 %v1551
    %v1601 = vunpack.c.l.b16 %v1552
    %v1602 = vunpack.c.h.b16 %v1552
    %v1603 = vunpack.c.l.b16 %v1553
    %v1604 = vunpack.c.h.b16 %v1553
    %v1605 = vpack.c.b16 %v1583, %v1581
    %v1606 = vpack.c.b16 %v1584, %v1582
    %v1607 = vpack.c.b16 %v1587, %v1585
    %v1608 = vpack.c.b16 %v1588, %v1586
    %v1609 = vpack.c.b16 %v1591, %v1589
    %v1610 = vpack.c.b16 %v1592, %v1590
    %v1611 = vpack.c.b16 %v1595, %v1593
    %v1612 = vpack.c.b16 %v1596, %v1594
    %v1613 = vpack.c.b16 %v1599, %v1597
    %v1614 = vpack.c.b16 %v1600, %v1598
    %v1615 = vpack.c.b16 %v1603, %v1601
    %v1616 = vpack.c.b16 %v1604, %v1602
    %vm1629 = vcmask 785408
    %v1631 = vsel %vm1629, %v1560, 0
    %v1634 = vsel %vm1629, %v1562, 0
    %v1637 = vsel %vm1629, %v1564, 0
    %v1640 = vsel %vm1629, %v1566, 0
    %v1643 = vsel %vm1629, %v1568, 0
    %1645 = vmatprep.subr.bf16.mxu0 0
    %1646 = vmatpush1.bf16.msra.mxu0 0
    %1647 = vmatprep.subr.bf16.mxu0 0
    %1648 = vmatpush1.bf16.msra.mxu0 0
    %1649 = vmatprep.subr.bf16.mxu0 %v1616
    %1650 = vmatpush1.bf16.msra.mxu0 %v1615
    %1651 = vmatprep.subr.bf16.mxu0 %v1614
    %1652 = vmatpush1.bf16.msra.mxu0 %v1613
    %1653 = vmatprep.subr.bf16.mxu0 %v1612
    %1654 = vmatpush1.bf16.msra.mxu0 %v1611
    %1655 = vmatprep.subr.bf16.mxu0 %v1610
    %1656 = vmatpush1.bf16.msra.mxu0 %v1609
    %1657 = vmatprep.subr.bf16.mxu0 %v1608
    %1658 = vmatpush1.bf16.msra.mxu0 %v1607
    %1659 = vmatprep.subr.bf16.mxu0 %v1606
    %1660 = vmatpush1.bf16.msra.mxu0 %v1605
    %1661 = vmatprep.subr.bf16.mxu0 0
    %1662 = vmatpush2.bf16.msra.mxu0 0
    %1663 = vmatprep.subr.bf16.mxu0 0
    %1664 = vmatpush2.bf16.msra.mxu0 0
    %1665 = vmatprep.subr.bf16.mxu0 0
    %1666 = vmatpush2.bf16.msra.mxu0 0
    %1667 = vmatprep.subr.bf16.mxu0 0
    %1668 = vmatpush2.bf16.msra.mxu0 0
    %1669 = vmatprep.subr.bf16.mxu0 0
    %1670 = vmatpush2.bf16.msra.mxu0 0
    %1671 = vmatprep.subr.bf16.mxu0 0
    %1672 = vmatpush2.bf16.msra.mxu0 0
    %1673 = vmatprep.subr.bf16.mxu0 0
    %1674 = vmatpush2.bf16.msra.mxu0 0
    %1675 = vmatprep.subr.bf16.mxu0 0
    %1676 = vmatpush2.bf16.msra.mxu0 0
    %1677 = vmatprep.mubr.bf16.mxu0 0
    %1678 = vmatmul.mubr.bf16.gmra.mxu0 %v1631
    %v1679 = vpop.f32.mrf.mxu0
    %v1680 = vadd.f32 0.0, %v1679
    %v1681 = vpop.f32.mrf.mxu0
    %v1682 = vadd.f32 0.0, %v1681
    %v1683 = vpop.f32.mrf.mxu0
    %v1684 = vadd.f32 0.0, %v1683
    %v1685 = vpop.f32.mrf.mxu0
    %v1686 = vadd.f32 0.0, %v1685
    %1687 = vmatprep.mubr.bf16.mxu0 0
    %1688 = vmatmul.mubr.bf16.gmra.mxu0 %v1634
    %v1689 = vpop.f32.mrf.mxu0
    %v1690 = vadd.f32 0.0, %v1689
    %v1691 = vpop.f32.mrf.mxu0
    %v1692 = vadd.f32 0.0, %v1691
    %v1693 = vpop.f32.mrf.mxu0
    %v1694 = vadd.f32 0.0, %v1693
    %v1695 = vpop.f32.mrf.mxu0
    %v1696 = vadd.f32 0.0, %v1695
    %1697 = vmatprep.mubr.bf16.mxu0 0
    %1698 = vmatmul.mubr.bf16.gmra.mxu0 %v1637
    %v1699 = vpop.f32.mrf.mxu0
    %v1700 = vadd.f32 0.0, %v1699
    %v1701 = vpop.f32.mrf.mxu0
    %v1702 = vadd.f32 0.0, %v1701
    %v1703 = vpop.f32.mrf.mxu0
    %v1704 = vadd.f32 0.0, %v1703
    %v1705 = vpop.f32.mrf.mxu0
    %v1706 = vadd.f32 0.0, %v1705
    %1707 = vmatprep.mubr.bf16.mxu0 0
    %1708 = vmatmul.mubr.bf16.gmra.mxu0 %v1640
    %v1709 = vpop.f32.mrf.mxu0
    %v1710 = vadd.f32 0.0, %v1709
    %v1711 = vpop.f32.mrf.mxu0
    %v1712 = vadd.f32 0.0, %v1711
    %v1713 = vpop.f32.mrf.mxu0
    %v1714 = vadd.f32 0.0, %v1713
    %v1715 = vpop.f32.mrf.mxu0
    %v1716 = vadd.f32 0.0, %v1715
    %1717 = vmatprep.mubr.bf16.mxu0 0
    %1718 = vmatmul.mubr.bf16.gmra.mxu0 %v1643
    %v1719 = vpop.f32.mrf.mxu0
    %v1720 = vadd.f32 0.0, %v1719
    %v1721 = vpop.f32.mrf.mxu0
    %v1722 = vadd.f32 0.0, %v1721
    %v1723 = vpop.f32.mrf.mxu0
    %v1724 = vpop.f32.mrf.mxu0
    %1725 = vdwg.mxu0
    %v1738 = vunpack.c.l.b16 %v1529
    %v1739 = vunpack.c.h.b16 %v1529
    %v1740 = vunpack.c.l.b16 %v1530
    %v1741 = vunpack.c.h.b16 %v1530
    %v1742 = vunpack.c.l.b16 %v1531
    %v1743 = vunpack.c.h.b16 %v1531
    %v1744 = vunpack.c.l.b16 %v1532
    %v1745 = vunpack.c.h.b16 %v1532
    %v1746 = vunpack.c.l.b16 %v1533
    %v1747 = vunpack.c.h.b16 %v1533
    %v1748 = vunpack.c.l.b16 %v1534
    %v1749 = vunpack.c.h.b16 %v1534
    %v1750 = vunpack.c.l.b16 %v1535
    %v1751 = vunpack.c.h.b16 %v1535
    %v1752 = vunpack.c.l.b16 %v1536
    %v1753 = vunpack.c.h.b16 %v1536
    %v1754 = vunpack.c.l.b16 %v1537
    %v1755 = vunpack.c.h.b16 %v1537
    %v1756 = vunpack.c.l.b16 %v1538
    %v1757 = vunpack.c.h.b16 %v1538
    %v1758 = vunpack.c.l.b16 %v1539
    %v1759 = vunpack.c.h.b16 %v1539
    %v1760 = vunpack.c.l.b16 %v1540
    %v1761 = vunpack.c.h.b16 %v1540
    %v1762 = vpack.c.b16 %v1740, %v1738
    %v1763 = vpack.c.b16 %v1741, %v1739
    %v1764 = vpack.c.b16 %v1744, %v1742
    %v1765 = vpack.c.b16 %v1745, %v1743
    %v1766 = vpack.c.b16 %v1748, %v1746
    %v1767 = vpack.c.b16 %v1749, %v1747
    %v1768 = vpack.c.b16 %v1752, %v1750
    %v1769 = vpack.c.b16 %v1753, %v1751
    %v1770 = vpack.c.b16 %v1756, %v1754
    %v1771 = vpack.c.b16 %v1757, %v1755
    %v1772 = vpack.c.b16 %v1760, %v1758
    %v1773 = vpack.c.b16 %v1761, %v1759
    %v1787 = vsel %vm1629, %v1524, 0
    %v1790 = vsel %vm1629, %v1525, 0
    %v1793 = vsel %vm1629, %v1526, 0
    %v1796 = vsel %vm1629, %v1527, 0
    %v1799 = vsel %vm1629, %v1528, 0
    %1801 = vmatprep.subr.bf16.mxu0 0
    %1802 = vmatpush1.bf16.msra.mxu0 0
    %1803 = vmatprep.subr.bf16.mxu0 0
    %1804 = vmatpush1.bf16.msra.mxu0 0
    %1805 = vmatprep.subr.bf16.mxu0 %v1773
    %1806 = vmatpush1.bf16.msra.mxu0 %v1772
    %1807 = vmatprep.subr.bf16.mxu0 %v1771
    %1808 = vmatpush1.bf16.msra.mxu0 %v1770
    %1809 = vmatprep.subr.bf16.mxu0 %v1769
    %1810 = vmatpush1.bf16.msra.mxu0 %v1768
    %1811 = vmatprep.subr.bf16.mxu0 %v1767
    %1812 = vmatpush1.bf16.msra.mxu0 %v1766
    %1813 = vmatprep.subr.bf16.mxu0 %v1765
    %1814 = vmatpush1.bf16.msra.mxu0 %v1764
    %1815 = vmatprep.subr.bf16.mxu0 %v1763
    %1816 = vmatpush1.bf16.msra.mxu0 %v1762
    %1817 = vmatprep.subr.bf16.mxu0 0
    %1818 = vmatpush2.bf16.msra.mxu0 0
    %1819 = vmatprep.subr.bf16.mxu0 0
    %1820 = vmatpush2.bf16.msra.mxu0 0
    %1821 = vmatprep.subr.bf16.mxu0 0
    %1822 = vmatpush2.bf16.msra.mxu0 0
    %1823 = vmatprep.subr.bf16.mxu0 0
    %1824 = vmatpush2.bf16.msra.mxu0 0
    %1825 = vmatprep.subr.bf16.mxu0 0
    %1826 = vmatpush2.bf16.msra.mxu0 0
    %1827 = vmatprep.subr.bf16.mxu0 0
    %1828 = vmatpush2.bf16.msra.mxu0 0
    %1829 = vmatprep.subr.bf16.mxu0 0
    %1830 = vmatpush2.bf16.msra.mxu0 0
    %1831 = vmatprep.subr.bf16.mxu0 0
    %1832 = vmatpush2.bf16.msra.mxu0 0
    %1833 = vmatprep.mubr.bf16.mxu0 0
    %1834 = vmatmul.mubr.bf16.gmra.mxu0 %v1787
    %v1835 = vpop.f32.mrf.mxu0
    %v1836 = vadd.f32 %v1680, %v1835
    %v1837 = vpop.f32.mrf.mxu0
    %v1838 = vadd.f32 %v1682, %v1837
    %v1839 = vpop.f32.mrf.mxu0
    %v1840 = vadd.f32 %v1684, %v1839
    %v1841 = vpop.f32.mrf.mxu0
    %v1842 = vadd.f32 %v1686, %v1841
    %1843 = vmatprep.mubr.bf16.mxu0 0
    %1844 = vmatmul.mubr.bf16.gmra.mxu0 %v1790
    %v1845 = vpop.f32.mrf.mxu0
    %v1846 = vadd.f32 %v1690, %v1845
    %v1847 = vpop.f32.mrf.mxu0
    %v1848 = vadd.f32 %v1692, %v1847
    %v1849 = vpop.f32.mrf.mxu0
    %v1850 = vadd.f32 %v1694, %v1849
    %v1851 = vpop.f32.mrf.mxu0
    %v1852 = vadd.f32 %v1696, %v1851
    %1853 = vmatprep.mubr.bf16.mxu0 0
    %1854 = vmatmul.mubr.bf16.gmra.mxu0 %v1793
    %v1855 = vpop.f32.mrf.mxu0
    %v1856 = vadd.f32 %v1700, %v1855
    %v1857 = vpop.f32.mrf.mxu0
    %v1858 = vadd.f32 %v1702, %v1857
    %v1859 = vpop.f32.mrf.mxu0
    %v1860 = vadd.f32 %v1704, %v1859
    %v1861 = vpop.f32.mrf.mxu0
    %v1862 = vadd.f32 %v1706, %v1861
    %1863 = vmatprep.mubr.bf16.mxu0 0
    %1864 = vmatmul.mubr.bf16.gmra.mxu0 %v1796
    %v1865 = vpop.f32.mrf.mxu0
    %v1866 = vadd.f32 %v1710, %v1865
    %v1867 = vpop.f32.mrf.mxu0
    %v1868 = vadd.f32 %v1712, %v1867
    %v1869 = vpop.f32.mrf.mxu0
    %v1870 = vadd.f32 %v1714, %v1869
    %v1871 = vpop.f32.mrf.mxu0
    %v1872 = vadd.f32 %v1716, %v1871
    %1873 = vmatprep.mubr.bf16.mxu0 0
    %1874 = vmatmul.mubr.bf16.gmra.mxu0 %v1799
    %v1875 = vpop.f32.mrf.mxu0
    %v1876 = vadd.f32 %v1720, %v1875
    %v1877 = vpop.f32.mrf.mxu0
    %v1878 = vadd.f32 %v1722, %v1877
    %v1879 = vpop.f32.mrf.mxu0
    %v1880 = vpop.f32.mrf.mxu0
    %1881 = vdwg.mxu0
    %s1882 = scalar_lea.vmem %s4, 192
    %v1883 = vld [vmem:[%s1882] sm:$0xff]
    %v1884 = vld [vmem:[%s1882 + $0x8] sm:$0xff]
    %v1885 = vld [vmem:[%s1882 + $0x10] sm:$0xff]
    %v1886 = vld [vmem:[%s1882 + $0x18] sm:$0xff]
    %v1887 = vld [vmem:[%s1882 + $0x20] sm:$0xff]
    %v1888 = vld [vmem:[%s1882 + $0x28] sm:$0xff]
    %v1889 = vld [vmem:[%s1882 + $0x30] sm:$0xff]
    %v1890 = vld [vmem:[%s1882 + $0x38] sm:$0xff]
    %v1891 = vld [vmem:[%s1882 + $0x40] sm:$0xff]
    %v1892 = vld [vmem:[%s1882 + $0x48] sm:$0xff]
    %v1893 = vld [vmem:[%s1882 + $0x50] sm:$0xff]
    %v1894 = vld [vmem:[%s1882 + $0x58] sm:$0xff]
    %1895 = vrot.lane.b32.xlu0 %v1524, 112
    %v1896 = vpop.permute.xlu0 %1895
    %1897 = vrot.lane.b32.xlu0 %v1525, 112
    %v1898 = vpop.permute.xlu0 %1897
    %1899 = vrot.lane.b32.xlu0 %v1526, 112
    %v1900 = vpop.permute.xlu0 %1899
    %1901 = vrot.lane.b32.xlu0 %v1527, 112
    %v1902 = vpop.permute.xlu0 %1901
    %1903 = vrot.lane.b32.xlu0 %v1528, 112
    %v1904 = vpop.permute.xlu0 %1903
    %v1917 = vunpack.c.l.b16 %v1883
    %v1918 = vunpack.c.h.b16 %v1883
    %v1919 = vunpack.c.l.b16 %v1884
    %v1920 = vunpack.c.h.b16 %v1884
    %v1921 = vunpack.c.l.b16 %v1885
    %v1922 = vunpack.c.h.b16 %v1885
    %v1923 = vunpack.c.l.b16 %v1886
    %v1924 = vunpack.c.h.b16 %v1886
    %v1925 = vunpack.c.l.b16 %v1887
    %v1926 = vunpack.c.h.b16 %v1887
    %v1927 = vunpack.c.l.b16 %v1888
    %v1928 = vunpack.c.h.b16 %v1888
    %v1929 = vunpack.c.l.b16 %v1889
    %v1930 = vunpack.c.h.b16 %v1889
    %v1931 = vunpack.c.l.b16 %v1890
    %v1932 = vunpack.c.h.b16 %v1890
    %v1933 = vunpack.c.l.b16 %v1891
    %v1934 = vunpack.c.h.b16 %v1891
    %v1935 = vunpack.c.l.b16 %v1892
    %v1936 = vunpack.c.h.b16 %v1892
    %v1937 = vunpack.c.l.b16 %v1893
    %v1938 = vunpack.c.h.b16 %v1893
    %v1939 = vunpack.c.l.b16 %v1894
    %v1940 = vunpack.c.h.b16 %v1894
    %v1941 = vpack.c.b16 %v1919, %v1917
    %v1942 = vpack.c.b16 %v1920, %v1918
    %v1943 = vpack.c.b16 %v1923, %v1921
    %v1944 = vpack.c.b16 %v1924, %v1922
    %v1945 = vpack.c.b16 %v1927, %v1925
    %v1946 = vpack.c.b16 %v1928, %v1926
    %v1947 = vpack.c.b16 %v1931, %v1929
    %v1948 = vpack.c.b16 %v1932, %v1930
    %v1949 = vpack.c.b16 %v1935, %v1933
    %v1950 = vpack.c.b16 %v1936, %v1934
    %v1951 = vpack.c.b16 %v1939, %v1937
    %v1952 = vpack.c.b16 %v1940, %v1938
    %v1966 = vsel %vm1629, %v1896, 0
    %v1969 = vsel %vm1629, %v1898, 0
    %v1972 = vsel %vm1629, %v1900, 0
    %v1975 = vsel %vm1629, %v1902, 0
    %v1978 = vsel %vm1629, %v1904, 0
    %1980 = vmatprep.subr.bf16.mxu0 0
    %1981 = vmatpush1.bf16.msra.mxu0 0
    %1982 = vmatprep.subr.bf16.mxu0 0
    %1983 = vmatpush1.bf16.msra.mxu0 0
    %1984 = vmatprep.subr.bf16.mxu0 %v1952
    %1985 = vmatpush1.bf16.msra.mxu0 %v1951
    %1986 = vmatprep.subr.bf16.mxu0 %v1950
    %1987 = vmatpush1.bf16.msra.mxu0 %v1949
    %1988 = vmatprep.subr.bf16.mxu0 %v1948
    %1989 = vmatpush1.bf16.msra.mxu0 %v1947
    %1990 = vmatprep.subr.bf16.mxu0 %v1946
    %1991 = vmatpush1.bf16.msra.mxu0 %v1945
    %1992 = vmatprep.subr.bf16.mxu0 %v1944
    %1993 = vmatpush1.bf16.msra.mxu0 %v1943
    %1994 = vmatprep.subr.bf16.mxu0 %v1942
    %1995 = vmatpush1.bf16.msra.mxu0 %v1941
    %1996 = vmatprep.subr.bf16.mxu0 0
    %1997 = vmatpush2.bf16.msra.mxu0 0
    %1998 = vmatprep.subr.bf16.mxu0 0
    %1999 = vmatpush2.bf16.msra.mxu0 0
    %2000 = vmatprep.subr.bf16.mxu0 0
    %2001 = vmatpush2.bf16.msra.mxu0 0
    %2002 = vmatprep.subr.bf16.mxu0 0
    %2003 = vmatpush2.bf16.msra.mxu0 0
    %2004 = vmatprep.subr.bf16.mxu0 0
    %2005 = vmatpush2.bf16.msra.mxu0 0
    %2006 = vmatprep.subr.bf16.mxu0 0
    %2007 = vmatpush2.bf16.msra.mxu0 0
    %2008 = vmatprep.subr.bf16.mxu0 0
    %2009 = vmatpush2.bf16.msra.mxu0 0
    %2010 = vmatprep.subr.bf16.mxu0 0
    %2011 = vmatpush2.bf16.msra.mxu0 0
    %2012 = vmatprep.mubr.bf16.mxu0 0
    %2013 = vmatmul.mubr.bf16.gmra.mxu0 %v1966
    %v2014 = vpop.f32.mrf.mxu0
    %v2015 = vadd.f32 0.0, %v2014
    %v2016 = vpop.f32.mrf.mxu0
    %v2017 = vadd.f32 0.0, %v2016
    %v2018 = vpop.f32.mrf.mxu0
    %v2019 = vadd.f32 0.0, %v2018
    %v2020 = vpop.f32.mrf.mxu0
    %v2021 = vadd.f32 0.0, %v2020
    %2022 = vmatprep.mubr.bf16.mxu0 0
    %2023 = vmatmul.mubr.bf16.gmra.mxu0 %v1969
    %v2024 = vpop.f32.mrf.mxu0
    %v2025 = vadd.f32 0.0, %v2024
    %v2026 = vpop.f32.mrf.mxu0
    %v2027 = vadd.f32 0.0, %v2026
    %v2028 = vpop.f32.mrf.mxu0
    %v2029 = vadd.f32 0.0, %v2028
    %v2030 = vpop.f32.mrf.mxu0
    %v2031 = vadd.f32 0.0, %v2030
    %2032 = vmatprep.mubr.bf16.mxu0 0
    %2033 = vmatmul.mubr.bf16.gmra.mxu0 %v1972
    %v2034 = vpop.f32.mrf.mxu0
    %v2035 = vadd.f32 0.0, %v2034
    %v2036 = vpop.f32.mrf.mxu0
    %v2037 = vadd.f32 0.0, %v2036
    %v2038 = vpop.f32.mrf.mxu0
    %v2039 = vadd.f32 0.0, %v2038
    %v2040 = vpop.f32.mrf.mxu0
    %v2041 = vadd.f32 0.0, %v2040
    %2042 = vmatprep.mubr.bf16.mxu0 0
    %2043 = vmatmul.mubr.bf16.gmra.mxu0 %v1975
    %v2044 = vpop.f32.mrf.mxu0
    %v2045 = vadd.f32 0.0, %v2044
    %v2046 = vpop.f32.mrf.mxu0
    %v2047 = vadd.f32 0.0, %v2046
    %v2048 = vpop.f32.mrf.mxu0
    %v2049 = vadd.f32 0.0, %v2048
    %v2050 = vpop.f32.mrf.mxu0
    %v2051 = vadd.f32 0.0, %v2050
    %2052 = vmatprep.mubr.bf16.mxu0 0
    %2053 = vmatmul.mubr.bf16.gmra.mxu0 %v1978
    %v2054 = vpop.f32.mrf.mxu0
    %v2055 = vadd.f32 0.0, %v2054
    %v2056 = vpop.f32.mrf.mxu0
    %v2057 = vadd.f32 0.0, %v2056
    %v2058 = vpop.f32.mrf.mxu0
    %v2059 = vpop.f32.mrf.mxu0
    %2060 = vdwg.mxu0
    %v2061 = vadd.f32 %v1836, %v2015
    %v2062 = vadd.f32 %v1838, %v2017
    %v2063 = vadd.f32 %v1840, %v2019
    %v2064 = vadd.f32 %v1842, %v2021
    %v2065 = vadd.f32 %v1846, %v2025
    %v2066 = vadd.f32 %v1848, %v2027
    %v2067 = vadd.f32 %v1850, %v2029
    %v2068 = vadd.f32 %v1852, %v2031
    %v2069 = vadd.f32 %v1856, %v2035
    %v2070 = vadd.f32 %v1858, %v2037
    %v2071 = vadd.f32 %v1860, %v2039
    %v2072 = vadd.f32 %v1862, %v2041
    %v2073 = vadd.f32 %v1866, %v2045
    %v2074 = vadd.f32 %v1868, %v2047
    %v2075 = vadd.f32 %v1870, %v2049
    %v2076 = vadd.f32 %v1872, %v2051
    %v2077 = vadd.f32 %v1876, %v2055
    %v2078 = vadd.f32 %v1878, %v2057
    %v2079 = vld [vmem:[#allocation2 + $0x6] sm:$0xff]
    %v2080 = vld [vmem:[#allocation2 + $0xe] sm:$0xff]
    %v2081 = vld [vmem:[#allocation2 + $0x16] sm:$0xff]
    %v2082 = vld [vmem:[#allocation2 + $0x1e] sm:$0xff]
    %v2083 = vld [vmem:[#allocation2 + $0x26] sm:$0xff]
    %v2084 = vld [vmem:[#allocation2 + $0x2e] sm:$0xff]
    %v2085 = vld [vmem:[#allocation2 + $0x36] sm:$0xff]
    %v2086 = vld [vmem:[#allocation2 + $0x3e] sm:$0xff]
    %v2087 = vld [vmem:[#allocation2 + $0x46] sm:$0xff]
    %v2088 = vpack.c.bf16 %v2080, %v2079
    %v2089 = vpack.c.bf16 %v2082, %v2081
    %v2090 = vpack.c.bf16 %v2084, %v2083
    %v2091 = vpack.c.bf16 %v2086, %v2085
    %v2092 = vpack.c.bf16 %v2087, %v2087
    %s2093 = scalar_lea.vmem %s4, 288
    %v2094 = vld [vmem:[%s2093] sm:$0xff]
    %v2095 = vld [vmem:[%s2093 + $0x8] sm:$0xff]
    %v2096 = vld [vmem:[%s2093 + $0x10] sm:$0xff]
    %v2097 = vld [vmem:[%s2093 + $0x18] sm:$0xff]
    %v2098 = vld [vmem:[%s2093 + $0x20] sm:$0xff]
    %v2099 = vld [vmem:[%s2093 + $0x28] sm:$0xff]
    %v2100 = vld [vmem:[%s2093 + $0x30] sm:$0xff]
    %v2101 = vld [vmem:[%s2093 + $0x38] sm:$0xff]
    %v2102 = vld [vmem:[%s2093 + $0x40] sm:$0xff]
    %v2103 = vld [vmem:[%s2093 + $0x48] sm:$0xff]
    %v2104 = vld [vmem:[%s2093 + $0x50] sm:$0xff]
    %v2105 = vld [vmem:[%s2093 + $0x58] sm:$0xff]
    %v2118 = vunpack.c.l.b16 %v2094
    %v2119 = vunpack.c.h.b16 %v2094
    %v2120 = vunpack.c.l.b16 %v2095
    %v2121 = vunpack.c.h.b16 %v2095
    %v2122 = vunpack.c.l.b16 %v2096
    %v2123 = vunpack.c.h.b16 %v2096
    %v2124 = vunpack.c.l.b16 %v2097
    %v2125 = vunpack.c.h.b16 %v2097
    %v2126 = vunpack.c.l.b16 %v2098
    %v2127 = vunpack.c.h.b16 %v2098
    %v2128 = vunpack.c.l.b16 %v2099
    %v2129 = vunpack.c.h.b16 %v2099
    %v2130 = vunpack.c.l.b16 %v2100
    %v2131 = vunpack.c.h.b16 %v2100
    %v2132 = vunpack.c.l.b16 %v2101
    %v2133 = vunpack.c.h.b16 %v2101
    %v2134 = vunpack.c.l.b16 %v2102
    %v2135 = vunpack.c.h.b16 %v2102
    %v2136 = vunpack.c.l.b16 %v2103
    %v2137 = vunpack.c.h.b16 %v2103
    %v2138 = vunpack.c.l.b16 %v2104
    %v2139 = vunpack.c.h.b16 %v2104
    %v2140 = vunpack.c.l.b16 %v2105
    %v2141 = vunpack.c.h.b16 %v2105
    %v2142 = vpack.c.b16 %v2120, %v2118
    %v2143 = vpack.c.b16 %v2121, %v2119
    %v2144 = vpack.c.b16 %v2124, %v2122
    %v2145 = vpack.c.b16 %v2125, %v2123
    %v2146 = vpack.c.b16 %v2128, %v2126
    %v2147 = vpack.c.b16 %v2129, %v2127
    %v2148 = vpack.c.b16 %v2132, %v2130
    %v2149 = vpack.c.b16 %v2133, %v2131
    %v2150 = vpack.c.b16 %v2136, %v2134
    %v2151 = vpack.c.b16 %v2137, %v2135
    %v2152 = vpack.c.b16 %v2140, %v2138
    %v2153 = vpack.c.b16 %v2141, %v2139
    %v2167 = vsel %vm1629, %v2088, 0
    %v2170 = vsel %vm1629, %v2089, 0
    %v2173 = vsel %vm1629, %v2090, 0
    %v2176 = vsel %vm1629, %v2091, 0
    %v2179 = vsel %vm1629, %v2092, 0
    %2181 = vmatprep.subr.bf16.mxu0 0
    %2182 = vmatpush1.bf16.msra.mxu0 0
    %2183 = vmatprep.subr.bf16.mxu0 0
    %2184 = vmatpush1.bf16.msra.mxu0 0
    %2185 = vmatprep.subr.bf16.mxu0 %v2153
    %2186 = vmatpush1.bf16.msra.mxu0 %v2152
    %2187 = vmatprep.subr.bf16.mxu0 %v2151
    %2188 = vmatpush1.bf16.msra.mxu0 %v2150
    %2189 = vmatprep.subr.bf16.mxu0 %v2149
    %2190 = vmatpush1.bf16.msra.mxu0 %v2148
    %2191 = vmatprep.subr.bf16.mxu0 %v2147
    %2192 = vmatpush1.bf16.msra.mxu0 %v2146
    %2193 = vmatprep.subr.bf16.mxu0 %v2145
    %2194 = vmatpush1.bf16.msra.mxu0 %v2144
    %2195 = vmatprep.subr.bf16.mxu0 %v2143
    %2196 = vmatpush1.bf16.msra.mxu0 %v2142
    %2197 = vmatprep.subr.bf16.mxu0 0
    %2198 = vmatpush2.bf16.msra.mxu0 0
    %2199 = vmatprep.subr.bf16.mxu0 0
    %2200 = vmatpush2.bf16.msra.mxu0 0
    %2201 = vmatprep.subr.bf16.mxu0 0
    %2202 = vmatpush2.bf16.msra.mxu0 0
    %2203 = vmatprep.subr.bf16.mxu0 0
    %2204 = vmatpush2.bf16.msra.mxu0 0
    %2205 = vmatprep.subr.bf16.mxu0 0
    %2206 = vmatpush2.bf16.msra.mxu0 0
    %2207 = vmatprep.subr.bf16.mxu0 0
    %2208 = vmatpush2.bf16.msra.mxu0 0
    %2209 = vmatprep.subr.bf16.mxu0 0
    %2210 = vmatpush2.bf16.msra.mxu0 0
    %2211 = vmatprep.subr.bf16.mxu0 0
    %2212 = vmatpush2.bf16.msra.mxu0 0
    %2213 = vmatprep.mubr.bf16.mxu0 0
    %2214 = vmatmul.mubr.bf16.gmra.mxu0 %v2167
    %v2215 = vpop.f32.mrf.mxu0
    %v2216 = vadd.f32 0.0, %v2215
    %v2217 = vpop.f32.mrf.mxu0
    %v2218 = vadd.f32 0.0, %v2217
    %v2219 = vpop.f32.mrf.mxu0
    %v2220 = vadd.f32 0.0, %v2219
    %v2221 = vpop.f32.mrf.mxu0
    %v2222 = vadd.f32 0.0, %v2221
    %2223 = vmatprep.mubr.bf16.mxu0 0
    %2224 = vmatmul.mubr.bf16.gmra.mxu0 %v2170
    %v2225 = vpop.f32.mrf.mxu0
    %v2226 = vadd.f32 0.0, %v2225
    %v2227 = vpop.f32.mrf.mxu0
    %v2228 = vadd.f32 0.0, %v2227
    %v2229 = vpop.f32.mrf.mxu0
    %v2230 = vadd.f32 0.0, %v2229
    %v2231 = vpop.f32.mrf.mxu0
    %v2232 = vadd.f32 0.0, %v2231
    %2233 = vmatprep.mubr.bf16.mxu0 0
    %2234 = vmatmul.mubr.bf16.gmra.mxu0 %v2173
    %v2235 = vpop.f32.mrf.mxu0
    %v2236 = vadd.f32 0.0, %v2235
    %v2237 = vpop.f32.mrf.mxu0
    %v2238 = vadd.f32 0.0, %v2237
    %v2239 = vpop.f32.mrf.mxu0
    %v2240 = vadd.f32 0.0, %v2239
    %v2241 = vpop.f32.mrf.mxu0
    %v2242 = vadd.f32 0.0, %v2241
    %2243 = vmatprep.mubr.bf16.mxu0 0
    %2244 = vmatmul.mubr.bf16.gmra.mxu0 %v2176
    %v2245 = vpop.f32.mrf.mxu0
    %v2246 = vadd.f32 0.0, %v2245
    %v2247 = vpop.f32.mrf.mxu0
    %v2248 = vadd.f32 0.0, %v2247
    %v2249 = vpop.f32.mrf.mxu0
    %v2250 = vadd.f32 0.0, %v2249
    %v2251 = vpop.f32.mrf.mxu0
    %v2252 = vadd.f32 0.0, %v2251
    %2253 = vmatprep.mubr.bf16.mxu0 0
    %2254 = vmatmul.mubr.bf16.gmra.mxu0 %v2179
    %v2255 = vpop.f32.mrf.mxu0
    %v2256 = vadd.f32 0.0, %v2255
    %v2257 = vpop.f32.mrf.mxu0
    %v2258 = vadd.f32 0.0, %v2257
    %v2259 = vpop.f32.mrf.mxu0
    %v2260 = vpop.f32.mrf.mxu0
    %2261 = vdwg.mxu0
    %v2262 = vadd.f32 %v2061, %v2216
    %v2263 = vadd.f32 %v2062, %v2218
    %v2264 = vadd.f32 %v2063, %v2220
    %v2265 = vadd.f32 %v2064, %v2222
    %v2266 = vadd.f32 %v2065, %v2226
    %v2267 = vadd.f32 %v2066, %v2228
    %v2268 = vadd.f32 %v2067, %v2230
    %v2269 = vadd.f32 %v2068, %v2232
    %v2270 = vadd.f32 %v2069, %v2236
    %v2271 = vadd.f32 %v2070, %v2238
    %v2272 = vadd.f32 %v2071, %v2240
    %v2273 = vadd.f32 %v2072, %v2242
    %v2274 = vadd.f32 %v2073, %v2246
    %v2275 = vadd.f32 %v2074, %v2248
    %v2276 = vadd.f32 %v2075, %v2250
    %v2277 = vadd.f32 %v2076, %v2252
    %v2278 = vadd.f32 %v2077, %v2256
    %v2279 = vadd.f32 %v2078, %v2258
    %s2280 = scalar_lea.vmem %s4, 384
    %v2281 = vld [vmem:[%s2280] sm:$0xff]
    %v2282 = vld [vmem:[%s2280 + $0x8] sm:$0xff]
    %v2283 = vld [vmem:[%s2280 + $0x10] sm:$0xff]
    %v2284 = vld [vmem:[%s2280 + $0x18] sm:$0xff]
    %v2285 = vld [vmem:[%s2280 + $0x20] sm:$0xff]
    %v2286 = vld [vmem:[%s2280 + $0x28] sm:$0xff]
    %v2287 = vld [vmem:[%s2280 + $0x30] sm:$0xff]
    %v2288 = vld [vmem:[%s2280 + $0x38] sm:$0xff]
    %v2289 = vld [vmem:[%s2280 + $0x40] sm:$0xff]
    %v2290 = vld [vmem:[%s2280 + $0x48] sm:$0xff]
    %v2291 = vld [vmem:[%s2280 + $0x50] sm:$0xff]
    %v2292 = vld [vmem:[%s2280 + $0x58] sm:$0xff]
    %2298 = vrot.lane.b32.xlu0 %v2088, 120
    %v2299 = vpop.permute.xlu0 %2298
    %2300 = vrot.lane.b32.xlu0 %v2089, 120
    %v2301 = vpop.permute.xlu0 %2300
    %2302 = vrot.lane.b32.xlu0 %v2090, 120
    %v2303 = vpop.permute.xlu0 %2302
    %2304 = vrot.lane.b32.xlu0 %v2091, 120
    %v2305 = vpop.permute.xlu0 %2304
    %2306 = vrot.lane.b32.xlu0 %v2092, 120
    %v2307 = vpop.permute.xlu0 %2306
    %v2320 = vunpack.c.l.b16 %v2281
    %v2321 = vunpack.c.h.b16 %v2281
    %v2322 = vunpack.c.l.b16 %v2282
    %v2323 = vunpack.c.h.b16 %v2282
    %v2324 = vunpack.c.l.b16 %v2283
    %v2325 = vunpack.c.h.b16 %v2283
    %v2326 = vunpack.c.l.b16 %v2284
    %v2327 = vunpack.c.h.b16 %v2284
    %v2328 = vunpack.c.l.b16 %v2285
    %v2329 = vunpack.c.h.b16 %v2285
    %v2330 = vunpack.c.l.b16 %v2286
    %v2331 = vunpack.c.h.b16 %v2286
    %v2332 = vunpack.c.l.b16 %v2287
    %v2333 = vunpack.c.h.b16 %v2287
    %v2334 = vunpack.c.l.b16 %v2288
    %v2335 = vunpack.c.h.b16 %v2288
    %v2336 = vunpack.c.l.b16 %v2289
    %v2337 = vunpack.c.h.b16 %v2289
    %v2338 = vunpack.c.l.b16 %v2290
    %v2339 = vunpack.c.h.b16 %v2290
    %v2340 = vunpack.c.l.b16 %v2291
    %v2341 = vunpack.c.h.b16 %v2291
    %v2342 = vunpack.c.l.b16 %v2292
    %v2343 = vunpack.c.h.b16 %v2292
    %v2344 = vpack.c.b16 %v2322, %v2320
    %v2345 = vpack.c.b16 %v2323, %v2321
    %v2346 = vpack.c.b16 %v2326, %v2324
    %v2347 = vpack.c.b16 %v2327, %v2325
    %v2348 = vpack.c.b16 %v2330, %v2328
    %v2349 = vpack.c.b16 %v2331, %v2329
    %v2350 = vpack.c.b16 %v2334, %v2332
    %v2351 = vpack.c.b16 %v2335, %v2333
    %v2352 = vpack.c.b16 %v2338, %v2336
    %v2353 = vpack.c.b16 %v2339, %v2337
    %v2354 = vpack.c.b16 %v2342, %v2340
    %v2355 = vpack.c.b16 %v2343, %v2341
    %v2369 = vsel %vm1629, %v2299, 0
    %v2372 = vsel %vm1629, %v2301, 0
    %v2375 = vsel %vm1629, %v2303, 0
    %v2378 = vsel %vm1629, %v2305, 0
    %v2381 = vsel %vm1629, %v2307, 0
    %2383 = vmatprep.subr.bf16.mxu0 0
    %2384 = vmatpush1.bf16.msra.mxu0 0
    %2385 = vmatprep.subr.bf16.mxu0 0
    %2386 = vmatpush1.bf16.msra.mxu0 0
    %2387 = vmatprep.subr.bf16.mxu0 %v2355
    %2388 = vmatpush1.bf16.msra.mxu0 %v2354
    %2389 = vmatprep.subr.bf16.mxu0 %v2353
    %2390 = vmatpush1.bf16.msra.mxu0 %v2352
    %2391 = vmatprep.subr.bf16.mxu0 %v2351
    %2392 = vmatpush1.bf16.msra.mxu0 %v2350
    %2393 = vmatprep.subr.bf16.mxu0 %v2349
    %2394 = vmatpush1.bf16.msra.mxu0 %v2348
    %2395 = vmatprep.subr.bf16.mxu0 %v2347
    %2396 = vmatpush1.bf16.msra.mxu0 %v2346
    %2397 = vmatprep.subr.bf16.mxu0 %v2345
    %2398 = vmatpush1.bf16.msra.mxu0 %v2344
    %2399 = vmatprep.subr.bf16.mxu0 0
    %2400 = vmatpush2.bf16.msra.mxu0 0
    %2401 = vmatprep.subr.bf16.mxu0 0
    %2402 = vmatpush2.bf16.msra.mxu0 0
    %2403 = vmatprep.subr.bf16.mxu0 0
    %2404 = vmatpush2.bf16.msra.mxu0 0
    %2405 = vmatprep.subr.bf16.mxu0 0
    %2406 = vmatpush2.bf16.msra.mxu0 0
    %2407 = vmatprep.subr.bf16.mxu0 0
    %2408 = vmatpush2.bf16.msra.mxu0 0
    %2409 = vmatprep.subr.bf16.mxu0 0
    %2410 = vmatpush2.bf16.msra.mxu0 0
    %2411 = vmatprep.subr.bf16.mxu0 0
    %2412 = vmatpush2.bf16.msra.mxu0 0
    %2413 = vmatprep.subr.bf16.mxu0 0
    %2414 = vmatpush2.bf16.msra.mxu0 0
    %2415 = vmatprep.mubr.bf16.mxu0 0
    %2416 = vmatmul.mubr.bf16.gmra.mxu0 %v2369
    %v2417 = vpop.f32.mrf.mxu0
    %v2418 = vadd.f32 0.0, %v2417
    %v2419 = vpop.f32.mrf.mxu0
    %v2420 = vadd.f32 0.0, %v2419
    %v2421 = vpop.f32.mrf.mxu0
    %v2422 = vadd.f32 0.0, %v2421
    %v2423 = vpop.f32.mrf.mxu0
    %v2424 = vadd.f32 0.0, %v2423
    %2425 = vmatprep.mubr.bf16.mxu0 0
    %2426 = vmatmul.mubr.bf16.gmra.mxu0 %v2372
    %v2427 = vpop.f32.mrf.mxu0
    %v2428 = vadd.f32 0.0, %v2427
    %v2429 = vpop.f32.mrf.mxu0
    %v2430 = vadd.f32 0.0, %v2429
    %v2431 = vpop.f32.mrf.mxu0
    %v2432 = vadd.f32 0.0, %v2431
    %v2433 = vpop.f32.mrf.mxu0
    %v2434 = vadd.f32 0.0, %v2433
    %2435 = vmatprep.mubr.bf16.mxu0 0
    %2436 = vmatmul.mubr.bf16.gmra.mxu0 %v2375
    %v2437 = vpop.f32.mrf.mxu0
    %v2438 = vadd.f32 0.0, %v2437
    %v2439 = vpop.f32.mrf.mxu0
    %v2440 = vadd.f32 0.0, %v2439
    %v2441 = vpop.f32.mrf.mxu0
    %v2442 = vadd.f32 0.0, %v2441
    %v2443 = vpop.f32.mrf.mxu0
    %v2444 = vadd.f32 0.0, %v2443
    %2445 = vmatprep.mubr.bf16.mxu0 0
    %2446 = vmatmul.mubr.bf16.gmra.mxu0 %v2378
    %v2447 = vpop.f32.mrf.mxu0
    %v2448 = vadd.f32 0.0, %v2447
    %v2449 = vpop.f32.mrf.mxu0
    %v2450 = vadd.f32 0.0, %v2449
    %v2451 = vpop.f32.mrf.mxu0
    %v2452 = vadd.f32 0.0, %v2451
    %v2453 = vpop.f32.mrf.mxu0
    %v2454 = vadd.f32 0.0, %v2453
    %2455 = vmatprep.mubr.bf16.mxu0 0
    %2456 = vmatmul.mubr.bf16.gmra.mxu0 %v2381
    %v2457 = vpop.f32.mrf.mxu0
    %v2458 = vadd.f32 0.0, %v2457
    %v2459 = vpop.f32.mrf.mxu0
    %v2460 = vadd.f32 0.0, %v2459
    %v2461 = vpop.f32.mrf.mxu0
    %v2462 = vpop.f32.mrf.mxu0
    %2463 = vdwg.mxu0
    %v2464 = vadd.f32 %v2262, %v2418
    %v2465 = vadd.f32 %v2263, %v2420
    %v2466 = vadd.f32 %v2264, %v2422
    %v2467 = vadd.f32 %v2265, %v2424
    %v2468 = vadd.f32 %v2266, %v2428
    %v2469 = vadd.f32 %v2267, %v2430
    %v2470 = vadd.f32 %v2268, %v2432
    %v2471 = vadd.f32 %v2269, %v2434
    %v2472 = vadd.f32 %v2270, %v2438
    %v2473 = vadd.f32 %v2271, %v2440
    %v2474 = vadd.f32 %v2272, %v2442
    %v2475 = vadd.f32 %v2273, %v2444
    %v2476 = vadd.f32 %v2274, %v2448
    %v2477 = vadd.f32 %v2275, %v2450
    %v2478 = vadd.f32 %v2276, %v2452
    %v2479 = vadd.f32 %v2277, %v2454
    %v2480 = vadd.f32 %v2278, %v2458
    %v2481 = vadd.f32 %v2279, %v2460
    %s2482 = scalar_lea.vmem %s4, 480
    %v2483 = vld [vmem:[%s2482] sm:$0xff]
    %v2484 = vld [vmem:[%s2482 + $0x8] sm:$0xff]
    %v2485 = vld [vmem:[%s2482 + $0x10] sm:$0xff]
    %v2486 = vld [vmem:[%s2482 + $0x18] sm:$0xff]
    %v2487 = vld [vmem:[%s2482 + $0x20] sm:$0xff]
    %v2488 = vld [vmem:[%s2482 + $0x28] sm:$0xff]
    %v2489 = vld [vmem:[%s2482 + $0x30] sm:$0xff]
    %v2490 = vld [vmem:[%s2482 + $0x38] sm:$0xff]
    %v2491 = vld [vmem:[%s2482 + $0x40] sm:$0xff]
    %v2492 = vld [vmem:[%s2482 + $0x48] sm:$0xff]
    %v2493 = vld [vmem:[%s2482 + $0x50] sm:$0xff]
    %v2494 = vld [vmem:[%s2482 + $0x58] sm:$0xff]
    %2495 = vrot.lane.b32.xlu0 %v2088, 112
    %v2496 = vpop.permute.xlu0 %2495
    %2497 = vrot.lane.b32.xlu0 %v2089, 112
    %v2498 = vpop.permute.xlu0 %2497
    %2499 = vrot.lane.b32.xlu0 %v2090, 112
    %v2500 = vpop.permute.xlu0 %2499
    %2501 = vrot.lane.b32.xlu0 %v2091, 112
    %v2502 = vpop.permute.xlu0 %2501
    %2503 = vrot.lane.b32.xlu0 %v2092, 112
    %v2504 = vpop.permute.xlu0 %2503
    %v2517 = vunpack.c.l.b16 %v2483
    %v2518 = vunpack.c.h.b16 %v2483
    %v2519 = vunpack.c.l.b16 %v2484
    %v2520 = vunpack.c.h.b16 %v2484
    %v2521 = vunpack.c.l.b16 %v2485
    %v2522 = vunpack.c.h.b16 %v2485
    %v2523 = vunpack.c.l.b16 %v2486
    %v2524 = vunpack.c.h.b16 %v2486
    %v2525 = vunpack.c.l.b16 %v2487
    %v2526 = vunpack.c.h.b16 %v2487
    %v2527 = vunpack.c.l.b16 %v2488
    %v2528 = vunpack.c.h.b16 %v2488
    %v2529 = vunpack.c.l.b16 %v2489
    %v2530 = vunpack.c.h.b16 %v2489
    %v2531 = vunpack.c.l.b16 %v2490
    %v2532 = vunpack.c.h.b16 %v2490
    %v2533 = vunpack.c.l.b16 %v2491
    %v2534 = vunpack.c.h.b16 %v2491
    %v2535 = vunpack.c.l.b16 %v2492
    %v2536 = vunpack.c.h.b16 %v2492
    %v2537 = vunpack.c.l.b16 %v2493
    %v2538 = vunpack.c.h.b16 %v2493
    %v2539 = vunpack.c.l.b16 %v2494
    %v2540 = vunpack.c.h.b16 %v2494
    %v2541 = vpack.c.b16 %v2519, %v2517
    %v2542 = vpack.c.b16 %v2520, %v2518
    %v2543 = vpack.c.b16 %v2523, %v2521
    %v2544 = vpack.c.b16 %v2524, %v2522
    %v2545 = vpack.c.b16 %v2527, %v2525
    %v2546 = vpack.c.b16 %v2528, %v2526
    %v2547 = vpack.c.b16 %v2531, %v2529
    %v2548 = vpack.c.b16 %v2532, %v2530
    %v2549 = vpack.c.b16 %v2535, %v2533
    %v2550 = vpack.c.b16 %v2536, %v2534
    %v2551 = vpack.c.b16 %v2539, %v2537
    %v2552 = vpack.c.b16 %v2540, %v2538
    %v2566 = vsel %vm1629, %v2496, 0
    %v2569 = vsel %vm1629, %v2498, 0
    %v2572 = vsel %vm1629, %v2500, 0
    %v2575 = vsel %vm1629, %v2502, 0
    %v2578 = vsel %vm1629, %v2504, 0
    %2580 = vmatprep.subr.bf16.mxu0 0
    %2581 = vmatpush1.bf16.msra.mxu0 0
    %2582 = vmatprep.subr.bf16.mxu0 0
    %2583 = vmatpush1.bf16.msra.mxu0 0
    %2584 = vmatprep.subr.bf16.mxu0 %v2552
    %2585 = vmatpush1.bf16.msra.mxu0 %v2551
    %2586 = vmatprep.subr.bf16.mxu0 %v2550
    %2587 = vmatpush1.bf16.msra.mxu0 %v2549
    %2588 = vmatprep.subr.bf16.mxu0 %v2548
    %2589 = vmatpush1.bf16.msra.mxu0 %v2547
    %2590 = vmatprep.subr.bf16.mxu0 %v2546
    %2591 = vmatpush1.bf16.msra.mxu0 %v2545
    %2592 = vmatprep.subr.bf16.mxu0 %v2544
    %2593 = vmatpush1.bf16.msra.mxu0 %v2543
    %2594 = vmatprep.subr.bf16.mxu0 %v2542
    %2595 = vmatpush1.bf16.msra.mxu0 %v2541
    %2596 = vmatprep.subr.bf16.mxu0 0
    %2597 = vmatpush2.bf16.msra.mxu0 0
    %2598 = vmatprep.subr.bf16.mxu0 0
    %2599 = vmatpush2.bf16.msra.mxu0 0
    %2600 = vmatprep.subr.bf16.mxu0 0
    %2601 = vmatpush2.bf16.msra.mxu0 0
    %2602 = vmatprep.subr.bf16.mxu0 0
    %2603 = vmatpush2.bf16.msra.mxu0 0
    %2604 = vmatprep.subr.bf16.mxu0 0
    %2605 = vmatpush2.bf16.msra.mxu0 0
    %2606 = vmatprep.subr.bf16.mxu0 0
    %2607 = vmatpush2.bf16.msra.mxu0 0
    %2608 = vmatprep.subr.bf16.mxu0 0
    %2609 = vmatpush2.bf16.msra.mxu0 0
    %2610 = vmatprep.subr.bf16.mxu0 0
    %2611 = vmatpush2.bf16.msra.mxu0 0
    %2612 = vmatprep.mubr.bf16.mxu0 0
    %2613 = vmatmul.mubr.bf16.gmra.mxu0 %v2566
    %v2614 = vpop.f32.mrf.mxu0
    %v2615 = vadd.f32 0.0, %v2614
    %v2616 = vpop.f32.mrf.mxu0
    %v2617 = vadd.f32 0.0, %v2616
    %v2618 = vpop.f32.mrf.mxu0
    %v2619 = vadd.f32 0.0, %v2618
    %v2620 = vpop.f32.mrf.mxu0
    %v2621 = vadd.f32 0.0, %v2620
    %2622 = vmatprep.mubr.bf16.mxu0 0
    %2623 = vmatmul.mubr.bf16.gmra.mxu0 %v2569
    %v2624 = vpop.f32.mrf.mxu0
    %v2625 = vadd.f32 0.0, %v2624
    %v2626 = vpop.f32.mrf.mxu0
    %v2627 = vadd.f32 0.0, %v2626
    %v2628 = vpop.f32.mrf.mxu0
    %v2629 = vadd.f32 0.0, %v2628
    %v2630 = vpop.f32.mrf.mxu0
    %v2631 = vadd.f32 0.0, %v2630
    %2632 = vmatprep.mubr.bf16.mxu0 0
    %2633 = vmatmul.mubr.bf16.gmra.mxu0 %v2572
    %v2634 = vpop.f32.mrf.mxu0
    %v2635 = vadd.f32 0.0, %v2634
    %v2636 = vpop.f32.mrf.mxu0
    %v2637 = vadd.f32 0.0, %v2636
    %v2638 = vpop.f32.mrf.mxu0
    %v2639 = vadd.f32 0.0, %v2638
    %v2640 = vpop.f32.mrf.mxu0
    %v2641 = vadd.f32 0.0, %v2640
    %2642 = vmatprep.mubr.bf16.mxu0 0
    %2643 = vmatmul.mubr.bf16.gmra.mxu0 %v2575
    %v2644 = vpop.f32.mrf.mxu0
    %v2645 = vadd.f32 0.0, %v2644
    %v2646 = vpop.f32.mrf.mxu0
    %v2647 = vadd.f32 0.0, %v2646
    %v2648 = vpop.f32.mrf.mxu0
    %v2649 = vadd.f32 0.0, %v2648
    %v2650 = vpop.f32.mrf.mxu0
    %v2651 = vadd.f32 0.0, %v2650
    %2652 = vmatprep.mubr.bf16.mxu0 0
    %2653 = vmatmul.mubr.bf16.gmra.mxu0 %v2578
    %v2654 = vpop.f32.mrf.mxu0
    %v2655 = vadd.f32 0.0, %v2654
    %v2656 = vpop.f32.mrf.mxu0
    %v2657 = vadd.f32 0.0, %v2656
    %v2658 = vpop.f32.mrf.mxu0
    %v2659 = vpop.f32.mrf.mxu0
    %2660 = vdwg.mxu0
    %v2661 = vadd.f32 %v2464, %v2615
    %v2662 = vadd.f32 %v2465, %v2617
    %v2663 = vadd.f32 %v2466, %v2619
    %v2664 = vadd.f32 %v2467, %v2621
    %v2665 = vadd.f32 %v2468, %v2625
    %v2666 = vadd.f32 %v2469, %v2627
    %v2667 = vadd.f32 %v2470, %v2629
    %v2668 = vadd.f32 %v2471, %v2631
    %v2669 = vadd.f32 %v2472, %v2635
    %v2670 = vadd.f32 %v2473, %v2637
    %v2671 = vadd.f32 %v2474, %v2639
    %v2672 = vadd.f32 %v2475, %v2641
    %v2673 = vadd.f32 %v2476, %v2645
    %v2674 = vadd.f32 %v2477, %v2647
    %v2675 = vadd.f32 %v2478, %v2649
    %v2676 = vadd.f32 %v2479, %v2651
    %v2677 = vadd.f32 %v2480, %v2655
    %v2678 = vadd.f32 %v2481, %v2657
    %v2679 = vld [vmem:[#allocation2 + $0xc] sm:$0xff]
    %v2680 = vld [vmem:[#allocation2 + $0x14] sm:$0xff]
    %v2681 = vld [vmem:[#allocation2 + $0x1c] sm:$0xff]
    %v2682 = vld [vmem:[#allocation2 + $0x24] sm:$0xff]
    %v2683 = vld [vmem:[#allocation2 + $0x2c] sm:$0xff]
    %v2684 = vld [vmem:[#allocation2 + $0x34] sm:$0xff]
    %v2685 = vld [vmem:[#allocation2 + $0x3c] sm:$0xff]
    %v2686 = vld [vmem:[#allocation2 + $0x44] sm:$0xff]
    %v2687 = vld [vmem:[#allocation2 + $0x4c] sm:$0xff]
    %v2688 = vpack.c.bf16 %v2680, %v2679
    %v2689 = vpack.c.bf16 %v2682, %v2681
    %v2690 = vpack.c.bf16 %v2684, %v2683
    %v2691 = vpack.c.bf16 %v2686, %v2685
    %v2692 = vpack.c.bf16 %v2687, %v2687
    %s2693 = scalar_lea.vmem %s4, 576
    %v2694 = vld [vmem:[%s2693] sm:$0xff]
    %v2695 = vld [vmem:[%s2693 + $0x8] sm:$0xff]
    %v2696 = vld [vmem:[%s2693 + $0x10] sm:$0xff]
    %v2697 = vld [vmem:[%s2693 + $0x18] sm:$0xff]
    %v2698 = vld [vmem:[%s2693 + $0x20] sm:$0xff]
    %v2699 = vld [vmem:[%s2693 + $0x28] sm:$0xff]
    %v2700 = vld [vmem:[%s2693 + $0x30] sm:$0xff]
    %v2701 = vld [vmem:[%s2693 + $0x38] sm:$0xff]
    %v2702 = vld [vmem:[%s2693 + $0x40] sm:$0xff]
    %v2703 = vld [vmem:[%s2693 + $0x48] sm:$0xff]
    %v2704 = vld [vmem:[%s2693 + $0x50] sm:$0xff]
    %v2705 = vld [vmem:[%s2693 + $0x58] sm:$0xff]
    %v2718 = vunpack.c.l.b16 %v2694
    %v2719 = vunpack.c.h.b16 %v2694
    %v2720 = vunpack.c.l.b16 %v2695
    %v2721 = vunpack.c.h.b16 %v2695
    %v2722 = vunpack.c.l.b16 %v2696
    %v2723 = vunpack.c.h.b16 %v2696
    %v2724 = vunpack.c.l.b16 %v2697
    %v2725 = vunpack.c.h.b16 %v2697
    %v2726 = vunpack.c.l.b16 %v2698
    %v2727 = vunpack.c.h.b16 %v2698
    %v2728 = vunpack.c.l.b16 %v2699
    %v2729 = vunpack.c.h.b16 %v2699
    %v2730 = vunpack.c.l.b16 %v2700
    %v2731 = vunpack.c.h.b16 %v2700
    %v2732 = vunpack.c.l.b16 %v2701
    %v2733 = vunpack.c.h.b16 %v2701
    %v2734 = vunpack.c.l.b16 %v2702
    %v2735 = vunpack.c.h.b16 %v2702
    %v2736 = vunpack.c.l.b16 %v2703
    %v2737 = vunpack.c.h.b16 %v2703
    %v2738 = vunpack.c.l.b16 %v2704
    %v2739 = vunpack.c.h.b16 %v2704
    %v2740 = vunpack.c.l.b16 %v2705
    %v2741 = vunpack.c.h.b16 %v2705
    %v2742 = vpack.c.b16 %v2720, %v2718
    %v2743 = vpack.c.b16 %v2721, %v2719
    %v2744 = vpack.c.b16 %v2724, %v2722
    %v2745 = vpack.c.b16 %v2725, %v2723
    %v2746 = vpack.c.b16 %v2728, %v2726
    %v2747 = vpack.c.b16 %v2729, %v2727
    %v2748 = vpack.c.b16 %v2732, %v2730
    %v2749 = vpack.c.b16 %v2733, %v2731
    %v2750 = vpack.c.b16 %v2736, %v2734
    %v2751 = vpack.c.b16 %v2737, %v2735
    %v2752 = vpack.c.b16 %v2740, %v2738
    %v2753 = vpack.c.b16 %v2741, %v2739
    %v2767 = vsel %vm1629, %v2688, 0
    %v2770 = vsel %vm1629, %v2689, 0
    %v2773 = vsel %vm1629, %v2690, 0
    %v2776 = vsel %vm1629, %v2691, 0
    %v2779 = vsel %vm1629, %v2692, 0
    %2781 = vmatprep.subr.bf16.mxu0 0
    %2782 = vmatpush1.bf16.msra.mxu0 0
    %2783 = vmatprep.subr.bf16.mxu0 0
    %2784 = vmatpush1.bf16.msra.mxu0 0
    %2785 = vmatprep.subr.bf16.mxu0 %v2753
    %2786 = vmatpush1.bf16.msra.mxu0 %v2752
    %2787 = vmatprep.subr.bf16.mxu0 %v2751
    %2788 = vmatpush1.bf16.msra.mxu0 %v2750
    %2789 = vmatprep.subr.bf16.mxu0 %v2749
    %2790 = vmatpush1.bf16.msra.mxu0 %v2748
    %2791 = vmatprep.subr.bf16.mxu0 %v2747
    %2792 = vmatpush1.bf16.msra.mxu0 %v2746
    %2793 = vmatprep.subr.bf16.mxu0 %v2745
    %2794 = vmatpush1.bf16.msra.mxu0 %v2744
    %2795 = vmatprep.subr.bf16.mxu0 %v2743
    %2796 = vmatpush1.bf16.msra.mxu0 %v2742
    %2797 = vmatprep.subr.bf16.mxu0 0
    %2798 = vmatpush2.bf16.msra.mxu0 0
    %2799 = vmatprep.subr.bf16.mxu0 0
    %2800 = vmatpush2.bf16.msra.mxu0 0
    %2801 = vmatprep.subr.bf16.mxu0 0
    %2802 = vmatpush2.bf16.msra.mxu0 0
    %2803 = vmatprep.subr.bf16.mxu0 0
    %2804 = vmatpush2.bf16.msra.mxu0 0
    %2805 = vmatprep.subr.bf16.mxu0 0
    %2806 = vmatpush2.bf16.msra.mxu0 0
    %2807 = vmatprep.subr.bf16.mxu0 0
    %2808 = vmatpush2.bf16.msra.mxu0 0
    %2809 = vmatprep.subr.bf16.mxu0 0
    %2810 = vmatpush2.bf16.msra.mxu0 0
    %2811 = vmatprep.subr.bf16.mxu0 0
    %2812 = vmatpush2.bf16.msra.mxu0 0
    %2813 = vmatprep.mubr.bf16.mxu0 0
    %2814 = vmatmul.mubr.bf16.gmra.mxu0 %v2767
    %v2815 = vpop.f32.mrf.mxu0
    %v2816 = vadd.f32 0.0, %v2815
    %v2817 = vpop.f32.mrf.mxu0
    %v2818 = vadd.f32 0.0, %v2817
    %v2819 = vpop.f32.mrf.mxu0
    %v2820 = vadd.f32 0.0, %v2819
    %v2821 = vpop.f32.mrf.mxu0
    %v2822 = vadd.f32 0.0, %v2821
    %2823 = vmatprep.mubr.bf16.mxu0 0
    %2824 = vmatmul.mubr.bf16.gmra.mxu0 %v2770
    %v2825 = vpop.f32.mrf.mxu0
    %v2826 = vadd.f32 0.0, %v2825
    %v2827 = vpop.f32.mrf.mxu0
    %v2828 = vadd.f32 0.0, %v2827
    %v2829 = vpop.f32.mrf.mxu0
    %v2830 = vadd.f32 0.0, %v2829
    %v2831 = vpop.f32.mrf.mxu0
    %v2832 = vadd.f32 0.0, %v2831
    %2833 = vmatprep.mubr.bf16.mxu0 0
    %2834 = vmatmul.mubr.bf16.gmra.mxu0 %v2773
    %v2835 = vpop.f32.mrf.mxu0
    %v2836 = vadd.f32 0.0, %v2835
    %v2837 = vpop.f32.mrf.mxu0
    %v2838 = vadd.f32 0.0, %v2837
    %v2839 = vpop.f32.mrf.mxu0
    %v2840 = vadd.f32 0.0, %v2839
    %v2841 = vpop.f32.mrf.mxu0
    %v2842 = vadd.f32 0.0, %v2841
    %2843 = vmatprep.mubr.bf16.mxu0 0
    %2844 = vmatmul.mubr.bf16.gmra.mxu0 %v2776
    %v2845 = vpop.f32.mrf.mxu0
    %v2846 = vadd.f32 0.0, %v2845
    %v2847 = vpop.f32.mrf.mxu0
    %v2848 = vadd.f32 0.0, %v2847
    %v2849 = vpop.f32.mrf.mxu0
    %v2850 = vadd.f32 0.0, %v2849
    %v2851 = vpop.f32.mrf.mxu0
    %v2852 = vadd.f32 0.0, %v2851
    %2853 = vmatprep.mubr.bf16.mxu0 0
    %2854 = vmatmul.mubr.bf16.gmra.mxu0 %v2779
    %v2855 = vpop.f32.mrf.mxu0
    %v2856 = vadd.f32 0.0, %v2855
    %v2857 = vpop.f32.mrf.mxu0
    %v2858 = vadd.f32 0.0, %v2857
    %v2859 = vpop.f32.mrf.mxu0
    %v2860 = vpop.f32.mrf.mxu0
    %2861 = vdwg.mxu0
    %v2862 = vadd.f32 %v2661, %v2816
    %v2863 = vadd.f32 %v2662, %v2818
    %v2864 = vadd.f32 %v2663, %v2820
    %v2865 = vadd.f32 %v2664, %v2822
    %v2866 = vadd.f32 %v2665, %v2826
    %v2867 = vadd.f32 %v2666, %v2828
    %v2868 = vadd.f32 %v2667, %v2830
    %v2869 = vadd.f32 %v2668, %v2832
    %v2870 = vadd.f32 %v2669, %v2836
    %v2871 = vadd.f32 %v2670, %v2838
    %v2872 = vadd.f32 %v2671, %v2840
    %v2873 = vadd.f32 %v2672, %v2842
    %v2874 = vadd.f32 %v2673, %v2846
    %v2875 = vadd.f32 %v2674, %v2848
    %v2876 = vadd.f32 %v2675, %v2850
    %v2877 = vadd.f32 %v2676, %v2852
    %v2878 = vadd.f32 %v2677, %v2856
    %v2879 = vadd.f32 %v2678, %v2858
    %s2880 = scalar_lea.vmem %s4, 672
    %v2881 = vld [vmem:[%s2880] sm:$0xff]
    %v2882 = vld [vmem:[%s2880 + $0x8] sm:$0xff]
    %v2883 = vld [vmem:[%s2880 + $0x10] sm:$0xff]
    %v2884 = vld [vmem:[%s2880 + $0x18] sm:$0xff]
    %v2885 = vld [vmem:[%s2880 + $0x20] sm:$0xff]
    %v2886 = vld [vmem:[%s2880 + $0x28] sm:$0xff]
    %v2887 = vld [vmem:[%s2880 + $0x30] sm:$0xff]
    %v2888 = vld [vmem:[%s2880 + $0x38] sm:$0xff]
    %v2889 = vld [vmem:[%s2880 + $0x40] sm:$0xff]
    %v2890 = vld [vmem:[%s2880 + $0x48] sm:$0xff]
    %v2891 = vld [vmem:[%s2880 + $0x50] sm:$0xff]
    %v2892 = vld [vmem:[%s2880 + $0x58] sm:$0xff]
    %2898 = vrot.lane.b32.xlu0 %v2688, 120
    %v2899 = vpop.permute.xlu0 %2898
    %2900 = vrot.lane.b32.xlu0 %v2689, 120
    %v2901 = vpop.permute.xlu0 %2900
    %2902 = vrot.lane.b32.xlu0 %v2690, 120
    %v2903 = vpop.permute.xlu0 %2902
    %2904 = vrot.lane.b32.xlu0 %v2691, 120
    %v2905 = vpop.permute.xlu0 %2904
    %2906 = vrot.lane.b32.xlu0 %v2692, 120
    %v2907 = vpop.permute.xlu0 %2906
    %v2920 = vunpack.c.l.b16 %v2881
    %v2921 = vunpack.c.h.b16 %v2881
    %v2922 = vunpack.c.l.b16 %v2882
    %v2923 = vunpack.c.h.b16 %v2882
    %v2924 = vunpack.c.l.b16 %v2883
    %v2925 = vunpack.c.h.b16 %v2883
    %v2926 = vunpack.c.l.b16 %v2884
    %v2927 = vunpack.c.h.b16 %v2884
    %v2928 = vunpack.c.l.b16 %v2885
    %v2929 = vunpack.c.h.b16 %v2885
    %v2930 = vunpack.c.l.b16 %v2886
    %v2931 = vunpack.c.h.b16 %v2886
    %v2932 = vunpack.c.l.b16 %v2887
    %v2933 = vunpack.c.h.b16 %v2887
    %v2934 = vunpack.c.l.b16 %v2888
    %v2935 = vunpack.c.h.b16 %v2888
    %v2936 = vunpack.c.l.b16 %v2889
    %v2937 = vunpack.c.h.b16 %v2889
    %v2938 = vunpack.c.l.b16 %v2890
    %v2939 = vunpack.c.h.b16 %v2890
    %v2940 = vunpack.c.l.b16 %v2891
    %v2941 = vunpack.c.h.b16 %v2891
    %v2942 = vunpack.c.l.b16 %v2892
    %v2943 = vunpack.c.h.b16 %v2892
    %v2944 = vpack.c.b16 %v2922, %v2920
    %v2945 = vpack.c.b16 %v2923, %v2921
    %v2946 = vpack.c.b16 %v2926, %v2924
    %v2947 = vpack.c.b16 %v2927, %v2925
    %v2948 = vpack.c.b16 %v2930, %v2928
    %v2949 = vpack.c.b16 %v2931, %v2929
    %v2950 = vpack.c.b16 %v2934, %v2932
    %v2951 = vpack.c.b16 %v2935, %v2933
    %v2952 = vpack.c.b16 %v2938, %v2936
    %v2953 = vpack.c.b16 %v2939, %v2937
    %v2954 = vpack.c.b16 %v2942, %v2940
    %v2955 = vpack.c.b16 %v2943, %v2941
    %v2969 = vsel %vm1629, %v2899, 0
    %v2972 = vsel %vm1629, %v2901, 0
    %v2975 = vsel %vm1629, %v2903, 0
    %v2978 = vsel %vm1629, %v2905, 0
    %v2981 = vsel %vm1629, %v2907, 0
    %2983 = vmatprep.subr.bf16.mxu0 0
    %2984 = vmatpush1.bf16.msra.mxu0 0
    %2985 = vmatprep.subr.bf16.mxu0 0
    %2986 = vmatpush1.bf16.msra.mxu0 0
    %2987 = vmatprep.subr.bf16.mxu0 %v2955
    %2988 = vmatpush1.bf16.msra.mxu0 %v2954
    %2989 = vmatprep.subr.bf16.mxu0 %v2953
    %2990 = vmatpush1.bf16.msra.mxu0 %v2952
    %2991 = vmatprep.subr.bf16.mxu0 %v2951
    %2992 = vmatpush1.bf16.msra.mxu0 %v2950
    %2993 = vmatprep.subr.bf16.mxu0 %v2949
    %2994 = vmatpush1.bf16.msra.mxu0 %v2948
    %2995 = vmatprep.subr.bf16.mxu0 %v2947
    %2996 = vmatpush1.bf16.msra.mxu0 %v2946
    %2997 = vmatprep.subr.bf16.mxu0 %v2945
    %2998 = vmatpush1.bf16.msra.mxu0 %v2944
    %2999 = vmatprep.subr.bf16.mxu0 0
    %3000 = vmatpush2.bf16.msra.mxu0 0
    %3001 = vmatprep.subr.bf16.mxu0 0
    %3002 = vmatpush2.bf16.msra.mxu0 0
    %3003 = vmatprep.subr.bf16.mxu0 0
    %3004 = vmatpush2.bf16.msra.mxu0 0
    %3005 = vmatprep.subr.bf16.mxu0 0
    %3006 = vmatpush2.bf16.msra.mxu0 0
    %3007 = vmatprep.subr.bf16.mxu0 0
    %3008 = vmatpush2.bf16.msra.mxu0 0
    %3009 = vmatprep.subr.bf16.mxu0 0
    %3010 = vmatpush2.bf16.msra.mxu0 0
    %3011 = vmatprep.subr.bf16.mxu0 0
    %3012 = vmatpush2.bf16.msra.mxu0 0
    %3013 = vmatprep.subr.bf16.mxu0 0
    %3014 = vmatpush2.bf16.msra.mxu0 0
    %3015 = vmatprep.mubr.bf16.mxu0 0
    %3016 = vmatmul.mubr.bf16.gmra.mxu0 %v2969
    %v3017 = vpop.f32.mrf.mxu0
    %v3018 = vadd.f32 0.0, %v3017
    %v3019 = vpop.f32.mrf.mxu0
    %v3020 = vadd.f32 0.0, %v3019
    %v3021 = vpop.f32.mrf.mxu0
    %v3022 = vadd.f32 0.0, %v3021
    %v3023 = vpop.f32.mrf.mxu0
    %v3024 = vadd.f32 0.0, %v3023
    %3025 = vmatprep.mubr.bf16.mxu0 0
    %3026 = vmatmul.mubr.bf16.gmra.mxu0 %v2972
    %v3027 = vpop.f32.mrf.mxu0
    %v3028 = vadd.f32 0.0, %v3027
    %v3029 = vpop.f32.mrf.mxu0
    %v3030 = vadd.f32 0.0, %v3029
    %v3031 = vpop.f32.mrf.mxu0
    %v3032 = vadd.f32 0.0, %v3031
    %v3033 = vpop.f32.mrf.mxu0
    %v3034 = vadd.f32 0.0, %v3033
    %3035 = vmatprep.mubr.bf16.mxu0 0
    %3036 = vmatmul.mubr.bf16.gmra.mxu0 %v2975
    %v3037 = vpop.f32.mrf.mxu0
    %v3038 = vadd.f32 0.0, %v3037
    %v3039 = vpop.f32.mrf.mxu0
    %v3040 = vadd.f32 0.0, %v3039
    %v3041 = vpop.f32.mrf.mxu0
    %v3042 = vadd.f32 0.0, %v3041
    %v3043 = vpop.f32.mrf.mxu0
    %v3044 = vadd.f32 0.0, %v3043
    %3045 = vmatprep.mubr.bf16.mxu0 0
    %3046 = vmatmul.mubr.bf16.gmra.mxu0 %v2978
    %v3047 = vpop.f32.mrf.mxu0
    %v3048 = vadd.f32 0.0, %v3047
    %v3049 = vpop.f32.mrf.mxu0
    %v3050 = vadd.f32 0.0, %v3049
    %v3051 = vpop.f32.mrf.mxu0
    %v3052 = vadd.f32 0.0, %v3051
    %v3053 = vpop.f32.mrf.mxu0
    %v3054 = vadd.f32 0.0, %v3053
    %3055 = vmatprep.mubr.bf16.mxu0 0
    %3056 = vmatmul.mubr.bf16.gmra.mxu0 %v2981
    %v3057 = vpop.f32.mrf.mxu0
    %v3058 = vadd.f32 0.0, %v3057
    %v3059 = vpop.f32.mrf.mxu0
    %v3060 = vadd.f32 0.0, %v3059
    %v3061 = vpop.f32.mrf.mxu0
    %v3062 = vpop.f32.mrf.mxu0
    %3063 = vdwg.mxu0
    %v3064 = vadd.f32 %v2862, %v3018
    %v3065 = vadd.f32 %v2863, %v3020
    %v3066 = vadd.f32 %v2864, %v3022
    %v3067 = vadd.f32 %v2865, %v3024
    %v3068 = vadd.f32 %v2866, %v3028
    %v3069 = vadd.f32 %v2867, %v3030
    %v3070 = vadd.f32 %v2868, %v3032
    %v3071 = vadd.f32 %v2869, %v3034
    %v3072 = vadd.f32 %v2870, %v3038
    %v3073 = vadd.f32 %v2871, %v3040
    %v3074 = vadd.f32 %v2872, %v3042
    %v3075 = vadd.f32 %v2873, %v3044
    %v3076 = vadd.f32 %v2874, %v3048
    %v3077 = vadd.f32 %v2875, %v3050
    %v3078 = vadd.f32 %v2876, %v3052
    %v3079 = vadd.f32 %v2877, %v3054
    %v3080 = vadd.f32 %v2878, %v3058
    %v3081 = vadd.f32 %v2879, %v3060
    %s3082 = scalar_lea.vmem %s4, 768
    %v3083 = vld [vmem:[%s3082] sm:$0xff]
    %v3084 = vld [vmem:[%s3082 + $0x8] sm:$0xff]
    %v3085 = vld [vmem:[%s3082 + $0x10] sm:$0xff]
    %v3086 = vld [vmem:[%s3082 + $0x18] sm:$0xff]
    %v3087 = vld [vmem:[%s3082 + $0x20] sm:$0xff]
    %v3088 = vld [vmem:[%s3082 + $0x28] sm:$0xff]
    %v3089 = vld [vmem:[%s3082 + $0x30] sm:$0xff]
    %v3090 = vld [vmem:[%s3082 + $0x38] sm:$0xff]
    %v3091 = vld [vmem:[%s3082 + $0x40] sm:$0xff]
    %v3092 = vld [vmem:[%s3082 + $0x48] sm:$0xff]
    %v3093 = vld [vmem:[%s3082 + $0x50] sm:$0xff]
    %v3094 = vld [vmem:[%s3082 + $0x58] sm:$0xff]
    %3095 = vrot.lane.b32.xlu0 %v2688, 112
    %v3096 = vpop.permute.xlu0 %3095
    %3097 = vrot.lane.b32.xlu0 %v2689, 112
    %v3098 = vpop.permute.xlu0 %3097
    %3099 = vrot.lane.b32.xlu0 %v2690, 112
    %v3100 = vpop.permute.xlu0 %3099
    %3101 = vrot.lane.b32.xlu0 %v2691, 112
    %v3102 = vpop.permute.xlu0 %3101
    %3103 = vrot.lane.b32.xlu0 %v2692, 112
    %v3104 = vpop.permute.xlu0 %3103
    %v3117 = vunpack.c.l.b16 %v3083
    %v3118 = vunpack.c.h.b16 %v3083
    %v3119 = vunpack.c.l.b16 %v3084
    %v3120 = vunpack.c.h.b16 %v3084
    %v3121 = vunpack.c.l.b16 %v3085
    %v3122 = vunpack.c.h.b16 %v3085
    %v3123 = vunpack.c.l.b16 %v3086
    %v3124 = vunpack.c.h.b16 %v3086
    %v3125 = vunpack.c.l.b16 %v3087
    %v3126 = vunpack.c.h.b16 %v3087
    %v3127 = vunpack.c.l.b16 %v3088
    %v3128 = vunpack.c.h.b16 %v3088
    %v3129 = vunpack.c.l.b16 %v3089
    %v3130 = vunpack.c.h.b16 %v3089
    %v3131 = vunpack.c.l.b16 %v3090
    %v3132 = vunpack.c.h.b16 %v3090
    %v3133 = vunpack.c.l.b16 %v3091
    %v3134 = vunpack.c.h.b16 %v3091
    %v3135 = vunpack.c.l.b16 %v3092
    %v3136 = vunpack.c.h.b16 %v3092
    %v3137 = vunpack.c.l.b16 %v3093
    %v3138 = vunpack.c.h.b16 %v3093
    %v3139 = vunpack.c.l.b16 %v3094
    %v3140 = vunpack.c.h.b16 %v3094
    %v3141 = vpack.c.b16 %v3119, %v3117
    %v3142 = vpack.c.b16 %v3120, %v3118
    %v3143 = vpack.c.b16 %v3123, %v3121
    %v3144 = vpack.c.b16 %v3124, %v3122
    %v3145 = vpack.c.b16 %v3127, %v3125
    %v3146 = vpack.c.b16 %v3128, %v3126
    %v3147 = vpack.c.b16 %v3131, %v3129
    %v3148 = vpack.c.b16 %v3132, %v3130
    %v3149 = vpack.c.b16 %v3135, %v3133
    %v3150 = vpack.c.b16 %v3136, %v3134
    %v3151 = vpack.c.b16 %v3139, %v3137
    %v3152 = vpack.c.b16 %v3140, %v3138
    %v3166 = vsel %vm1629, %v3096, 0
    %v3169 = vsel %vm1629, %v3098, 0
    %v3172 = vsel %vm1629, %v3100, 0
    %v3175 = vsel %vm1629, %v3102, 0
    %v3178 = vsel %vm1629, %v3104, 0
    %3180 = vmatprep.subr.bf16.mxu0 0
    %3181 = vmatpush1.bf16.msra.mxu0 0
    %3182 = vmatprep.subr.bf16.mxu0 0
    %3183 = vmatpush1.bf16.msra.mxu0 0
    %3184 = vmatprep.subr.bf16.mxu0 %v3152
    %3185 = vmatpush1.bf16.msra.mxu0 %v3151
    %3186 = vmatprep.subr.bf16.mxu0 %v3150
    %3187 = vmatpush1.bf16.msra.mxu0 %v3149
    %3188 = vmatprep.subr.bf16.mxu0 %v3148
    %3189 = vmatpush1.bf16.msra.mxu0 %v3147
    %3190 = vmatprep.subr.bf16.mxu0 %v3146
    %3191 = vmatpush1.bf16.msra.mxu0 %v3145
    %3192 = vmatprep.subr.bf16.mxu0 %v3144
    %3193 = vmatpush1.bf16.msra.mxu0 %v3143
    %3194 = vmatprep.subr.bf16.mxu0 %v3142
    %3195 = vmatpush1.bf16.msra.mxu0 %v3141
    %3196 = vmatprep.subr.bf16.mxu0 0
    %3197 = vmatpush2.bf16.msra.mxu0 0
    %3198 = vmatprep.subr.bf16.mxu0 0
    %3199 = vmatpush2.bf16.msra.mxu0 0
    %3200 = vmatprep.subr.bf16.mxu0 0
    %3201 = vmatpush2.bf16.msra.mxu0 0
    %3202 = vmatprep.subr.bf16.mxu0 0
    %3203 = vmatpush2.bf16.msra.mxu0 0
    %3204 = vmatprep.subr.bf16.mxu0 0
    %3205 = vmatpush2.bf16.msra.mxu0 0
    %3206 = vmatprep.subr.bf16.mxu0 0
    %3207 = vmatpush2.bf16.msra.mxu0 0
    %3208 = vmatprep.subr.bf16.mxu0 0
    %3209 = vmatpush2.bf16.msra.mxu0 0
    %3210 = vmatprep.subr.bf16.mxu0 0
    %3211 = vmatpush2.bf16.msra.mxu0 0
    %3212 = vmatprep.mubr.bf16.mxu0 0
    %3213 = vmatmul.mubr.bf16.gmra.mxu0 %v3166
    %v3214 = vpop.f32.mrf.mxu0
    %v3215 = vadd.f32 0.0, %v3214
    %v3216 = vpop.f32.mrf.mxu0
    %v3217 = vadd.f32 0.0, %v3216
    %v3218 = vpop.f32.mrf.mxu0
    %v3219 = vadd.f32 0.0, %v3218
    %v3220 = vpop.f32.mrf.mxu0
    %v3221 = vadd.f32 0.0, %v3220
    %3222 = vmatprep.mubr.bf16.mxu0 0
    %3223 = vmatmul.mubr.bf16.gmra.mxu0 %v3169
    %v3224 = vpop.f32.mrf.mxu0
    %v3225 = vadd.f32 0.0, %v3224
    %v3226 = vpop.f32.mrf.mxu0
    %v3227 = vadd.f32 0.0, %v3226
    %v3228 = vpop.f32.mrf.mxu0
    %v3229 = vadd.f32 0.0, %v3228
    %v3230 = vpop.f32.mrf.mxu0
    %v3231 = vadd.f32 0.0, %v3230
    %3232 = vmatprep.mubr.bf16.mxu0 0
    %3233 = vmatmul.mubr.bf16.gmra.mxu0 %v3172
    %v3234 = vpop.f32.mrf.mxu0
    %v3235 = vadd.f32 0.0, %v3234
    %v3236 = vpop.f32.mrf.mxu0
    %v3237 = vadd.f32 0.0, %v3236
    %v3238 = vpop.f32.mrf.mxu0
    %v3239 = vadd.f32 0.0, %v3238
    %v3240 = vpop.f32.mrf.mxu0
    %v3241 = vadd.f32 0.0, %v3240
    %3242 = vmatprep.mubr.bf16.mxu0 0
    %3243 = vmatmul.mubr.bf16.gmra.mxu0 %v3175
    %v3244 = vpop.f32.mrf.mxu0
    %v3245 = vadd.f32 0.0, %v3244
    %v3246 = vpop.f32.mrf.mxu0
    %v3247 = vadd.f32 0.0, %v3246
    %v3248 = vpop.f32.mrf.mxu0
    %v3249 = vadd.f32 0.0, %v3248
    %v3250 = vpop.f32.mrf.mxu0
    %v3251 = vadd.f32 0.0, %v3250
    %3252 = vmatprep.mubr.bf16.mxu0 0
    %3253 = vmatmul.mubr.bf16.gmra.mxu0 %v3178
    %v3254 = vpop.f32.mrf.mxu0
    %v3255 = vadd.f32 0.0, %v3254
    %v3256 = vpop.f32.mrf.mxu0
    %v3257 = vadd.f32 0.0, %v3256
    %v3258 = vpop.f32.mrf.mxu0
    %v3259 = vpop.f32.mrf.mxu0
    %3260 = vdwg.mxu0
    %v3261 = vadd.f32 %v3064, %v3215
    %v3262 = vadd.f32 %v3065, %v3217
    %v3263 = vadd.f32 %v3066, %v3219
    %v3264 = vadd.f32 %v3067, %v3221
    %v3265 = vadd.f32 %v3068, %v3225
    %v3266 = vadd.f32 %v3069, %v3227
    %v3267 = vadd.f32 %v3070, %v3229
    %v3268 = vadd.f32 %v3071, %v3231
    %v3269 = vadd.f32 %v3072, %v3235
    %v3270 = vadd.f32 %v3073, %v3237
    %v3271 = vadd.f32 %v3074, %v3239
    %v3272 = vadd.f32 %v3075, %v3241
    %v3273 = vadd.f32 %v3076, %v3245
    %v3274 = vadd.f32 %v3077, %v3247
    %v3275 = vadd.f32 %v3078, %v3249
    %v3276 = vadd.f32 %v3079, %v3251
    %v3277 = vadd.f32 %v3080, %v3255
    %v3278 = vadd.f32 %v3081, %v3257
    %v3279 = vld [vmem:[%s5] sm:$0x3]
    %v3281 = vlaneseq
    %v3282 = vshrl.u32 %v3281, 7
    %v3283 = vsub.s32 0, %v3282
    %v3284 = vrot.slane %v3279, %v3283
    %v3285 = vlaneseq
    %v3286 = vshrl.u32 %v3285, 7
    %v3287 = vsub.s32 1, %v3286
    %v3288 = vrot.slane %v3279, %v3287
    %v3291 = vmul.f32 %v3261, %v3284
    %v3292 = vmul.f32 %v3262, %v3288
    %v3293 = vmul.f32 %v3263, %v3284
    %v3294 = vmul.f32 %v3264, %v3288
    %v3295 = vmul.f32 %v3265, %v3284
    %v3296 = vmul.f32 %v3266, %v3288
    %v3297 = vmul.f32 %v3267, %v3284
    %v3298 = vmul.f32 %v3268, %v3288
    %v3299 = vmul.f32 %v3269, %v3284
    %v3300 = vmul.f32 %v3270, %v3288
    %v3301 = vmul.f32 %v3271, %v3284
    %v3302 = vmul.f32 %v3272, %v3288
    %v3303 = vmul.f32 %v3273, %v3284
    %v3304 = vmul.f32 %v3274, %v3288
    %v3305 = vmul.f32 %v3275, %v3284
    %v3306 = vmul.f32 %v3276, %v3288
    %v3307 = vmul.f32 %v3277, %v3284
    %v3308 = vmul.f32 %v3278, %v3288
    %v3309 = vld [vmem:[%s6] sm:$0x3]
    %v3311 = vlaneseq
    %v3312 = vshrl.u32 %v3311, 7
    %v3313 = vsub.s32 0, %v3312
    %v3314 = vrot.slane %v3309, %v3313
    %v3315 = vlaneseq
    %v3316 = vshrl.u32 %v3315, 7
    %v3317 = vsub.s32 1, %v3316
    %v3318 = vrot.slane %v3309, %v3317
    %v3321 = vadd.f32 %v3291, %v3314
    %v3322 = vadd.f32 %v3292, %v3318
    %v3323 = vadd.f32 %v3293, %v3314
    %v3324 = vadd.f32 %v3294, %v3318
    %v3325 = vadd.f32 %v3295, %v3314
    %v3326 = vadd.f32 %v3296, %v3318
    %v3327 = vadd.f32 %v3297, %v3314
    %v3328 = vadd.f32 %v3298, %v3318
    %v3329 = vadd.f32 %v3299, %v3314
    %v3330 = vadd.f32 %v3300, %v3318
    %v3331 = vadd.f32 %v3301, %v3314
    %v3332 = vadd.f32 %v3302, %v3318
    %v3333 = vadd.f32 %v3303, %v3314
    %v3334 = vadd.f32 %v3304, %v3318
    %v3335 = vadd.f32 %v3305, %v3314
    %v3336 = vadd.f32 %v3306, %v3318
    %v3337 = vadd.f32 %v3307, %v3314
    %v3338 = vadd.f32 %v3308, %v3318
    %v3339 = vmax.f32 %v3321, 0.0
    %v3340 = vmax.f32 %v3322, 0.0
    %v3341 = vmax.f32 %v3323, 0.0
    %v3342 = vmax.f32 %v3324, 0.0
    %v3343 = vmax.f32 %v3325, 0.0
    %v3344 = vmax.f32 %v3326, 0.0
    %v3345 = vmax.f32 %v3327, 0.0
    %v3346 = vmax.f32 %v3328, 0.0
    %v3347 = vmax.f32 %v3329, 0.0
    %v3348 = vmax.f32 %v3330, 0.0
    %v3349 = vmax.f32 %v3331, 0.0
    %v3350 = vmax.f32 %v3332, 0.0
    %v3351 = vmax.f32 %v3333, 0.0
    %v3352 = vmax.f32 %v3334, 0.0
    %v3353 = vmax.f32 %v3335, 0.0
    %v3354 = vmax.f32 %v3336, 0.0
    %v3355 = vmax.f32 %v3337, 0.0
    %v3356 = vmax.f32 %v3338, 0.0
    %3357 = vst [vmem:[#allocation3] sm:$0xff] %v3339
    %vm3358 = vcmask 523264
    %3359 = vst.msk [vmem:[#allocation3 + $0x8] sm:$0xff] %vm3358, %v3340
    %3360 = vst [vmem:[#allocation3 + $0x10] sm:$0xff] %v3341
    %3361 = vst.msk [vmem:[#allocation3 + $0x18] sm:$0xff] %vm3358, %v3342
    %3362 = vst [vmem:[#allocation3 + $0x20] sm:$0xff] %v3343
    %3363 = vst.msk [vmem:[#allocation3 + $0x28] sm:$0xff] %vm3358, %v3344
    %3364 = vst [vmem:[#allocation3 + $0x30] sm:$0xff] %v3345
    %3365 = vst.msk [vmem:[#allocation3 + $0x38] sm:$0xff] %vm3358, %v3346
    %3366 = vst [vmem:[#allocation3 + $0x40] sm:$0xff] %v3347
    %3367 = vst.msk [vmem:[#allocation3 + $0x48] sm:$0xff] %vm3358, %v3348
    %3368 = vst [vmem:[#allocation3 + $0x50] sm:$0xff] %v3349
    %3369 = vst.msk [vmem:[#allocation3 + $0x58] sm:$0xff] %vm3358, %v3350
    %3370 = vst [vmem:[#allocation3 + $0x60] sm:$0xff] %v3351
    %3371 = vst.msk [vmem:[#allocation3 + $0x68] sm:$0xff] %vm3358, %v3352
    %3372 = vst [vmem:[#allocation3 + $0x70] sm:$0xff] %v3353
    %3373 = vst.msk [vmem:[#allocation3 + $0x78] sm:$0xff] %vm3358, %v3354
    %3374 = vst [vmem:[#allocation3 + $0x80] sm:$0xff] %v3355
    %3375 = vst.msk [vmem:[#allocation3 + $0x88] sm:$0xff] %vm3358, %v3356
    %v3376 = vld [vmem:[#allocation3] sm:$0xff]
    %v3377 = vld [vmem:[#allocation3 + $0x8] sm:$0xff]
    %v3378 = vld [vmem:[#allocation3 + $0x10] sm:$0xff]
    %v3379 = vld [vmem:[#allocation3 + $0x18] sm:$0xff]
    %v3380 = vld [vmem:[#allocation3 + $0x20] sm:$0xff]
    %v3381 = vld [vmem:[#allocation3 + $0x28] sm:$0xff]
    %v3382 = vld [vmem:[#allocation3 + $0x30] sm:$0xff]
    %v3383 = vld [vmem:[#allocation3 + $0x38] sm:$0xff]
    %v3384 = vld [vmem:[#allocation3 + $0x40] sm:$0xff]
    %v3385 = vld [vmem:[#allocation3 + $0x48] sm:$0xff]
    %v3386 = vld [vmem:[#allocation3 + $0x50] sm:$0xff]
    %v3387 = vld [vmem:[#allocation3 + $0x58] sm:$0xff]
    %v3388 = vld [vmem:[#allocation3 + $0x60] sm:$0xff]
    %v3389 = vld [vmem:[#allocation3 + $0x68] sm:$0xff]
    %v3390 = vld [vmem:[#allocation3 + $0x70] sm:$0xf]
    %v3391 = vld [vmem:[#allocation3 + $0x78] sm:$0xf]
    %v3392 = vpack.c.bf16 %v3378, %v3376
    %v3393 = vpack.c.bf16 %v3379, %v3377
    %v3394 = vpack.c.bf16 %v3382, %v3380
    %v3395 = vpack.c.bf16 %v3383, %v3381
    %v3396 = vpack.c.bf16 %v3386, %v3384
    %v3397 = vpack.c.bf16 %v3387, %v3385
    %v3398 = vpack.c.bf16 %v3390, %v3388
    %v3399 = vpack.c.bf16 %v3391, %v3389
    %v3400 = vld [vmem:[%s7] sm:$0xff]
    %v3401 = vld [vmem:[%s7 + $0x8] sm:$0xf]
    %v3402 = vld [vmem:[%s7 + $0xc] sm:$0xff]
    %v3403 = vld [vmem:[%s7 + $0x14] sm:$0xf]
    %v3404 = vld [vmem:[%s7 + $0x18] sm:$0xff]
    %v3405 = vld [vmem:[%s7 + $0x20] sm:$0xf]
    %v3406 = vld [vmem:[%s7 + $0x24] sm:$0xff]
    %v3407 = vld [vmem:[%s7 + $0x2c] sm:$0xf]
    %v3408 = vld [vmem:[%s7 + $0x30] sm:$0xff]
    %v3409 = vld [vmem:[%s7 + $0x38] sm:$0xf]
    %v3410 = vld [vmem:[%s7 + $0x3c] sm:$0xff]
    %v3411 = vld [vmem:[%s7 + $0x44] sm:$0xf]
    %v3412 = vld [vmem:[%s7 + $0x48] sm:$0xff]
    %v3413 = vld [vmem:[%s7 + $0x50] sm:$0xf]
    %v3414 = vld [vmem:[%s7 + $0x54] sm:$0xff]
    %v3415 = vld [vmem:[%s7 + $0x5c] sm:$0xf]
    %v3416 = vld [vmem:[%s7 + $0x60] sm:$0xff]
    %v3417 = vld [vmem:[%s7 + $0x68] sm:$0xf]
    %v3418 = vld [vmem:[%s7 + $0x6c] sm:$0xff]
    %v3419 = vld [vmem:[%s7 + $0x74] sm:$0xf]
    %v3420 = vld [vmem:[%s7 + $0x78] sm:$0xff]
    %v3421 = vld [vmem:[%s7 + $0x80] sm:$0xf]
    %v3422 = vld [vmem:[%s7 + $0x84] sm:$0xff]
    %v3423 = vld [vmem:[%s7 + $0x8c] sm:$0xf]
    %v3424 = vld [vmem:[%s7 + $0x90] sm:$0xff]
    %v3425 = vld [vmem:[%s7 + $0x98] sm:$0xf]
    %v3426 = vld [vmem:[%s7 + $0x9c] sm:$0xff]
    %v3427 = vld [vmem:[%s7 + $0xa4] sm:$0xf]
    %v3428 = vld [vmem:[%s7 + $0xa8] sm:$0xff]
    %v3429 = vld [vmem:[%s7 + $0xb0] sm:$0xf]
    %v3430 = vld [vmem:[%s7 + $0xb4] sm:$0xff]
    %v3431 = vld [vmem:[%s7 + $0xbc] sm:$0xf]
    %v3432 = vld [vmem:[%s7 + $0xc0] sm:$0xff]
    %v3433 = vld [vmem:[%s7 + $0xc8] sm:$0xf]
    %v3434 = vld [vmem:[%s7 + $0xcc] sm:$0xff]
    %v3435 = vld [vmem:[%s7 + $0xd4] sm:$0xf]
    %v3436 = vld [vmem:[%s7 + $0xd8] sm:$0xff]
    %v3437 = vld [vmem:[%s7 + $0xe0] sm:$0xf]
    %v3438 = vld [vmem:[%s7 + $0xe4] sm:$0xff]
    %v3439 = vld [vmem:[%s7 + $0xec] sm:$0xf]
    %s3440 = scalar_lea.vmem %s7, 240
    %v3441 = vld [vmem:[%s3440] sm:$0xff]
    %v3442 = vld [vmem:[%s3440 + $0x8] sm:$0xf]
    %v3443 = vld [vmem:[%s3440 + $0xc] sm:$0xff]
    %v3444 = vld [vmem:[%s3440 + $0x14] sm:$0xf]
    %v3445 = vld [vmem:[%s3440 + $0x18] sm:$0xff]
    %v3446 = vld [vmem:[%s3440 + $0x20] sm:$0xf]
    %v3447 = vld [vmem:[%s3440 + $0x24] sm:$0xff]
    %v3448 = vld [vmem:[%s3440 + $0x2c] sm:$0xf]
    %v3449 = vld [vmem:[%s3440 + $0x30] sm:$0xff]
    %v3450 = vld [vmem:[%s3440 + $0x38] sm:$0xf]
    %v3451 = vld [vmem:[%s3440 + $0x3c] sm:$0xff]
    %v3452 = vld [vmem:[%s3440 + $0x44] sm:$0xf]
    %v3453 = vld [vmem:[%s3440 + $0x48] sm:$0xff]
    %v3454 = vld [vmem:[%s3440 + $0x50] sm:$0xf]
    %v3455 = vld [vmem:[%s3440 + $0x54] sm:$0xff]
    %v3456 = vld [vmem:[%s3440 + $0x5c] sm:$0xf]
    %v3457 = vld [vmem:[%s3440 + $0x60] sm:$0xff]
    %v3458 = vld [vmem:[%s3440 + $0x68] sm:$0xf]
    %v3459 = vld [vmem:[%s3440 + $0x6c] sm:$0xff]
    %v3460 = vld [vmem:[%s3440 + $0x74] sm:$0xf]
    %v3461 = vld [vmem:[%s3440 + $0x78] sm:$0xff]
    %v3462 = vld [vmem:[%s3440 + $0x80] sm:$0xf]
    %v3463 = vld [vmem:[%s3440 + $0x84] sm:$0xff]
    %v3464 = vld [vmem:[%s3440 + $0x8c] sm:$0xf]
    %v3465 = vld [vmem:[%s3440 + $0x90] sm:$0xff]
    %v3466 = vld [vmem:[%s3440 + $0x98] sm:$0xf]
    %v3467 = vld [vmem:[%s3440 + $0x9c] sm:$0xff]
    %v3468 = vld [vmem:[%s3440 + $0xa4] sm:$0xf]
    %v3469 = vld [vmem:[%s3440 + $0xa8] sm:$0xff]
    %v3470 = vld [vmem:[%s3440 + $0xb0] sm:$0xf]
    %v3471 = vld [vmem:[%s3440 + $0xb4] sm:$0xff]
    %v3472 = vld [vmem:[%s3440 + $0xbc] sm:$0xf]
    %v3473 = vld [vmem:[%s3440 + $0xc0] sm:$0xff]
    %v3474 = vld [vmem:[%s3440 + $0xc8] sm:$0xf]
    %v3475 = vld [vmem:[%s3440 + $0xcc] sm:$0xff]
    %v3476 = vld [vmem:[%s3440 + $0xd4] sm:$0xf]
    %v3477 = vld [vmem:[%s3440 + $0xd8] sm:$0xff]
    %v3478 = vld [vmem:[%s3440 + $0xe0] sm:$0xf]
    %v3479 = vld [vmem:[%s3440 + $0xe4] sm:$0xff]
    %v3480 = vld [vmem:[%s3440 + $0xec] sm:$0xf]
    %3489 = vrot.lane.b32.xlu0 %v3392, 112
    %v3490 = vpop.permute.xlu0 %3489
    %3491 = vrot.lane.b32.xlu0 %v3393, 112
    %v3492 = vpop.permute.xlu0 %3491
    %3493 = vrot.lane.b32.xlu0 %v3394, 112
    %v3494 = vpop.permute.xlu0 %3493
    %3495 = vrot.lane.b32.xlu0 %v3395, 112
    %v3496 = vpop.permute.xlu0 %3495
    %3497 = vrot.lane.b32.xlu0 %v3396, 112
    %v3498 = vpop.permute.xlu0 %3497
    %3499 = vrot.lane.b32.xlu0 %v3397, 112
    %v3500 = vpop.permute.xlu0 %3499
    %3501 = vrot.lane.b32.xlu0 %v3398, 112
    %v3502 = vpop.permute.xlu0 %3501
    %3503 = vrot.lane.b32.xlu0 %v3399, 112
    %v3504 = vpop.permute.xlu0 %3503
    %vm3505 = vcmask 916480
    %v3506 = vsel %vm3505, %v3490, %v3492
    %v3507 = vsel %vm3505, %v3494, %v3496
    %v3508 = vsel %vm3505, %v3498, %v3500
    %v3509 = vsel %vm3505, %v3502, %v3504
    %v3554 = vunpack.c.l.b16 %v3441
    %v3555 = vunpack.c.h.b16 %v3441
    %v3556 = vunpack.c.l.b16 %v3442
    %v3557 = vunpack.c.l.b16 %v3443
    %v3558 = vunpack.c.h.b16 %v3443
    %v3559 = vunpack.c.l.b16 %v3444
    %v3560 = vunpack.c.l.b16 %v3445
    %v3561 = vunpack.c.h.b16 %v3445
    %v3562 = vunpack.c.l.b16 %v3446
    %v3563 = vunpack.c.l.b16 %v3447
    %v3564 = vunpack.c.h.b16 %v3447
    %v3565 = vunpack.c.l.b16 %v3448
    %v3566 = vunpack.c.l.b16 %v3449
    %v3567 = vunpack.c.h.b16 %v3449
    %v3568 = vunpack.c.l.b16 %v3450
    %v3569 = vunpack.c.l.b16 %v3451
    %v3570 = vunpack.c.h.b16 %v3451
    %v3571 = vunpack.c.l.b16 %v3452
    %v3572 = vunpack.c.l.b16 %v3453
    %v3573 = vunpack.c.h.b16 %v3453
    %v3574 = vunpack.c.l.b16 %v3454
    %v3575 = vunpack.c.l.b16 %v3455
    %v3576 = vunpack.c.h.b16 %v3455
    %v3577 = vunpack.c.l.b16 %v3456
    %v3578 = vunpack.c.l.b16 %v3457
    %v3579 = vunpack.c.h.b16 %v3457
    %v3580 = vunpack.c.l.b16 %v3458
    %v3581 = vunpack.c.l.b16 %v3459
    %v3582 = vunpack.c.h.b16 %v3459
    %v3583 = vunpack.c.l.b16 %v3460
    %v3584 = vunpack.c.l.b16 %v3461
    %v3585 = vunpack.c.h.b16 %v3461
    %v3586 = vunpack.c.l.b16 %v3462
    %v3587 = vunpack.c.l.b16 %v3463
    %v3588 = vunpack.c.h.b16 %v3463
    %v3589 = vunpack.c.l.b16 %v3464
    %v3590 = vunpack.c.l.b16 %v3465
    %v3591 = vunpack.c.h.b16 %v3465
    %v3592 = vunpack.c.l.b16 %v3466
    %v3593 = vunpack.c.l.b16 %v3467
    %v3594 = vunpack.c.h.b16 %v3467
    %v3595 = vunpack.c.l.b16 %v3468
    %v3596 = vunpack.c.l.b16 %v3469
    %v3597 = vunpack.c.h.b16 %v3469
    %v3598 = vunpack.c.l.b16 %v3470
    %v3599 = vunpack.c.l.b16 %v3471
    %v3600 = vunpack.c.h.b16 %v3471
    %v3601 = vunpack.c.l.b16 %v3472
    %v3602 = vunpack.c.l.b16 %v3473
    %v3603 = vunpack.c.h.b16 %v3473
    %v3604 = vunpack.c.l.b16 %v3474
    %v3605 = vunpack.c.l.b16 %v3475
    %v3606 = vunpack.c.h.b16 %v3475
    %v3607 = vunpack.c.l.b16 %v3476
    %v3608 = vunpack.c.l.b16 %v3477
    %v3609 = vunpack.c.h.b16 %v3477
    %v3610 = vunpack.c.l.b16 %v3478
    %v3611 = vunpack.c.l.b16 %v3479
    %v3612 = vunpack.c.h.b16 %v3479
    %v3613 = vunpack.c.l.b16 %v3480
    %v3614 = vpack.c.b16 %v3557, %v3554
    %v3615 = vpack.c.b16 %v3558, %v3555
    %v3616 = vpack.c.b16 %v3559, %v3556
    %v3617 = vpack.c.b16 %v3563, %v3560
    %v3618 = vpack.c.b16 %v3564, %v3561
    %v3619 = vpack.c.b16 %v3565, %v3562
    %v3620 = vpack.c.b16 %v3569, %v3566
    %v3621 = vpack.c.b16 %v3570, %v3567
    %v3622 = vpack.c.b16 %v3571, %v3568
    %v3623 = vpack.c.b16 %v3575, %v3572
    %v3624 = vpack.c.b16 %v3576, %v3573
    %v3625 = vpack.c.b16 %v3577, %v3574
    %v3626 = vpack.c.b16 %v3581, %v3578
    %v3627 = vpack.c.b16 %v3582, %v3579
    %v3628 = vpack.c.b16 %v3583, %v3580
    %v3629 = vpack.c.b16 %v3587, %v3584
    %v3630 = vpack.c.b16 %v3588, %v3585
    %v3631 = vpack.c.b16 %v3589, %v3586
    %v3632 = vpack.c.b16 %v3593, %v3590
    %v3633 = vpack.c.b16 %v3594, %v3591
    %v3634 = vpack.c.b16 %v3595, %v3592
    %v3635 = vpack.c.b16 %v3599, %v3596
    %v3636 = vpack.c.b16 %v3600, %v3597
    %v3637 = vpack.c.b16 %v3601, %v3598
    %v3638 = vpack.c.b16 %v3605, %v3602
    %v3639 = vpack.c.b16 %v3606, %v3603
    %v3640 = vpack.c.b16 %v3607, %v3604
    %v3641 = vpack.c.b16 %v3611, %v3608
    %v3642 = vpack.c.b16 %v3612, %v3609
    %v3643 = vpack.c.b16 %v3613, %v3610
    %vm3674 = vcmask 261120
    %v3676 = vsel %vm3674, %v3492, 0
    %v3679 = vsel %vm3674, %v3496, 0
    %v3682 = vsel %vm3674, %v3500, 0
    %v3685 = vsel %vm3674, %v3504, 0
    %3687 = vmatprep.subr.bf16.mxu0 %v3636
    %3688 = vmatpush1.bf16.msra.mxu0 %v3635
    %3689 = vmatprep.subr.bf16.mxu0 %v3633
    %3690 = vmatpush1.bf16.msra.mxu0 %v3632
    %3691 = vmatprep.subr.bf16.mxu0 %v3630
    %3692 = vmatpush1.bf16.msra.mxu0 %v3629
    %3693 = vmatprep.subr.bf16.mxu0 %v3627
    %3694 = vmatpush1.bf16.msra.mxu0 %v3626
    %3695 = vmatprep.subr.bf16.mxu0 %v3624
    %3696 = vmatpush1.bf16.msra.mxu0 %v3623
    %3697 = vmatprep.subr.bf16.mxu0 %v3621
    %3698 = vmatpush1.bf16.msra.mxu0 %v3620
    %3699 = vmatprep.subr.bf16.mxu0 %v3618
    %3700 = vmatpush1.bf16.msra.mxu0 %v3617
    %3701 = vmatprep.subr.bf16.mxu0 %v3615
    %3702 = vmatpush1.bf16.msra.mxu0 %v3614
    %3703 = vmatprep.subr.bf16.mxu0 0
    %3704 = vmatpush2.bf16.msra.mxu0 0
    %3705 = vmatprep.subr.bf16.mxu0 0
    %3706 = vmatpush2.bf16.msra.mxu0 0
    %3707 = vmatprep.subr.bf16.mxu0 0
    %3708 = vmatpush2.bf16.msra.mxu0 0
    %3709 = vmatprep.subr.bf16.mxu0 0
    %3710 = vmatpush2.bf16.msra.mxu0 0
    %3711 = vmatprep.subr.bf16.mxu0 0
    %3712 = vmatpush2.bf16.msra.mxu0 0
    %3713 = vmatprep.subr.bf16.mxu0 0
    %3714 = vmatpush2.bf16.msra.mxu0 0
    %3715 = vmatprep.subr.bf16.mxu0 %v3642
    %3716 = vmatpush2.bf16.msra.mxu0 %v3641
    %3717 = vmatprep.subr.bf16.mxu0 %v3639
    %3718 = vmatpush2.bf16.msra.mxu0 %v3638
    %3719 = vmatprep.mubr.bf16.mxu0 %v3676
    %3720 = vmatmul.mubr.bf16.gmra.mxu0 %v3506
    %v3721 = vpop.f32.mrf.mxu0
    %v3722 = vadd.f32 0.0, %v3721
    %v3723 = vpop.f32.mrf.mxu0
    %v3724 = vadd.f32 0.0, %v3723
    %v3725 = vpop.f32.mrf.mxu0
    %v3726 = vadd.f32 0.0, %v3725
    %v3727 = vpop.f32.mrf.mxu0
    %v3728 = vadd.f32 0.0, %v3727
    %3729 = vmatprep.mubr.bf16.mxu0 %v3679
    %3730 = vmatmul.mubr.bf16.gmra.mxu0 %v3507
    %v3731 = vpop.f32.mrf.mxu0
    %v3732 = vadd.f32 0.0, %v3731
    %v3733 = vpop.f32.mrf.mxu0
    %v3734 = vadd.f32 0.0, %v3733
    %v3735 = vpop.f32.mrf.mxu0
    %v3736 = vadd.f32 0.0, %v3735
    %v3737 = vpop.f32.mrf.mxu0
    %v3738 = vadd.f32 0.0, %v3737
    %3739 = vmatprep.mubr.bf16.mxu0 %v3682
    %3740 = vmatmul.mubr.bf16.gmra.mxu0 %v3508
    %v3741 = vpop.f32.mrf.mxu0
    %v3742 = vadd.f32 0.0, %v3741
    %v3743 = vpop.f32.mrf.mxu0
    %v3744 = vadd.f32 0.0, %v3743
    %v3745 = vpop.f32.mrf.mxu0
    %v3746 = vadd.f32 0.0, %v3745
    %v3747 = vpop.f32.mrf.mxu0
    %v3748 = vadd.f32 0.0, %v3747
    %3749 = vmatprep.mubr.bf16.mxu0 %v3685
    %3750 = vmatmul.mubr.bf16.gmra.mxu0 %v3509
    %v3751 = vpop.f32.mrf.mxu0
    %v3752 = vadd.f32 0.0, %v3751
    %v3753 = vpop.f32.mrf.mxu0
    %v3754 = vadd.f32 0.0, %v3753
    %v3755 = vpop.f32.mrf.mxu0
    %v3756 = vadd.f32 0.0, %v3755
    %v3757 = vpop.f32.mrf.mxu0
    %v3758 = vadd.f32 0.0, %v3757
    %3759 = vdwg.mxu0
    %3760 = vmatprep.subr.bf16.mxu0 0
    %3761 = vmatpush1.bf16.msra.mxu0 %v3637
    %3762 = vmatprep.subr.bf16.mxu0 0
    %3763 = vmatpush1.bf16.msra.mxu0 %v3634
    %3764 = vmatprep.subr.bf16.mxu0 0
    %3765 = vmatpush1.bf16.msra.mxu0 %v3631
    %3766 = vmatprep.subr.bf16.mxu0 0
    %3767 = vmatpush1.bf16.msra.mxu0 %v3628
    %3768 = vmatprep.subr.bf16.mxu0 0
    %3769 = vmatpush1.bf16.msra.mxu0 %v3625
    %3770 = vmatprep.subr.bf16.mxu0 0
    %3771 = vmatpush1.bf16.msra.mxu0 %v3622
    %3772 = vmatprep.subr.bf16.mxu0 0
    %3773 = vmatpush1.bf16.msra.mxu0 %v3619
    %3774 = vmatprep.subr.bf16.mxu0 0
    %3775 = vmatpush1.bf16.msra.mxu0 %v3616
    %3776 = vmatprep.subr.bf16.mxu0 0
    %3777 = vmatpush2.bf16.msra.mxu0 0
    %3778 = vmatprep.subr.bf16.mxu0 0
    %3779 = vmatpush2.bf16.msra.mxu0 0
    %3780 = vmatprep.subr.bf16.mxu0 0
    %3781 = vmatpush2.bf16.msra.mxu0 0
    %3782 = vmatprep.subr.bf16.mxu0 0
    %3783 = vmatpush2.bf16.msra.mxu0 0
    %3784 = vmatprep.subr.bf16.mxu0 0
    %3785 = vmatpush2.bf16.msra.mxu0 0
    %3786 = vmatprep.subr.bf16.mxu0 0
    %3787 = vmatpush2.bf16.msra.mxu0 0
    %3788 = vmatprep.subr.bf16.mxu0 0
    %3789 = vmatpush2.bf16.msra.mxu0 %v3643
    %3790 = vmatprep.subr.bf16.mxu0 0
    %3791 = vmatpush2.bf16.msra.mxu0 %v3640
    %3792 = vmatprep.mubr.bf16.mxu0 %v3676
    %3793 = vmatmul.mubr.bf16.gmra.mxu0 %v3506
    %v3794 = vpop.f32.mrf.mxu0
    %v3795 = vadd.f32 0.0, %v3794
    %v3796 = vpop.f32.mrf.mxu0
    %v3797 = vpop.f32.mrf.mxu0
    %v3798 = vadd.f32 0.0, %v3797
    %v3799 = vpop.f32.mrf.mxu0
    %3800 = vmatprep.mubr.bf16.mxu0 %v3679
    %3801 = vmatmul.mubr.bf16.gmra.mxu0 %v3507
    %v3802 = vpop.f32.mrf.mxu0
    %v3803 = vadd.f32 0.0, %v3802
    %v3804 = vpop.f32.mrf.mxu0
    %v3805 = vpop.f32.mrf.mxu0
    %v3806 = vadd.f32 0.0, %v3805
    %v3807 = vpop.f32.mrf.mxu0
    %3808 = vmatprep.mubr.bf16.mxu0 %v3682
    %3809 = vmatmul.mubr.bf16.gmra.mxu0 %v3508
    %v3810 = vpop.f32.mrf.mxu0
    %v3811 = vadd.f32 0.0, %v3810
    %v3812 = vpop.f32.mrf.mxu0
    %v3813 = vpop.f32.mrf.mxu0
    %v3814 = vadd.f32 0.0, %v3813
    %v3815 = vpop.f32.mrf.mxu0
    %3816 = vmatprep.mubr.bf16.mxu0 %v3685
    %3817 = vmatmul.mubr.bf16.gmra.mxu0 %v3509
    %v3818 = vpop.f32.mrf.mxu0
    %v3819 = vadd.f32 0.0, %v3818
    %v3820 = vpop.f32.mrf.mxu0
    %v3821 = vpop.f32.mrf.mxu0
    %v3822 = vadd.f32 0.0, %v3821
    %v3823 = vpop.f32.mrf.mxu0
    %3824 = vdwg.mxu0
    %v3865 = vunpack.c.l.b16 %v3400
    %v3866 = vunpack.c.h.b16 %v3400
    %v3867 = vunpack.c.l.b16 %v3401
    %v3868 = vunpack.c.l.b16 %v3402
    %v3869 = vunpack.c.h.b16 %v3402
    %v3870 = vunpack.c.l.b16 %v3403
    %v3871 = vunpack.c.l.b16 %v3404
    %v3872 = vunpack.c.h.b16 %v3404
    %v3873 = vunpack.c.l.b16 %v3405
    %v3874 = vunpack.c.l.b16 %v3406
    %v3875 = vunpack.c.h.b16 %v3406
    %v3876 = vunpack.c.l.b16 %v3407
    %v3877 = vunpack.c.l.b16 %v3408
    %v3878 = vunpack.c.h.b16 %v3408
    %v3879 = vunpack.c.l.b16 %v3409
    %v3880 = vunpack.c.l.b16 %v3410
    %v3881 = vunpack.c.h.b16 %v3410
    %v3882 = vunpack.c.l.b16 %v3411
    %v3883 = vunpack.c.l.b16 %v3412
    %v3884 = vunpack.c.h.b16 %v3412
    %v3885 = vunpack.c.l.b16 %v3413
    %v3886 = vunpack.c.l.b16 %v3414
    %v3887 = vunpack.c.h.b16 %v3414
    %v3888 = vunpack.c.l.b16 %v3415
    %v3889 = vunpack.c.l.b16 %v3416
    %v3890 = vunpack.c.h.b16 %v3416
    %v3891 = vunpack.c.l.b16 %v3417
    %v3892 = vunpack.c.l.b16 %v3418
    %v3893 = vunpack.c.h.b16 %v3418
    %v3894 = vunpack.c.l.b16 %v3419
    %v3895 = vunpack.c.l.b16 %v3420
    %v3896 = vunpack.c.h.b16 %v3420
    %v3897 = vunpack.c.l.b16 %v3421
    %v3898 = vunpack.c.l.b16 %v3422
    %v3899 = vunpack.c.h.b16 %v3422
    %v3900 = vunpack.c.l.b16 %v3423
    %v3901 = vunpack.c.l.b16 %v3424
    %v3902 = vunpack.c.h.b16 %v3424
    %v3903 = vunpack.c.l.b16 %v3425
    %v3904 = vunpack.c.l.b16 %v3426
    %v3905 = vunpack.c.h.b16 %v3426
    %v3906 = vunpack.c.l.b16 %v3427
    %v3907 = vunpack.c.l.b16 %v3428
    %v3908 = vunpack.c.h.b16 %v3428
    %v3909 = vunpack.c.l.b16 %v3429
    %v3910 = vunpack.c.l.b16 %v3430
    %v3911 = vunpack.c.h.b16 %v3430
    %v3912 = vunpack.c.l.b16 %v3431
    %v3913 = vunpack.c.l.b16 %v3432
    %v3914 = vunpack.c.h.b16 %v3432
    %v3915 = vunpack.c.l.b16 %v3433
    %v3916 = vunpack.c.l.b16 %v3434
    %v3917 = vunpack.c.h.b16 %v3434
    %v3918 = vunpack.c.l.b16 %v3435
    %v3919 = vunpack.c.l.b16 %v3436
    %v3920 = vunpack.c.h.b16 %v3436
    %v3921 = vunpack.c.l.b16 %v3437
    %v3922 = vunpack.c.l.b16 %v3438
    %v3923 = vunpack.c.h.b16 %v3438
    %v3924 = vunpack.c.l.b16 %v3439
    %v3925 = vpack.c.b16 %v3868, %v3865
    %v3926 = vpack.c.b16 %v3869, %v3866
    %v3927 = vpack.c.b16 %v3870, %v3867
    %v3928 = vpack.c.b16 %v3874, %v3871
    %v3929 = vpack.c.b16 %v3875, %v3872
    %v3930 = vpack.c.b16 %v3876, %v3873
    %v3931 = vpack.c.b16 %v3880, %v3877
    %v3932 = vpack.c.b16 %v3881, %v3878
    %v3933 = vpack.c.b16 %v3882, %v3879
    %v3934 = vpack.c.b16 %v3886, %v3883
    %v3935 = vpack.c.b16 %v3887, %v3884
    %v3936 = vpack.c.b16 %v3888, %v3885
    %v3937 = vpack.c.b16 %v3892, %v3889
    %v3938 = vpack.c.b16 %v3893, %v3890
    %v3939 = vpack.c.b16 %v3894, %v3891
    %v3940 = vpack.c.b16 %v3898, %v3895
    %v3941 = vpack.c.b16 %v3899, %v3896
    %v3942 = vpack.c.b16 %v3900, %v3897
    %v3943 = vpack.c.b16 %v3904, %v3901
    %v3944 = vpack.c.b16 %v3905, %v3902
    %v3945 = vpack.c.b16 %v3906, %v3903
    %v3946 = vpack.c.b16 %v3910, %v3907
    %v3947 = vpack.c.b16 %v3911, %v3908
    %v3948 = vpack.c.b16 %v3912, %v3909
    %v3949 = vpack.c.b16 %v3916, %v3913
    %v3950 = vpack.c.b16 %v3917, %v3914
    %v3951 = vpack.c.b16 %v3918, %v3915
    %v3952 = vpack.c.b16 %v3922, %v3919
    %v3953 = vpack.c.b16 %v3923, %v3920
    %v3954 = vpack.c.b16 %v3924, %v3921
    %v3986 = vsel %vm3674, %v3393, 0
    %v3989 = vsel %vm3674, %v3395, 0
    %v3992 = vsel %vm3674, %v3397, 0
    %v3995 = vsel %vm3674, %v3399, 0
    %3997 = vmatprep.subr.bf16.mxu0 %v3947
    %3998 = vmatpush1.bf16.msra.mxu0 %v3946
    %3999 = vmatprep.subr.bf16.mxu0 %v3944
    %4000 = vmatpush1.bf16.msra.mxu0 %v3943
    %4001 = vmatprep.subr.bf16.mxu0 %v3941
    %4002 = vmatpush1.bf16.msra.mxu0 %v3940
    %4003 = vmatprep.subr.bf16.mxu0 %v3938
    %4004 = vmatpush1.bf16.msra.mxu0 %v3937
    %4005 = vmatprep.subr.bf16.mxu0 %v3935
    %4006 = vmatpush1.bf16.msra.mxu0 %v3934
    %4007 = vmatprep.subr.bf16.mxu0 %v3932
    %4008 = vmatpush1.bf16.msra.mxu0 %v3931
    %4009 = vmatprep.subr.bf16.mxu0 %v3929
    %4010 = vmatpush1.bf16.msra.mxu0 %v3928
    %4011 = vmatprep.subr.bf16.mxu0 %v3926
    %4012 = vmatpush1.bf16.msra.mxu0 %v3925
    %4013 = vmatprep.subr.bf16.mxu0 0
    %4014 = vmatpush2.bf16.msra.mxu0 0
    %4015 = vmatprep.subr.bf16.mxu0 0
    %4016 = vmatpush2.bf16.msra.mxu0 0
    %4017 = vmatprep.subr.bf16.mxu0 0
    %4018 = vmatpush2.bf16.msra.mxu0 0
    %4019 = vmatprep.subr.bf16.mxu0 0
    %4020 = vmatpush2.bf16.msra.mxu0 0
    %4021 = vmatprep.subr.bf16.mxu0 0
    %4022 = vmatpush2.bf16.msra.mxu0 0
    %4023 = vmatprep.subr.bf16.mxu0 0
    %4024 = vmatpush2.bf16.msra.mxu0 0
    %4025 = vmatprep.subr.bf16.mxu0 %v3953
    %4026 = vmatpush2.bf16.msra.mxu0 %v3952
    %4027 = vmatprep.subr.bf16.mxu0 %v3950
    %4028 = vmatpush2.bf16.msra.mxu0 %v3949
    %4029 = vmatprep.mubr.bf16.mxu0 %v3986
    %4030 = vmatmul.mubr.bf16.gmra.mxu0 %v3392
    %v4031 = vpop.f32.mrf.mxu0
    %v4032 = vadd.f32 %v3722, %v4031
    %v4033 = vpop.f32.mrf.mxu0
    %v4034 = vadd.f32 %v3724, %v4033
    %v4035 = vpop.f32.mrf.mxu0
    %v4036 = vadd.f32 %v3726, %v4035
    %v4037 = vpop.f32.mrf.mxu0
    %v4038 = vadd.f32 %v3728, %v4037
    %4039 = vmatprep.mubr.bf16.mxu0 %v3989
    %4040 = vmatmul.mubr.bf16.gmra.mxu0 %v3394
    %v4041 = vpop.f32.mrf.mxu0
    %v4042 = vadd.f32 %v3732, %v4041
    %v4043 = vpop.f32.mrf.mxu0
    %v4044 = vadd.f32 %v3734, %v4043
    %v4045 = vpop.f32.mrf.mxu0
    %v4046 = vadd.f32 %v3736, %v4045
    %v4047 = vpop.f32.mrf.mxu0
    %v4048 = vadd.f32 %v3738, %v4047
    %4049 = vmatprep.mubr.bf16.mxu0 %v3992
    %4050 = vmatmul.mubr.bf16.gmra.mxu0 %v3396
    %v4051 = vpop.f32.mrf.mxu0
    %v4052 = vadd.f32 %v3742, %v4051
    %v4053 = vpop.f32.mrf.mxu0
    %v4054 = vadd.f32 %v3744, %v4053
    %v4055 = vpop.f32.mrf.mxu0
    %v4056 = vadd.f32 %v3746, %v4055
    %v4057 = vpop.f32.mrf.mxu0
    %v4058 = vadd.f32 %v3748, %v4057
    %4059 = vmatprep.mubr.bf16.mxu0 %v3995
    %4060 = vmatmul.mubr.bf16.gmra.mxu0 %v3398
    %v4061 = vpop.f32.mrf.mxu0
    %v4062 = vadd.f32 %v3752, %v4061
    %v4063 = vpop.f32.mrf.mxu0
    %v4064 = vadd.f32 %v3754, %v4063
    %v4065 = vpop.f32.mrf.mxu0
    %v4066 = vadd.f32 %v3756, %v4065
    %v4067 = vpop.f32.mrf.mxu0
    %v4068 = vadd.f32 %v3758, %v4067
    %4069 = vdwg.mxu0
    %4070 = vmatprep.subr.bf16.mxu0 0
    %4071 = vmatpush1.bf16.msra.mxu0 %v3948
    %4072 = vmatprep.subr.bf16.mxu0 0
    %4073 = vmatpush1.bf16.msra.mxu0 %v3945
    %4074 = vmatprep.subr.bf16.mxu0 0
    %4075 = vmatpush1.bf16.msra.mxu0 %v3942
    %4076 = vmatprep.subr.bf16.mxu0 0
    %4077 = vmatpush1.bf16.msra.mxu0 %v3939
    %4078 = vmatprep.subr.bf16.mxu0 0
    %4079 = vmatpush1.bf16.msra.mxu0 %v3936
    %4080 = vmatprep.subr.bf16.mxu0 0
    %4081 = vmatpush1.bf16.msra.mxu0 %v3933
    %4082 = vmatprep.subr.bf16.mxu0 0
    %4083 = vmatpush1.bf16.msra.mxu0 %v3930
    %4084 = vmatprep.subr.bf16.mxu0 0
    %4085 = vmatpush1.bf16.msra.mxu0 %v3927
    %4086 = vmatprep.subr.bf16.mxu0 0
    %4087 = vmatpush2.bf16.msra.mxu0 0
    %4088 = vmatprep.subr.bf16.mxu0 0
    %4089 = vmatpush2.bf16.msra.mxu0 0
    %4090 = vmatprep.subr.bf16.mxu0 0
    %4091 = vmatpush2.bf16.msra.mxu0 0
    %4092 = vmatprep.subr.bf16.mxu0 0
    %4093 = vmatpush2.bf16.msra.mxu0 0
    %4094 = vmatprep.subr.bf16.mxu0 0
    %4095 = vmatpush2.bf16.msra.mxu0 0
    %4096 = vmatprep.subr.bf16.mxu0 0
    %4097 = vmatpush2.bf16.msra.mxu0 0
    %4098 = vmatprep.subr.bf16.mxu0 0
    %4099 = vmatpush2.bf16.msra.mxu0 %v3954
    %4100 = vmatprep.subr.bf16.mxu0 0
    %4101 = vmatpush2.bf16.msra.mxu0 %v3951
    %4102 = vmatprep.mubr.bf16.mxu0 %v3986
    %4103 = vmatmul.mubr.bf16.gmra.mxu0 %v3392
    %v4104 = vpop.f32.mrf.mxu0
    %v4105 = vadd.f32 %v3795, %v4104
    %v4106 = vpop.f32.mrf.mxu0
    %v4107 = vpop.f32.mrf.mxu0
    %v4108 = vadd.f32 %v3798, %v4107
    %v4109 = vpop.f32.mrf.mxu0
    %4110 = vmatprep.mubr.bf16.mxu0 %v3989
    %4111 = vmatmul.mubr.bf16.gmra.mxu0 %v3394
    %v4112 = vpop.f32.mrf.mxu0
    %v4113 = vadd.f32 %v3803, %v4112
    %v4114 = vpop.f32.mrf.mxu0
    %v4115 = vpop.f32.mrf.mxu0
    %v4116 = vadd.f32 %v3806, %v4115
    %v4117 = vpop.f32.mrf.mxu0
    %4118 = vmatprep.mubr.bf16.mxu0 %v3992
    %4119 = vmatmul.mubr.bf16.gmra.mxu0 %v3396
    %v4120 = vpop.f32.mrf.mxu0
    %v4121 = vadd.f32 %v3811, %v4120
    %v4122 = vpop.f32.mrf.mxu0
    %v4123 = vpop.f32.mrf.mxu0
    %v4124 = vadd.f32 %v3814, %v4123
    %v4125 = vpop.f32.mrf.mxu0
    %4126 = vmatprep.mubr.bf16.mxu0 %v3995
    %4127 = vmatmul.mubr.bf16.gmra.mxu0 %v3398
    %v4128 = vpop.f32.mrf.mxu0
    %v4129 = vadd.f32 %v3819, %v4128
    %v4130 = vpop.f32.mrf.mxu0
    %v4131 = vpop.f32.mrf.mxu0
    %v4132 = vadd.f32 %v3822, %v4131
    %v4133 = vpop.f32.mrf.mxu0
    %4134 = vdwg.mxu0
    %s4135 = scalar_lea.vmem %s7, 480
    %v4136 = vld [vmem:[%s4135] sm:$0xff]
    %v4137 = vld [vmem:[%s4135 + $0x8] sm:$0xf]
    %v4138 = vld [vmem:[%s4135 + $0xc] sm:$0xff]
    %v4139 = vld [vmem:[%s4135 + $0x14] sm:$0xf]
    %v4140 = vld [vmem:[%s4135 + $0x18] sm:$0xff]
    %v4141 = vld [vmem:[%s4135 + $0x20] sm:$0xf]
    %v4142 = vld [vmem:[%s4135 + $0x24] sm:$0xff]
    %v4143 = vld [vmem:[%s4135 + $0x2c] sm:$0xf]
    %v4144 = vld [vmem:[%s4135 + $0x30] sm:$0xff]
    %v4145 = vld [vmem:[%s4135 + $0x38] sm:$0xf]
    %v4146 = vld [vmem:[%s4135 + $0x3c] sm:$0xff]
    %v4147 = vld [vmem:[%s4135 + $0x44] sm:$0xf]
    %v4148 = vld [vmem:[%s4135 + $0x48] sm:$0xff]
    %v4149 = vld [vmem:[%s4135 + $0x50] sm:$0xf]
    %v4150 = vld [vmem:[%s4135 + $0x54] sm:$0xff]
    %v4151 = vld [vmem:[%s4135 + $0x5c] sm:$0xf]
    %v4152 = vld [vmem:[%s4135 + $0x60] sm:$0xff]
    %v4153 = vld [vmem:[%s4135 + $0x68] sm:$0xf]
    %v4154 = vld [vmem:[%s4135 + $0x6c] sm:$0xff]
    %v4155 = vld [vmem:[%s4135 + $0x74] sm:$0xf]
    %v4156 = vld [vmem:[%s4135 + $0x78] sm:$0xff]
    %v4157 = vld [vmem:[%s4135 + $0x80] sm:$0xf]
    %v4158 = vld [vmem:[%s4135 + $0x84] sm:$0xff]
    %v4159 = vld [vmem:[%s4135 + $0x8c] sm:$0xf]
    %v4160 = vld [vmem:[%s4135 + $0x90] sm:$0xff]
    %v4161 = vld [vmem:[%s4135 + $0x98] sm:$0xf]
    %v4162 = vld [vmem:[%s4135 + $0x9c] sm:$0xff]
    %v4163 = vld [vmem:[%s4135 + $0xa4] sm:$0xf]
    %v4164 = vld [vmem:[%s4135 + $0xa8] sm:$0xff]
    %v4165 = vld [vmem:[%s4135 + $0xb0] sm:$0xf]
    %v4166 = vld [vmem:[%s4135 + $0xb4] sm:$0xff]
    %v4167 = vld [vmem:[%s4135 + $0xbc] sm:$0xf]
    %v4168 = vld [vmem:[%s4135 + $0xc0] sm:$0xff]
    %v4169 = vld [vmem:[%s4135 + $0xc8] sm:$0xf]
    %v4170 = vld [vmem:[%s4135 + $0xcc] sm:$0xff]
    %v4171 = vld [vmem:[%s4135 + $0xd4] sm:$0xf]
    %v4172 = vld [vmem:[%s4135 + $0xd8] sm:$0xff]
    %v4173 = vld [vmem:[%s4135 + $0xe0] sm:$0xf]
    %v4174 = vld [vmem:[%s4135 + $0xe4] sm:$0xff]
    %v4175 = vld [vmem:[%s4135 + $0xec] sm:$0xf]
    %4176 = vrot.lane.b32.xlu0 %v3392, 96
    %v4177 = vpop.permute.xlu0 %4176
    %4178 = vrot.lane.b32.xlu0 %v3393, 96
    %v4179 = vpop.permute.xlu0 %4178
    %4180 = vrot.lane.b32.xlu0 %v3394, 96
    %v4181 = vpop.permute.xlu0 %4180
    %4182 = vrot.lane.b32.xlu0 %v3395, 96
    %v4183 = vpop.permute.xlu0 %4182
    %4184 = vrot.lane.b32.xlu0 %v3396, 96
    %v4185 = vpop.permute.xlu0 %4184
    %4186 = vrot.lane.b32.xlu0 %v3397, 96
    %v4187 = vpop.permute.xlu0 %4186
    %4188 = vrot.lane.b32.xlu0 %v3398, 96
    %v4189 = vpop.permute.xlu0 %4188
    %4190 = vrot.lane.b32.xlu0 %v3399, 96
    %v4191 = vpop.permute.xlu0 %4190
    %vm4192 = vcmask 785408
    %v4193 = vsel %vm4192, %v4177, %v4179
    %v4194 = vsel %vm4192, %v4181, %v4183
    %v4195 = vsel %vm4192, %v4185, %v4187
    %v4196 = vsel %vm4192, %v4189, %v4191
    %v4241 = vunpack.c.l.b16 %v4136
    %v4242 = vunpack.c.h.b16 %v4136
    %v4243 = vunpack.c.l.b16 %v4137
    %v4244 = vunpack.c.l.b16 %v4138
    %v4245 = vunpack.c.h.b16 %v4138
    %v4246 = vunpack.c.l.b16 %v4139
    %v4247 = vunpack.c.l.b16 %v4140
    %v4248 = vunpack.c.h.b16 %v4140
    %v4249 = vunpack.c.l.b16 %v4141
    %v4250 = vunpack.c.l.b16 %v4142
    %v4251 = vunpack.c.h.b16 %v4142
    %v4252 = vunpack.c.l.b16 %v4143
    %v4253 = vunpack.c.l.b16 %v4144
    %v4254 = vunpack.c.h.b16 %v4144
    %v4255 = vunpack.c.l.b16 %v4145
    %v4256 = vunpack.c.l.b16 %v4146
    %v4257 = vunpack.c.h.b16 %v4146
    %v4258 = vunpack.c.l.b16 %v4147
    %v4259 = vunpack.c.l.b16 %v4148
    %v4260 = vunpack.c.h.b16 %v4148
    %v4261 = vunpack.c.l.b16 %v4149
    %v4262 = vunpack.c.l.b16 %v4150
    %v4263 = vunpack.c.h.b16 %v4150
    %v4264 = vunpack.c.l.b16 %v4151
    %v4265 = vunpack.c.l.b16 %v4152
    %v4266 = vunpack.c.h.b16 %v4152
    %v4267 = vunpack.c.l.b16 %v4153
    %v4268 = vunpack.c.l.b16 %v4154
    %v4269 = vunpack.c.h.b16 %v4154
    %v4270 = vunpack.c.l.b16 %v4155
    %v4271 = vunpack.c.l.b16 %v4156
    %v4272 = vunpack.c.h.b16 %v4156
    %v4273 = vunpack.c.l.b16 %v4157
    %v4274 = vunpack.c.l.b16 %v4158
    %v4275 = vunpack.c.h.b16 %v4158
    %v4276 = vunpack.c.l.b16 %v4159
    %v4277 = vunpack.c.l.b16 %v4160
    %v4278 = vunpack.c.h.b16 %v4160
    %v4279 = vunpack.c.l.b16 %v4161
    %v4280 = vunpack.c.l.b16 %v4162
    %v4281 = vunpack.c.h.b16 %v4162
    %v4282 = vunpack.c.l.b16 %v4163
    %v4283 = vunpack.c.l.b16 %v4164
    %v4284 = vunpack.c.h.b16 %v4164
    %v4285 = vunpack.c.l.b16 %v4165
    %v4286 = vunpack.c.l.b16 %v4166
    %v4287 = vunpack.c.h.b16 %v4166
    %v4288 = vunpack.c.l.b16 %v4167
    %v4289 = vunpack.c.l.b16 %v4168
    %v4290 = vunpack.c.h.b16 %v4168
    %v4291 = vunpack.c.l.b16 %v4169
    %v4292 = vunpack.c.l.b16 %v4170
    %v4293 = vunpack.c.h.b16 %v4170
    %v4294 = vunpack.c.l.b16 %v4171
    %v4295 = vunpack.c.l.b16 %v4172
    %v4296 = vunpack.c.h.b16 %v4172
    %v4297 = vunpack.c.l.b16 %v4173
    %v4298 = vunpack.c.l.b16 %v4174
    %v4299 = vunpack.c.h.b16 %v4174
    %v4300 = vunpack.c.l.b16 %v4175
    %v4301 = vpack.c.b16 %v4244, %v4241
    %v4302 = vpack.c.b16 %v4245, %v4242
    %v4303 = vpack.c.b16 %v4246, %v4243
    %v4304 = vpack.c.b16 %v4250, %v4247
    %v4305 = vpack.c.b16 %v4251, %v4248
    %v4306 = vpack.c.b16 %v4252, %v4249
    %v4307 = vpack.c.b16 %v4256, %v4253
    %v4308 = vpack.c.b16 %v4257, %v4254
    %v4309 = vpack.c.b16 %v4258, %v4255
    %v4310 = vpack.c.b16 %v4262, %v4259
    %v4311 = vpack.c.b16 %v4263, %v4260
    %v4312 = vpack.c.b16 %v4264, %v4261
    %v4313 = vpack.c.b16 %v4268, %v4265
    %v4314 = vpack.c.b16 %v4269, %v4266
    %v4315 = vpack.c.b16 %v4270, %v4267
    %v4316 = vpack.c.b16 %v4274, %v4271
    %v4317 = vpack.c.b16 %v4275, %v4272
    %v4318 = vpack.c.b16 %v4276, %v4273
    %v4319 = vpack.c.b16 %v4280, %v4277
    %v4320 = vpack.c.b16 %v4281, %v4278
    %v4321 = vpack.c.b16 %v4282, %v4279
    %v4322 = vpack.c.b16 %v4286, %v4283
    %v4323 = vpack.c.b16 %v4287, %v4284
    %v4324 = vpack.c.b16 %v4288, %v4285
    %v4325 = vpack.c.b16 %v4292, %v4289
    %v4326 = vpack.c.b16 %v4293, %v4290
    %v4327 = vpack.c.b16 %v4294, %v4291
    %v4328 = vpack.c.b16 %v4298, %v4295
    %v4329 = vpack.c.b16 %v4299, %v4296
    %v4330 = vpack.c.b16 %v4300, %v4297
    %v4362 = vsel %vm3674, %v4179, 0
    %v4365 = vsel %vm3674, %v4183, 0
    %v4368 = vsel %vm3674, %v4187, 0
    %v4371 = vsel %vm3674, %v4191, 0
    %4373 = vmatprep.subr.bf16.mxu0 %v4323
    %4374 = vmatpush1.bf16.msra.mxu0 %v4322
    %4375 = vmatprep.subr.bf16.mxu0 %v4320
    %4376 = vmatpush1.bf16.msra.mxu0 %v4319
    %4377 = vmatprep.subr.bf16.mxu0 %v4317
    %4378 = vmatpush1.bf16.msra.mxu0 %v4316
    %4379 = vmatprep.subr.bf16.mxu0 %v4314
    %4380 = vmatpush1.bf16.msra.mxu0 %v4313
    %4381 = vmatprep.subr.bf16.mxu0 %v4311
    %4382 = vmatpush1.bf16.msra.mxu0 %v4310
    %4383 = vmatprep.subr.bf16.mxu0 %v4308
    %4384 = vmatpush1.bf16.msra.mxu0 %v4307
    %4385 = vmatprep.subr.bf16.mxu0 %v4305
    %4386 = vmatpush1.bf16.msra.mxu0 %v4304
    %4387 = vmatprep.subr.bf16.mxu0 %v4302
    %4388 = vmatpush1.bf16.msra.mxu0 %v4301
    %4389 = vmatprep.subr.bf16.mxu0 0
    %4390 = vmatpush2.bf16.msra.mxu0 0
    %4391 = vmatprep.subr.bf16.mxu0 0
    %4392 = vmatpush2.bf16.msra.mxu0 0
    %4393 = vmatprep.subr.bf16.mxu0 0
    %4394 = vmatpush2.bf16.msra.mxu0 0
    %4395 = vmatprep.subr.bf16.mxu0 0
    %4396 = vmatpush2.bf16.msra.mxu0 0
    %4397 = vmatprep.subr.bf16.mxu0 0
    %4398 = vmatpush2.bf16.msra.mxu0 0
    %4399 = vmatprep.subr.bf16.mxu0 0
    %4400 = vmatpush2.bf16.msra.mxu0 0
    %4401 = vmatprep.subr.bf16.mxu0 %v4329
    %4402 = vmatpush2.bf16.msra.mxu0 %v4328
    %4403 = vmatprep.subr.bf16.mxu0 %v4326
    %4404 = vmatpush2.bf16.msra.mxu0 %v4325
    %4405 = vmatprep.mubr.bf16.mxu0 %v4362
    %4406 = vmatmul.mubr.bf16.gmra.mxu0 %v4193
    %v4407 = vpop.f32.mrf.mxu0
    %v4408 = vadd.f32 0.0, %v4407
    %v4409 = vpop.f32.mrf.mxu0
    %v4410 = vadd.f32 0.0, %v4409
    %v4411 = vpop.f32.mrf.mxu0
    %v4412 = vadd.f32 0.0, %v4411
    %v4413 = vpop.f32.mrf.mxu0
    %v4414 = vadd.f32 0.0, %v4413
    %4415 = vmatprep.mubr.bf16.mxu0 %v4365
    %4416 = vmatmul.mubr.bf16.gmra.mxu0 %v4194
    %v4417 = vpop.f32.mrf.mxu0
    %v4418 = vadd.f32 0.0, %v4417
    %v4419 = vpop.f32.mrf.mxu0
    %v4420 = vadd.f32 0.0, %v4419
    %v4421 = vpop.f32.mrf.mxu0
    %v4422 = vadd.f32 0.0, %v4421
    %v4423 = vpop.f32.mrf.mxu0
    %v4424 = vadd.f32 0.0, %v4423
    %4425 = vmatprep.mubr.bf16.mxu0 %v4368
    %4426 = vmatmul.mubr.bf16.gmra.mxu0 %v4195
    %v4427 = vpop.f32.mrf.mxu0
    %v4428 = vadd.f32 0.0, %v4427
    %v4429 = vpop.f32.mrf.mxu0
    %v4430 = vadd.f32 0.0, %v4429
    %v4431 = vpop.f32.mrf.mxu0
    %v4432 = vadd.f32 0.0, %v4431
    %v4433 = vpop.f32.mrf.mxu0
    %v4434 = vadd.f32 0.0, %v4433
    %4435 = vmatprep.mubr.bf16.mxu0 %v4371
    %4436 = vmatmul.mubr.bf16.gmra.mxu0 %v4196
    %v4437 = vpop.f32.mrf.mxu0
    %v4438 = vadd.f32 0.0, %v4437
    %v4439 = vpop.f32.mrf.mxu0
    %v4440 = vadd.f32 0.0, %v4439
    %v4441 = vpop.f32.mrf.mxu0
    %v4442 = vadd.f32 0.0, %v4441
    %v4443 = vpop.f32.mrf.mxu0
    %v4444 = vadd.f32 0.0, %v4443
    %4445 = vdwg.mxu0
    %4446 = vmatprep.subr.bf16.mxu0 0
    %4447 = vmatpush1.bf16.msra.mxu0 %v4324
    %4448 = vmatprep.subr.bf16.mxu0 0
    %4449 = vmatpush1.bf16.msra.mxu0 %v4321
    %4450 = vmatprep.subr.bf16.mxu0 0
    %4451 = vmatpush1.bf16.msra.mxu0 %v4318
    %4452 = vmatprep.subr.bf16.mxu0 0
    %4453 = vmatpush1.bf16.msra.mxu0 %v4315
    %4454 = vmatprep.subr.bf16.mxu0 0
    %4455 = vmatpush1.bf16.msra.mxu0 %v4312
    %4456 = vmatprep.subr.bf16.mxu0 0
    %4457 = vmatpush1.bf16.msra.mxu0 %v4309
    %4458 = vmatprep.subr.bf16.mxu0 0
    %4459 = vmatpush1.bf16.msra.mxu0 %v4306
    %4460 = vmatprep.subr.bf16.mxu0 0
    %4461 = vmatpush1.bf16.msra.mxu0 %v4303
    %4462 = vmatprep.subr.bf16.mxu0 0
    %4463 = vmatpush2.bf16.msra.mxu0 0
    %4464 = vmatprep.subr.bf16.mxu0 0
    %4465 = vmatpush2.bf16.msra.mxu0 0
    %4466 = vmatprep.subr.bf16.mxu0 0
    %4467 = vmatpush2.bf16.msra.mxu0 0
    %4468 = vmatprep.subr.bf16.mxu0 0
    %4469 = vmatpush2.bf16.msra.mxu0 0
    %4470 = vmatprep.subr.bf16.mxu0 0
    %4471 = vmatpush2.bf16.msra.mxu0 0
    %4472 = vmatprep.subr.bf16.mxu0 0
    %4473 = vmatpush2.bf16.msra.mxu0 0
    %4474 = vmatprep.subr.bf16.mxu0 0
    %4475 = vmatpush2.bf16.msra.mxu0 %v4330
    %4476 = vmatprep.subr.bf16.mxu0 0
    %4477 = vmatpush2.bf16.msra.mxu0 %v4327
    %4478 = vmatprep.mubr.bf16.mxu0 %v4362
    %4479 = vmatmul.mubr.bf16.gmra.mxu0 %v4193
    %v4480 = vpop.f32.mrf.mxu0
    %v4481 = vadd.f32 0.0, %v4480
    %v4482 = vpop.f32.mrf.mxu0
    %v4483 = vpop.f32.mrf.mxu0
    %v4484 = vadd.f32 0.0, %v4483
    %v4485 = vpop.f32.mrf.mxu0
    %4486 = vmatprep.mubr.bf16.mxu0 %v4365
    %4487 = vmatmul.mubr.bf16.gmra.mxu0 %v4194
    %v4488 = vpop.f32.mrf.mxu0
    %v4489 = vadd.f32 0.0, %v4488
    %v4490 = vpop.f32.mrf.mxu0
    %v4491 = vpop.f32.mrf.mxu0
    %v4492 = vadd.f32 0.0, %v4491
    %v4493 = vpop.f32.mrf.mxu0
    %4494 = vmatprep.mubr.bf16.mxu0 %v4368
    %4495 = vmatmul.mubr.bf16.gmra.mxu0 %v4195
    %v4496 = vpop.f32.mrf.mxu0
    %v4497 = vadd.f32 0.0, %v4496
    %v4498 = vpop.f32.mrf.mxu0
    %v4499 = vpop.f32.mrf.mxu0
    %v4500 = vadd.f32 0.0, %v4499
    %v4501 = vpop.f32.mrf.mxu0
    %4502 = vmatprep.mubr.bf16.mxu0 %v4371
    %4503 = vmatmul.mubr.bf16.gmra.mxu0 %v4196
    %v4504 = vpop.f32.mrf.mxu0
    %v4505 = vadd.f32 0.0, %v4504
    %v4506 = vpop.f32.mrf.mxu0
    %v4507 = vpop.f32.mrf.mxu0
    %v4508 = vadd.f32 0.0, %v4507
    %v4509 = vpop.f32.mrf.mxu0
    %4510 = vdwg.mxu0
    %v4511 = vadd.f32 %v4032, %v4408
    %v4512 = vadd.f32 %v4034, %v4410
    %v4513 = vadd.f32 %v4105, %v4481
    %v4514 = vadd.f32 %v4036, %v4412
    %v4515 = vadd.f32 %v4038, %v4414
    %v4516 = vadd.f32 %v4108, %v4484
    %v4517 = vadd.f32 %v4042, %v4418
    %v4518 = vadd.f32 %v4044, %v4420
    %v4519 = vadd.f32 %v4113, %v4489
    %v4520 = vadd.f32 %v4046, %v4422
    %v4521 = vadd.f32 %v4048, %v4424
    %v4522 = vadd.f32 %v4116, %v4492
    %v4523 = vadd.f32 %v4052, %v4428
    %v4524 = vadd.f32 %v4054, %v4430
    %v4525 = vadd.f32 %v4121, %v4497
    %v4526 = vadd.f32 %v4056, %v4432
    %v4527 = vadd.f32 %v4058, %v4434
    %v4528 = vadd.f32 %v4124, %v4500
    %v4529 = vadd.f32 %v4062, %v4438
    %v4530 = vadd.f32 %v4064, %v4440
    %v4531 = vadd.f32 %v4129, %v4505
    %v4532 = vadd.f32 %v4066, %v4442
    %v4533 = vadd.f32 %v4068, %v4444
    %v4534 = vadd.f32 %v4132, %v4508
    %v4535 = vld [vmem:[#allocation3] sm:$0xc0]
    %v4536 = vld [vmem:[#allocation3 + $0x8] sm:$0xc0]
    %v4537 = vld [vmem:[#allocation3 + $0x10] sm:$0xff]
    %v4538 = vld [vmem:[#allocation3 + $0x18] sm:$0xff]
    %v4539 = vld [vmem:[#allocation3 + $0x20] sm:$0xff]
    %v4540 = vld [vmem:[#allocation3 + $0x28] sm:$0xff]
    %v4541 = vld [vmem:[#allocation3 + $0x30] sm:$0xff]
    %v4542 = vld [vmem:[#allocation3 + $0x38] sm:$0xff]
    %v4543 = vld [vmem:[#allocation3 + $0x40] sm:$0xff]
    %v4544 = vld [vmem:[#allocation3 + $0x48] sm:$0xff]
    %v4545 = vld [vmem:[#allocation3 + $0x50] sm:$0xff]
    %v4546 = vld [vmem:[#allocation3 + $0x58] sm:$0xff]
    %v4547 = vld [vmem:[#allocation3 + $0x60] sm:$0xff]
    %v4548 = vld [vmem:[#allocation3 + $0x68] sm:$0xff]
    %v4549 = vld [vmem:[#allocation3 + $0x70] sm:$0xff]
    %v4550 = vld [vmem:[#allocation3 + $0x78] sm:$0xff]
    %v4551 = vld [vmem:[#allocation3 + $0x80] sm:$0x3]
    %v4552 = vld [vmem:[#allocation3 + $0x88] sm:$0x3]
    %v4553 = vpack.c.bf16 %v4537, %v4535
    %v4554 = vpack.c.bf16 %v4538, %v4536
    %v4555 = vpack.c.bf16 %v4541, %v4539
    %v4556 = vpack.c.bf16 %v4542, %v4540
    %v4557 = vpack.c.bf16 %v4545, %v4543
    %v4558 = vpack.c.bf16 %v4546, %v4544
    %v4559 = vpack.c.bf16 %v4549, %v4547
    %v4560 = vpack.c.bf16 %v4550, %v4548
    %v4561 = vpack.c.bf16 %v4551, %v4551
    %v4562 = vpack.c.bf16 %v4552, %v4552
    %s4563 = scalar_lea.vmem %s7, 720
    %v4564 = vld [vmem:[%s4563] sm:$0xff]
    %v4565 = vld [vmem:[%s4563 + $0x8] sm:$0xf]
    %v4566 = vld [vmem:[%s4563 + $0xc] sm:$0xff]
    %v4567 = vld [vmem:[%s4563 + $0x14] sm:$0xf]
    %v4568 = vld [vmem:[%s4563 + $0x18] sm:$0xff]
    %v4569 = vld [vmem:[%s4563 + $0x20] sm:$0xf]
    %v4570 = vld [vmem:[%s4563 + $0x24] sm:$0xff]
    %v4571 = vld [vmem:[%s4563 + $0x2c] sm:$0xf]
    %v4572 = vld [vmem:[%s4563 + $0x30] sm:$0xff]
    %v4573 = vld [vmem:[%s4563 + $0x38] sm:$0xf]
    %v4574 = vld [vmem:[%s4563 + $0x3c] sm:$0xff]
    %v4575 = vld [vmem:[%s4563 + $0x44] sm:$0xf]
    %v4576 = vld [vmem:[%s4563 + $0x48] sm:$0xff]
    %v4577 = vld [vmem:[%s4563 + $0x50] sm:$0xf]
    %v4578 = vld [vmem:[%s4563 + $0x54] sm:$0xff]
    %v4579 = vld [vmem:[%s4563 + $0x5c] sm:$0xf]
    %v4580 = vld [vmem:[%s4563 + $0x60] sm:$0xff]
    %v4581 = vld [vmem:[%s4563 + $0x68] sm:$0xf]
    %v4582 = vld [vmem:[%s4563 + $0x6c] sm:$0xff]
    %v4583 = vld [vmem:[%s4563 + $0x74] sm:$0xf]
    %v4584 = vld [vmem:[%s4563 + $0x78] sm:$0xff]
    %v4585 = vld [vmem:[%s4563 + $0x80] sm:$0xf]
    %v4586 = vld [vmem:[%s4563 + $0x84] sm:$0xff]
    %v4587 = vld [vmem:[%s4563 + $0x8c] sm:$0xf]
    %v4588 = vld [vmem:[%s4563 + $0x90] sm:$0xff]
    %v4589 = vld [vmem:[%s4563 + $0x98] sm:$0xf]
    %v4590 = vld [vmem:[%s4563 + $0x9c] sm:$0xff]
    %v4591 = vld [vmem:[%s4563 + $0xa4] sm:$0xf]
    %v4592 = vld [vmem:[%s4563 + $0xa8] sm:$0xff]
    %v4593 = vld [vmem:[%s4563 + $0xb0] sm:$0xf]
    %v4594 = vld [vmem:[%s4563 + $0xb4] sm:$0xff]
    %v4595 = vld [vmem:[%s4563 + $0xbc] sm:$0xf]
    %v4596 = vld [vmem:[%s4563 + $0xc0] sm:$0xff]
    %v4597 = vld [vmem:[%s4563 + $0xc8] sm:$0xf]
    %v4598 = vld [vmem:[%s4563 + $0xcc] sm:$0xff]
    %v4599 = vld [vmem:[%s4563 + $0xd4] sm:$0xf]
    %v4600 = vld [vmem:[%s4563 + $0xd8] sm:$0xff]
    %v4601 = vld [vmem:[%s4563 + $0xe0] sm:$0xf]
    %v4602 = vld [vmem:[%s4563 + $0xe4] sm:$0xff]
    %v4603 = vld [vmem:[%s4563 + $0xec] sm:$0xf]
    %vm4614 = vcmask 1044480
    %v4615 = vrot.slane %v4553, 3
    %v4616 = vrot.slane %v4555, 3
    %v4617 = vsel %vm4614, %v4615, %v4616
    %v4618 = vrot.slane %v4554, 3
    %v4619 = vrot.slane %v4556, 3
    %v4620 = vsel %vm4614, %v4618, %v4619
    %v4621 = vrot.slane %v4557, 3
    %v4622 = vsel %vm4614, %v4616, %v4621
    %v4623 = vrot.slane %v4558, 3
    %v4624 = vsel %vm4614, %v4619, %v4623
    %v4625 = vrot.slane %v4559, 3
    %v4626 = vsel %vm4614, %v4621, %v4625
    %v4627 = vrot.slane %v4560, 3
    %v4628 = vsel %vm4614, %v4623, %v4627
    %v4629 = vrot.slane %v4561, 3
    %v4630 = vsel %vm4614, %v4625, %v4629
    %v4631 = vrot.slane %v4562, 3
    %v4632 = vsel %vm4614, %v4627, %v4631
    %v4677 = vunpack.c.l.b16 %v4564
    %v4678 = vunpack.c.h.b16 %v4564
    %v4679 = vunpack.c.l.b16 %v4565
    %v4680 = vunpack.c.l.b16 %v4566
    %v4681 = vunpack.c.h.b16 %v4566
    %v4682 = vunpack.c.l.b16 %v4567
    %v4683 = vunpack.c.l.b16 %v4568
    %v4684 = vunpack.c.h.b16 %v4568
    %v4685 = vunpack.c.l.b16 %v4569
    %v4686 = vunpack.c.l.b16 %v4570
    %v4687 = vunpack.c.h.b16 %v4570
    %v4688 = vunpack.c.l.b16 %v4571
    %v4689 = vunpack.c.l.b16 %v4572
    %v4690 = vunpack.c.h.b16 %v4572
    %v4691 = vunpack.c.l.b16 %v4573
    %v4692 = vunpack.c.l.b16 %v4574
    %v4693 = vunpack.c.h.b16 %v4574
    %v4694 = vunpack.c.l.b16 %v4575
    %v4695 = vunpack.c.l.b16 %v4576
    %v4696 = vunpack.c.h.b16 %v4576
    %v4697 = vunpack.c.l.b16 %v4577
    %v4698 = vunpack.c.l.b16 %v4578
    %v4699 = vunpack.c.h.b16 %v4578
    %v4700 = vunpack.c.l.b16 %v4579
    %v4701 = vunpack.c.l.b16 %v4580
    %v4702 = vunpack.c.h.b16 %v4580
    %v4703 = vunpack.c.l.b16 %v4581
    %v4704 = vunpack.c.l.b16 %v4582
    %v4705 = vunpack.c.h.b16 %v4582
    %v4706 = vunpack.c.l.b16 %v4583
    %v4707 = vunpack.c.l.b16 %v4584
    %v4708 = vunpack.c.h.b16 %v4584
    %v4709 = vunpack.c.l.b16 %v4585
    %v4710 = vunpack.c.l.b16 %v4586
    %v4711 = vunpack.c.h.b16 %v4586
    %v4712 = vunpack.c.l.b16 %v4587
    %v4713 = vunpack.c.l.b16 %v4588
    %v4714 = vunpack.c.h.b16 %v4588
    %v4715 = vunpack.c.l.b16 %v4589
    %v4716 = vunpack.c.l.b16 %v4590
    %v4717 = vunpack.c.h.b16 %v4590
    %v4718 = vunpack.c.l.b16 %v4591
    %v4719 = vunpack.c.l.b16 %v4592
    %v4720 = vunpack.c.h.b16 %v4592
    %v4721 = vunpack.c.l.b16 %v4593
    %v4722 = vunpack.c.l.b16 %v4594
    %v4723 = vunpack.c.h.b16 %v4594
    %v4724 = vunpack.c.l.b16 %v4595
    %v4725 = vunpack.c.l.b16 %v4596
    %v4726 = vunpack.c.h.b16 %v4596
    %v4727 = vunpack.c.l.b16 %v4597
    %v4728 = vunpack.c.l.b16 %v4598
    %v4729 = vunpack.c.h.b16 %v4598
    %v4730 = vunpack.c.l.b16 %v4599
    %v4731 = vunpack.c.l.b16 %v4600
    %v4732 = vunpack.c.h.b16 %v4600
    %v4733 = vunpack.c.l.b16 %v4601
    %v4734 = vunpack.c.l.b16 %v4602
    %v4735 = vunpack.c.h.b16 %v4602
    %v4736 = vunpack.c.l.b16 %v4603
    %v4737 = vpack.c.b16 %v4680, %v4677
    %v4738 = vpack.c.b16 %v4681, %v4678
    %v4739 = vpack.c.b16 %v4682, %v4679
    %v4740 = vpack.c.b16 %v4686, %v4683
    %v4741 = vpack.c.b16 %v4687, %v4684
    %v4742 = vpack.c.b16 %v4688, %v4685
    %v4743 = vpack.c.b16 %v4692, %v4689
    %v4744 = vpack.c.b16 %v4693, %v4690
    %v4745 = vpack.c.b16 %v4694, %v4691
    %v4746 = vpack.c.b16 %v4698, %v4695
    %v4747 = vpack.c.b16 %v4699, %v4696
    %v4748 = vpack.c.b16 %v4700, %v4697
    %v4749 = vpack.c.b16 %v4704, %v4701
    %v4750 = vpack.c.b16 %v4705, %v4702
    %v4751 = vpack.c.b16 %v4706, %v4703
    %v4752 = vpack.c.b16 %v4710, %v4707
    %v4753 = vpack.c.b16 %v4711, %v4708
    %v4754 = vpack.c.b16 %v4712, %v4709
    %v4755 = vpack.c.b16 %v4716, %v4713
    %v4756 = vpack.c.b16 %v4717, %v4714
    %v4757 = vpack.c.b16 %v4718, %v4715
    %v4758 = vpack.c.b16 %v4722, %v4719
    %v4759 = vpack.c.b16 %v4723, %v4720
    %v4760 = vpack.c.b16 %v4724, %v4721
    %v4761 = vpack.c.b16 %v4728, %v4725
    %v4762 = vpack.c.b16 %v4729, %v4726
    %v4763 = vpack.c.b16 %v4730, %v4727
    %v4764 = vpack.c.b16 %v4734, %v4731
    %v4765 = vpack.c.b16 %v4735, %v4732
    %v4766 = vpack.c.b16 %v4736, %v4733
    %v4798 = vsel %vm3674, %v4620, 0
    %v4801 = vsel %vm3674, %v4624, 0
    %v4804 = vsel %vm3674, %v4628, 0
    %v4807 = vsel %vm3674, %v4632, 0
    %4809 = vmatprep.subr.bf16.mxu0 %v4759
    %4810 = vmatpush1.bf16.msra.mxu0 %v4758
    %4811 = vmatprep.subr.bf16.mxu0 %v4756
    %4812 = vmatpush1.bf16.msra.mxu0 %v4755
    %4813 = vmatprep.subr.bf16.mxu0 %v4753
    %4814 = vmatpush1.bf16.msra.mxu0 %v4752
    %4815 = vmatprep.subr.bf16.mxu0 %v4750
    %4816 = vmatpush1.bf16.msra.mxu0 %v4749
    %4817 = vmatprep.subr.bf16.mxu0 %v4747
    %4818 = vmatpush1.bf16.msra.mxu0 %v4746
    %4819 = vmatprep.subr.bf16.mxu0 %v4744
    %4820 = vmatpush1.bf16.msra.mxu0 %v4743
    %4821 = vmatprep.subr.bf16.mxu0 %v4741
    %4822 = vmatpush1.bf16.msra.mxu0 %v4740
    %4823 = vmatprep.subr.bf16.mxu0 %v4738
    %4824 = vmatpush1.bf16.msra.mxu0 %v4737
    %4825 = vmatprep.subr.bf16.mxu0 0
    %4826 = vmatpush2.bf16.msra.mxu0 0
    %4827 = vmatprep.subr.bf16.mxu0 0
    %4828 = vmatpush2.bf16.msra.mxu0 0
    %4829 = vmatprep.subr.bf16.mxu0 0
    %4830 = vmatpush2.bf16.msra.mxu0 0
    %4831 = vmatprep.subr.bf16.mxu0 0
    %4832 = vmatpush2.bf16.msra.mxu0 0
    %4833 = vmatprep.subr.bf16.mxu0 0
    %4834 = vmatpush2.bf16.msra.mxu0 0
    %4835 = vmatprep.subr.bf16.mxu0 0
    %4836 = vmatpush2.bf16.msra.mxu0 0
    %4837 = vmatprep.subr.bf16.mxu0 %v4765
    %4838 = vmatpush2.bf16.msra.mxu0 %v4764
    %4839 = vmatprep.subr.bf16.mxu0 %v4762
    %4840 = vmatpush2.bf16.msra.mxu0 %v4761
    %4841 = vmatprep.mubr.bf16.mxu0 %v4798
    %4842 = vmatmul.mubr.bf16.gmra.mxu0 %v4617
    %v4843 = vpop.f32.mrf.mxu0
    %v4844 = vadd.f32 0.0, %v4843
    %v4845 = vpop.f32.mrf.mxu0
    %v4846 = vadd.f32 0.0, %v4845
    %v4847 = vpop.f32.mrf.mxu0
    %v4848 = vadd.f32 0.0, %v4847
    %v4849 = vpop.f32.mrf.mxu0
    %v4850 = vadd.f32 0.0, %v4849
    %4851 = vmatprep.mubr.bf16.mxu0 %v4801
    %4852 = vmatmul.mubr.bf16.gmra.mxu0 %v4622
    %v4853 = vpop.f32.mrf.mxu0
    %v4854 = vadd.f32 0.0, %v4853
    %v4855 = vpop.f32.mrf.mxu0
    %v4856 = vadd.f32 0.0, %v4855
    %v4857 = vpop.f32.mrf.mxu0
    %v4858 = vadd.f32 0.0, %v4857
    %v4859 = vpop.f32.mrf.mxu0
    %v4860 = vadd.f32 0.0, %v4859
    %4861 = vmatprep.mubr.bf16.mxu0 %v4804
    %4862 = vmatmul.mubr.bf16.gmra.mxu0 %v4626
    %v4863 = vpop.f32.mrf.mxu0
    %v4864 = vadd.f32 0.0, %v4863
    %v4865 = vpop.f32.mrf.mxu0
    %v4866 = vadd.f32 0.0, %v4865
    %v4867 = vpop.f32.mrf.mxu0
    %v4868 = vadd.f32 0.0, %v4867
    %v4869 = vpop.f32.mrf.mxu0
    %v4870 = vadd.f32 0.0, %v4869
    %4871 = vmatprep.mubr.bf16.mxu0 %v4807
    %4872 = vmatmul.mubr.bf16.gmra.mxu0 %v4630
    %v4873 = vpop.f32.mrf.mxu0
    %v4874 = vadd.f32 0.0, %v4873
    %v4875 = vpop.f32.mrf.mxu0
    %v4876 = vadd.f32 0.0, %v4875
    %v4877 = vpop.f32.mrf.mxu0
    %v4878 = vadd.f32 0.0, %v4877
    %v4879 = vpop.f32.mrf.mxu0
    %v4880 = vadd.f32 0.0, %v4879
    %4881 = vdwg.mxu0
    %4882 = vmatprep.subr.bf16.mxu0 0
    %4883 = vmatpush1.bf16.msra.mxu0 %v4760
    %4884 = vmatprep.subr.bf16.mxu0 0
    %4885 = vmatpush1.bf16.msra.mxu0 %v4757
    %4886 = vmatprep.subr.bf16.mxu0 0
    %4887 = vmatpush1.bf16.msra.mxu0 %v4754
    %4888 = vmatprep.subr.bf16.mxu0 0
    %4889 = vmatpush1.bf16.msra.mxu0 %v4751
    %4890 = vmatprep.subr.bf16.mxu0 0
    %4891 = vmatpush1.bf16.msra.mxu0 %v4748
    %4892 = vmatprep.subr.bf16.mxu0 0
    %4893 = vmatpush1.bf16.msra.mxu0 %v4745
    %4894 = vmatprep.subr.bf16.mxu0 0
    %4895 = vmatpush1.bf16.msra.mxu0 %v4742
    %4896 = vmatprep.subr.bf16.mxu0 0
    %4897 = vmatpush1.bf16.msra.mxu0 %v4739
    %4898 = vmatprep.subr.bf16.mxu0 0
    %4899 = vmatpush2.bf16.msra.mxu0 0
    %4900 = vmatprep.subr.bf16.mxu0 0
    %4901 = vmatpush2.bf16.msra.mxu0 0
    %4902 = vmatprep.subr.bf16.mxu0 0
    %4903 = vmatpush2.bf16.msra.mxu0 0
    %4904 = vmatprep.subr.bf16.mxu0 0
    %4905 = vmatpush2.bf16.msra.mxu0 0
    %4906 = vmatprep.subr.bf16.mxu0 0
    %4907 = vmatpush2.bf16.msra.mxu0 0
    %4908 = vmatprep.subr.bf16.mxu0 0
    %4909 = vmatpush2.bf16.msra.mxu0 0
    %4910 = vmatprep.subr.bf16.mxu0 0
    %4911 = vmatpush2.bf16.msra.mxu0 %v4766
    %4912 = vmatprep.subr.bf16.mxu0 0
    %4913 = vmatpush2.bf16.msra.mxu0 %v4763
    %4914 = vmatprep.mubr.bf16.mxu0 %v4798
    %4915 = vmatmul.mubr.bf16.gmra.mxu0 %v4617
    %v4916 = vpop.f32.mrf.mxu0
    %v4917 = vadd.f32 0.0, %v4916
    %v4918 = vpop.f32.mrf.mxu0
    %v4919 = vpop.f32.mrf.mxu0
    %v4920 = vadd.f32 0.0, %v4919
    %v4921 = vpop.f32.mrf.mxu0
    %4922 = vmatprep.mubr.bf16.mxu0 %v4801
    %4923 = vmatmul.mubr.bf16.gmra.mxu0 %v4622
    %v4924 = vpop.f32.mrf.mxu0
    %v4925 = vadd.f32 0.0, %v4924
    %v4926 = vpop.f32.mrf.mxu0
    %v4927 = vpop.f32.mrf.mxu0
    %v4928 = vadd.f32 0.0, %v4927
    %v4929 = vpop.f32.mrf.mxu0
    %4930 = vmatprep.mubr.bf16.mxu0 %v4804
    %4931 = vmatmul.mubr.bf16.gmra.mxu0 %v4626
    %v4932 = vpop.f32.mrf.mxu0
    %v4933 = vadd.f32 0.0, %v4932
    %v4934 = vpop.f32.mrf.mxu0
    %v4935 = vpop.f32.mrf.mxu0
    %v4936 = vadd.f32 0.0, %v4935
    %v4937 = vpop.f32.mrf.mxu0
    %4938 = vmatprep.mubr.bf16.mxu0 %v4807
    %4939 = vmatmul.mubr.bf16.gmra.mxu0 %v4630
    %v4940 = vpop.f32.mrf.mxu0
    %v4941 = vadd.f32 0.0, %v4940
    %v4942 = vpop.f32.mrf.mxu0
    %v4943 = vpop.f32.mrf.mxu0
    %v4944 = vadd.f32 0.0, %v4943
    %v4945 = vpop.f32.mrf.mxu0
    %4946 = vdwg.mxu0
    %v4947 = vadd.f32 %v4511, %v4844
    %v4948 = vadd.f32 %v4512, %v4846
    %v4949 = vadd.f32 %v4513, %v4917
    %v4950 = vadd.f32 %v4514, %v4848
    %v4951 = vadd.f32 %v4515, %v4850
    %v4952 = vadd.f32 %v4516, %v4920
    %v4953 = vadd.f32 %v4517, %v4854
    %v4954 = vadd.f32 %v4518, %v4856
    %v4955 = vadd.f32 %v4519, %v4925
    %v4956 = vadd.f32 %v4520, %v4858
    %v4957 = vadd.f32 %v4521, %v4860
    %v4958 = vadd.f32 %v4522, %v4928
    %v4959 = vadd.f32 %v4523, %v4864
    %v4960 = vadd.f32 %v4524, %v4866
    %v4961 = vadd.f32 %v4525, %v4933
    %v4962 = vadd.f32 %v4526, %v4868
    %v4963 = vadd.f32 %v4527, %v4870
    %v4964 = vadd.f32 %v4528, %v4936
    %v4965 = vadd.f32 %v4529, %v4874
    %v4966 = vadd.f32 %v4530, %v4876
    %v4967 = vadd.f32 %v4531, %v4941
    %v4968 = vadd.f32 %v4532, %v4878
    %v4969 = vadd.f32 %v4533, %v4880
    %v4970 = vadd.f32 %v4534, %v4944
    %s4971 = scalar_lea.vmem %s7, 960
    %v4972 = vld [vmem:[%s4971] sm:$0xff]
    %v4973 = vld [vmem:[%s4971 + $0x8] sm:$0xf]
    %v4974 = vld [vmem:[%s4971 + $0xc] sm:$0xff]
    %v4975 = vld [vmem:[%s4971 + $0x14] sm:$0xf]
    %v4976 = vld [vmem:[%s4971 + $0x18] sm:$0xff]
    %v4977 = vld [vmem:[%s4971 + $0x20] sm:$0xf]
    %v4978 = vld [vmem:[%s4971 + $0x24] sm:$0xff]
    %v4979 = vld [vmem:[%s4971 + $0x2c] sm:$0xf]
    %v4980 = vld [vmem:[%s4971 + $0x30] sm:$0xff]
    %v4981 = vld [vmem:[%s4971 + $0x38] sm:$0xf]
    %v4982 = vld [vmem:[%s4971 + $0x3c] sm:$0xff]
    %v4983 = vld [vmem:[%s4971 + $0x44] sm:$0xf]
    %v4984 = vld [vmem:[%s4971 + $0x48] sm:$0xff]
    %v4985 = vld [vmem:[%s4971 + $0x50] sm:$0xf]
    %v4986 = vld [vmem:[%s4971 + $0x54] sm:$0xff]
    %v4987 = vld [vmem:[%s4971 + $0x5c] sm:$0xf]
    %v4988 = vld [vmem:[%s4971 + $0x60] sm:$0xff]
    %v4989 = vld [vmem:[%s4971 + $0x68] sm:$0xf]
    %v4990 = vld [vmem:[%s4971 + $0x6c] sm:$0xff]
    %v4991 = vld [vmem:[%s4971 + $0x74] sm:$0xf]
    %v4992 = vld [vmem:[%s4971 + $0x78] sm:$0xff]
    %v4993 = vld [vmem:[%s4971 + $0x80] sm:$0xf]
    %v4994 = vld [vmem:[%s4971 + $0x84] sm:$0xff]
    %v4995 = vld [vmem:[%s4971 + $0x8c] sm:$0xf]
    %v4996 = vld [vmem:[%s4971 + $0x90] sm:$0xff]
    %v4997 = vld [vmem:[%s4971 + $0x98] sm:$0xf]
    %v4998 = vld [vmem:[%s4971 + $0x9c] sm:$0xff]
    %v4999 = vld [vmem:[%s4971 + $0xa4] sm:$0xf]
    %v5000 = vld [vmem:[%s4971 + $0xa8] sm:$0xff]
    %v5001 = vld [vmem:[%s4971 + $0xb0] sm:$0xf]
    %v5002 = vld [vmem:[%s4971 + $0xb4] sm:$0xff]
    %v5003 = vld [vmem:[%s4971 + $0xbc] sm:$0xf]
    %v5004 = vld [vmem:[%s4971 + $0xc0] sm:$0xff]
    %v5005 = vld [vmem:[%s4971 + $0xc8] sm:$0xf]
    %v5006 = vld [vmem:[%s4971 + $0xcc] sm:$0xff]
    %v5007 = vld [vmem:[%s4971 + $0xd4] sm:$0xf]
    %v5008 = vld [vmem:[%s4971 + $0xd8] sm:$0xff]
    %v5009 = vld [vmem:[%s4971 + $0xe0] sm:$0xf]
    %v5010 = vld [vmem:[%s4971 + $0xe4] sm:$0xff]
    %v5011 = vld [vmem:[%s4971 + $0xec] sm:$0xf]
    %5012 = vrot.lane.b32.xlu0 %v4617, 112
    %v5013 = vpop.permute.xlu0 %5012
    %5014 = vrot.lane.b32.xlu0 %v4620, 112
    %v5015 = vpop.permute.xlu0 %5014
    %5016 = vrot.lane.b32.xlu0 %v4622, 112
    %v5017 = vpop.permute.xlu0 %5016
    %5018 = vrot.lane.b32.xlu0 %v4624, 112
    %v5019 = vpop.permute.xlu0 %5018
    %5020 = vrot.lane.b32.xlu0 %v4626, 112
    %v5021 = vpop.permute.xlu0 %5020
    %5022 = vrot.lane.b32.xlu0 %v4628, 112
    %v5023 = vpop.permute.xlu0 %5022
    %5024 = vrot.lane.b32.xlu0 %v4630, 112
    %v5025 = vpop.permute.xlu0 %5024
    %5026 = vrot.lane.b32.xlu0 %v4632, 112
    %v5027 = vpop.permute.xlu0 %5026
    %v5028 = vsel %vm3505, %v5013, %v5015
    %v5029 = vsel %vm3505, %v5017, %v5019
    %v5030 = vsel %vm3505, %v5021, %v5023
    %v5031 = vsel %vm3505, %v5025, %v5027
    %v5076 = vunpack.c.l.b16 %v4972
    %v5077 = vunpack.c.h.b16 %v4972
    %v5078 = vunpack.c.l.b16 %v4973
    %v5079 = vunpack.c.l.b16 %v4974
    %v5080 = vunpack.c.h.b16 %v4974
    %v5081 = vunpack.c.l.b16 %v4975
    %v5082 = vunpack.c.l.b16 %v4976
    %v5083 = vunpack.c.h.b16 %v4976
    %v5084 = vunpack.c.l.b16 %v4977
    %v5085 = vunpack.c.l.b16 %v4978
    %v5086 = vunpack.c.h.b16 %v4978
    %v5087 = vunpack.c.l.b16 %v4979
    %v5088 = vunpack.c.l.b16 %v4980
    %v5089 = vunpack.c.h.b16 %v4980
    %v5090 = vunpack.c.l.b16 %v4981
    %v5091 = vunpack.c.l.b16 %v4982
    %v5092 = vunpack.c.h.b16 %v4982
    %v5093 = vunpack.c.l.b16 %v4983
    %v5094 = vunpack.c.l.b16 %v4984
    %v5095 = vunpack.c.h.b16 %v4984
    %v5096 = vunpack.c.l.b16 %v4985
    %v5097 = vunpack.c.l.b16 %v4986
    %v5098 = vunpack.c.h.b16 %v4986
    %v5099 = vunpack.c.l.b16 %v4987
    %v5100 = vunpack.c.l.b16 %v4988
    %v5101 = vunpack.c.h.b16 %v4988
    %v5102 = vunpack.c.l.b16 %v4989
    %v5103 = vunpack.c.l.b16 %v4990
    %v5104 = vunpack.c.h.b16 %v4990
    %v5105 = vunpack.c.l.b16 %v4991
    %v5106 = vunpack.c.l.b16 %v4992
    %v5107 = vunpack.c.h.b16 %v4992
    %v5108 = vunpack.c.l.b16 %v4993
    %v5109 = vunpack.c.l.b16 %v4994
    %v5110 = vunpack.c.h.b16 %v4994
    %v5111 = vunpack.c.l.b16 %v4995
    %v5112 = vunpack.c.l.b16 %v4996
    %v5113 = vunpack.c.h.b16 %v4996
    %v5114 = vunpack.c.l.b16 %v4997
    %v5115 = vunpack.c.l.b16 %v4998
    %v5116 = vunpack.c.h.b16 %v4998
    %v5117 = vunpack.c.l.b16 %v4999
    %v5118 = vunpack.c.l.b16 %v5000
    %v5119 = vunpack.c.h.b16 %v5000
    %v5120 = vunpack.c.l.b16 %v5001
    %v5121 = vunpack.c.l.b16 %v5002
    %v5122 = vunpack.c.h.b16 %v5002
    %v5123 = vunpack.c.l.b16 %v5003
    %v5124 = vunpack.c.l.b16 %v5004
    %v5125 = vunpack.c.h.b16 %v5004
    %v5126 = vunpack.c.l.b16 %v5005
    %v5127 = vunpack.c.l.b16 %v5006
    %v5128 = vunpack.c.h.b16 %v5006
    %v5129 = vunpack.c.l.b16 %v5007
    %v5130 = vunpack.c.l.b16 %v5008
    %v5131 = vunpack.c.h.b16 %v5008
    %v5132 = vunpack.c.l.b16 %v5009
    %v5133 = vunpack.c.l.b16 %v5010
    %v5134 = vunpack.c.h.b16 %v5010
    %v5135 = vunpack.c.l.b16 %v5011
    %v5136 = vpack.c.b16 %v5079, %v5076
    %v5137 = vpack.c.b16 %v5080, %v5077
    %v5138 = vpack.c.b16 %v5081, %v5078
    %v5139 = vpack.c.b16 %v5085, %v5082
    %v5140 = vpack.c.b16 %v5086, %v5083
    %v5141 = vpack.c.b16 %v5087, %v5084
    %v5142 = vpack.c.b16 %v5091, %v5088
    %v5143 = vpack.c.b16 %v5092, %v5089
    %v5144 = vpack.c.b16 %v5093, %v5090
    %v5145 = vpack.c.b16 %v5097, %v5094
    %v5146 = vpack.c.b16 %v5098, %v5095
    %v5147 = vpack.c.b16 %v5099, %v5096
    %v5148 = vpack.c.b16 %v5103, %v5100
    %v5149 = vpack.c.b16 %v5104, %v5101
    %v5150 = vpack.c.b16 %v5105, %v5102
    %v5151 = vpack.c.b16 %v5109, %v5106
    %v5152 = vpack.c.b16 %v5110, %v5107
    %v5153 = vpack.c.b16 %v5111, %v5108
    %v5154 = vpack.c.b16 %v5115, %v5112
    %v5155 = vpack.c.b16 %v5116, %v5113
    %v5156 = vpack.c.b16 %v5117, %v5114
    %v5157 = vpack.c.b16 %v5121, %v5118
    %v5158 = vpack.c.b16 %v5122, %v5119
    %v5159 = vpack.c.b16 %v5123, %v5120
    %v5160 = vpack.c.b16 %v5127, %v5124
    %v5161 = vpack.c.b16 %v5128, %v5125
    %v5162 = vpack.c.b16 %v5129, %v5126
    %v5163 = vpack.c.b16 %v5133, %v5130
    %v5164 = vpack.c.b16 %v5134, %v5131
    %v5165 = vpack.c.b16 %v5135, %v5132
    %v5197 = vsel %vm3674, %v5015, 0
    %v5200 = vsel %vm3674, %v5019, 0
    %v5203 = vsel %vm3674, %v5023, 0
    %v5206 = vsel %vm3674, %v5027, 0
    %5208 = vmatprep.subr.bf16.mxu0 %v5158
    %5209 = vmatpush1.bf16.msra.mxu0 %v5157
    %5210 = vmatprep.subr.bf16.mxu0 %v5155
    %5211 = vmatpush1.bf16.msra.mxu0 %v5154
    %5212 = vmatprep.subr.bf16.mxu0 %v5152
    %5213 = vmatpush1.bf16.msra.mxu0 %v5151
    %5214 = vmatprep.subr.bf16.mxu0 %v5149
    %5215 = vmatpush1.bf16.msra.mxu0 %v5148
    %5216 = vmatprep.subr.bf16.mxu0 %v5146
    %5217 = vmatpush1.bf16.msra.mxu0 %v5145
    %5218 = vmatprep.subr.bf16.mxu0 %v5143
    %5219 = vmatpush1.bf16.msra.mxu0 %v5142
    %5220 = vmatprep.subr.bf16.mxu0 %v5140
    %5221 = vmatpush1.bf16.msra.mxu0 %v5139
    %5222 = vmatprep.subr.bf16.mxu0 %v5137
    %5223 = vmatpush1.bf16.msra.mxu0 %v5136
    %5224 = vmatprep.subr.bf16.mxu0 0
    %5225 = vmatpush2.bf16.msra.mxu0 0
    %5226 = vmatprep.subr.bf16.mxu0 0
    %5227 = vmatpush2.bf16.msra.mxu0 0
    %5228 = vmatprep.subr.bf16.mxu0 0
    %5229 = vmatpush2.bf16.msra.mxu0 0
    %5230 = vmatprep.subr.bf16.mxu0 0
    %5231 = vmatpush2.bf16.msra.mxu0 0
    %5232 = vmatprep.subr.bf16.mxu0 0
    %5233 = vmatpush2.bf16.msra.mxu0 0
    %5234 = vmatprep.subr.bf16.mxu0 0
    %5235 = vmatpush2.bf16.msra.mxu0 0
    %5236 = vmatprep.subr.bf16.mxu0 %v5164
    %5237 = vmatpush2.bf16.msra.mxu0 %v5163
    %5238 = vmatprep.subr.bf16.mxu0 %v5161
    %5239 = vmatpush2.bf16.msra.mxu0 %v5160
    %5240 = vmatprep.mubr.bf16.mxu0 %v5197
    %5241 = vmatmul.mubr.bf16.gmra.mxu0 %v5028
    %v5242 = vpop.f32.mrf.mxu0
    %v5243 = vadd.f32 0.0, %v5242
    %v5244 = vpop.f32.mrf.mxu0
    %v5245 = vadd.f32 0.0, %v5244
    %v5246 = vpop.f32.mrf.mxu0
    %v5247 = vadd.f32 0.0, %v5246
    %v5248 = vpop.f32.mrf.mxu0
    %v5249 = vadd.f32 0.0, %v5248
    %5250 = vmatprep.mubr.bf16.mxu0 %v5200
    %5251 = vmatmul.mubr.bf16.gmra.mxu0 %v5029
    %v5252 = vpop.f32.mrf.mxu0
    %v5253 = vadd.f32 0.0, %v5252
    %v5254 = vpop.f32.mrf.mxu0
    %v5255 = vadd.f32 0.0, %v5254
    %v5256 = vpop.f32.mrf.mxu0
    %v5257 = vadd.f32 0.0, %v5256
    %v5258 = vpop.f32.mrf.mxu0
    %v5259 = vadd.f32 0.0, %v5258
    %5260 = vmatprep.mubr.bf16.mxu0 %v5203
    %5261 = vmatmul.mubr.bf16.gmra.mxu0 %v5030
    %v5262 = vpop.f32.mrf.mxu0
    %v5263 = vadd.f32 0.0, %v5262
    %v5264 = vpop.f32.mrf.mxu0
    %v5265 = vadd.f32 0.0, %v5264
    %v5266 = vpop.f32.mrf.mxu0
    %v5267 = vadd.f32 0.0, %v5266
    %v5268 = vpop.f32.mrf.mxu0
    %v5269 = vadd.f32 0.0, %v5268
    %5270 = vmatprep.mubr.bf16.mxu0 %v5206
    %5271 = vmatmul.mubr.bf16.gmra.mxu0 %v5031
    %v5272 = vpop.f32.mrf.mxu0
    %v5273 = vadd.f32 0.0, %v5272
    %v5274 = vpop.f32.mrf.mxu0
    %v5275 = vadd.f32 0.0, %v5274
    %v5276 = vpop.f32.mrf.mxu0
    %v5277 = vadd.f32 0.0, %v5276
    %v5278 = vpop.f32.mrf.mxu0
    %v5279 = vadd.f32 0.0, %v5278
    %5280 = vdwg.mxu0
    %5281 = vmatprep.subr.bf16.mxu0 0
    %5282 = vmatpush1.bf16.msra.mxu0 %v5159
    %5283 = vmatprep.subr.bf16.mxu0 0
    %5284 = vmatpush1.bf16.msra.mxu0 %v5156
    %5285 = vmatprep.subr.bf16.mxu0 0
    %5286 = vmatpush1.bf16.msra.mxu0 %v5153
    %5287 = vmatprep.subr.bf16.mxu0 0
    %5288 = vmatpush1.bf16.msra.mxu0 %v5150
    %5289 = vmatprep.subr.bf16.mxu0 0
    %5290 = vmatpush1.bf16.msra.mxu0 %v5147
    %5291 = vmatprep.subr.bf16.mxu0 0
    %5292 = vmatpush1.bf16.msra.mxu0 %v5144
    %5293 = vmatprep.subr.bf16.mxu0 0
    %5294 = vmatpush1.bf16.msra.mxu0 %v5141
    %5295 = vmatprep.subr.bf16.mxu0 0
    %5296 = vmatpush1.bf16.msra.mxu0 %v5138
    %5297 = vmatprep.subr.bf16.mxu0 0
    %5298 = vmatpush2.bf16.msra.mxu0 0
    %5299 = vmatprep.subr.bf16.mxu0 0
    %5300 = vmatpush2.bf16.msra.mxu0 0
    %5301 = vmatprep.subr.bf16.mxu0 0
    %5302 = vmatpush2.bf16.msra.mxu0 0
    %5303 = vmatprep.subr.bf16.mxu0 0
    %5304 = vmatpush2.bf16.msra.mxu0 0
    %5305 = vmatprep.subr.bf16.mxu0 0
    %5306 = vmatpush2.bf16.msra.mxu0 0
    %5307 = vmatprep.subr.bf16.mxu0 0
    %5308 = vmatpush2.bf16.msra.mxu0 0
    %5309 = vmatprep.subr.bf16.mxu0 0
    %5310 = vmatpush2.bf16.msra.mxu0 %v5165
    %5311 = vmatprep.subr.bf16.mxu0 0
    %5312 = vmatpush2.bf16.msra.mxu0 %v5162
    %5313 = vmatprep.mubr.bf16.mxu0 %v5197
    %5314 = vmatmul.mubr.bf16.gmra.mxu0 %v5028
    %v5315 = vpop.f32.mrf.mxu0
    %v5316 = vadd.f32 0.0, %v5315
    %v5317 = vpop.f32.mrf.mxu0
    %v5318 = vpop.f32.mrf.mxu0
    %v5319 = vadd.f32 0.0, %v5318
    %v5320 = vpop.f32.mrf.mxu0
    %5321 = vmatprep.mubr.bf16.mxu0 %v5200
    %5322 = vmatmul.mubr.bf16.gmra.mxu0 %v5029
    %v5323 = vpop.f32.mrf.mxu0
    %v5324 = vadd.f32 0.0, %v5323
    %v5325 = vpop.f32.mrf.mxu0
    %v5326 = vpop.f32.mrf.mxu0
    %v5327 = vadd.f32 0.0, %v5326
    %v5328 = vpop.f32.mrf.mxu0
    %5329 = vmatprep.mubr.bf16.mxu0 %v5203
    %5330 = vmatmul.mubr.bf16.gmra.mxu0 %v5030
    %v5331 = vpop.f32.mrf.mxu0
    %v5332 = vadd.f32 0.0, %v5331
    %v5333 = vpop.f32.mrf.mxu0
    %v5334 = vpop.f32.mrf.mxu0
    %v5335 = vadd.f32 0.0, %v5334
    %v5336 = vpop.f32.mrf.mxu0
    %5337 = vmatprep.mubr.bf16.mxu0 %v5206
    %5338 = vmatmul.mubr.bf16.gmra.mxu0 %v5031
    %v5339 = vpop.f32.mrf.mxu0
    %v5340 = vadd.f32 0.0, %v5339
    %v5341 = vpop.f32.mrf.mxu0
    %v5342 = vpop.f32.mrf.mxu0
    %v5343 = vadd.f32 0.0, %v5342
    %v5344 = vpop.f32.mrf.mxu0
    %5345 = vdwg.mxu0
    %v5346 = vadd.f32 %v4947, %v5243
    %v5347 = vadd.f32 %v4948, %v5245
    %v5348 = vadd.f32 %v4949, %v5316
    %v5349 = vadd.f32 %v4950, %v5247
    %v5350 = vadd.f32 %v4951, %v5249
    %v5351 = vadd.f32 %v4952, %v5319
    %v5352 = vadd.f32 %v4953, %v5253
    %v5353 = vadd.f32 %v4954, %v5255
    %v5354 = vadd.f32 %v4955, %v5324
    %v5355 = vadd.f32 %v4956, %v5257
    %v5356 = vadd.f32 %v4957, %v5259
    %v5357 = vadd.f32 %v4958, %v5327
    %v5358 = vadd.f32 %v4959, %v5263
    %v5359 = vadd.f32 %v4960, %v5265
    %v5360 = vadd.f32 %v4961, %v5332
    %v5361 = vadd.f32 %v4962, %v5267
    %v5362 = vadd.f32 %v4963, %v5269
    %v5363 = vadd.f32 %v4964, %v5335
    %v5364 = vadd.f32 %v4965, %v5273
    %v5365 = vadd.f32 %v4966, %v5275
    %v5366 = vadd.f32 %v4967, %v5340
    %v5367 = vadd.f32 %v4968, %v5277
    %v5368 = vadd.f32 %v4969, %v5279
    %v5369 = vadd.f32 %v4970, %v5343
    %s5370 = scalar_lea.vmem %s7, 1200
    %v5371 = vld [vmem:[%s5370] sm:$0xff]
    %v5372 = vld [vmem:[%s5370 + $0x8] sm:$0xf]
    %v5373 = vld [vmem:[%s5370 + $0xc] sm:$0xff]
    %v5374 = vld [vmem:[%s5370 + $0x14] sm:$0xf]
    %v5375 = vld [vmem:[%s5370 + $0x18] sm:$0xff]
    %v5376 = vld [vmem:[%s5370 + $0x20] sm:$0xf]
    %v5377 = vld [vmem:[%s5370 + $0x24] sm:$0xff]
    %v5378 = vld [vmem:[%s5370 + $0x2c] sm:$0xf]
    %v5379 = vld [vmem:[%s5370 + $0x30] sm:$0xff]
    %v5380 = vld [vmem:[%s5370 + $0x38] sm:$0xf]
    %v5381 = vld [vmem:[%s5370 + $0x3c] sm:$0xff]
    %v5382 = vld [vmem:[%s5370 + $0x44] sm:$0xf]
    %v5383 = vld [vmem:[%s5370 + $0x48] sm:$0xff]
    %v5384 = vld [vmem:[%s5370 + $0x50] sm:$0xf]
    %v5385 = vld [vmem:[%s5370 + $0x54] sm:$0xff]
    %v5386 = vld [vmem:[%s5370 + $0x5c] sm:$0xf]
    %v5387 = vld [vmem:[%s5370 + $0x60] sm:$0xff]
    %v5388 = vld [vmem:[%s5370 + $0x68] sm:$0xf]
    %v5389 = vld [vmem:[%s5370 + $0x6c] sm:$0xff]
    %v5390 = vld [vmem:[%s5370 + $0x74] sm:$0xf]
    %v5391 = vld [vmem:[%s5370 + $0x78] sm:$0xff]
    %v5392 = vld [vmem:[%s5370 + $0x80] sm:$0xf]
    %v5393 = vld [vmem:[%s5370 + $0x84] sm:$0xff]
    %v5394 = vld [vmem:[%s5370 + $0x8c] sm:$0xf]
    %v5395 = vld [vmem:[%s5370 + $0x90] sm:$0xff]
    %v5396 = vld [vmem:[%s5370 + $0x98] sm:$0xf]
    %v5397 = vld [vmem:[%s5370 + $0x9c] sm:$0xff]
    %v5398 = vld [vmem:[%s5370 + $0xa4] sm:$0xf]
    %v5399 = vld [vmem:[%s5370 + $0xa8] sm:$0xff]
    %v5400 = vld [vmem:[%s5370 + $0xb0] sm:$0xf]
    %v5401 = vld [vmem:[%s5370 + $0xb4] sm:$0xff]
    %v5402 = vld [vmem:[%s5370 + $0xbc] sm:$0xf]
    %v5403 = vld [vmem:[%s5370 + $0xc0] sm:$0xff]
    %v5404 = vld [vmem:[%s5370 + $0xc8] sm:$0xf]
    %v5405 = vld [vmem:[%s5370 + $0xcc] sm:$0xff]
    %v5406 = vld [vmem:[%s5370 + $0xd4] sm:$0xf]
    %v5407 = vld [vmem:[%s5370 + $0xd8] sm:$0xff]
    %v5408 = vld [vmem:[%s5370 + $0xe0] sm:$0xf]
    %v5409 = vld [vmem:[%s5370 + $0xe4] sm:$0xff]
    %v5410 = vld [vmem:[%s5370 + $0xec] sm:$0xf]
    %5411 = vrot.lane.b32.xlu0 %v4617, 96
    %v5412 = vpop.permute.xlu0 %5411
    %5413 = vrot.lane.b32.xlu0 %v4620, 96
    %v5414 = vpop.permute.xlu0 %5413
    %5415 = vrot.lane.b32.xlu0 %v4622, 96
    %v5416 = vpop.permute.xlu0 %5415
    %5417 = vrot.lane.b32.xlu0 %v4624, 96
    %v5418 = vpop.permute.xlu0 %5417
    %5419 = vrot.lane.b32.xlu0 %v4626, 96
    %v5420 = vpop.permute.xlu0 %5419
    %5421 = vrot.lane.b32.xlu0 %v4628, 96
    %v5422 = vpop.permute.xlu0 %5421
    %5423 = vrot.lane.b32.xlu0 %v4630, 96
    %v5424 = vpop.permute.xlu0 %5423
    %5425 = vrot.lane.b32.xlu0 %v4632, 96
    %v5426 = vpop.permute.xlu0 %5425
    %v5427 = vsel %vm4192, %v5412, %v5414
    %v5428 = vsel %vm4192, %v5416, %v5418
    %v5429 = vsel %vm4192, %v5420, %v5422
    %v5430 = vsel %vm4192, %v5424, %v5426
    %v5475 = vunpack.c.l.b16 %v5371
    %v5476 = vunpack.c.h.b16 %v5371
    %v5477 = vunpack.c.l.b16 %v5372
    %v5478 = vunpack.c.l.b16 %v5373
    %v5479 = vunpack.c.h.b16 %v5373
    %v5480 = vunpack.c.l.b16 %v5374
    %v5481 = vunpack.c.l.b16 %v5375
    %v5482 = vunpack.c.h.b16 %v5375
    %v5483 = vunpack.c.l.b16 %v5376
    %v5484 = vunpack.c.l.b16 %v5377
    %v5485 = vunpack.c.h.b16 %v5377
    %v5486 = vunpack.c.l.b16 %v5378
    %v5487 = vunpack.c.l.b16 %v5379
    %v5488 = vunpack.c.h.b16 %v5379
    %v5489 = vunpack.c.l.b16 %v5380
    %v5490 = vunpack.c.l.b16 %v5381
    %v5491 = vunpack.c.h.b16 %v5381
    %v5492 = vunpack.c.l.b16 %v5382
    %v5493 = vunpack.c.l.b16 %v5383
    %v5494 = vunpack.c.h.b16 %v5383
    %v5495 = vunpack.c.l.b16 %v5384
    %v5496 = vunpack.c.l.b16 %v5385
    %v5497 = vunpack.c.h.b16 %v5385
    %v5498 = vunpack.c.l.b16 %v5386
    %v5499 = vunpack.c.l.b16 %v5387
    %v5500 = vunpack.c.h.b16 %v5387
    %v5501 = vunpack.c.l.b16 %v5388
    %v5502 = vunpack.c.l.b16 %v5389
    %v5503 = vunpack.c.h.b16 %v5389
    %v5504 = vunpack.c.l.b16 %v5390
    %v5505 = vunpack.c.l.b16 %v5391
    %v5506 = vunpack.c.h.b16 %v5391
    %v5507 = vunpack.c.l.b16 %v5392
    %v5508 = vunpack.c.l.b16 %v5393
    %v5509 = vunpack.c.h.b16 %v5393
    %v5510 = vunpack.c.l.b16 %v5394
    %v5511 = vunpack.c.l.b16 %v5395
    %v5512 = vunpack.c.h.b16 %v5395
    %v5513 = vunpack.c.l.b16 %v5396
    %v5514 = vunpack.c.l.b16 %v5397
    %v5515 = vunpack.c.h.b16 %v5397
    %v5516 = vunpack.c.l.b16 %v5398
    %v5517 = vunpack.c.l.b16 %v5399
    %v5518 = vunpack.c.h.b16 %v5399
    %v5519 = vunpack.c.l.b16 %v5400
    %v5520 = vunpack.c.l.b16 %v5401
    %v5521 = vunpack.c.h.b16 %v5401
    %v5522 = vunpack.c.l.b16 %v5402
    %v5523 = vunpack.c.l.b16 %v5403
    %v5524 = vunpack.c.h.b16 %v5403
    %v5525 = vunpack.c.l.b16 %v5404
    %v5526 = vunpack.c.l.b16 %v5405
    %v5527 = vunpack.c.h.b16 %v5405
    %v5528 = vunpack.c.l.b16 %v5406
    %v5529 = vunpack.c.l.b16 %v5407
    %v5530 = vunpack.c.h.b16 %v5407
    %v5531 = vunpack.c.l.b16 %v5408
    %v5532 = vunpack.c.l.b16 %v5409
    %v5533 = vunpack.c.h.b16 %v5409
    %v5534 = vunpack.c.l.b16 %v5410
    %v5535 = vpack.c.b16 %v5478, %v5475
    %v5536 = vpack.c.b16 %v5479, %v5476
    %v5537 = vpack.c.b16 %v5480, %v5477
    %v5538 = vpack.c.b16 %v5484, %v5481
    %v5539 = vpack.c.b16 %v5485, %v5482
    %v5540 = vpack.c.b16 %v5486, %v5483
    %v5541 = vpack.c.b16 %v5490, %v5487
    %v5542 = vpack.c.b16 %v5491, %v5488
    %v5543 = vpack.c.b16 %v5492, %v5489
    %v5544 = vpack.c.b16 %v5496, %v5493
    %v5545 = vpack.c.b16 %v5497, %v5494
    %v5546 = vpack.c.b16 %v5498, %v5495
    %v5547 = vpack.c.b16 %v5502, %v5499
    %v5548 = vpack.c.b16 %v5503, %v5500
    %v5549 = vpack.c.b16 %v5504, %v5501
    %v5550 = vpack.c.b16 %v5508, %v5505
    %v5551 = vpack.c.b16 %v5509, %v5506
    %v5552 = vpack.c.b16 %v5510, %v5507
    %v5553 = vpack.c.b16 %v5514, %v5511
    %v5554 = vpack.c.b16 %v5515, %v5512
    %v5555 = vpack.c.b16 %v5516, %v5513
    %v5556 = vpack.c.b16 %v5520, %v5517
    %v5557 = vpack.c.b16 %v5521, %v5518
    %v5558 = vpack.c.b16 %v5522, %v5519
    %v5559 = vpack.c.b16 %v5526, %v5523
    %v5560 = vpack.c.b16 %v5527, %v5524
    %v5561 = vpack.c.b16 %v5528, %v5525
    %v5562 = vpack.c.b16 %v5532, %v5529
    %v5563 = vpack.c.b16 %v5533, %v5530
    %v5564 = vpack.c.b16 %v5534, %v5531
    %v5596 = vsel %vm3674, %v5414, 0
    %v5599 = vsel %vm3674, %v5418, 0
    %v5602 = vsel %vm3674, %v5422, 0
    %v5605 = vsel %vm3674, %v5426, 0
    %5607 = vmatprep.subr.bf16.mxu0 %v5557
    %5608 = vmatpush1.bf16.msra.mxu0 %v5556
    %5609 = vmatprep.subr.bf16.mxu0 %v5554
    %5610 = vmatpush1.bf16.msra.mxu0 %v5553
    %5611 = vmatprep.subr.bf16.mxu0 %v5551
    %5612 = vmatpush1.bf16.msra.mxu0 %v5550
    %5613 = vmatprep.subr.bf16.mxu0 %v5548
    %5614 = vmatpush1.bf16.msra.mxu0 %v5547
    %5615 = vmatprep.subr.bf16.mxu0 %v5545
    %5616 = vmatpush1.bf16.msra.mxu0 %v5544
    %5617 = vmatprep.subr.bf16.mxu0 %v5542
    %5618 = vmatpush1.bf16.msra.mxu0 %v5541
    %5619 = vmatprep.subr.bf16.mxu0 %v5539
    %5620 = vmatpush1.bf16.msra.mxu0 %v5538
    %5621 = vmatprep.subr.bf16.mxu0 %v5536
    %5622 = vmatpush1.bf16.msra.mxu0 %v5535
    %5623 = vmatprep.subr.bf16.mxu0 0
    %5624 = vmatpush2.bf16.msra.mxu0 0
    %5625 = vmatprep.subr.bf16.mxu0 0
    %5626 = vmatpush2.bf16.msra.mxu0 0
    %5627 = vmatprep.subr.bf16.mxu0 0
    %5628 = vmatpush2.bf16.msra.mxu0 0
    %5629 = vmatprep.subr.bf16.mxu0 0
    %5630 = vmatpush2.bf16.msra.mxu0 0
    %5631 = vmatprep.subr.bf16.mxu0 0
    %5632 = vmatpush2.bf16.msra.mxu0 0
    %5633 = vmatprep.subr.bf16.mxu0 0
    %5634 = vmatpush2.bf16.msra.mxu0 0
    %5635 = vmatprep.subr.bf16.mxu0 %v5563
    %5636 = vmatpush2.bf16.msra.mxu0 %v5562
    %5637 = vmatprep.subr.bf16.mxu0 %v5560
    %5638 = vmatpush2.bf16.msra.mxu0 %v5559
    %5639 = vmatprep.mubr.bf16.mxu0 %v5596
    %5640 = vmatmul.mubr.bf16.gmra.mxu0 %v5427
    %v5641 = vpop.f32.mrf.mxu0
    %v5642 = vadd.f32 0.0, %v5641
    %v5643 = vpop.f32.mrf.mxu0
    %v5644 = vadd.f32 0.0, %v5643
    %v5645 = vpop.f32.mrf.mxu0
    %v5646 = vadd.f32 0.0, %v5645
    %v5647 = vpop.f32.mrf.mxu0
    %v5648 = vadd.f32 0.0, %v5647
    %5649 = vmatprep.mubr.bf16.mxu0 %v5599
    %5650 = vmatmul.mubr.bf16.gmra.mxu0 %v5428
    %v5651 = vpop.f32.mrf.mxu0
    %v5652 = vadd.f32 0.0, %v5651
    %v5653 = vpop.f32.mrf.mxu0
    %v5654 = vadd.f32 0.0, %v5653
    %v5655 = vpop.f32.mrf.mxu0
    %v5656 = vadd.f32 0.0, %v5655
    %v5657 = vpop.f32.mrf.mxu0
    %v5658 = vadd.f32 0.0, %v5657
    %5659 = vmatprep.mubr.bf16.mxu0 %v5602
    %5660 = vmatmul.mubr.bf16.gmra.mxu0 %v5429
    %v5661 = vpop.f32.mrf.mxu0
    %v5662 = vadd.f32 0.0, %v5661
    %v5663 = vpop.f32.mrf.mxu0
    %v5664 = vadd.f32 0.0, %v5663
    %v5665 = vpop.f32.mrf.mxu0
    %v5666 = vadd.f32 0.0, %v5665
    %v5667 = vpop.f32.mrf.mxu0
    %v5668 = vadd.f32 0.0, %v5667
    %5669 = vmatprep.mubr.bf16.mxu0 %v5605
    %5670 = vmatmul.mubr.bf16.gmra.mxu0 %v5430
    %v5671 = vpop.f32.mrf.mxu0
    %v5672 = vadd.f32 0.0, %v5671
    %v5673 = vpop.f32.mrf.mxu0
    %v5674 = vadd.f32 0.0, %v5673
    %v5675 = vpop.f32.mrf.mxu0
    %v5676 = vadd.f32 0.0, %v5675
    %v5677 = vpop.f32.mrf.mxu0
    %v5678 = vadd.f32 0.0, %v5677
    %5679 = vdwg.mxu0
    %5680 = vmatprep.subr.bf16.mxu0 0
    %5681 = vmatpush1.bf16.msra.mxu0 %v5558
    %5682 = vmatprep.subr.bf16.mxu0 0
    %5683 = vmatpush1.bf16.msra.mxu0 %v5555
    %5684 = vmatprep.subr.bf16.mxu0 0
    %5685 = vmatpush1.bf16.msra.mxu0 %v5552
    %5686 = vmatprep.subr.bf16.mxu0 0
    %5687 = vmatpush1.bf16.msra.mxu0 %v5549
    %5688 = vmatprep.subr.bf16.mxu0 0
    %5689 = vmatpush1.bf16.msra.mxu0 %v5546
    %5690 = vmatprep.subr.bf16.mxu0 0
    %5691 = vmatpush1.bf16.msra.mxu0 %v5543
    %5692 = vmatprep.subr.bf16.mxu0 0
    %5693 = vmatpush1.bf16.msra.mxu0 %v5540
    %5694 = vmatprep.subr.bf16.mxu0 0
    %5695 = vmatpush1.bf16.msra.mxu0 %v5537
    %5696 = vmatprep.subr.bf16.mxu0 0
    %5697 = vmatpush2.bf16.msra.mxu0 0
    %5698 = vmatprep.subr.bf16.mxu0 0
    %5699 = vmatpush2.bf16.msra.mxu0 0
    %5700 = vmatprep.subr.bf16.mxu0 0
    %5701 = vmatpush2.bf16.msra.mxu0 0
    %5702 = vmatprep.subr.bf16.mxu0 0
    %5703 = vmatpush2.bf16.msra.mxu0 0
    %5704 = vmatprep.subr.bf16.mxu0 0
    %5705 = vmatpush2.bf16.msra.mxu0 0
    %5706 = vmatprep.subr.bf16.mxu0 0
    %5707 = vmatpush2.bf16.msra.mxu0 0
    %5708 = vmatprep.subr.bf16.mxu0 0
    %5709 = vmatpush2.bf16.msra.mxu0 %v5564
    %5710 = vmatprep.subr.bf16.mxu0 0
    %5711 = vmatpush2.bf16.msra.mxu0 %v5561
    %5712 = vmatprep.mubr.bf16.mxu0 %v5596
    %5713 = vmatmul.mubr.bf16.gmra.mxu0 %v5427
    %v5714 = vpop.f32.mrf.mxu0
    %v5715 = vadd.f32 0.0, %v5714
    %v5716 = vpop.f32.mrf.mxu0
    %v5717 = vpop.f32.mrf.mxu0
    %v5718 = vadd.f32 0.0, %v5717
    %v5719 = vpop.f32.mrf.mxu0
    %5720 = vmatprep.mubr.bf16.mxu0 %v5599
    %5721 = vmatmul.mubr.bf16.gmra.mxu0 %v5428
    %v5722 = vpop.f32.mrf.mxu0
    %v5723 = vadd.f32 0.0, %v5722
    %v5724 = vpop.f32.mrf.mxu0
    %v5725 = vpop.f32.mrf.mxu0
    %v5726 = vadd.f32 0.0, %v5725
    %v5727 = vpop.f32.mrf.mxu0
    %5728 = vmatprep.mubr.bf16.mxu0 %v5602
    %5729 = vmatmul.mubr.bf16.gmra.mxu0 %v5429
    %v5730 = vpop.f32.mrf.mxu0
    %v5731 = vadd.f32 0.0, %v5730
    %v5732 = vpop.f32.mrf.mxu0
    %v5733 = vpop.f32.mrf.mxu0
    %v5734 = vadd.f32 0.0, %v5733
    %v5735 = vpop.f32.mrf.mxu0
    %5736 = vmatprep.mubr.bf16.mxu0 %v5605
    %5737 = vmatmul.mubr.bf16.gmra.mxu0 %v5430
    %v5738 = vpop.f32.mrf.mxu0
    %v5739 = vadd.f32 0.0, %v5738
    %v5740 = vpop.f32.mrf.mxu0
    %v5741 = vpop.f32.mrf.mxu0
    %v5742 = vadd.f32 0.0, %v5741
    %v5743 = vpop.f32.mrf.mxu0
    %5744 = vdwg.mxu0
    %v5745 = vadd.f32 %v5346, %v5642
    %v5746 = vadd.f32 %v5347, %v5644
    %v5747 = vadd.f32 %v5348, %v5715
    %v5748 = vadd.f32 %v5349, %v5646
    %v5749 = vadd.f32 %v5350, %v5648
    %v5750 = vadd.f32 %v5351, %v5718
    %v5751 = vadd.f32 %v5352, %v5652
    %v5752 = vadd.f32 %v5353, %v5654
    %v5753 = vadd.f32 %v5354, %v5723
    %v5754 = vadd.f32 %v5355, %v5656
    %v5755 = vadd.f32 %v5356, %v5658
    %v5756 = vadd.f32 %v5357, %v5726
    %v5757 = vadd.f32 %v5358, %v5662
    %v5758 = vadd.f32 %v5359, %v5664
    %v5759 = vadd.f32 %v5360, %v5731
    %v5760 = vadd.f32 %v5361, %v5666
    %v5761 = vadd.f32 %v5362, %v5668
    %v5762 = vadd.f32 %v5363, %v5734
    %v5763 = vadd.f32 %v5364, %v5672
    %v5764 = vadd.f32 %v5365, %v5674
    %v5765 = vadd.f32 %v5366, %v5739
    %v5766 = vadd.f32 %v5367, %v5676
    %v5767 = vadd.f32 %v5368, %v5678
    %v5768 = vadd.f32 %v5369, %v5742
    %v5769 = vld [vmem:[#allocation3 + $0x10] sm:$0xf0]
    %v5770 = vld [vmem:[#allocation3 + $0x18] sm:$0xf0]
    %v5771 = vld [vmem:[#allocation3 + $0x80] sm:$0xff]
    %v5772 = vld [vmem:[#allocation3 + $0x88] sm:$0xff]
    %v5773 = vpack.c.bf16 %v4539, %v5769
    %v5774 = vpack.c.bf16 %v4540, %v5770
    %v5775 = vpack.c.bf16 %v4543, %v4541
    %v5776 = vpack.c.bf16 %v4544, %v4542
    %v5777 = vpack.c.bf16 %v4547, %v4545
    %v5778 = vpack.c.bf16 %v4548, %v4546
    %v5779 = vpack.c.bf16 %v5771, %v4549
    %v5780 = vpack.c.bf16 %v5772, %v4550
    %s5781 = scalar_lea.vmem %s7, 1440
    %v5782 = vld [vmem:[%s5781] sm:$0xff]
    %v5783 = vld [vmem:[%s5781 + $0x8] sm:$0xf]
    %v5784 = vld [vmem:[%s5781 + $0xc] sm:$0xff]
    %v5785 = vld [vmem:[%s5781 + $0x14] sm:$0xf]
    %v5786 = vld [vmem:[%s5781 + $0x18] sm:$0xff]
    %v5787 = vld [vmem:[%s5781 + $0x20] sm:$0xf]
    %v5788 = vld [vmem:[%s5781 + $0x24] sm:$0xff]
    %v5789 = vld [vmem:[%s5781 + $0x2c] sm:$0xf]
    %v5790 = vld [vmem:[%s5781 + $0x30] sm:$0xff]
    %v5791 = vld [vmem:[%s5781 + $0x38] sm:$0xf]
    %v5792 = vld [vmem:[%s5781 + $0x3c] sm:$0xff]
    %v5793 = vld [vmem:[%s5781 + $0x44] sm:$0xf]
    %v5794 = vld [vmem:[%s5781 + $0x48] sm:$0xff]
    %v5795 = vld [vmem:[%s5781 + $0x50] sm:$0xf]
    %v5796 = vld [vmem:[%s5781 + $0x54] sm:$0xff]
    %v5797 = vld [vmem:[%s5781 + $0x5c] sm:$0xf]
    %v5798 = vld [vmem:[%s5781 + $0x60] sm:$0xff]
    %v5799 = vld [vmem:[%s5781 + $0x68] sm:$0xf]
    %v5800 = vld [vmem:[%s5781 + $0x6c] sm:$0xff]
    %v5801 = vld [vmem:[%s5781 + $0x74] sm:$0xf]
    %v5802 = vld [vmem:[%s5781 + $0x78] sm:$0xff]
    %v5803 = vld [vmem:[%s5781 + $0x80] sm:$0xf]
    %v5804 = vld [vmem:[%s5781 + $0x84] sm:$0xff]
    %v5805 = vld [vmem:[%s5781 + $0x8c] sm:$0xf]
    %v5806 = vld [vmem:[%s5781 + $0x90] sm:$0xff]
    %v5807 = vld [vmem:[%s5781 + $0x98] sm:$0xf]
    %v5808 = vld [vmem:[%s5781 + $0x9c] sm:$0xff]
    %v5809 = vld [vmem:[%s5781 + $0xa4] sm:$0xf]
    %v5810 = vld [vmem:[%s5781 + $0xa8] sm:$0xff]
    %v5811 = vld [vmem:[%s5781 + $0xb0] sm:$0xf]
    %v5812 = vld [vmem:[%s5781 + $0xb4] sm:$0xff]
    %v5813 = vld [vmem:[%s5781 + $0xbc] sm:$0xf]
    %v5814 = vld [vmem:[%s5781 + $0xc0] sm:$0xff]
    %v5815 = vld [vmem:[%s5781 + $0xc8] sm:$0xf]
    %v5816 = vld [vmem:[%s5781 + $0xcc] sm:$0xff]
    %v5817 = vld [vmem:[%s5781 + $0xd4] sm:$0xf]
    %v5818 = vld [vmem:[%s5781 + $0xd8] sm:$0xff]
    %v5819 = vld [vmem:[%s5781 + $0xe0] sm:$0xf]
    %v5820 = vld [vmem:[%s5781 + $0xe4] sm:$0xff]
    %v5821 = vld [vmem:[%s5781 + $0xec] sm:$0xf]
    %vm5830 = vcmask 1045504
    %v5831 = vrot.slane %v5773, 2
    %v5832 = vrot.slane %v5775, 2
    %v5833 = vsel %vm5830, %v5831, %v5832
    %v5834 = vrot.slane %v5774, 2
    %v5835 = vrot.slane %v5776, 2
    %v5836 = vsel %vm5830, %v5834, %v5835
    %v5837 = vrot.slane %v5777, 2
    %v5838 = vsel %vm5830, %v5832, %v5837
    %v5839 = vrot.slane %v5778, 2
    %v5840 = vsel %vm5830, %v5835, %v5839
    %v5841 = vrot.slane %v5779, 2
    %v5842 = vsel %vm5830, %v5837, %v5841
    %v5843 = vrot.slane %v5780, 2
    %v5844 = vsel %vm5830, %v5839, %v5843
    %v5889 = vunpack.c.l.b16 %v5782
    %v5890 = vunpack.c.h.b16 %v5782
    %v5891 = vunpack.c.l.b16 %v5783
    %v5892 = vunpack.c.l.b16 %v5784
    %v5893 = vunpack.c.h.b16 %v5784
    %v5894 = vunpack.c.l.b16 %v5785
    %v5895 = vunpack.c.l.b16 %v5786
    %v5896 = vunpack.c.h.b16 %v5786
    %v5897 = vunpack.c.l.b16 %v5787
    %v5898 = vunpack.c.l.b16 %v5788
    %v5899 = vunpack.c.h.b16 %v5788
    %v5900 = vunpack.c.l.b16 %v5789
    %v5901 = vunpack.c.l.b16 %v5790
    %v5902 = vunpack.c.h.b16 %v5790
    %v5903 = vunpack.c.l.b16 %v5791
    %v5904 = vunpack.c.l.b16 %v5792
    %v5905 = vunpack.c.h.b16 %v5792
    %v5906 = vunpack.c.l.b16 %v5793
    %v5907 = vunpack.c.l.b16 %v5794
    %v5908 = vunpack.c.h.b16 %v5794
    %v5909 = vunpack.c.l.b16 %v5795
    %v5910 = vunpack.c.l.b16 %v5796
    %v5911 = vunpack.c.h.b16 %v5796
    %v5912 = vunpack.c.l.b16 %v5797
    %v5913 = vunpack.c.l.b16 %v5798
    %v5914 = vunpack.c.h.b16 %v5798
    %v5915 = vunpack.c.l.b16 %v5799
    %v5916 = vunpack.c.l.b16 %v5800
    %v5917 = vunpack.c.h.b16 %v5800
    %v5918 = vunpack.c.l.b16 %v5801
    %v5919 = vunpack.c.l.b16 %v5802
    %v5920 = vunpack.c.h.b16 %v5802
    %v5921 = vunpack.c.l.b16 %v5803
    %v5922 = vunpack.c.l.b16 %v5804
    %v5923 = vunpack.c.h.b16 %v5804
    %v5924 = vunpack.c.l.b16 %v5805
    %v5925 = vunpack.c.l.b16 %v5806
    %v5926 = vunpack.c.h.b16 %v5806
    %v5927 = vunpack.c.l.b16 %v5807
    %v5928 = vunpack.c.l.b16 %v5808
    %v5929 = vunpack.c.h.b16 %v5808
    %v5930 = vunpack.c.l.b16 %v5809
    %v5931 = vunpack.c.l.b16 %v5810
    %v5932 = vunpack.c.h.b16 %v5810
    %v5933 = vunpack.c.l.b16 %v5811
    %v5934 = vunpack.c.l.b16 %v5812
    %v5935 = vunpack.c.h.b16 %v5812
    %v5936 = vunpack.c.l.b16 %v5813
    %v5937 = vunpack.c.l.b16 %v5814
    %v5938 = vunpack.c.h.b16 %v5814
    %v5939 = vunpack.c.l.b16 %v5815
    %v5940 = vunpack.c.l.b16 %v5816
    %v5941 = vunpack.c.h.b16 %v5816
    %v5942 = vunpack.c.l.b16 %v5817
    %v5943 = vunpack.c.l.b16 %v5818
    %v5944 = vunpack.c.h.b16 %v5818
    %v5945 = vunpack.c.l.b16 %v5819
    %v5946 = vunpack.c.l.b16 %v5820
    %v5947 = vunpack.c.h.b16 %v5820
    %v5948 = vunpack.c.l.b16 %v5821
    %v5949 = vpack.c.b16 %v5892, %v5889
    %v5950 = vpack.c.b16 %v5893, %v5890
    %v5951 = vpack.c.b16 %v5894, %v5891
    %v5952 = vpack.c.b16 %v5898, %v5895
    %v5953 = vpack.c.b16 %v5899, %v5896
    %v5954 = vpack.c.b16 %v5900, %v5897
    %v5955 = vpack.c.b16 %v5904, %v5901
    %v5956 = vpack.c.b16 %v5905, %v5902
    %v5957 = vpack.c.b16 %v5906, %v5903
    %v5958 = vpack.c.b16 %v5910, %v5907
    %v5959 = vpack.c.b16 %v5911, %v5908
    %v5960 = vpack.c.b16 %v5912, %v5909
    %v5961 = vpack.c.b16 %v5916, %v5913
    %v5962 = vpack.c.b16 %v5917, %v5914
    %v5963 = vpack.c.b16 %v5918, %v5915
    %v5964 = vpack.c.b16 %v5922, %v5919
    %v5965 = vpack.c.b16 %v5923, %v5920
    %v5966 = vpack.c.b16 %v5924, %v5921
    %v5967 = vpack.c.b16 %v5928, %v5925
    %v5968 = vpack.c.b16 %v5929, %v5926
    %v5969 = vpack.c.b16 %v5930, %v5927
    %v5970 = vpack.c.b16 %v5934, %v5931
    %v5971 = vpack.c.b16 %v5935, %v5932
    %v5972 = vpack.c.b16 %v5936, %v5933
    %v5973 = vpack.c.b16 %v5940, %v5937
    %v5974 = vpack.c.b16 %v5941, %v5938
    %v5975 = vpack.c.b16 %v5942, %v5939
    %v5976 = vpack.c.b16 %v5946, %v5943
    %v5977 = vpack.c.b16 %v5947, %v5944
    %v5978 = vpack.c.b16 %v5948, %v5945
    %v6010 = vsel %vm3674, %v5836, 0
    %v6013 = vsel %vm3674, %v5840, 0
    %v6016 = vsel %vm3674, %v5844, 0
    %v6019 = vsel %vm3674, %v5843, 0
    %6021 = vmatprep.subr.bf16.mxu0 %v5971
    %6022 = vmatpush1.bf16.msra.mxu0 %v5970
    %6023 = vmatprep.subr.bf16.mxu0 %v5968
    %6024 = vmatpush1.bf16.msra.mxu0 %v5967
    %6025 = vmatprep.subr.bf16.mxu0 %v5965
    %6026 = vmatpush1.bf16.msra.mxu0 %v5964
    %6027 = vmatprep.subr.bf16.mxu0 %v5962
    %6028 = vmatpush1.bf16.msra.mxu0 %v5961
    %6029 = vmatprep.subr.bf16.mxu0 %v5959
    %6030 = vmatpush1.bf16.msra.mxu0 %v5958
    %6031 = vmatprep.subr.bf16.mxu0 %v5956
    %6032 = vmatpush1.bf16.msra.mxu0 %v5955
    %6033 = vmatprep.subr.bf16.mxu0 %v5953
    %6034 = vmatpush1.bf16.msra.mxu0 %v5952
    %6035 = vmatprep.subr.bf16.mxu0 %v5950
    %6036 = vmatpush1.bf16.msra.mxu0 %v5949
    %6037 = vmatprep.subr.bf16.mxu0 0
    %6038 = vmatpush2.bf16.msra.mxu0 0
    %6039 = vmatprep.subr.bf16.mxu0 0
    %6040 = vmatpush2.bf16.msra.mxu0 0
    %6041 = vmatprep.subr.bf16.mxu0 0
    %6042 = vmatpush2.bf16.msra.mxu0 0
    %6043 = vmatprep.subr.bf16.mxu0 0
    %6044 = vmatpush2.bf16.msra.mxu0 0
    %6045 = vmatprep.subr.bf16.mxu0 0
    %6046 = vmatpush2.bf16.msra.mxu0 0
    %6047 = vmatprep.subr.bf16.mxu0 0
    %6048 = vmatpush2.bf16.msra.mxu0 0
    %6049 = vmatprep.subr.bf16.mxu0 %v5977
    %6050 = vmatpush2.bf16.msra.mxu0 %v5976
    %6051 = vmatprep.subr.bf16.mxu0 %v5974
    %6052 = vmatpush2.bf16.msra.mxu0 %v5973
    %6053 = vmatprep.mubr.bf16.mxu0 %v6010
    %6054 = vmatmul.mubr.bf16.gmra.mxu0 %v5833
    %v6055 = vpop.f32.mrf.mxu0
    %v6056 = vadd.f32 0.0, %v6055
    %v6057 = vpop.f32.mrf.mxu0
    %v6058 = vadd.f32 0.0, %v6057
    %v6059 = vpop.f32.mrf.mxu0
    %v6060 = vadd.f32 0.0, %v6059
    %v6061 = vpop.f32.mrf.mxu0
    %v6062 = vadd.f32 0.0, %v6061
    %6063 = vmatprep.mubr.bf16.mxu0 %v6013
    %6064 = vmatmul.mubr.bf16.gmra.mxu0 %v5838
    %v6065 = vpop.f32.mrf.mxu0
    %v6066 = vadd.f32 0.0, %v6065
    %v6067 = vpop.f32.mrf.mxu0
    %v6068 = vadd.f32 0.0, %v6067
    %v6069 = vpop.f32.mrf.mxu0
    %v6070 = vadd.f32 0.0, %v6069
    %v6071 = vpop.f32.mrf.mxu0
    %v6072 = vadd.f32 0.0, %v6071
    %6073 = vmatprep.mubr.bf16.mxu0 %v6016
    %6074 = vmatmul.mubr.bf16.gmra.mxu0 %v5842
    %v6075 = vpop.f32.mrf.mxu0
    %v6076 = vadd.f32 0.0, %v6075
    %v6077 = vpop.f32.mrf.mxu0
    %v6078 = vadd.f32 0.0, %v6077
    %v6079 = vpop.f32.mrf.mxu0
    %v6080 = vadd.f32 0.0, %v6079
    %v6081 = vpop.f32.mrf.mxu0
    %v6082 = vadd.f32 0.0, %v6081
    %6083 = vmatprep.mubr.bf16.mxu0 %v6019
    %6084 = vmatmul.mubr.bf16.gmra.mxu0 %v5841
    %v6085 = vpop.f32.mrf.mxu0
    %v6086 = vadd.f32 0.0, %v6085
    %v6087 = vpop.f32.mrf.mxu0
    %v6088 = vadd.f32 0.0, %v6087
    %v6089 = vpop.f32.mrf.mxu0
    %v6090 = vadd.f32 0.0, %v6089
    %v6091 = vpop.f32.mrf.mxu0
    %v6092 = vadd.f32 0.0, %v6091
    %6093 = vdwg.mxu0
    %6094 = vmatprep.subr.bf16.mxu0 0
    %6095 = vmatpush1.bf16.msra.mxu0 %v5972
    %6096 = vmatprep.subr.bf16.mxu0 0
    %6097 = vmatpush1.bf16.msra.mxu0 %v5969
    %6098 = vmatprep.subr.bf16.mxu0 0
    %6099 = vmatpush1.bf16.msra.mxu0 %v5966
    %6100 = vmatprep.subr.bf16.mxu0 0
    %6101 = vmatpush1.bf16.msra.mxu0 %v5963
    %6102 = vmatprep.subr.bf16.mxu0 0
    %6103 = vmatpush1.bf16.msra.mxu0 %v5960
    %6104 = vmatprep.subr.bf16.mxu0 0
    %6105 = vmatpush1.bf16.msra.mxu0 %v5957
    %6106 = vmatprep.subr.bf16.mxu0 0
    %6107 = vmatpush1.bf16.msra.mxu0 %v5954
    %6108 = vmatprep.subr.bf16.mxu0 0
    %6109 = vmatpush1.bf16.msra.mxu0 %v5951
    %6110 = vmatprep.subr.bf16.mxu0 0
    %6111 = vmatpush2.bf16.msra.mxu0 0
    %6112 = vmatprep.subr.bf16.mxu0 0
    %6113 = vmatpush2.bf16.msra.mxu0 0
    %6114 = vmatprep.subr.bf16.mxu0 0
    %6115 = vmatpush2.bf16.msra.mxu0 0
    %6116 = vmatprep.subr.bf16.mxu0 0
    %6117 = vmatpush2.bf16.msra.mxu0 0
    %6118 = vmatprep.subr.bf16.mxu0 0
    %6119 = vmatpush2.bf16.msra.mxu0 0
    %6120 = vmatprep.subr.bf16.mxu0 0
    %6121 = vmatpush2.bf16.msra.mxu0 0
    %6122 = vmatprep.subr.bf16.mxu0 0
    %6123 = vmatpush2.bf16.msra.mxu0 %v5978
    %6124 = vmatprep.subr.bf16.mxu0 0
    %6125 = vmatpush2.bf16.msra.mxu0 %v5975
    %6126 = vmatprep.mubr.bf16.mxu0 %v6010
    %6127 = vmatmul.mubr.bf16.gmra.mxu0 %v5833
    %v6128 = vpop.f32.mrf.mxu0
    %v6129 = vadd.f32 0.0, %v6128
    %v6130 = vpop.f32.mrf.mxu0
    %v6131 = vpop.f32.mrf.mxu0
    %v6132 = vadd.f32 0.0, %v6131
    %v6133 = vpop.f32.mrf.mxu0
    %6134 = vmatprep.mubr.bf16.mxu0 %v6013
    %6135 = vmatmul.mubr.bf16.gmra.mxu0 %v5838
    %v6136 = vpop.f32.mrf.mxu0
    %v6137 = vadd.f32 0.0, %v6136
    %v6138 = vpop.f32.mrf.mxu0
    %v6139 = vpop.f32.mrf.mxu0
    %v6140 = vadd.f32 0.0, %v6139
    %v6141 = vpop.f32.mrf.mxu0
    %6142 = vmatprep.mubr.bf16.mxu0 %v6016
    %6143 = vmatmul.mubr.bf16.gmra.mxu0 %v5842
    %v6144 = vpop.f32.mrf.mxu0
    %v6145 = vadd.f32 0.0, %v6144
    %v6146 = vpop.f32.mrf.mxu0
    %v6147 = vpop.f32.mrf.mxu0
    %v6148 = vadd.f32 0.0, %v6147
    %v6149 = vpop.f32.mrf.mxu0
    %6150 = vmatprep.mubr.bf16.mxu0 %v6019
    %6151 = vmatmul.mubr.bf16.gmra.mxu0 %v5841
    %v6152 = vpop.f32.mrf.mxu0
    %v6153 = vadd.f32 0.0, %v6152
    %v6154 = vpop.f32.mrf.mxu0
    %v6155 = vpop.f32.mrf.mxu0
    %v6156 = vadd.f32 0.0, %v6155
    %v6157 = vpop.f32.mrf.mxu0
    %6158 = vdwg.mxu0
    %v6159 = vadd.f32 %v5745, %v6056
    %v6160 = vadd.f32 %v5746, %v6058
    %v6161 = vadd.f32 %v5747, %v6129
    %v6162 = vadd.f32 %v5748, %v6060
    %v6163 = vadd.f32 %v5749, %v6062
    %v6164 = vadd.f32 %v5750, %v6132
    %v6165 = vadd.f32 %v5751, %v6066
    %v6166 = vadd.f32 %v5752, %v6068
    %v6167 = vadd.f32 %v5753, %v6137
    %v6168 = vadd.f32 %v5754, %v6070
    %v6169 = vadd.f32 %v5755, %v6072
    %v6170 = vadd.f32 %v5756, %v6140
    %v6171 = vadd.f32 %v5757, %v6076
    %v6172 = vadd.f32 %v5758, %v6078
    %v6173 = vadd.f32 %v5759, %v6145
    %v6174 = vadd.f32 %v5760, %v6080
    %v6175 = vadd.f32 %v5761, %v6082
    %v6176 = vadd.f32 %v5762, %v6148
    %v6177 = vadd.f32 %v5763, %v6086
    %v6178 = vadd.f32 %v5764, %v6088
    %v6179 = vadd.f32 %v5765, %v6153
    %v6180 = vadd.f32 %v5766, %v6090
    %v6181 = vadd.f32 %v5767, %v6092
    %v6182 = vadd.f32 %v5768, %v6156
    %s6183 = scalar_lea.vmem %s7, 1680
    %v6184 = vld [vmem:[%s6183] sm:$0xff]
    %v6185 = vld [vmem:[%s6183 + $0x8] sm:$0xf]
    %v6186 = vld [vmem:[%s6183 + $0xc] sm:$0xff]
    %v6187 = vld [vmem:[%s6183 + $0x14] sm:$0xf]
    %v6188 = vld [vmem:[%s6183 + $0x18] sm:$0xff]
    %v6189 = vld [vmem:[%s6183 + $0x20] sm:$0xf]
    %v6190 = vld [vmem:[%s6183 + $0x24] sm:$0xff]
    %v6191 = vld [vmem:[%s6183 + $0x2c] sm:$0xf]
    %v6192 = vld [vmem:[%s6183 + $0x30] sm:$0xff]
    %v6193 = vld [vmem:[%s6183 + $0x38] sm:$0xf]
    %v6194 = vld [vmem:[%s6183 + $0x3c] sm:$0xff]
    %v6195 = vld [vmem:[%s6183 + $0x44] sm:$0xf]
    %v6196 = vld [vmem:[%s6183 + $0x48] sm:$0xff]
    %v6197 = vld [vmem:[%s6183 + $0x50] sm:$0xf]
    %v6198 = vld [vmem:[%s6183 + $0x54] sm:$0xff]
    %v6199 = vld [vmem:[%s6183 + $0x5c] sm:$0xf]
    %v6200 = vld [vmem:[%s6183 + $0x60] sm:$0xff]
    %v6201 = vld [vmem:[%s6183 + $0x68] sm:$0xf]
    %v6202 = vld [vmem:[%s6183 + $0x6c] sm:$0xff]
    %v6203 = vld [vmem:[%s6183 + $0x74] sm:$0xf]
    %v6204 = vld [vmem:[%s6183 + $0x78] sm:$0xff]
    %v6205 = vld [vmem:[%s6183 + $0x80] sm:$0xf]
    %v6206 = vld [vmem:[%s6183 + $0x84] sm:$0xff]
    %v6207 = vld [vmem:[%s6183 + $0x8c] sm:$0xf]
    %v6208 = vld [vmem:[%s6183 + $0x90] sm:$0xff]
    %v6209 = vld [vmem:[%s6183 + $0x98] sm:$0xf]
    %v6210 = vld [vmem:[%s6183 + $0x9c] sm:$0xff]
    %v6211 = vld [vmem:[%s6183 + $0xa4] sm:$0xf]
    %v6212 = vld [vmem:[%s6183 + $0xa8] sm:$0xff]
    %v6213 = vld [vmem:[%s6183 + $0xb0] sm:$0xf]
    %v6214 = vld [vmem:[%s6183 + $0xb4] sm:$0xff]
    %v6215 = vld [vmem:[%s6183 + $0xbc] sm:$0xf]
    %v6216 = vld [vmem:[%s6183 + $0xc0] sm:$0xff]
    %v6217 = vld [vmem:[%s6183 + $0xc8] sm:$0xf]
    %v6218 = vld [vmem:[%s6183 + $0xcc] sm:$0xff]
    %v6219 = vld [vmem:[%s6183 + $0xd4] sm:$0xf]
    %v6220 = vld [vmem:[%s6183 + $0xd8] sm:$0xff]
    %v6221 = vld [vmem:[%s6183 + $0xe0] sm:$0xf]
    %v6222 = vld [vmem:[%s6183 + $0xe4] sm:$0xff]
    %v6223 = vld [vmem:[%s6183 + $0xec] sm:$0xf]
    %6224 = vrot.lane.b32.xlu0 %v5833, 112
    %v6225 = vpop.permute.xlu0 %6224
    %6226 = vrot.lane.b32.xlu0 %v5836, 112
    %v6227 = vpop.permute.xlu0 %6226
    %6228 = vrot.lane.b32.xlu0 %v5838, 112
    %v6229 = vpop.permute.xlu0 %6228
    %6230 = vrot.lane.b32.xlu0 %v5840, 112
    %v6231 = vpop.permute.xlu0 %6230
    %6232 = vrot.lane.b32.xlu0 %v5842, 112
    %v6233 = vpop.permute.xlu0 %6232
    %6234 = vrot.lane.b32.xlu0 %v5844, 112
    %v6235 = vpop.permute.xlu0 %6234
    %6236 = vrot.lane.b32.xlu0 %v5841, 112
    %v6237 = vpop.permute.xlu0 %6236
    %6238 = vrot.lane.b32.xlu0 %v5843, 112
    %v6239 = vpop.permute.xlu0 %6238
    %v6240 = vsel %vm3505, %v6225, %v6227
    %v6241 = vsel %vm3505, %v6229, %v6231
    %v6242 = vsel %vm3505, %v6233, %v6235
    %v6243 = vsel %vm3505, %v6237, %v6239
    %v6288 = vunpack.c.l.b16 %v6184
    %v6289 = vunpack.c.h.b16 %v6184
    %v6290 = vunpack.c.l.b16 %v6185
    %v6291 = vunpack.c.l.b16 %v6186
    %v6292 = vunpack.c.h.b16 %v6186
    %v6293 = vunpack.c.l.b16 %v6187
    %v6294 = vunpack.c.l.b16 %v6188
    %v6295 = vunpack.c.h.b16 %v6188
    %v6296 = vunpack.c.l.b16 %v6189
    %v6297 = vunpack.c.l.b16 %v6190
    %v6298 = vunpack.c.h.b16 %v6190
    %v6299 = vunpack.c.l.b16 %v6191
    %v6300 = vunpack.c.l.b16 %v6192
    %v6301 = vunpack.c.h.b16 %v6192
    %v6302 = vunpack.c.l.b16 %v6193
    %v6303 = vunpack.c.l.b16 %v6194
    %v6304 = vunpack.c.h.b16 %v6194
    %v6305 = vunpack.c.l.b16 %v6195
    %v6306 = vunpack.c.l.b16 %v6196
    %v6307 = vunpack.c.h.b16 %v6196
    %v6308 = vunpack.c.l.b16 %v6197
    %v6309 = vunpack.c.l.b16 %v6198
    %v6310 = vunpack.c.h.b16 %v6198
    %v6311 = vunpack.c.l.b16 %v6199
    %v6312 = vunpack.c.l.b16 %v6200
    %v6313 = vunpack.c.h.b16 %v6200
    %v6314 = vunpack.c.l.b16 %v6201
    %v6315 = vunpack.c.l.b16 %v6202
    %v6316 = vunpack.c.h.b16 %v6202
    %v6317 = vunpack.c.l.b16 %v6203
    %v6318 = vunpack.c.l.b16 %v6204
    %v6319 = vunpack.c.h.b16 %v6204
    %v6320 = vunpack.c.l.b16 %v6205
    %v6321 = vunpack.c.l.b16 %v6206
    %v6322 = vunpack.c.h.b16 %v6206
    %v6323 = vunpack.c.l.b16 %v6207
    %v6324 = vunpack.c.l.b16 %v6208
    %v6325 = vunpack.c.h.b16 %v6208
    %v6326 = vunpack.c.l.b16 %v6209
    %v6327 = vunpack.c.l.b16 %v6210
    %v6328 = vunpack.c.h.b16 %v6210
    %v6329 = vunpack.c.l.b16 %v6211
    %v6330 = vunpack.c.l.b16 %v6212
    %v6331 = vunpack.c.h.b16 %v6212
    %v6332 = vunpack.c.l.b16 %v6213
    %v6333 = vunpack.c.l.b16 %v6214
    %v6334 = vunpack.c.h.b16 %v6214
    %v6335 = vunpack.c.l.b16 %v6215
    %v6336 = vunpack.c.l.b16 %v6216
    %v6337 = vunpack.c.h.b16 %v6216
    %v6338 = vunpack.c.l.b16 %v6217
    %v6339 = vunpack.c.l.b16 %v6218
    %v6340 = vunpack.c.h.b16 %v6218
    %v6341 = vunpack.c.l.b16 %v6219
    %v6342 = vunpack.c.l.b16 %v6220
    %v6343 = vunpack.c.h.b16 %v6220
    %v6344 = vunpack.c.l.b16 %v6221
    %v6345 = vunpack.c.l.b16 %v6222
    %v6346 = vunpack.c.h.b16 %v6222
    %v6347 = vunpack.c.l.b16 %v6223
    %v6348 = vpack.c.b16 %v6291, %v6288
    %v6349 = vpack.c.b16 %v6292, %v6289
    %v6350 = vpack.c.b16 %v6293, %v6290
    %v6351 = vpack.c.b16 %v6297, %v6294
    %v6352 = vpack.c.b16 %v6298, %v6295
    %v6353 = vpack.c.b16 %v6299, %v6296
    %v6354 = vpack.c.b16 %v6303, %v6300
    %v6355 = vpack.c.b16 %v6304, %v6301
    %v6356 = vpack.c.b16 %v6305, %v6302
    %v6357 = vpack.c.b16 %v6309, %v6306
    %v6358 = vpack.c.b16 %v6310, %v6307
    %v6359 = vpack.c.b16 %v6311, %v6308
    %v6360 = vpack.c.b16 %v6315, %v6312
    %v6361 = vpack.c.b16 %v6316, %v6313
    %v6362 = vpack.c.b16 %v6317, %v6314
    %v6363 = vpack.c.b16 %v6321, %v6318
    %v6364 = vpack.c.b16 %v6322, %v6319
    %v6365 = vpack.c.b16 %v6323, %v6320
    %v6366 = vpack.c.b16 %v6327, %v6324
    %v6367 = vpack.c.b16 %v6328, %v6325
    %v6368 = vpack.c.b16 %v6329, %v6326
    %v6369 = vpack.c.b16 %v6333, %v6330
    %v6370 = vpack.c.b16 %v6334, %v6331
    %v6371 = vpack.c.b16 %v6335, %v6332
    %v6372 = vpack.c.b16 %v6339, %v6336
    %v6373 = vpack.c.b16 %v6340, %v6337
    %v6374 = vpack.c.b16 %v6341, %v6338
    %v6375 = vpack.c.b16 %v6345, %v6342
    %v6376 = vpack.c.b16 %v6346, %v6343
    %v6377 = vpack.c.b16 %v6347, %v6344
    %v6409 = vsel %vm3674, %v6227, 0
    %v6412 = vsel %vm3674, %v6231, 0
    %v6415 = vsel %vm3674, %v6235, 0
    %v6418 = vsel %vm3674, %v6239, 0
    %6420 = vmatprep.subr.bf16.mxu0 %v6370
    %6421 = vmatpush1.bf16.msra.mxu0 %v6369
    %6422 = vmatprep.subr.bf16.mxu0 %v6367
    %6423 = vmatpush1.bf16.msra.mxu0 %v6366
    %6424 = vmatprep.subr.bf16.mxu0 %v6364
    %6425 = vmatpush1.bf16.msra.mxu0 %v6363
    %6426 = vmatprep.subr.bf16.mxu0 %v6361
    %6427 = vmatpush1.bf16.msra.mxu0 %v6360
    %6428 = vmatprep.subr.bf16.mxu0 %v6358
    %6429 = vmatpush1.bf16.msra.mxu0 %v6357
    %6430 = vmatprep.subr.bf16.mxu0 %v6355
    %6431 = vmatpush1.bf16.msra.mxu0 %v6354
    %6432 = vmatprep.subr.bf16.mxu0 %v6352
    %6433 = vmatpush1.bf16.msra.mxu0 %v6351
    %6434 = vmatprep.subr.bf16.mxu0 %v6349
    %6435 = vmatpush1.bf16.msra.mxu0 %v6348
    %6436 = vmatprep.subr.bf16.mxu0 0
    %6437 = vmatpush2.bf16.msra.mxu0 0
    %6438 = vmatprep.subr.bf16.mxu0 0
    %6439 = vmatpush2.bf16.msra.mxu0 0
    %6440 = vmatprep.subr.bf16.mxu0 0
    %6441 = vmatpush2.bf16.msra.mxu0 0
    %6442 = vmatprep.subr.bf16.mxu0 0
    %6443 = vmatpush2.bf16.msra.mxu0 0
    %6444 = vmatprep.subr.bf16.mxu0 0
    %6445 = vmatpush2.bf16.msra.mxu0 0
    %6446 = vmatprep.subr.bf16.mxu0 0
    %6447 = vmatpush2.bf16.msra.mxu0 0
    %6448 = vmatprep.subr.bf16.mxu0 %v6376
    %6449 = vmatpush2.bf16.msra.mxu0 %v6375
    %6450 = vmatprep.subr.bf16.mxu0 %v6373
    %6451 = vmatpush2.bf16.msra.mxu0 %v6372
    %6452 = vmatprep.mubr.bf16.mxu0 %v6409
    %6453 = vmatmul.mubr.bf16.gmra.mxu0 %v6240
    %v6454 = vpop.f32.mrf.mxu0
    %v6455 = vadd.f32 0.0, %v6454
    %v6456 = vpop.f32.mrf.mxu0
    %v6457 = vadd.f32 0.0, %v6456
    %v6458 = vpop.f32.mrf.mxu0
    %v6459 = vadd.f32 0.0, %v6458
    %v6460 = vpop.f32.mrf.mxu0
    %v6461 = vadd.f32 0.0, %v6460
    %6462 = vmatprep.mubr.bf16.mxu0 %v6412
    %6463 = vmatmul.mubr.bf16.gmra.mxu0 %v6241
    %v6464 = vpop.f32.mrf.mxu0
    %v6465 = vadd.f32 0.0, %v6464
    %v6466 = vpop.f32.mrf.mxu0
    %v6467 = vadd.f32 0.0, %v6466
    %v6468 = vpop.f32.mrf.mxu0
    %v6469 = vadd.f32 0.0, %v6468
    %v6470 = vpop.f32.mrf.mxu0
    %v6471 = vadd.f32 0.0, %v6470
    %6472 = vmatprep.mubr.bf16.mxu0 %v6415
    %6473 = vmatmul.mubr.bf16.gmra.mxu0 %v6242
    %v6474 = vpop.f32.mrf.mxu0
    %v6475 = vadd.f32 0.0, %v6474
    %v6476 = vpop.f32.mrf.mxu0
    %v6477 = vadd.f32 0.0, %v6476
    %v6478 = vpop.f32.mrf.mxu0
    %v6479 = vadd.f32 0.0, %v6478
    %v6480 = vpop.f32.mrf.mxu0
    %v6481 = vadd.f32 0.0, %v6480
    %6482 = vmatprep.mubr.bf16.mxu0 %v6418
    %6483 = vmatmul.mubr.bf16.gmra.mxu0 %v6243
    %v6484 = vpop.f32.mrf.mxu0
    %v6485 = vadd.f32 0.0, %v6484
    %v6486 = vpop.f32.mrf.mxu0
    %v6487 = vadd.f32 0.0, %v6486
    %v6488 = vpop.f32.mrf.mxu0
    %v6489 = vadd.f32 0.0, %v6488
    %v6490 = vpop.f32.mrf.mxu0
    %v6491 = vadd.f32 0.0, %v6490
    %6492 = vdwg.mxu0
    %6493 = vmatprep.subr.bf16.mxu0 0
    %6494 = vmatpush1.bf16.msra.mxu0 %v6371
    %6495 = vmatprep.subr.bf16.mxu0 0
    %6496 = vmatpush1.bf16.msra.mxu0 %v6368
    %6497 = vmatprep.subr.bf16.mxu0 0
    %6498 = vmatpush1.bf16.msra.mxu0 %v6365
    %6499 = vmatprep.subr.bf16.mxu0 0
    %6500 = vmatpush1.bf16.msra.mxu0 %v6362
    %6501 = vmatprep.subr.bf16.mxu0 0
    %6502 = vmatpush1.bf16.msra.mxu0 %v6359
    %6503 = vmatprep.subr.bf16.mxu0 0
    %6504 = vmatpush1.bf16.msra.mxu0 %v6356
    %6505 = vmatprep.subr.bf16.mxu0 0
    %6506 = vmatpush1.bf16.msra.mxu0 %v6353
    %6507 = vmatprep.subr.bf16.mxu0 0
    %6508 = vmatpush1.bf16.msra.mxu0 %v6350
    %6509 = vmatprep.subr.bf16.mxu0 0
    %6510 = vmatpush2.bf16.msra.mxu0 0
    %6511 = vmatprep.subr.bf16.mxu0 0
    %6512 = vmatpush2.bf16.msra.mxu0 0
    %6513 = vmatprep.subr.bf16.mxu0 0
    %6514 = vmatpush2.bf16.msra.mxu0 0
    %6515 = vmatprep.subr.bf16.mxu0 0
    %6516 = vmatpush2.bf16.msra.mxu0 0
    %6517 = vmatprep.subr.bf16.mxu0 0
    %6518 = vmatpush2.bf16.msra.mxu0 0
    %6519 = vmatprep.subr.bf16.mxu0 0
    %6520 = vmatpush2.bf16.msra.mxu0 0
    %6521 = vmatprep.subr.bf16.mxu0 0
    %6522 = vmatpush2.bf16.msra.mxu0 %v6377
    %6523 = vmatprep.subr.bf16.mxu0 0
    %6524 = vmatpush2.bf16.msra.mxu0 %v6374
    %6525 = vmatprep.mubr.bf16.mxu0 %v6409
    %6526 = vmatmul.mubr.bf16.gmra.mxu0 %v6240
    %v6527 = vpop.f32.mrf.mxu0
    %v6528 = vadd.f32 0.0, %v6527
    %v6529 = vpop.f32.mrf.mxu0
    %v6530 = vpop.f32.mrf.mxu0
    %v6531 = vadd.f32 0.0, %v6530
    %v6532 = vpop.f32.mrf.mxu0
    %6533 = vmatprep.mubr.bf16.mxu0 %v6412
    %6534 = vmatmul.mubr.bf16.gmra.mxu0 %v6241
    %v6535 = vpop.f32.mrf.mxu0
    %v6536 = vadd.f32 0.0, %v6535
    %v6537 = vpop.f32.mrf.mxu0
    %v6538 = vpop.f32.mrf.mxu0
    %v6539 = vadd.f32 0.0, %v6538
    %v6540 = vpop.f32.mrf.mxu0
    %6541 = vmatprep.mubr.bf16.mxu0 %v6415
    %6542 = vmatmul.mubr.bf16.gmra.mxu0 %v6242
    %v6543 = vpop.f32.mrf.mxu0
    %v6544 = vadd.f32 0.0, %v6543
    %v6545 = vpop.f32.mrf.mxu0
    %v6546 = vpop.f32.mrf.mxu0
    %v6547 = vadd.f32 0.0, %v6546
    %v6548 = vpop.f32.mrf.mxu0
    %6549 = vmatprep.mubr.bf16.mxu0 %v6418
    %6550 = vmatmul.mubr.bf16.gmra.mxu0 %v6243
    %v6551 = vpop.f32.mrf.mxu0
    %v6552 = vadd.f32 0.0, %v6551
    %v6553 = vpop.f32.mrf.mxu0
    %v6554 = vpop.f32.mrf.mxu0
    %v6555 = vadd.f32 0.0, %v6554
    %v6556 = vpop.f32.mrf.mxu0
    %6557 = vdwg.mxu0
    %v6558 = vadd.f32 %v6159, %v6455
    %v6559 = vadd.f32 %v6160, %v6457
    %v6560 = vadd.f32 %v6161, %v6528
    %v6561 = vadd.f32 %v6162, %v6459
    %v6562 = vadd.f32 %v6163, %v6461
    %v6563 = vadd.f32 %v6164, %v6531
    %v6564 = vadd.f32 %v6165, %v6465
    %v6565 = vadd.f32 %v6166, %v6467
    %v6566 = vadd.f32 %v6167, %v6536
    %v6567 = vadd.f32 %v6168, %v6469
    %v6568 = vadd.f32 %v6169, %v6471
    %v6569 = vadd.f32 %v6170, %v6539
    %v6570 = vadd.f32 %v6171, %v6475
    %v6571 = vadd.f32 %v6172, %v6477
    %v6572 = vadd.f32 %v6173, %v6544
    %v6573 = vadd.f32 %v6174, %v6479
    %v6574 = vadd.f32 %v6175, %v6481
    %v6575 = vadd.f32 %v6176, %v6547
    %v6576 = vadd.f32 %v6177, %v6485
    %v6577 = vadd.f32 %v6178, %v6487
    %v6578 = vadd.f32 %v6179, %v6552
    %v6579 = vadd.f32 %v6180, %v6489
    %v6580 = vadd.f32 %v6181, %v6491
    %v6581 = vadd.f32 %v6182, %v6555
    %s6582 = scalar_lea.vmem %s7, 1920
    %v6583 = vld [vmem:[%s6582] sm:$0xff]
    %v6584 = vld [vmem:[%s6582 + $0x8] sm:$0xf]
    %v6585 = vld [vmem:[%s6582 + $0xc] sm:$0xff]
    %v6586 = vld [vmem:[%s6582 + $0x14] sm:$0xf]
    %v6587 = vld [vmem:[%s6582 + $0x18] sm:$0xff]
    %v6588 = vld [vmem:[%s6582 + $0x20] sm:$0xf]
    %v6589 = vld [vmem:[%s6582 + $0x24] sm:$0xff]
    %v6590 = vld [vmem:[%s6582 + $0x2c] sm:$0xf]
    %v6591 = vld [vmem:[%s6582 + $0x30] sm:$0xff]
    %v6592 = vld [vmem:[%s6582 + $0x38] sm:$0xf]
    %v6593 = vld [vmem:[%s6582 + $0x3c] sm:$0xff]
    %v6594 = vld [vmem:[%s6582 + $0x44] sm:$0xf]
    %v6595 = vld [vmem:[%s6582 + $0x48] sm:$0xff]
    %v6596 = vld [vmem:[%s6582 + $0x50] sm:$0xf]
    %v6597 = vld [vmem:[%s6582 + $0x54] sm:$0xff]
    %v6598 = vld [vmem:[%s6582 + $0x5c] sm:$0xf]
    %v6599 = vld [vmem:[%s6582 + $0x60] sm:$0xff]
    %v6600 = vld [vmem:[%s6582 + $0x68] sm:$0xf]
    %v6601 = vld [vmem:[%s6582 + $0x6c] sm:$0xff]
    %v6602 = vld [vmem:[%s6582 + $0x74] sm:$0xf]
    %v6603 = vld [vmem:[%s6582 + $0x78] sm:$0xff]
    %v6604 = vld [vmem:[%s6582 + $0x80] sm:$0xf]
    %v6605 = vld [vmem:[%s6582 + $0x84] sm:$0xff]
    %v6606 = vld [vmem:[%s6582 + $0x8c] sm:$0xf]
    %v6607 = vld [vmem:[%s6582 + $0x90] sm:$0xff]
    %v6608 = vld [vmem:[%s6582 + $0x98] sm:$0xf]
    %v6609 = vld [vmem:[%s6582 + $0x9c] sm:$0xff]
    %v6610 = vld [vmem:[%s6582 + $0xa4] sm:$0xf]
    %v6611 = vld [vmem:[%s6582 + $0xa8] sm:$0xff]
    %v6612 = vld [vmem:[%s6582 + $0xb0] sm:$0xf]
    %v6613 = vld [vmem:[%s6582 + $0xb4] sm:$0xff]
    %v6614 = vld [vmem:[%s6582 + $0xbc] sm:$0xf]
    %v6615 = vld [vmem:[%s6582 + $0xc0] sm:$0xff]
    %v6616 = vld [vmem:[%s6582 + $0xc8] sm:$0xf]
    %v6617 = vld [vmem:[%s6582 + $0xcc] sm:$0xff]
    %v6618 = vld [vmem:[%s6582 + $0xd4] sm:$0xf]
    %v6619 = vld [vmem:[%s6582 + $0xd8] sm:$0xff]
    %v6620 = vld [vmem:[%s6582 + $0xe0] sm:$0xf]
    %v6621 = vld [vmem:[%s6582 + $0xe4] sm:$0xff]
    %v6622 = vld [vmem:[%s6582 + $0xec] sm:$0xf]
    %6623 = vrot.lane.b32.xlu0 %v5833, 96
    %v6624 = vpop.permute.xlu0 %6623
    %6625 = vrot.lane.b32.xlu0 %v5836, 96
    %v6626 = vpop.permute.xlu0 %6625
    %6627 = vrot.lane.b32.xlu0 %v5838, 96
    %v6628 = vpop.permute.xlu0 %6627
    %6629 = vrot.lane.b32.xlu0 %v5840, 96
    %v6630 = vpop.permute.xlu0 %6629
    %6631 = vrot.lane.b32.xlu0 %v5842, 96
    %v6632 = vpop.permute.xlu0 %6631
    %6633 = vrot.lane.b32.xlu0 %v5844, 96
    %v6634 = vpop.permute.xlu0 %6633
    %6635 = vrot.lane.b32.xlu0 %v5841, 96
    %v6636 = vpop.permute.xlu0 %6635
    %6637 = vrot.lane.b32.xlu0 %v5843, 96
    %v6638 = vpop.permute.xlu0 %6637
    %v6639 = vsel %vm4192, %v6624, %v6626
    %v6640 = vsel %vm4192, %v6628, %v6630
    %v6641 = vsel %vm4192, %v6632, %v6634
    %v6642 = vsel %vm4192, %v6636, %v6638
    %v6687 = vunpack.c.l.b16 %v6583
    %v6688 = vunpack.c.h.b16 %v6583
    %v6689 = vunpack.c.l.b16 %v6584
    %v6690 = vunpack.c.l.b16 %v6585
    %v6691 = vunpack.c.h.b16 %v6585
    %v6692 = vunpack.c.l.b16 %v6586
    %v6693 = vunpack.c.l.b16 %v6587
    %v6694 = vunpack.c.h.b16 %v6587
    %v6695 = vunpack.c.l.b16 %v6588
    %v6696 = vunpack.c.l.b16 %v6589
    %v6697 = vunpack.c.h.b16 %v6589
    %v6698 = vunpack.c.l.b16 %v6590
    %v6699 = vunpack.c.l.b16 %v6591
    %v6700 = vunpack.c.h.b16 %v6591
    %v6701 = vunpack.c.l.b16 %v6592
    %v6702 = vunpack.c.l.b16 %v6593
    %v6703 = vunpack.c.h.b16 %v6593
    %v6704 = vunpack.c.l.b16 %v6594
    %v6705 = vunpack.c.l.b16 %v6595
    %v6706 = vunpack.c.h.b16 %v6595
    %v6707 = vunpack.c.l.b16 %v6596
    %v6708 = vunpack.c.l.b16 %v6597
    %v6709 = vunpack.c.h.b16 %v6597
    %v6710 = vunpack.c.l.b16 %v6598
    %v6711 = vunpack.c.l.b16 %v6599
    %v6712 = vunpack.c.h.b16 %v6599
    %v6713 = vunpack.c.l.b16 %v6600
    %v6714 = vunpack.c.l.b16 %v6601
    %v6715 = vunpack.c.h.b16 %v6601
    %v6716 = vunpack.c.l.b16 %v6602
    %v6717 = vunpack.c.l.b16 %v6603
    %v6718 = vunpack.c.h.b16 %v6603
    %v6719 = vunpack.c.l.b16 %v6604
    %v6720 = vunpack.c.l.b16 %v6605
    %v6721 = vunpack.c.h.b16 %v6605
    %v6722 = vunpack.c.l.b16 %v6606
    %v6723 = vunpack.c.l.b16 %v6607
    %v6724 = vunpack.c.h.b16 %v6607
    %v6725 = vunpack.c.l.b16 %v6608
    %v6726 = vunpack.c.l.b16 %v6609
    %v6727 = vunpack.c.h.b16 %v6609
    %v6728 = vunpack.c.l.b16 %v6610
    %v6729 = vunpack.c.l.b16 %v6611
    %v6730 = vunpack.c.h.b16 %v6611
    %v6731 = vunpack.c.l.b16 %v6612
    %v6732 = vunpack.c.l.b16 %v6613
    %v6733 = vunpack.c.h.b16 %v6613
    %v6734 = vunpack.c.l.b16 %v6614
    %v6735 = vunpack.c.l.b16 %v6615
    %v6736 = vunpack.c.h.b16 %v6615
    %v6737 = vunpack.c.l.b16 %v6616
    %v6738 = vunpack.c.l.b16 %v6617
    %v6739 = vunpack.c.h.b16 %v6617
    %v6740 = vunpack.c.l.b16 %v6618
    %v6741 = vunpack.c.l.b16 %v6619
    %v6742 = vunpack.c.h.b16 %v6619
    %v6743 = vunpack.c.l.b16 %v6620
    %v6744 = vunpack.c.l.b16 %v6621
    %v6745 = vunpack.c.h.b16 %v6621
    %v6746 = vunpack.c.l.b16 %v6622
    %v6747 = vpack.c.b16 %v6690, %v6687
    %v6748 = vpack.c.b16 %v6691, %v6688
    %v6749 = vpack.c.b16 %v6692, %v6689
    %v6750 = vpack.c.b16 %v6696, %v6693
    %v6751 = vpack.c.b16 %v6697, %v6694
    %v6752 = vpack.c.b16 %v6698, %v6695
    %v6753 = vpack.c.b16 %v6702, %v6699
    %v6754 = vpack.c.b16 %v6703, %v6700
    %v6755 = vpack.c.b16 %v6704, %v6701
    %v6756 = vpack.c.b16 %v6708, %v6705
    %v6757 = vpack.c.b16 %v6709, %v6706
    %v6758 = vpack.c.b16 %v6710, %v6707
    %v6759 = vpack.c.b16 %v6714, %v6711
    %v6760 = vpack.c.b16 %v6715, %v6712
    %v6761 = vpack.c.b16 %v6716, %v6713
    %v6762 = vpack.c.b16 %v6720, %v6717
    %v6763 = vpack.c.b16 %v6721, %v6718
    %v6764 = vpack.c.b16 %v6722, %v6719
    %v6765 = vpack.c.b16 %v6726, %v6723
    %v6766 = vpack.c.b16 %v6727, %v6724
    %v6767 = vpack.c.b16 %v6728, %v6725
    %v6768 = vpack.c.b16 %v6732, %v6729
    %v6769 = vpack.c.b16 %v6733, %v6730
    %v6770 = vpack.c.b16 %v6734, %v6731
    %v6771 = vpack.c.b16 %v6738, %v6735
    %v6772 = vpack.c.b16 %v6739, %v6736
    %v6773 = vpack.c.b16 %v6740, %v6737
    %v6774 = vpack.c.b16 %v6744, %v6741
    %v6775 = vpack.c.b16 %v6745, %v6742
    %v6776 = vpack.c.b16 %v6746, %v6743
    %v6808 = vsel %vm3674, %v6626, 0
    %v6811 = vsel %vm3674, %v6630, 0
    %v6814 = vsel %vm3674, %v6634, 0
    %v6817 = vsel %vm3674, %v6638, 0
    %6819 = vmatprep.subr.bf16.mxu0 %v6769
    %6820 = vmatpush1.bf16.msra.mxu0 %v6768
    %6821 = vmatprep.subr.bf16.mxu0 %v6766
    %6822 = vmatpush1.bf16.msra.mxu0 %v6765
    %6823 = vmatprep.subr.bf16.mxu0 %v6763
    %6824 = vmatpush1.bf16.msra.mxu0 %v6762
    %6825 = vmatprep.subr.bf16.mxu0 %v6760
    %6826 = vmatpush1.bf16.msra.mxu0 %v6759
    %6827 = vmatprep.subr.bf16.mxu0 %v6757
    %6828 = vmatpush1.bf16.msra.mxu0 %v6756
    %6829 = vmatprep.subr.bf16.mxu0 %v6754
    %6830 = vmatpush1.bf16.msra.mxu0 %v6753
    %6831 = vmatprep.subr.bf16.mxu0 %v6751
    %6832 = vmatpush1.bf16.msra.mxu0 %v6750
    %6833 = vmatprep.subr.bf16.mxu0 %v6748
    %6834 = vmatpush1.bf16.msra.mxu0 %v6747
    %6835 = vmatprep.subr.bf16.mxu0 0
    %6836 = vmatpush2.bf16.msra.mxu0 0
    %6837 = vmatprep.subr.bf16.mxu0 0
    %6838 = vmatpush2.bf16.msra.mxu0 0
    %6839 = vmatprep.subr.bf16.mxu0 0
    %6840 = vmatpush2.bf16.msra.mxu0 0
    %6841 = vmatprep.subr.bf16.mxu0 0
    %6842 = vmatpush2.bf16.msra.mxu0 0
    %6843 = vmatprep.subr.bf16.mxu0 0
    %6844 = vmatpush2.bf16.msra.mxu0 0
    %6845 = vmatprep.subr.bf16.mxu0 0
    %6846 = vmatpush2.bf16.msra.mxu0 0
    %6847 = vmatprep.subr.bf16.mxu0 %v6775
    %6848 = vmatpush2.bf16.msra.mxu0 %v6774
    %6849 = vmatprep.subr.bf16.mxu0 %v6772
    %6850 = vmatpush2.bf16.msra.mxu0 %v6771
    %6851 = vmatprep.mubr.bf16.mxu0 %v6808
    %6852 = vmatmul.mubr.bf16.gmra.mxu0 %v6639
    %v6853 = vpop.f32.mrf.mxu0
    %v6854 = vadd.f32 0.0, %v6853
    %v6855 = vpop.f32.mrf.mxu0
    %v6856 = vadd.f32 0.0, %v6855
    %v6857 = vpop.f32.mrf.mxu0
    %v6858 = vadd.f32 0.0, %v6857
    %v6859 = vpop.f32.mrf.mxu0
    %v6860 = vadd.f32 0.0, %v6859
    %6861 = vmatprep.mubr.bf16.mxu0 %v6811
    %6862 = vmatmul.mubr.bf16.gmra.mxu0 %v6640
    %v6863 = vpop.f32.mrf.mxu0
    %v6864 = vadd.f32 0.0, %v6863
    %v6865 = vpop.f32.mrf.mxu0
    %v6866 = vadd.f32 0.0, %v6865
    %v6867 = vpop.f32.mrf.mxu0
    %v6868 = vadd.f32 0.0, %v6867
    %v6869 = vpop.f32.mrf.mxu0
    %v6870 = vadd.f32 0.0, %v6869
    %6871 = vmatprep.mubr.bf16.mxu0 %v6814
    %6872 = vmatmul.mubr.bf16.gmra.mxu0 %v6641
    %v6873 = vpop.f32.mrf.mxu0
    %v6874 = vadd.f32 0.0, %v6873
    %v6875 = vpop.f32.mrf.mxu0
    %v6876 = vadd.f32 0.0, %v6875
    %v6877 = vpop.f32.mrf.mxu0
    %v6878 = vadd.f32 0.0, %v6877
    %v6879 = vpop.f32.mrf.mxu0
    %v6880 = vadd.f32 0.0, %v6879
    %6881 = vmatprep.mubr.bf16.mxu0 %v6817
    %6882 = vmatmul.mubr.bf16.gmra.mxu0 %v6642
    %v6883 = vpop.f32.mrf.mxu0
    %v6884 = vadd.f32 0.0, %v6883
    %v6885 = vpop.f32.mrf.mxu0
    %v6886 = vadd.f32 0.0, %v6885
    %v6887 = vpop.f32.mrf.mxu0
    %v6888 = vadd.f32 0.0, %v6887
    %v6889 = vpop.f32.mrf.mxu0
    %v6890 = vadd.f32 0.0, %v6889
    %6891 = vdwg.mxu0
    %6892 = vmatprep.subr.bf16.mxu0 0
    %6893 = vmatpush1.bf16.msra.mxu0 %v6770
    %6894 = vmatprep.subr.bf16.mxu0 0
    %6895 = vmatpush1.bf16.msra.mxu0 %v6767
    %6896 = vmatprep.subr.bf16.mxu0 0
    %6897 = vmatpush1.bf16.msra.mxu0 %v6764
    %6898 = vmatprep.subr.bf16.mxu0 0
    %6899 = vmatpush1.bf16.msra.mxu0 %v6761
    %6900 = vmatprep.subr.bf16.mxu0 0
    %6901 = vmatpush1.bf16.msra.mxu0 %v6758
    %6902 = vmatprep.subr.bf16.mxu0 0
    %6903 = vmatpush1.bf16.msra.mxu0 %v6755
    %6904 = vmatprep.subr.bf16.mxu0 0
    %6905 = vmatpush1.bf16.msra.mxu0 %v6752
    %6906 = vmatprep.subr.bf16.mxu0 0
    %6907 = vmatpush1.bf16.msra.mxu0 %v6749
    %6908 = vmatprep.subr.bf16.mxu0 0
    %6909 = vmatpush2.bf16.msra.mxu0 0
    %6910 = vmatprep.subr.bf16.mxu0 0
    %6911 = vmatpush2.bf16.msra.mxu0 0
    %6912 = vmatprep.subr.bf16.mxu0 0
    %6913 = vmatpush2.bf16.msra.mxu0 0
    %6914 = vmatprep.subr.bf16.mxu0 0
    %6915 = vmatpush2.bf16.msra.mxu0 0
    %6916 = vmatprep.subr.bf16.mxu0 0
    %6917 = vmatpush2.bf16.msra.mxu0 0
    %6918 = vmatprep.subr.bf16.mxu0 0
    %6919 = vmatpush2.bf16.msra.mxu0 0
    %6920 = vmatprep.subr.bf16.mxu0 0
    %6921 = vmatpush2.bf16.msra.mxu0 %v6776
    %6922 = vmatprep.subr.bf16.mxu0 0
    %6923 = vmatpush2.bf16.msra.mxu0 %v6773
    %6924 = vmatprep.mubr.bf16.mxu0 %v6808
    %6925 = vmatmul.mubr.bf16.gmra.mxu0 %v6639
    %v6926 = vpop.f32.mrf.mxu0
    %v6927 = vadd.f32 0.0, %v6926
    %v6928 = vpop.f32.mrf.mxu0
    %v6929 = vpop.f32.mrf.mxu0
    %v6930 = vadd.f32 0.0, %v6929
    %v6931 = vpop.f32.mrf.mxu0
    %6932 = vmatprep.mubr.bf16.mxu0 %v6811
    %6933 = vmatmul.mubr.bf16.gmra.mxu0 %v6640
    %v6934 = vpop.f32.mrf.mxu0
    %v6935 = vadd.f32 0.0, %v6934
    %v6936 = vpop.f32.mrf.mxu0
    %v6937 = vpop.f32.mrf.mxu0
    %v6938 = vadd.f32 0.0, %v6937
    %v6939 = vpop.f32.mrf.mxu0
    %6940 = vmatprep.mubr.bf16.mxu0 %v6814
    %6941 = vmatmul.mubr.bf16.gmra.mxu0 %v6641
    %v6942 = vpop.f32.mrf.mxu0
    %v6943 = vadd.f32 0.0, %v6942
    %v6944 = vpop.f32.mrf.mxu0
    %v6945 = vpop.f32.mrf.mxu0
    %v6946 = vadd.f32 0.0, %v6945
    %v6947 = vpop.f32.mrf.mxu0
    %6948 = vmatprep.mubr.bf16.mxu0 %v6817
    %6949 = vmatmul.mubr.bf16.gmra.mxu0 %v6642
    %v6950 = vpop.f32.mrf.mxu0
    %v6951 = vadd.f32 0.0, %v6950
    %v6952 = vpop.f32.mrf.mxu0
    %v6953 = vpop.f32.mrf.mxu0
    %v6954 = vadd.f32 0.0, %v6953
    %v6955 = vpop.f32.mrf.mxu0
    %6956 = vdwg.mxu0
    %v6957 = vadd.f32 %v6558, %v6854
    %v6958 = vadd.f32 %v6559, %v6856
    %v6959 = vadd.f32 %v6560, %v6927
    %v6960 = vadd.f32 %v6561, %v6858
    %v6961 = vadd.f32 %v6562, %v6860
    %v6962 = vadd.f32 %v6563, %v6930
    %v6963 = vadd.f32 %v6564, %v6864
    %v6964 = vadd.f32 %v6565, %v6866
    %v6965 = vadd.f32 %v6566, %v6935
    %v6966 = vadd.f32 %v6567, %v6868
    %v6967 = vadd.f32 %v6568, %v6870
    %v6968 = vadd.f32 %v6569, %v6938
    %v6969 = vadd.f32 %v6570, %v6874
    %v6970 = vadd.f32 %v6571, %v6876
    %v6971 = vadd.f32 %v6572, %v6943
    %v6972 = vadd.f32 %v6573, %v6878
    %v6973 = vadd.f32 %v6574, %v6880
    %v6974 = vadd.f32 %v6575, %v6946
    %v6975 = vadd.f32 %v6576, %v6884
    %v6976 = vadd.f32 %v6577, %v6886
    %v6977 = vadd.f32 %v6578, %v6951
    %v6978 = vadd.f32 %v6579, %v6888
    %v6979 = vadd.f32 %v6580, %v6890
    %v6980 = vadd.f32 %v6581, %v6954
    %v6981 = vld [vmem:[%s8] sm:$0x7]
    %v6983 = vlaneseq
    %v6984 = vshrl.u32 %v6983, 7
    %v6985 = vsub.s32 0, %v6984
    %v6986 = vrot.slane %v6981, %v6985
    %v6987 = vlaneseq
    %v6988 = vshrl.u32 %v6987, 7
    %v6989 = vsub.s32 1, %v6988
    %v6990 = vrot.slane %v6981, %v6989
    %v6991 = vlaneseq
    %v6992 = vshrl.u32 %v6991, 7
    %v6993 = vsub.s32 2, %v6992
    %v6994 = vrot.slane %v6981, %v6993
    %v6998 = vmul.f32 %v6957, %v6986
    %v6999 = vmul.f32 %v6958, %v6990
    %v7000 = vmul.f32 %v6959, %v6994
    %v7001 = vmul.f32 %v6960, %v6986
    %v7002 = vmul.f32 %v6961, %v6990
    %v7003 = vmul.f32 %v6962, %v6994
    %v7004 = vmul.f32 %v6963, %v6986
    %v7005 = vmul.f32 %v6964, %v6990
    %v7006 = vmul.f32 %v6965, %v6994
    %v7007 = vmul.f32 %v6966, %v6986
    %v7008 = vmul.f32 %v6967, %v6990
    %v7009 = vmul.f32 %v6968, %v6994
    %v7010 = vmul.f32 %v6969, %v6986
    %v7011 = vmul.f32 %v6970, %v6990
    %v7012 = vmul.f32 %v6971, %v6994
    %v7013 = vmul.f32 %v6972, %v6986
    %v7014 = vmul.f32 %v6973, %v6990
    %v7015 = vmul.f32 %v6974, %v6994
    %v7016 = vmul.f32 %v6975, %v6986
    %v7017 = vmul.f32 %v6976, %v6990
    %v7018 = vmul.f32 %v6977, %v6994
    %v7019 = vmul.f32 %v6978, %v6986
    %v7020 = vmul.f32 %v6979, %v6990
    %v7021 = vmul.f32 %v6980, %v6994
    %v7022 = vld [vmem:[%s9] sm:$0x7]
    %v7024 = vlaneseq
    %v7025 = vshrl.u32 %v7024, 7
    %v7026 = vsub.s32 0, %v7025
    %v7027 = vrot.slane %v7022, %v7026
    %v7028 = vlaneseq
    %v7029 = vshrl.u32 %v7028, 7
    %v7030 = vsub.s32 1, %v7029
    %v7031 = vrot.slane %v7022, %v7030
    %v7032 = vlaneseq
    %v7033 = vshrl.u32 %v7032, 7
    %v7034 = vsub.s32 2, %v7033
    %v7035 = vrot.slane %v7022, %v7034
    %v7039 = vadd.f32 %v6998, %v7027
    %v7040 = vadd.f32 %v6999, %v7031
    %v7041 = vadd.f32 %v7000, %v7035
    %v7042 = vadd.f32 %v7001, %v7027
    %v7043 = vadd.f32 %v7002, %v7031
    %v7044 = vadd.f32 %v7003, %v7035
    %v7045 = vadd.f32 %v7004, %v7027
    %v7046 = vadd.f32 %v7005, %v7031
    %v7047 = vadd.f32 %v7006, %v7035
    %v7048 = vadd.f32 %v7007, %v7027
    %v7049 = vadd.f32 %v7008, %v7031
    %v7050 = vadd.f32 %v7009, %v7035
    %v7051 = vadd.f32 %v7010, %v7027
    %v7052 = vadd.f32 %v7011, %v7031
    %v7053 = vadd.f32 %v7012, %v7035
    %v7054 = vadd.f32 %v7013, %v7027
    %v7055 = vadd.f32 %v7014, %v7031
    %v7056 = vadd.f32 %v7015, %v7035
    %v7057 = vadd.f32 %v7016, %v7027
    %v7058 = vadd.f32 %v7017, %v7031
    %v7059 = vadd.f32 %v7018, %v7035
    %v7060 = vadd.f32 %v7019, %v7027
    %v7061 = vadd.f32 %v7020, %v7031
    %v7062 = vadd.f32 %v7021, %v7035
    %7063 = vst [vmem:[#allocation4] sm:$0xff] %v7039
    %7064 = vst [vmem:[#allocation4 + $0x8] sm:$0xff] %v7040
    %7065 = vst.msk [vmem:[#allocation4 + $0x10] sm:$0xff] %vm3358, %v7041
    %7066 = vst [vmem:[#allocation4 + $0x18] sm:$0xff] %v7042
    %7067 = vst [vmem:[#allocation4 + $0x20] sm:$0xff] %v7043
    %7068 = vst.msk [vmem:[#allocation4 + $0x28] sm:$0xff] %vm3358, %v7044
    %7069 = vst [vmem:[#allocation4 + $0x30] sm:$0xff] %v7045
    %7070 = vst [vmem:[#allocation4 + $0x38] sm:$0xff] %v7046
    %7071 = vst.msk [vmem:[#allocation4 + $0x40] sm:$0xff] %vm3358, %v7047
    %7072 = vst [vmem:[#allocation4 + $0x48] sm:$0xff] %v7048
    %7073 = vst [vmem:[#allocation4 + $0x50] sm:$0xff] %v7049
    %7074 = vst.msk [vmem:[#allocation4 + $0x58] sm:$0xff] %vm3358, %v7050
    %7075 = vst [vmem:[#allocation4 + $0x60] sm:$0xff] %v7051
    %7076 = vst [vmem:[#allocation4 + $0x68] sm:$0xff] %v7052
    %7077 = vst.msk [vmem:[#allocation4 + $0x70] sm:$0xff] %vm3358, %v7053
    %7078 = vst [vmem:[#allocation4 + $0x78] sm:$0xff] %v7054
    %7079 = vst [vmem:[#allocation4 + $0x80] sm:$0xff] %v7055
    %7080 = vst.msk [vmem:[#allocation4 + $0x88] sm:$0xff] %vm3358, %v7056
    %7081 = vst [vmem:[#allocation4 + $0x90] sm:$0xff] %v7057
    %7082 = vst [vmem:[#allocation4 + $0x98] sm:$0xff] %v7058
    %7083 = vst.msk [vmem:[#allocation4 + $0xa0] sm:$0xff] %vm3358, %v7059
    %7084 = vst [vmem:[#allocation4 + $0xa8] sm:$0xf] %v7060
    %7085 = vst [vmem:[#allocation4 + $0xb0] sm:$0xf] %v7061
    %vm7086 = vcmask 519168
    %7087 = vst.msk [vmem:[#allocation4 + $0xb8] sm:$0xf] %vm7086, %v7062
    %v7088 = vld [vmem:[#allocation4] sm:$0x3f]
    %v7089 = vld [vmem:[#allocation4 + $0x8] sm:$0x3f]
    %v7090 = vld [vmem:[#allocation4 + $0x10] sm:$0x3f]
    %v7091 = vpack.c.bf16 %v7088, %v7088
    %v7092 = vpack.c.bf16 %v7089, %v7089
    %v7093 = vpack.c.bf16 %v7090, %v7090
    %v7094 = vld [vmem:[#allocation5] sm:$0xf]
    %v7095 = vld [vmem:[#allocation5 + $0x4] sm:$0xf]
    %v7096 = vld [vmem:[#allocation5 + $0x8] sm:$0xf]
    %v7097 = vld [vmem:[#allocation5 + $0xc] sm:$0xf]
    %v7098 = vld [vmem:[#allocation5 + $0x10] sm:$0xf]
    %v7099 = vld [vmem:[#allocation5 + $0x14] sm:$0xf]
    %v7100 = vld [vmem:[#allocation5 + $0x18] sm:$0xf]
    %v7101 = vld [vmem:[#allocation5 + $0x1c] sm:$0xf]
    %v7102 = vld [vmem:[#allocation5 + $0x20] sm:$0xf]
    %v7103 = vld [vmem:[#allocation5 + $0x24] sm:$0xf]
    %v7104 = vld [vmem:[#allocation5 + $0x28] sm:$0xf]
    %v7105 = vld [vmem:[#allocation5 + $0x2c] sm:$0xf]
    %v7106 = vld [vmem:[#allocation5 + $0x30] sm:$0xf]
    %v7107 = vld [vmem:[#allocation5 + $0x34] sm:$0xf]
    %v7108 = vld [vmem:[#allocation5 + $0x38] sm:$0xf]
    %v7109 = vld [vmem:[#allocation5 + $0x3c] sm:$0xf]
    %v7110 = vld [vmem:[#allocation5 + $0x40] sm:$0xf]
    %v7111 = vld [vmem:[#allocation5 + $0x44] sm:$0xf]
    %v7112 = vld [vmem:[#allocation5 + $0x48] sm:$0xf]
    %v7113 = vld [vmem:[#allocation5 + $0x4c] sm:$0xf]
    %v7114 = vld [vmem:[#allocation5 + $0x50] sm:$0xf]
    %v7115 = vld [vmem:[#allocation5 + $0x54] sm:$0xf]
    %v7116 = vld [vmem:[#allocation5 + $0x58] sm:$0xf]
    %v7117 = vld [vmem:[#allocation5 + $0x5c] sm:$0xf]
    %v7118 = vld [vmem:[#allocation5 + $0x60] sm:$0xf]
    %v7119 = vld [vmem:[#allocation5 + $0x64] sm:$0xf]
    %v7120 = vld [vmem:[#allocation5 + $0x68] sm:$0xf]
    %v7121 = vld [vmem:[#allocation5 + $0x6c] sm:$0xf]
    %v7122 = vld [vmem:[#allocation5 + $0x70] sm:$0xf]
    %v7123 = vld [vmem:[#allocation5 + $0x74] sm:$0xf]
    %v7124 = vld [vmem:[#allocation5 + $0x78] sm:$0xf]
    %v7125 = vld [vmem:[#allocation5 + $0x7c] sm:$0xf]
    %v7126 = vld [vmem:[#allocation5 + $0x80] sm:$0xf]
    %v7127 = vld [vmem:[#allocation5 + $0x84] sm:$0xf]
    %v7128 = vld [vmem:[#allocation5 + $0x88] sm:$0xf]
    %v7129 = vld [vmem:[#allocation5 + $0x8c] sm:$0xf]
    %v7130 = vld [vmem:[#allocation5 + $0x90] sm:$0xf]
    %v7131 = vld [vmem:[#allocation5 + $0x94] sm:$0xf]
    %v7132 = vld [vmem:[#allocation5 + $0x98] sm:$0xf]
    %v7133 = vld [vmem:[#allocation5 + $0x9c] sm:$0xf]
    %v7134 = vld [vmem:[#allocation4] sm:$0xc0]
    %v7135 = vld [vmem:[#allocation4 + $0x8] sm:$0xc0]
    %v7136 = vld [vmem:[#allocation4 + $0x10] sm:$0xc0]
    %v7137 = vld [vmem:[#allocation4 + $0x18] sm:$0xf]
    %v7138 = vld [vmem:[#allocation4 + $0x20] sm:$0xf]
    %v7139 = vld [vmem:[#allocation4 + $0x28] sm:$0xf]
    %v7140 = vpack.c.bf16 %v7137, %v7134
    %v7141 = vpack.c.bf16 %v7138, %v7135
    %v7142 = vpack.c.bf16 %v7139, %v7136
    %s7143 = scalar_lea.vmem [#allocation5], 160
    %v7144 = vld [vmem:[%s7143] sm:$0xf]
    %v7145 = vld [vmem:[%s7143 + $0x4] sm:$0xf]
    %v7146 = vld [vmem:[%s7143 + $0x8] sm:$0xf]
    %v7147 = vld [vmem:[%s7143 + $0xc] sm:$0xf]
    %v7148 = vld [vmem:[%s7143 + $0x10] sm:$0xf]
    %v7149 = vld [vmem:[%s7143 + $0x14] sm:$0xf]
    %v7150 = vld [vmem:[%s7143 + $0x18] sm:$0xf]
    %v7151 = vld [vmem:[%s7143 + $0x1c] sm:$0xf]
    %v7152 = vld [vmem:[%s7143 + $0x20] sm:$0xf]
    %v7153 = vld [vmem:[%s7143 + $0x24] sm:$0xf]
    %v7154 = vld [vmem:[%s7143 + $0x28] sm:$0xf]
    %v7155 = vld [vmem:[%s7143 + $0x2c] sm:$0xf]
    %v7156 = vld [vmem:[%s7143 + $0x30] sm:$0xf]
    %v7157 = vld [vmem:[%s7143 + $0x34] sm:$0xf]
    %v7158 = vld [vmem:[%s7143 + $0x38] sm:$0xf]
    %v7159 = vld [vmem:[%s7143 + $0x3c] sm:$0xf]
    %v7160 = vld [vmem:[%s7143 + $0x40] sm:$0xf]
    %v7161 = vld [vmem:[%s7143 + $0x44] sm:$0xf]
    %v7162 = vld [vmem:[%s7143 + $0x48] sm:$0xf]
    %v7163 = vld [vmem:[%s7143 + $0x4c] sm:$0xf]
    %v7164 = vld [vmem:[%s7143 + $0x50] sm:$0xf]
    %v7165 = vld [vmem:[%s7143 + $0x54] sm:$0xf]
    %v7166 = vld [vmem:[%s7143 + $0x58] sm:$0xf]
    %v7167 = vld [vmem:[%s7143 + $0x5c] sm:$0xf]
    %v7168 = vld [vmem:[%s7143 + $0x60] sm:$0xf]
    %v7169 = vld [vmem:[%s7143 + $0x64] sm:$0xf]
    %v7170 = vld [vmem:[%s7143 + $0x68] sm:$0xf]
    %v7171 = vld [vmem:[%s7143 + $0x6c] sm:$0xf]
    %v7172 = vld [vmem:[%s7143 + $0x70] sm:$0xf]
    %v7173 = vld [vmem:[%s7143 + $0x74] sm:$0xf]
    %v7174 = vld [vmem:[%s7143 + $0x78] sm:$0xf]
    %v7175 = vld [vmem:[%s7143 + $0x7c] sm:$0xf]
    %v7176 = vld [vmem:[%s7143 + $0x80] sm:$0xf]
    %v7177 = vld [vmem:[%s7143 + $0x84] sm:$0xf]
    %v7178 = vld [vmem:[%s7143 + $0x88] sm:$0xf]
    %v7179 = vld [vmem:[%s7143 + $0x8c] sm:$0xf]
    %v7180 = vld [vmem:[%s7143 + $0x90] sm:$0xf]
    %v7181 = vld [vmem:[%s7143 + $0x94] sm:$0xf]
    %v7182 = vld [vmem:[%s7143 + $0x98] sm:$0xf]
    %v7183 = vld [vmem:[%s7143 + $0x9c] sm:$0xf]
    %v7187 = vrot.slane %v7140, 3
    %v7188 = vrot.slane %v7141, 3
    %v7189 = vrot.slane %v7142, 3
    %v7232 = vunpack.c.l.b16 %v7144
    %v7233 = vunpack.c.l.b16 %v7145
    %v7234 = vunpack.c.l.b16 %v7146
    %v7235 = vunpack.c.l.b16 %v7147
    %v7236 = vunpack.c.l.b16 %v7148
    %v7237 = vunpack.c.l.b16 %v7149
    %v7238 = vunpack.c.l.b16 %v7150
    %v7239 = vunpack.c.l.b16 %v7151
    %v7240 = vunpack.c.l.b16 %v7152
    %v7241 = vunpack.c.l.b16 %v7153
    %v7242 = vunpack.c.l.b16 %v7154
    %v7243 = vunpack.c.l.b16 %v7155
    %v7244 = vunpack.c.l.b16 %v7156
    %v7245 = vunpack.c.l.b16 %v7157
    %v7246 = vunpack.c.l.b16 %v7158
    %v7247 = vunpack.c.l.b16 %v7159
    %v7248 = vunpack.c.l.b16 %v7160
    %v7249 = vunpack.c.l.b16 %v7161
    %v7250 = vunpack.c.l.b16 %v7162
    %v7251 = vunpack.c.l.b16 %v7163
    %v7252 = vunpack.c.l.b16 %v7164
    %v7253 = vunpack.c.l.b16 %v7165
    %v7254 = vunpack.c.l.b16 %v7166
    %v7255 = vunpack.c.l.b16 %v7167
    %v7256 = vunpack.c.l.b16 %v7168
    %v7257 = vunpack.c.l.b16 %v7169
    %v7258 = vunpack.c.l.b16 %v7170
    %v7259 = vunpack.c.l.b16 %v7171
    %v7260 = vunpack.c.l.b16 %v7172
    %v7261 = vunpack.c.l.b16 %v7173
    %v7262 = vunpack.c.l.b16 %v7174
    %v7263 = vunpack.c.l.b16 %v7175
    %v7264 = vunpack.c.l.b16 %v7176
    %v7265 = vunpack.c.l.b16 %v7177
    %v7266 = vunpack.c.l.b16 %v7178
    %v7267 = vunpack.c.l.b16 %v7179
    %v7268 = vunpack.c.l.b16 %v7180
    %v7269 = vunpack.c.l.b16 %v7181
    %v7270 = vunpack.c.l.b16 %v7182
    %v7271 = vunpack.c.l.b16 %v7183
    %v7272 = vpack.c.b16 %v7233, %v7232
    %v7273 = vpack.c.b16 %v7235, %v7234
    %v7274 = vpack.c.b16 %v7237, %v7236
    %v7275 = vpack.c.b16 %v7239, %v7238
    %v7276 = vpack.c.b16 %v7241, %v7240
    %v7277 = vpack.c.b16 %v7243, %v7242
    %v7278 = vpack.c.b16 %v7245, %v7244
    %v7279 = vpack.c.b16 %v7247, %v7246
    %v7280 = vpack.c.b16 %v7249, %v7248
    %v7281 = vpack.c.b16 %v7251, %v7250
    %v7282 = vpack.c.b16 %v7253, %v7252
    %v7283 = vpack.c.b16 %v7255, %v7254
    %v7284 = vpack.c.b16 %v7257, %v7256
    %v7285 = vpack.c.b16 %v7259, %v7258
    %v7286 = vpack.c.b16 %v7261, %v7260
    %v7287 = vpack.c.b16 %v7263, %v7262
    %v7288 = vpack.c.b16 %v7265, %v7264
    %v7289 = vpack.c.b16 %v7267, %v7266
    %v7290 = vpack.c.b16 %v7269, %v7268
    %v7291 = vpack.c.b16 %v7271, %v7270
    %v7313 = vsel %vm3358, %v7189, 0
    %7315 = vmatprep.subr.bf16.mxu0 0
    %7316 = vmatpush1.bf16.msra.mxu0 %v7279
    %7317 = vmatprep.subr.bf16.mxu0 0
    %7318 = vmatpush1.bf16.msra.mxu0 %v7278
    %7319 = vmatprep.subr.bf16.mxu0 0
    %7320 = vmatpush1.bf16.msra.mxu0 %v7277
    %7321 = vmatprep.subr.bf16.mxu0 0
    %7322 = vmatpush1.bf16.msra.mxu0 %v7276
    %7323 = vmatprep.subr.bf16.mxu0 0
    %7324 = vmatpush1.bf16.msra.mxu0 %v7275
    %7325 = vmatprep.subr.bf16.mxu0 0
    %7326 = vmatpush1.bf16.msra.mxu0 %v7274
    %7327 = vmatprep.subr.bf16.mxu0 0
    %7328 = vmatpush1.bf16.msra.mxu0 %v7273
    %7329 = vmatprep.subr.bf16.mxu0 0
    %7330 = vmatpush1.bf16.msra.mxu0 %v7272
    %7331 = vmatprep.subr.bf16.mxu0 0
    %7332 = vmatpush2.bf16.msra.mxu0 %v7287
    %7333 = vmatprep.subr.bf16.mxu0 0
    %7334 = vmatpush2.bf16.msra.mxu0 %v7286
    %7335 = vmatprep.subr.bf16.mxu0 0
    %7336 = vmatpush2.bf16.msra.mxu0 %v7285
    %7337 = vmatprep.subr.bf16.mxu0 0
    %7338 = vmatpush2.bf16.msra.mxu0 %v7284
    %7339 = vmatprep.subr.bf16.mxu0 0
    %7340 = vmatpush2.bf16.msra.mxu0 %v7283
    %7341 = vmatprep.subr.bf16.mxu0 0
    %7342 = vmatpush2.bf16.msra.mxu0 %v7282
    %7343 = vmatprep.subr.bf16.mxu0 0
    %7344 = vmatpush2.bf16.msra.mxu0 %v7281
    %7345 = vmatprep.subr.bf16.mxu0 0
    %7346 = vmatpush2.bf16.msra.mxu0 %v7280
    %7347 = vmatprep.mubr.bf16.mxu0 %v7188
    %7348 = vmatmul.mubr.bf16.gmra.mxu0 %v7187
    %v7349 = vpop.f32.mrf.mxu0
    %v7350 = vadd.f32 0.0, %v7349
    %v7351 = vpop.f32.mrf.mxu0
    %v7352 = vpop.f32.mrf.mxu0
    %v7353 = vpop.f32.mrf.mxu0
    %7354 = vdwg.mxu0
    %7355 = vmatprep.subr.bf16.mxu0 0
    %7356 = vmatpush1.bf16.msra.mxu0 0
    %7357 = vmatprep.subr.bf16.mxu0 0
    %7358 = vmatpush1.bf16.msra.mxu0 0
    %7359 = vmatprep.subr.bf16.mxu0 0
    %7360 = vmatpush1.bf16.msra.mxu0 0
    %7361 = vmatprep.subr.bf16.mxu0 0
    %7362 = vmatpush1.bf16.msra.mxu0 0
    %7363 = vmatprep.subr.bf16.mxu0 0
    %7364 = vmatpush1.bf16.msra.mxu0 %v7291
    %7365 = vmatprep.subr.bf16.mxu0 0
    %7366 = vmatpush1.bf16.msra.mxu0 %v7290
    %7367 = vmatprep.subr.bf16.mxu0 0
    %7368 = vmatpush1.bf16.msra.mxu0 %v7289
    %7369 = vmatprep.subr.bf16.mxu0 0
    %7370 = vmatpush1.bf16.msra.mxu0 %v7288
    %7371 = vmatprep.subr.bf16.mxu0 0
    %7372 = vmatpush2.bf16.msra.mxu0 0
    %7373 = vmatprep.subr.bf16.mxu0 0
    %7374 = vmatpush2.bf16.msra.mxu0 0
    %7375 = vmatprep.subr.bf16.mxu0 0
    %7376 = vmatpush2.bf16.msra.mxu0 0
    %7377 = vmatprep.subr.bf16.mxu0 0
    %7378 = vmatpush2.bf16.msra.mxu0 0
    %7379 = vmatprep.subr.bf16.mxu0 0
    %7380 = vmatpush2.bf16.msra.mxu0 0
    %7381 = vmatprep.subr.bf16.mxu0 0
    %7382 = vmatpush2.bf16.msra.mxu0 0
    %7383 = vmatprep.subr.bf16.mxu0 0
    %7384 = vmatpush2.bf16.msra.mxu0 0
    %7385 = vmatprep.subr.bf16.mxu0 0
    %7386 = vmatpush2.bf16.msra.mxu0 0
    %7387 = vmatprep.mubr.bf16.mxu0 0
    %7388 = vmatmul.mubr.bf16.gmra.mxu0 %v7313
    %v7389 = vpop.f32.mrf.mxu0
    %v7390 = vadd.f32 %v7350, %v7389
    %v7391 = vpop.f32.mrf.mxu0
    %v7392 = vpop.f32.mrf.mxu0
    %v7393 = vpop.f32.mrf.mxu0
    %7394 = vdwg.mxu0
    %v7435 = vunpack.c.l.b16 %v7094
    %v7436 = vunpack.c.l.b16 %v7095
    %v7437 = vunpack.c.l.b16 %v7096
    %v7438 = vunpack.c.l.b16 %v7097
    %v7439 = vunpack.c.l.b16 %v7098
    %v7440 = vunpack.c.l.b16 %v7099
    %v7441 = vunpack.c.l.b16 %v7100
    %v7442 = vunpack.c.l.b16 %v7101
    %v7443 = vunpack.c.l.b16 %v7102
    %v7444 = vunpack.c.l.b16 %v7103
    %v7445 = vunpack.c.l.b16 %v7104
    %v7446 = vunpack.c.l.b16 %v7105
    %v7447 = vunpack.c.l.b16 %v7106
    %v7448 = vunpack.c.l.b16 %v7107
    %v7449 = vunpack.c.l.b16 %v7108
    %v7450 = vunpack.c.l.b16 %v7109
    %v7451 = vunpack.c.l.b16 %v7110
    %v7452 = vunpack.c.l.b16 %v7111
    %v7453 = vunpack.c.l.b16 %v7112
    %v7454 = vunpack.c.l.b16 %v7113
    %v7455 = vunpack.c.l.b16 %v7114
    %v7456 = vunpack.c.l.b16 %v7115
    %v7457 = vunpack.c.l.b16 %v7116
    %v7458 = vunpack.c.l.b16 %v7117
    %v7459 = vunpack.c.l.b16 %v7118
    %v7460 = vunpack.c.l.b16 %v7119
    %v7461 = vunpack.c.l.b16 %v7120
    %v7462 = vunpack.c.l.b16 %v7121
    %v7463 = vunpack.c.l.b16 %v7122
    %v7464 = vunpack.c.l.b16 %v7123
    %v7465 = vunpack.c.l.b16 %v7124
    %v7466 = vunpack.c.l.b16 %v7125
    %v7467 = vunpack.c.l.b16 %v7126
    %v7468 = vunpack.c.l.b16 %v7127
    %v7469 = vunpack.c.l.b16 %v7128
    %v7470 = vunpack.c.l.b16 %v7129
    %v7471 = vunpack.c.l.b16 %v7130
    %v7472 = vunpack.c.l.b16 %v7131
    %v7473 = vunpack.c.l.b16 %v7132
    %v7474 = vunpack.c.l.b16 %v7133
    %v7475 = vpack.c.b16 %v7436, %v7435
    %v7476 = vpack.c.b16 %v7438, %v7437
    %v7477 = vpack.c.b16 %v7440, %v7439
    %v7478 = vpack.c.b16 %v7442, %v7441
    %v7479 = vpack.c.b16 %v7444, %v7443
    %v7480 = vpack.c.b16 %v7446, %v7445
    %v7481 = vpack.c.b16 %v7448, %v7447
    %v7482 = vpack.c.b16 %v7450, %v7449
    %v7483 = vpack.c.b16 %v7452, %v7451
    %v7484 = vpack.c.b16 %v7454, %v7453
    %v7485 = vpack.c.b16 %v7456, %v7455
    %v7486 = vpack.c.b16 %v7458, %v7457
    %v7487 = vpack.c.b16 %v7460, %v7459
    %v7488 = vpack.c.b16 %v7462, %v7461
    %v7489 = vpack.c.b16 %v7464, %v7463
    %v7490 = vpack.c.b16 %v7466, %v7465
    %v7491 = vpack.c.b16 %v7468, %v7467
    %v7492 = vpack.c.b16 %v7470, %v7469
    %v7493 = vpack.c.b16 %v7472, %v7471
    %v7494 = vpack.c.b16 %v7474, %v7473
    %v7516 = vsel %vm3358, %v7093, 0
    %7518 = vmatprep.subr.bf16.mxu0 0
    %7519 = vmatpush1.bf16.msra.mxu0 %v7482
    %7520 = vmatprep.subr.bf16.mxu0 0
    %7521 = vmatpush1.bf16.msra.mxu0 %v7481
    %7522 = vmatprep.subr.bf16.mxu0 0
    %7523 = vmatpush1.bf16.msra.mxu0 %v7480
    %7524 = vmatprep.subr.bf16.mxu0 0
    %7525 = vmatpush1.bf16.msra.mxu0 %v7479
    %7526 = vmatprep.subr.bf16.mxu0 0
    %7527 = vmatpush1.bf16.msra.mxu0 %v7478
    %7528 = vmatprep.subr.bf16.mxu0 0
    %7529 = vmatpush1.bf16.msra.mxu0 %v7477
    %7530 = vmatprep.subr.bf16.mxu0 0
    %7531 = vmatpush1.bf16.msra.mxu0 %v7476
    %7532 = vmatprep.subr.bf16.mxu0 0
    %7533 = vmatpush1.bf16.msra.mxu0 %v7475
    %7534 = vmatprep.subr.bf16.mxu0 0
    %7535 = vmatpush2.bf16.msra.mxu0 %v7490
    %7536 = vmatprep.subr.bf16.mxu0 0
    %7537 = vmatpush2.bf16.msra.mxu0 %v7489
    %7538 = vmatprep.subr.bf16.mxu0 0
    %7539 = vmatpush2.bf16.msra.mxu0 %v7488
    %7540 = vmatprep.subr.bf16.mxu0 0
    %7541 = vmatpush2.bf16.msra.mxu0 %v7487
    %7542 = vmatprep.subr.bf16.mxu0 0
    %7543 = vmatpush2.bf16.msra.mxu0 %v7486
    %7544 = vmatprep.subr.bf16.mxu0 0
    %7545 = vmatpush2.bf16.msra.mxu0 %v7485
    %7546 = vmatprep.subr.bf16.mxu0 0
    %7547 = vmatpush2.bf16.msra.mxu0 %v7484
    %7548 = vmatprep.subr.bf16.mxu0 0
    %7549 = vmatpush2.bf16.msra.mxu0 %v7483
    %7550 = vmatprep.mubr.bf16.mxu0 %v7092
    %7551 = vmatmul.mubr.bf16.gmra.mxu0 %v7091
    %v7552 = vpop.f32.mrf.mxu0
    %v7553 = vadd.f32 %v7390, %v7552
    %v7554 = vpop.f32.mrf.mxu0
    %v7555 = vpop.f32.mrf.mxu0
    %v7556 = vpop.f32.mrf.mxu0
    %7557 = vdwg.mxu0
    %7558 = vmatprep.subr.bf16.mxu0 0
    %7559 = vmatpush1.bf16.msra.mxu0 0
    %7560 = vmatprep.subr.bf16.mxu0 0
    %7561 = vmatpush1.bf16.msra.mxu0 0
    %7562 = vmatprep.subr.bf16.mxu0 0
    %7563 = vmatpush1.bf16.msra.mxu0 0
    %7564 = vmatprep.subr.bf16.mxu0 0
    %7565 = vmatpush1.bf16.msra.mxu0 0
    %7566 = vmatprep.subr.bf16.mxu0 0
    %7567 = vmatpush1.bf16.msra.mxu0 %v7494
    %7568 = vmatprep.subr.bf16.mxu0 0
    %7569 = vmatpush1.bf16.msra.mxu0 %v7493
    %7570 = vmatprep.subr.bf16.mxu0 0
    %7571 = vmatpush1.bf16.msra.mxu0 %v7492
    %7572 = vmatprep.subr.bf16.mxu0 0
    %7573 = vmatpush1.bf16.msra.mxu0 %v7491
    %7574 = vmatprep.subr.bf16.mxu0 0
    %7575 = vmatpush2.bf16.msra.mxu0 0
    %7576 = vmatprep.subr.bf16.mxu0 0
    %7577 = vmatpush2.bf16.msra.mxu0 0
    %7578 = vmatprep.subr.bf16.mxu0 0
    %7579 = vmatpush2.bf16.msra.mxu0 0
    %7580 = vmatprep.subr.bf16.mxu0 0
    %7581 = vmatpush2.bf16.msra.mxu0 0
    %7582 = vmatprep.subr.bf16.mxu0 0
    %7583 = vmatpush2.bf16.msra.mxu0 0
    %7584 = vmatprep.subr.bf16.mxu0 0
    %7585 = vmatpush2.bf16.msra.mxu0 0
    %7586 = vmatprep.subr.bf16.mxu0 0
    %7587 = vmatpush2.bf16.msra.mxu0 0
    %7588 = vmatprep.subr.bf16.mxu0 0
    %7589 = vmatpush2.bf16.msra.mxu0 0
    %7590 = vmatprep.mubr.bf16.mxu0 0
    %7591 = vmatmul.mubr.bf16.gmra.mxu0 %v7516
    %v7592 = vpop.f32.mrf.mxu0
    %v7593 = vadd.f32 %v7553, %v7592
    %v7594 = vpop.f32.mrf.mxu0
    %v7595 = vpop.f32.mrf.mxu0
    %v7596 = vpop.f32.mrf.mxu0
    %7597 = vdwg.mxu0
    %v7598 = vld [vmem:[#allocation4 + $0x18] sm:$0xf0]
    %v7599 = vld [vmem:[#allocation4 + $0x20] sm:$0xf0]
    %v7600 = vld [vmem:[#allocation4 + $0x28] sm:$0xf0]
    %v7601 = vld [vmem:[#allocation4 + $0x30] sm:$0x3]
    %v7602 = vld [vmem:[#allocation4 + $0x38] sm:$0x3]
    %v7603 = vld [vmem:[#allocation4 + $0x40] sm:$0x3]
    %v7604 = vpack.c.bf16 %v7601, %v7598
    %v7605 = vpack.c.bf16 %v7602, %v7599
    %v7606 = vpack.c.bf16 %v7603, %v7600
    %s7607 = scalar_lea.vmem [#allocation5], 320
    %v7608 = vld [vmem:[%s7607] sm:$0xf]
    %v7609 = vld [vmem:[%s7607 + $0x4] sm:$0xf]
    %v7610 = vld [vmem:[%s7607 + $0x8] sm:$0xf]
    %v7611 = vld [vmem:[%s7607 + $0xc] sm:$0xf]
    %v7612 = vld [vmem:[%s7607 + $0x10] sm:$0xf]
    %v7613 = vld [vmem:[%s7607 + $0x14] sm:$0xf]
    %v7614 = vld [vmem:[%s7607 + $0x18] sm:$0xf]
    %v7615 = vld [vmem:[%s7607 + $0x1c] sm:$0xf]
    %v7616 = vld [vmem:[%s7607 + $0x20] sm:$0xf]
    %v7617 = vld [vmem:[%s7607 + $0x24] sm:$0xf]
    %v7618 = vld [vmem:[%s7607 + $0x28] sm:$0xf]
    %v7619 = vld [vmem:[%s7607 + $0x2c] sm:$0xf]
    %v7620 = vld [vmem:[%s7607 + $0x30] sm:$0xf]
    %v7621 = vld [vmem:[%s7607 + $0x34] sm:$0xf]
    %v7622 = vld [vmem:[%s7607 + $0x38] sm:$0xf]
    %v7623 = vld [vmem:[%s7607 + $0x3c] sm:$0xf]
    %v7624 = vld [vmem:[%s7607 + $0x40] sm:$0xf]
    %v7625 = vld [vmem:[%s7607 + $0x44] sm:$0xf]
    %v7626 = vld [vmem:[%s7607 + $0x48] sm:$0xf]
    %v7627 = vld [vmem:[%s7607 + $0x4c] sm:$0xf]
    %v7628 = vld [vmem:[%s7607 + $0x50] sm:$0xf]
    %v7629 = vld [vmem:[%s7607 + $0x54] sm:$0xf]
    %v7630 = vld [vmem:[%s7607 + $0x58] sm:$0xf]
    %v7631 = vld [vmem:[%s7607 + $0x5c] sm:$0xf]
    %v7632 = vld [vmem:[%s7607 + $0x60] sm:$0xf]
    %v7633 = vld [vmem:[%s7607 + $0x64] sm:$0xf]
    %v7634 = vld [vmem:[%s7607 + $0x68] sm:$0xf]
    %v7635 = vld [vmem:[%s7607 + $0x6c] sm:$0xf]
    %v7636 = vld [vmem:[%s7607 + $0x70] sm:$0xf]
    %v7637 = vld [vmem:[%s7607 + $0x74] sm:$0xf]
    %v7638 = vld [vmem:[%s7607 + $0x78] sm:$0xf]
    %v7639 = vld [vmem:[%s7607 + $0x7c] sm:$0xf]
    %v7640 = vld [vmem:[%s7607 + $0x80] sm:$0xf]
    %v7641 = vld [vmem:[%s7607 + $0x84] sm:$0xf]
    %v7642 = vld [vmem:[%s7607 + $0x88] sm:$0xf]
    %v7643 = vld [vmem:[%s7607 + $0x8c] sm:$0xf]
    %v7644 = vld [vmem:[%s7607 + $0x90] sm:$0xf]
    %v7645 = vld [vmem:[%s7607 + $0x94] sm:$0xf]
    %v7646 = vld [vmem:[%s7607 + $0x98] sm:$0xf]
    %v7647 = vld [vmem:[%s7607 + $0x9c] sm:$0xf]
    %v7651 = vrot.slane %v7604, 2
    %v7652 = vrot.slane %v7605, 2
    %v7653 = vrot.slane %v7606, 2
    %v7696 = vunpack.c.l.b16 %v7608
    %v7697 = vunpack.c.l.b16 %v7609
    %v7698 = vunpack.c.l.b16 %v7610
    %v7699 = vunpack.c.l.b16 %v7611
    %v7700 = vunpack.c.l.b16 %v7612
    %v7701 = vunpack.c.l.b16 %v7613
    %v7702 = vunpack.c.l.b16 %v7614
    %v7703 = vunpack.c.l.b16 %v7615
    %v7704 = vunpack.c.l.b16 %v7616
    %v7705 = vunpack.c.l.b16 %v7617
    %v7706 = vunpack.c.l.b16 %v7618
    %v7707 = vunpack.c.l.b16 %v7619
    %v7708 = vunpack.c.l.b16 %v7620
    %v7709 = vunpack.c.l.b16 %v7621
    %v7710 = vunpack.c.l.b16 %v7622
    %v7711 = vunpack.c.l.b16 %v7623
    %v7712 = vunpack.c.l.b16 %v7624
    %v7713 = vunpack.c.l.b16 %v7625
    %v7714 = vunpack.c.l.b16 %v7626
    %v7715 = vunpack.c.l.b16 %v7627
    %v7716 = vunpack.c.l.b16 %v7628
    %v7717 = vunpack.c.l.b16 %v7629
    %v7718 = vunpack.c.l.b16 %v7630
    %v7719 = vunpack.c.l.b16 %v7631
    %v7720 = vunpack.c.l.b16 %v7632
    %v7721 = vunpack.c.l.b16 %v7633
    %v7722 = vunpack.c.l.b16 %v7634
    %v7723 = vunpack.c.l.b16 %v7635
    %v7724 = vunpack.c.l.b16 %v7636
    %v7725 = vunpack.c.l.b16 %v7637
    %v7726 = vunpack.c.l.b16 %v7638
    %v7727 = vunpack.c.l.b16 %v7639
    %v7728 = vunpack.c.l.b16 %v7640
    %v7729 = vunpack.c.l.b16 %v7641
    %v7730 = vunpack.c.l.b16 %v7642
    %v7731 = vunpack.c.l.b16 %v7643
    %v7732 = vunpack.c.l.b16 %v7644
    %v7733 = vunpack.c.l.b16 %v7645
    %v7734 = vunpack.c.l.b16 %v7646
    %v7735 = vunpack.c.l.b16 %v7647
    %v7736 = vpack.c.b16 %v7697, %v7696
    %v7737 = vpack.c.b16 %v7699, %v7698
    %v7738 = vpack.c.b16 %v7701, %v7700
    %v7739 = vpack.c.b16 %v7703, %v7702
    %v7740 = vpack.c.b16 %v7705, %v7704
    %v7741 = vpack.c.b16 %v7707, %v7706
    %v7742 = vpack.c.b16 %v7709, %v7708
    %v7743 = vpack.c.b16 %v7711, %v7710
    %v7744 = vpack.c.b16 %v7713, %v7712
    %v7745 = vpack.c.b16 %v7715, %v7714
    %v7746 = vpack.c.b16 %v7717, %v7716
    %v7747 = vpack.c.b16 %v7719, %v7718
    %v7748 = vpack.c.b16 %v7721, %v7720
    %v7749 = vpack.c.b16 %v7723, %v7722
    %v7750 = vpack.c.b16 %v7725, %v7724
    %v7751 = vpack.c.b16 %v7727, %v7726
    %v7752 = vpack.c.b16 %v7729, %v7728
    %v7753 = vpack.c.b16 %v7731, %v7730
    %v7754 = vpack.c.b16 %v7733, %v7732
    %v7755 = vpack.c.b16 %v7735, %v7734
    %v7777 = vsel %vm3358, %v7653, 0
    %7779 = vmatprep.subr.bf16.mxu0 0
    %7780 = vmatpush1.bf16.msra.mxu0 %v7743
    %7781 = vmatprep.subr.bf16.mxu0 0
    %7782 = vmatpush1.bf16.msra.mxu0 %v7742
    %7783 = vmatprep.subr.bf16.mxu0 0
    %7784 = vmatpush1.bf16.msra.mxu0 %v7741
    %7785 = vmatprep.subr.bf16.mxu0 0
    %7786 = vmatpush1.bf16.msra.mxu0 %v7740
    %7787 = vmatprep.subr.bf16.mxu0 0
    %7788 = vmatpush1.bf16.msra.mxu0 %v7739
    %7789 = vmatprep.subr.bf16.mxu0 0
    %7790 = vmatpush1.bf16.msra.mxu0 %v7738
    %7791 = vmatprep.subr.bf16.mxu0 0
    %7792 = vmatpush1.bf16.msra.mxu0 %v7737
    %7793 = vmatprep.subr.bf16.mxu0 0
    %7794 = vmatpush1.bf16.msra.mxu0 %v7736
    %7795 = vmatprep.subr.bf16.mxu0 0
    %7796 = vmatpush2.bf16.msra.mxu0 %v7751
    %7797 = vmatprep.subr.bf16.mxu0 0
    %7798 = vmatpush2.bf16.msra.mxu0 %v7750
    %7799 = vmatprep.subr.bf16.mxu0 0
    %7800 = vmatpush2.bf16.msra.mxu0 %v7749
    %7801 = vmatprep.subr.bf16.mxu0 0
    %7802 = vmatpush2.bf16.msra.mxu0 %v7748
    %7803 = vmatprep.subr.bf16.mxu0 0
    %7804 = vmatpush2.bf16.msra.mxu0 %v7747
    %7805 = vmatprep.subr.bf16.mxu0 0
    %7806 = vmatpush2.bf16.msra.mxu0 %v7746
    %7807 = vmatprep.subr.bf16.mxu0 0
    %7808 = vmatpush2.bf16.msra.mxu0 %v7745
    %7809 = vmatprep.subr.bf16.mxu0 0
    %7810 = vmatpush2.bf16.msra.mxu0 %v7744
    %7811 = vmatprep.mubr.bf16.mxu0 %v7652
    %7812 = vmatmul.mubr.bf16.gmra.mxu0 %v7651
    %v7813 = vpop.f32.mrf.mxu0
    %v7814 = vadd.f32 0.0, %v7813
    %v7815 = vpop.f32.mrf.mxu0
    %v7816 = vpop.f32.mrf.mxu0
    %v7817 = vpop.f32.mrf.mxu0
    %7818 = vdwg.mxu0
    %7819 = vmatprep.subr.bf16.mxu0 0
    %7820 = vmatpush1.bf16.msra.mxu0 0
    %7821 = vmatprep.subr.bf16.mxu0 0
    %7822 = vmatpush1.bf16.msra.mxu0 0
    %7823 = vmatprep.subr.bf16.mxu0 0
    %7824 = vmatpush1.bf16.msra.mxu0 0
    %7825 = vmatprep.subr.bf16.mxu0 0
    %7826 = vmatpush1.bf16.msra.mxu0 0
    %7827 = vmatprep.subr.bf16.mxu0 0
    %7828 = vmatpush1.bf16.msra.mxu0 %v7755
    %7829 = vmatprep.subr.bf16.mxu0 0
    %7830 = vmatpush1.bf16.msra.mxu0 %v7754
    %7831 = vmatprep.subr.bf16.mxu0 0
    %7832 = vmatpush1.bf16.msra.mxu0 %v7753
    %7833 = vmatprep.subr.bf16.mxu0 0
    %7834 = vmatpush1.bf16.msra.mxu0 %v7752
    %7835 = vmatprep.subr.bf16.mxu0 0
    %7836 = vmatpush2.bf16.msra.mxu0 0
    %7837 = vmatprep.subr.bf16.mxu0 0
    %7838 = vmatpush2.bf16.msra.mxu0 0
    %7839 = vmatprep.subr.bf16.mxu0 0
    %7840 = vmatpush2.bf16.msra.mxu0 0
    %7841 = vmatprep.subr.bf16.mxu0 0
    %7842 = vmatpush2.bf16.msra.mxu0 0
    %7843 = vmatprep.subr.bf16.mxu0 0
    %7844 = vmatpush2.bf16.msra.mxu0 0
    %7845 = vmatprep.subr.bf16.mxu0 0
    %7846 = vmatpush2.bf16.msra.mxu0 0
    %7847 = vmatprep.subr.bf16.mxu0 0
    %7848 = vmatpush2.bf16.msra.mxu0 0
    %7849 = vmatprep.subr.bf16.mxu0 0
    %7850 = vmatpush2.bf16.msra.mxu0 0
    %7851 = vmatprep.mubr.bf16.mxu0 0
    %7852 = vmatmul.mubr.bf16.gmra.mxu0 %v7777
    %v7853 = vpop.f32.mrf.mxu0
    %v7854 = vadd.f32 %v7814, %v7853
    %v7855 = vpop.f32.mrf.mxu0
    %v7856 = vpop.f32.mrf.mxu0
    %v7857 = vpop.f32.mrf.mxu0
    %7858 = vdwg.mxu0
    %v7859 = vadd.f32 %v7593, %v7854
    %v7860 = vld [vmem:[#allocation4 + $0x30] sm:$0xfc]
    %v7861 = vld [vmem:[#allocation4 + $0x38] sm:$0xfc]
    %v7862 = vld [vmem:[#allocation4 + $0x40] sm:$0xfc]
    %v7863 = vpack.c.bf16 %v7860, %v7860
    %v7864 = vpack.c.bf16 %v7861, %v7861
    %v7865 = vpack.c.bf16 %v7862, %v7862
    %s7866 = scalar_lea.vmem [#allocation5], 480
    %v7867 = vld [vmem:[%s7866] sm:$0xf]
    %v7868 = vld [vmem:[%s7866 + $0x4] sm:$0xf]
    %v7869 = vld [vmem:[%s7866 + $0x8] sm:$0xf]
    %v7870 = vld [vmem:[%s7866 + $0xc] sm:$0xf]
    %v7871 = vld [vmem:[%s7866 + $0x10] sm:$0xf]
    %v7872 = vld [vmem:[%s7866 + $0x14] sm:$0xf]
    %v7873 = vld [vmem:[%s7866 + $0x18] sm:$0xf]
    %v7874 = vld [vmem:[%s7866 + $0x1c] sm:$0xf]
    %v7875 = vld [vmem:[%s7866 + $0x20] sm:$0xf]
    %v7876 = vld [vmem:[%s7866 + $0x24] sm:$0xf]
    %v7877 = vld [vmem:[%s7866 + $0x28] sm:$0xf]
    %v7878 = vld [vmem:[%s7866 + $0x2c] sm:$0xf]
    %v7879 = vld [vmem:[%s7866 + $0x30] sm:$0xf]
    %v7880 = vld [vmem:[%s7866 + $0x34] sm:$0xf]
    %v7881 = vld [vmem:[%s7866 + $0x38] sm:$0xf]
    %v7882 = vld [vmem:[%s7866 + $0x3c] sm:$0xf]
    %v7883 = vld [vmem:[%s7866 + $0x40] sm:$0xf]
    %v7884 = vld [vmem:[%s7866 + $0x44] sm:$0xf]
    %v7885 = vld [vmem:[%s7866 + $0x48] sm:$0xf]
    %v7886 = vld [vmem:[%s7866 + $0x4c] sm:$0xf]
    %v7887 = vld [vmem:[%s7866 + $0x50] sm:$0xf]
    %v7888 = vld [vmem:[%s7866 + $0x54] sm:$0xf]
    %v7889 = vld [vmem:[%s7866 + $0x58] sm:$0xf]
    %v7890 = vld [vmem:[%s7866 + $0x5c] sm:$0xf]
    %v7891 = vld [vmem:[%s7866 + $0x60] sm:$0xf]
    %v7892 = vld [vmem:[%s7866 + $0x64] sm:$0xf]
    %v7893 = vld [vmem:[%s7866 + $0x68] sm:$0xf]
    %v7894 = vld [vmem:[%s7866 + $0x6c] sm:$0xf]
    %v7895 = vld [vmem:[%s7866 + $0x70] sm:$0xf]
    %v7896 = vld [vmem:[%s7866 + $0x74] sm:$0xf]
    %v7897 = vld [vmem:[%s7866 + $0x78] sm:$0xf]
    %v7898 = vld [vmem:[%s7866 + $0x7c] sm:$0xf]
    %v7899 = vld [vmem:[%s7866 + $0x80] sm:$0xf]
    %v7900 = vld [vmem:[%s7866 + $0x84] sm:$0xf]
    %v7901 = vld [vmem:[%s7866 + $0x88] sm:$0xf]
    %v7902 = vld [vmem:[%s7866 + $0x8c] sm:$0xf]
    %v7903 = vld [vmem:[%s7866 + $0x90] sm:$0xf]
    %v7904 = vld [vmem:[%s7866 + $0x94] sm:$0xf]
    %v7905 = vld [vmem:[%s7866 + $0x98] sm:$0xf]
    %v7906 = vld [vmem:[%s7866 + $0x9c] sm:$0xf]
    %v7910 = vrot.slane %v7863, 1
    %v7911 = vrot.slane %v7864, 1
    %v7912 = vrot.slane %v7865, 1
    %v7955 = vunpack.c.l.b16 %v7867
    %v7956 = vunpack.c.l.b16 %v7868
    %v7957 = vunpack.c.l.b16 %v7869
    %v7958 = vunpack.c.l.b16 %v7870
    %v7959 = vunpack.c.l.b16 %v7871
    %v7960 = vunpack.c.l.b16 %v7872
    %v7961 = vunpack.c.l.b16 %v7873
    %v7962 = vunpack.c.l.b16 %v7874
    %v7963 = vunpack.c.l.b16 %v7875
    %v7964 = vunpack.c.l.b16 %v7876
    %v7965 = vunpack.c.l.b16 %v7877
    %v7966 = vunpack.c.l.b16 %v7878
    %v7967 = vunpack.c.l.b16 %v7879
    %v7968 = vunpack.c.l.b16 %v7880
    %v7969 = vunpack.c.l.b16 %v7881
    %v7970 = vunpack.c.l.b16 %v7882
    %v7971 = vunpack.c.l.b16 %v7883
    %v7972 = vunpack.c.l.b16 %v7884
    %v7973 = vunpack.c.l.b16 %v7885
    %v7974 = vunpack.c.l.b16 %v7886
    %v7975 = vunpack.c.l.b16 %v7887
    %v7976 = vunpack.c.l.b16 %v7888
    %v7977 = vunpack.c.l.b16 %v7889
    %v7978 = vunpack.c.l.b16 %v7890
    %v7979 = vunpack.c.l.b16 %v7891
    %v7980 = vunpack.c.l.b16 %v7892
    %v7981 = vunpack.c.l.b16 %v7893
    %v7982 = vunpack.c.l.b16 %v7894
    %v7983 = vunpack.c.l.b16 %v7895
    %v7984 = vunpack.c.l.b16 %v7896
    %v7985 = vunpack.c.l.b16 %v7897
    %v7986 = vunpack.c.l.b16 %v7898
    %v7987 = vunpack.c.l.b16 %v7899
    %v7988 = vunpack.c.l.b16 %v7900
    %v7989 = vunpack.c.l.b16 %v7901
    %v7990 = vunpack.c.l.b16 %v7902
    %v7991 = vunpack.c.l.b16 %v7903
    %v7992 = vunpack.c.l.b16 %v7904
    %v7993 = vunpack.c.l.b16 %v7905
    %v7994 = vunpack.c.l.b16 %v7906
    %v7995 = vpack.c.b16 %v7956, %v7955
    %v7996 = vpack.c.b16 %v7958, %v7957
    %v7997 = vpack.c.b16 %v7960, %v7959
    %v7998 = vpack.c.b16 %v7962, %v7961
    %v7999 = vpack.c.b16 %v7964, %v7963
    %v8000 = vpack.c.b16 %v7966, %v7965
    %v8001 = vpack.c.b16 %v7968, %v7967
    %v8002 = vpack.c.b16 %v7970, %v7969
    %v8003 = vpack.c.b16 %v7972, %v7971
    %v8004 = vpack.c.b16 %v7974, %v7973
    %v8005 = vpack.c.b16 %v7976, %v7975
    %v8006 = vpack.c.b16 %v7978, %v7977
    %v8007 = vpack.c.b16 %v7980, %v7979
    %v8008 = vpack.c.b16 %v7982, %v7981
    %v8009 = vpack.c.b16 %v7984, %v7983
    %v8010 = vpack.c.b16 %v7986, %v7985
    %v8011 = vpack.c.b16 %v7988, %v7987
    %v8012 = vpack.c.b16 %v7990, %v7989
    %v8013 = vpack.c.b16 %v7992, %v7991
    %v8014 = vpack.c.b16 %v7994, %v7993
    %v8036 = vsel %vm3358, %v7912, 0
    %8038 = vmatprep.subr.bf16.mxu0 0
    %8039 = vmatpush1.bf16.msra.mxu0 %v8002
    %8040 = vmatprep.subr.bf16.mxu0 0
    %8041 = vmatpush1.bf16.msra.mxu0 %v8001
    %8042 = vmatprep.subr.bf16.mxu0 0
    %8043 = vmatpush1.bf16.msra.mxu0 %v8000
    %8044 = vmatprep.subr.bf16.mxu0 0
    %8045 = vmatpush1.bf16.msra.mxu0 %v7999
    %8046 = vmatprep.subr.bf16.mxu0 0
    %8047 = vmatpush1.bf16.msra.mxu0 %v7998
    %8048 = vmatprep.subr.bf16.mxu0 0
    %8049 = vmatpush1.bf16.msra.mxu0 %v7997
    %8050 = vmatprep.subr.bf16.mxu0 0
    %8051 = vmatpush1.bf16.msra.mxu0 %v7996
    %8052 = vmatprep.subr.bf16.mxu0 0
    %8053 = vmatpush1.bf16.msra.mxu0 %v7995
    %8054 = vmatprep.subr.bf16.mxu0 0
    %8055 = vmatpush2.bf16.msra.mxu0 %v8010
    %8056 = vmatprep.subr.bf16.mxu0 0
    %8057 = vmatpush2.bf16.msra.mxu0 %v8009
    %8058 = vmatprep.subr.bf16.mxu0 0
    %8059 = vmatpush2.bf16.msra.mxu0 %v8008
    %8060 = vmatprep.subr.bf16.mxu0 0
    %8061 = vmatpush2.bf16.msra.mxu0 %v8007
    %8062 = vmatprep.subr.bf16.mxu0 0
    %8063 = vmatpush2.bf16.msra.mxu0 %v8006
    %8064 = vmatprep.subr.bf16.mxu0 0
    %8065 = vmatpush2.bf16.msra.mxu0 %v8005
    %8066 = vmatprep.subr.bf16.mxu0 0
    %8067 = vmatpush2.bf16.msra.mxu0 %v8004
    %8068 = vmatprep.subr.bf16.mxu0 0
    %8069 = vmatpush2.bf16.msra.mxu0 %v8003
    %8070 = vmatprep.mubr.bf16.mxu0 %v7911
    %8071 = vmatmul.mubr.bf16.gmra.mxu0 %v7910
    %v8072 = vpop.f32.mrf.mxu0
    %v8073 = vadd.f32 0.0, %v8072
    %v8074 = vpop.f32.mrf.mxu0
    %v8075 = vpop.f32.mrf.mxu0
    %v8076 = vpop.f32.mrf.mxu0
    %8077 = vdwg.mxu0
    %8078 = vmatprep.subr.bf16.mxu0 0
    %8079 = vmatpush1.bf16.msra.mxu0 0
    %8080 = vmatprep.subr.bf16.mxu0 0
    %8081 = vmatpush1.bf16.msra.mxu0 0
    %8082 = vmatprep.subr.bf16.mxu0 0
    %8083 = vmatpush1.bf16.msra.mxu0 0
    %8084 = vmatprep.subr.bf16.mxu0 0
    %8085 = vmatpush1.bf16.msra.mxu0 0
    %8086 = vmatprep.subr.bf16.mxu0 0
    %8087 = vmatpush1.bf16.msra.mxu0 %v8014
    %8088 = vmatprep.subr.bf16.mxu0 0
    %8089 = vmatpush1.bf16.msra.mxu0 %v8013
    %8090 = vmatprep.subr.bf16.mxu0 0
    %8091 = vmatpush1.bf16.msra.mxu0 %v8012
    %8092 = vmatprep.subr.bf16.mxu0 0
    %8093 = vmatpush1.bf16.msra.mxu0 %v8011
    %8094 = vmatprep.subr.bf16.mxu0 0
    %8095 = vmatpush2.bf16.msra.mxu0 0
    %8096 = vmatprep.subr.bf16.mxu0 0
    %8097 = vmatpush2.bf16.msra.mxu0 0
    %8098 = vmatprep.subr.bf16.mxu0 0
    %8099 = vmatpush2.bf16.msra.mxu0 0
    %8100 = vmatprep.subr.bf16.mxu0 0
    %8101 = vmatpush2.bf16.msra.mxu0 0
    %8102 = vmatprep.subr.bf16.mxu0 0
    %8103 = vmatpush2.bf16.msra.mxu0 0
    %8104 = vmatprep.subr.bf16.mxu0 0
    %8105 = vmatpush2.bf16.msra.mxu0 0
    %8106 = vmatprep.subr.bf16.mxu0 0
    %8107 = vmatpush2.bf16.msra.mxu0 0
    %8108 = vmatprep.subr.bf16.mxu0 0
    %8109 = vmatpush2.bf16.msra.mxu0 0
    %8110 = vmatprep.mubr.bf16.mxu0 0
    %8111 = vmatmul.mubr.bf16.gmra.mxu0 %v8036
    %v8112 = vpop.f32.mrf.mxu0
    %v8113 = vadd.f32 %v8073, %v8112
    %v8114 = vpop.f32.mrf.mxu0
    %v8115 = vpop.f32.mrf.mxu0
    %v8116 = vpop.f32.mrf.mxu0
    %8117 = vdwg.mxu0
    %v8118 = vadd.f32 %v7859, %v8113
    %v8119 = vld [vmem:[#allocation4 + $0x48] sm:$0x3f]
    %v8120 = vld [vmem:[#allocation4 + $0x50] sm:$0x3f]
    %v8121 = vld [vmem:[#allocation4 + $0x58] sm:$0x3f]
    %v8122 = vpack.c.bf16 %v8119, %v8119
    %v8123 = vpack.c.bf16 %v8120, %v8120
    %v8124 = vpack.c.bf16 %v8121, %v8121
    %s8125 = scalar_lea.vmem [#allocation5], 640
    %v8126 = vld [vmem:[%s8125] sm:$0xf]
    %v8127 = vld [vmem:[%s8125 + $0x4] sm:$0xf]
    %v8128 = vld [vmem:[%s8125 + $0x8] sm:$0xf]
    %v8129 = vld [vmem:[%s8125 + $0xc] sm:$0xf]
    %v8130 = vld [vmem:[%s8125 + $0x10] sm:$0xf]
    %v8131 = vld [vmem:[%s8125 + $0x14] sm:$0xf]
    %v8132 = vld [vmem:[%s8125 + $0x18] sm:$0xf]
    %v8133 = vld [vmem:[%s8125 + $0x1c] sm:$0xf]
    %v8134 = vld [vmem:[%s8125 + $0x20] sm:$0xf]
    %v8135 = vld [vmem:[%s8125 + $0x24] sm:$0xf]
    %v8136 = vld [vmem:[%s8125 + $0x28] sm:$0xf]
    %v8137 = vld [vmem:[%s8125 + $0x2c] sm:$0xf]
    %v8138 = vld [vmem:[%s8125 + $0x30] sm:$0xf]
    %v8139 = vld [vmem:[%s8125 + $0x34] sm:$0xf]
    %v8140 = vld [vmem:[%s8125 + $0x38] sm:$0xf]
    %v8141 = vld [vmem:[%s8125 + $0x3c] sm:$0xf]
    %v8142 = vld [vmem:[%s8125 + $0x40] sm:$0xf]
    %v8143 = vld [vmem:[%s8125 + $0x44] sm:$0xf]
    %v8144 = vld [vmem:[%s8125 + $0x48] sm:$0xf]
    %v8145 = vld [vmem:[%s8125 + $0x4c] sm:$0xf]
    %v8146 = vld [vmem:[%s8125 + $0x50] sm:$0xf]
    %v8147 = vld [vmem:[%s8125 + $0x54] sm:$0xf]
    %v8148 = vld [vmem:[%s8125 + $0x58] sm:$0xf]
    %v8149 = vld [vmem:[%s8125 + $0x5c] sm:$0xf]
    %v8150 = vld [vmem:[%s8125 + $0x60] sm:$0xf]
    %v8151 = vld [vmem:[%s8125 + $0x64] sm:$0xf]
    %v8152 = vld [vmem:[%s8125 + $0x68] sm:$0xf]
    %v8153 = vld [vmem:[%s8125 + $0x6c] sm:$0xf]
    %v8154 = vld [vmem:[%s8125 + $0x70] sm:$0xf]
    %v8155 = vld [vmem:[%s8125 + $0x74] sm:$0xf]
    %v8156 = vld [vmem:[%s8125 + $0x78] sm:$0xf]
    %v8157 = vld [vmem:[%s8125 + $0x7c] sm:$0xf]
    %v8158 = vld [vmem:[%s8125 + $0x80] sm:$0xf]
    %v8159 = vld [vmem:[%s8125 + $0x84] sm:$0xf]
    %v8160 = vld [vmem:[%s8125 + $0x88] sm:$0xf]
    %v8161 = vld [vmem:[%s8125 + $0x8c] sm:$0xf]
    %v8162 = vld [vmem:[%s8125 + $0x90] sm:$0xf]
    %v8163 = vld [vmem:[%s8125 + $0x94] sm:$0xf]
    %v8164 = vld [vmem:[%s8125 + $0x98] sm:$0xf]
    %v8165 = vld [vmem:[%s8125 + $0x9c] sm:$0xf]
    %v8206 = vunpack.c.l.b16 %v8126
    %v8207 = vunpack.c.l.b16 %v8127
    %v8208 = vunpack.c.l.b16 %v8128
    %v8209 = vunpack.c.l.b16 %v8129
    %v8210 = vunpack.c.l.b16 %v8130
    %v8211 = vunpack.c.l.b16 %v8131
    %v8212 = vunpack.c.l.b16 %v8132
    %v8213 = vunpack.c.l.b16 %v8133
    %v8214 = vunpack.c.l.b16 %v8134
    %v8215 = vunpack.c.l.b16 %v8135
    %v8216 = vunpack.c.l.b16 %v8136
    %v8217 = vunpack.c.l.b16 %v8137
    %v8218 = vunpack.c.l.b16 %v8138
    %v8219 = vunpack.c.l.b16 %v8139
    %v8220 = vunpack.c.l.b16 %v8140
    %v8221 = vunpack.c.l.b16 %v8141
    %v8222 = vunpack.c.l.b16 %v8142
    %v8223 = vunpack.c.l.b16 %v8143
    %v8224 = vunpack.c.l.b16 %v8144
    %v8225 = vunpack.c.l.b16 %v8145
    %v8226 = vunpack.c.l.b16 %v8146
    %v8227 = vunpack.c.l.b16 %v8147
    %v8228 = vunpack.c.l.b16 %v8148
    %v8229 = vunpack.c.l.b16 %v8149
    %v8230 = vunpack.c.l.b16 %v8150
    %v8231 = vunpack.c.l.b16 %v8151
    %v8232 = vunpack.c.l.b16 %v8152
    %v8233 = vunpack.c.l.b16 %v8153
    %v8234 = vunpack.c.l.b16 %v8154
    %v8235 = vunpack.c.l.b16 %v8155
    %v8236 = vunpack.c.l.b16 %v8156
    %v8237 = vunpack.c.l.b16 %v8157
    %v8238 = vunpack.c.l.b16 %v8158
    %v8239 = vunpack.c.l.b16 %v8159
    %v8240 = vunpack.c.l.b16 %v8160
    %v8241 = vunpack.c.l.b16 %v8161
    %v8242 = vunpack.c.l.b16 %v8162
    %v8243 = vunpack.c.l.b16 %v8163
    %v8244 = vunpack.c.l.b16 %v8164
    %v8245 = vunpack.c.l.b16 %v8165
    %v8246 = vpack.c.b16 %v8207, %v8206
    %v8247 = vpack.c.b16 %v8209, %v8208
    %v8248 = vpack.c.b16 %v8211, %v8210
    %v8249 = vpack.c.b16 %v8213, %v8212
    %v8250 = vpack.c.b16 %v8215, %v8214
    %v8251 = vpack.c.b16 %v8217, %v8216
    %v8252 = vpack.c.b16 %v8219, %v8218
    %v8253 = vpack.c.b16 %v8221, %v8220
    %v8254 = vpack.c.b16 %v8223, %v8222
    %v8255 = vpack.c.b16 %v8225, %v8224
    %v8256 = vpack.c.b16 %v8227, %v8226
    %v8257 = vpack.c.b16 %v8229, %v8228
    %v8258 = vpack.c.b16 %v8231, %v8230
    %v8259 = vpack.c.b16 %v8233, %v8232
    %v8260 = vpack.c.b16 %v8235, %v8234
    %v8261 = vpack.c.b16 %v8237, %v8236
    %v8262 = vpack.c.b16 %v8239, %v8238
    %v8263 = vpack.c.b16 %v8241, %v8240
    %v8264 = vpack.c.b16 %v8243, %v8242
    %v8265 = vpack.c.b16 %v8245, %v8244
    %v8287 = vsel %vm3358, %v8124, 0
    %8289 = vmatprep.subr.bf16.mxu0 0
    %8290 = vmatpush1.bf16.msra.mxu0 %v8253
    %8291 = vmatprep.subr.bf16.mxu0 0
    %8292 = vmatpush1.bf16.msra.mxu0 %v8252
    %8293 = vmatprep.subr.bf16.mxu0 0
    %8294 = vmatpush1.bf16.msra.mxu0 %v8251
    %8295 = vmatprep.subr.bf16.mxu0 0
    %8296 = vmatpush1.bf16.msra.mxu0 %v8250
    %8297 = vmatprep.subr.bf16.mxu0 0
    %8298 = vmatpush1.bf16.msra.mxu0 %v8249
    %8299 = vmatprep.subr.bf16.mxu0 0
    %8300 = vmatpush1.bf16.msra.mxu0 %v8248
    %8301 = vmatprep.subr.bf16.mxu0 0
    %8302 = vmatpush1.bf16.msra.mxu0 %v8247
    %8303 = vmatprep.subr.bf16.mxu0 0
    %8304 = vmatpush1.bf16.msra.mxu0 %v8246
    %8305 = vmatprep.subr.bf16.mxu0 0
    %8306 = vmatpush2.bf16.msra.mxu0 %v8261
    %8307 = vmatprep.subr.bf16.mxu0 0
    %8308 = vmatpush2.bf16.msra.mxu0 %v8260
    %8309 = vmatprep.subr.bf16.mxu0 0
    %8310 = vmatpush2.bf16.msra.mxu0 %v8259
    %8311 = vmatprep.subr.bf16.mxu0 0
    %8312 = vmatpush2.bf16.msra.mxu0 %v8258
    %8313 = vmatprep.subr.bf16.mxu0 0
    %8314 = vmatpush2.bf16.msra.mxu0 %v8257
    %8315 = vmatprep.subr.bf16.mxu0 0
    %8316 = vmatpush2.bf16.msra.mxu0 %v8256
    %8317 = vmatprep.subr.bf16.mxu0 0
    %8318 = vmatpush2.bf16.msra.mxu0 %v8255
    %8319 = vmatprep.subr.bf16.mxu0 0
    %8320 = vmatpush2.bf16.msra.mxu0 %v8254
    %8321 = vmatprep.mubr.bf16.mxu0 %v8123
    %8322 = vmatmul.mubr.bf16.gmra.mxu0 %v8122
    %v8323 = vpop.f32.mrf.mxu0
    %v8324 = vadd.f32 0.0, %v8323
    %v8325 = vpop.f32.mrf.mxu0
    %v8326 = vpop.f32.mrf.mxu0
    %v8327 = vpop.f32.mrf.mxu0
    %8328 = vdwg.mxu0
    %8329 = vmatprep.subr.bf16.mxu0 0
    %8330 = vmatpush1.bf16.msra.mxu0 0
    %8331 = vmatprep.subr.bf16.mxu0 0
    %8332 = vmatpush1.bf16.msra.mxu0 0
    %8333 = vmatprep.subr.bf16.mxu0 0
    %8334 = vmatpush1.bf16.msra.mxu0 0
    %8335 = vmatprep.subr.bf16.mxu0 0
    %8336 = vmatpush1.bf16.msra.mxu0 0
    %8337 = vmatprep.subr.bf16.mxu0 0
    %8338 = vmatpush1.bf16.msra.mxu0 %v8265
    %8339 = vmatprep.subr.bf16.mxu0 0
    %8340 = vmatpush1.bf16.msra.mxu0 %v8264
    %8341 = vmatprep.subr.bf16.mxu0 0
    %8342 = vmatpush1.bf16.msra.mxu0 %v8263
    %8343 = vmatprep.subr.bf16.mxu0 0
    %8344 = vmatpush1.bf16.msra.mxu0 %v8262
    %8345 = vmatprep.subr.bf16.mxu0 0
    %8346 = vmatpush2.bf16.msra.mxu0 0
    %8347 = vmatprep.subr.bf16.mxu0 0
    %8348 = vmatpush2.bf16.msra.mxu0 0
    %8349 = vmatprep.subr.bf16.mxu0 0
    %8350 = vmatpush2.bf16.msra.mxu0 0
    %8351 = vmatprep.subr.bf16.mxu0 0
    %8352 = vmatpush2.bf16.msra.mxu0 0
    %8353 = vmatprep.subr.bf16.mxu0 0
    %8354 = vmatpush2.bf16.msra.mxu0 0
    %8355 = vmatprep.subr.bf16.mxu0 0
    %8356 = vmatpush2.bf16.msra.mxu0 0
    %8357 = vmatprep.subr.bf16.mxu0 0
    %8358 = vmatpush2.bf16.msra.mxu0 0
    %8359 = vmatprep.subr.bf16.mxu0 0
    %8360 = vmatpush2.bf16.msra.mxu0 0
    %8361 = vmatprep.mubr.bf16.mxu0 0
    %8362 = vmatmul.mubr.bf16.gmra.mxu0 %v8287
    %v8363 = vpop.f32.mrf.mxu0
    %v8364 = vadd.f32 %v8324, %v8363
    %v8365 = vpop.f32.mrf.mxu0
    %v8366 = vpop.f32.mrf.mxu0
    %v8367 = vpop.f32.mrf.mxu0
    %8368 = vdwg.mxu0
    %v8369 = vadd.f32 %v8118, %v8364
    %v8370 = vld [vmem:[#allocation4 + $0x48] sm:$0xc0]
    %v8371 = vld [vmem:[#allocation4 + $0x50] sm:$0xc0]
    %v8372 = vld [vmem:[#allocation4 + $0x58] sm:$0xc0]
    %v8373 = vld [vmem:[#allocation4 + $0x60] sm:$0xf]
    %v8374 = vld [vmem:[#allocation4 + $0x68] sm:$0xf]
    %v8375 = vld [vmem:[#allocation4 + $0x70] sm:$0xf]
    %v8376 = vpack.c.bf16 %v8373, %v8370
    %v8377 = vpack.c.bf16 %v8374, %v8371
    %v8378 = vpack.c.bf16 %v8375, %v8372
    %s8379 = scalar_lea.vmem [#allocation5], 800
    %v8380 = vld [vmem:[%s8379] sm:$0xf]
    %v8381 = vld [vmem:[%s8379 + $0x4] sm:$0xf]
    %v8382 = vld [vmem:[%s8379 + $0x8] sm:$0xf]
    %v8383 = vld [vmem:[%s8379 + $0xc] sm:$0xf]
    %v8384 = vld [vmem:[%s8379 + $0x10] sm:$0xf]
    %v8385 = vld [vmem:[%s8379 + $0x14] sm:$0xf]
    %v8386 = vld [vmem:[%s8379 + $0x18] sm:$0xf]
    %v8387 = vld [vmem:[%s8379 + $0x1c] sm:$0xf]
    %v8388 = vld [vmem:[%s8379 + $0x20] sm:$0xf]
    %v8389 = vld [vmem:[%s8379 + $0x24] sm:$0xf]
    %v8390 = vld [vmem:[%s8379 + $0x28] sm:$0xf]
    %v8391 = vld [vmem:[%s8379 + $0x2c] sm:$0xf]
    %v8392 = vld [vmem:[%s8379 + $0x30] sm:$0xf]
    %v8393 = vld [vmem:[%s8379 + $0x34] sm:$0xf]
    %v8394 = vld [vmem:[%s8379 + $0x38] sm:$0xf]
    %v8395 = vld [vmem:[%s8379 + $0x3c] sm:$0xf]
    %v8396 = vld [vmem:[%s8379 + $0x40] sm:$0xf]
    %v8397 = vld [vmem:[%s8379 + $0x44] sm:$0xf]
    %v8398 = vld [vmem:[%s8379 + $0x48] sm:$0xf]
    %v8399 = vld [vmem:[%s8379 + $0x4c] sm:$0xf]
    %v8400 = vld [vmem:[%s8379 + $0x50] sm:$0xf]
    %v8401 = vld [vmem:[%s8379 + $0x54] sm:$0xf]
    %v8402 = vld [vmem:[%s8379 + $0x58] sm:$0xf]
    %v8403 = vld [vmem:[%s8379 + $0x5c] sm:$0xf]
    %v8404 = vld [vmem:[%s8379 + $0x60] sm:$0xf]
    %v8405 = vld [vmem:[%s8379 + $0x64] sm:$0xf]
    %v8406 = vld [vmem:[%s8379 + $0x68] sm:$0xf]
    %v8407 = vld [vmem:[%s8379 + $0x6c] sm:$0xf]
    %v8408 = vld [vmem:[%s8379 + $0x70] sm:$0xf]
    %v8409 = vld [vmem:[%s8379 + $0x74] sm:$0xf]
    %v8410 = vld [vmem:[%s8379 + $0x78] sm:$0xf]
    %v8411 = vld [vmem:[%s8379 + $0x7c] sm:$0xf]
    %v8412 = vld [vmem:[%s8379 + $0x80] sm:$0xf]
    %v8413 = vld [vmem:[%s8379 + $0x84] sm:$0xf]
    %v8414 = vld [vmem:[%s8379 + $0x88] sm:$0xf]
    %v8415 = vld [vmem:[%s8379 + $0x8c] sm:$0xf]
    %v8416 = vld [vmem:[%s8379 + $0x90] sm:$0xf]
    %v8417 = vld [vmem:[%s8379 + $0x94] sm:$0xf]
    %v8418 = vld [vmem:[%s8379 + $0x98] sm:$0xf]
    %v8419 = vld [vmem:[%s8379 + $0x9c] sm:$0xf]
    %v8423 = vrot.slane %v8376, 3
    %v8424 = vrot.slane %v8377, 3
    %v8425 = vrot.slane %v8378, 3
    %v8468 = vunpack.c.l.b16 %v8380
    %v8469 = vunpack.c.l.b16 %v8381
    %v8470 = vunpack.c.l.b16 %v8382
    %v8471 = vunpack.c.l.b16 %v8383
    %v8472 = vunpack.c.l.b16 %v8384
    %v8473 = vunpack.c.l.b16 %v8385
    %v8474 = vunpack.c.l.b16 %v8386
    %v8475 = vunpack.c.l.b16 %v8387
    %v8476 = vunpack.c.l.b16 %v8388
    %v8477 = vunpack.c.l.b16 %v8389
    %v8478 = vunpack.c.l.b16 %v8390
    %v8479 = vunpack.c.l.b16 %v8391
    %v8480 = vunpack.c.l.b16 %v8392
    %v8481 = vunpack.c.l.b16 %v8393
    %v8482 = vunpack.c.l.b16 %v8394
    %v8483 = vunpack.c.l.b16 %v8395
    %v8484 = vunpack.c.l.b16 %v8396
    %v8485 = vunpack.c.l.b16 %v8397
    %v8486 = vunpack.c.l.b16 %v8398
    %v8487 = vunpack.c.l.b16 %v8399
    %v8488 = vunpack.c.l.b16 %v8400
    %v8489 = vunpack.c.l.b16 %v8401
    %v8490 = vunpack.c.l.b16 %v8402
    %v8491 = vunpack.c.l.b16 %v8403
    %v8492 = vunpack.c.l.b16 %v8404
    %v8493 = vunpack.c.l.b16 %v8405
    %v8494 = vunpack.c.l.b16 %v8406
    %v8495 = vunpack.c.l.b16 %v8407
    %v8496 = vunpack.c.l.b16 %v8408
    %v8497 = vunpack.c.l.b16 %v8409
    %v8498 = vunpack.c.l.b16 %v8410
    %v8499 = vunpack.c.l.b16 %v8411
    %v8500 = vunpack.c.l.b16 %v8412
    %v8501 = vunpack.c.l.b16 %v8413
    %v8502 = vunpack.c.l.b16 %v8414
    %v8503 = vunpack.c.l.b16 %v8415
    %v8504 = vunpack.c.l.b16 %v8416
    %v8505 = vunpack.c.l.b16 %v8417
    %v8506 = vunpack.c.l.b16 %v8418
    %v8507 = vunpack.c.l.b16 %v8419
    %v8508 = vpack.c.b16 %v8469, %v8468
    %v8509 = vpack.c.b16 %v8471, %v8470
    %v8510 = vpack.c.b16 %v8473, %v8472
    %v8511 = vpack.c.b16 %v8475, %v8474
    %v8512 = vpack.c.b16 %v8477, %v8476
    %v8513 = vpack.c.b16 %v8479, %v8478
    %v8514 = vpack.c.b16 %v8481, %v8480
    %v8515 = vpack.c.b16 %v8483, %v8482
    %v8516 = vpack.c.b16 %v8485, %v8484
    %v8517 = vpack.c.b16 %v8487, %v8486
    %v8518 = vpack.c.b16 %v8489, %v8488
    %v8519 = vpack.c.b16 %v8491, %v8490
    %v8520 = vpack.c.b16 %v8493, %v8492
    %v8521 = vpack.c.b16 %v8495, %v8494
    %v8522 = vpack.c.b16 %v8497, %v8496
    %v8523 = vpack.c.b16 %v8499, %v8498
    %v8524 = vpack.c.b16 %v8501, %v8500
    %v8525 = vpack.c.b16 %v8503, %v8502
    %v8526 = vpack.c.b16 %v8505, %v8504
    %v8527 = vpack.c.b16 %v8507, %v8506
    %v8549 = vsel %vm3358, %v8425, 0
    %8551 = vmatprep.subr.bf16.mxu0 0
    %8552 = vmatpush1.bf16.msra.mxu0 %v8515
    %8553 = vmatprep.subr.bf16.mxu0 0
    %8554 = vmatpush1.bf16.msra.mxu0 %v8514
    %8555 = vmatprep.subr.bf16.mxu0 0
    %8556 = vmatpush1.bf16.msra.mxu0 %v8513
    %8557 = vmatprep.subr.bf16.mxu0 0
    %8558 = vmatpush1.bf16.msra.mxu0 %v8512
    %8559 = vmatprep.subr.bf16.mxu0 0
    %8560 = vmatpush1.bf16.msra.mxu0 %v8511
    %8561 = vmatprep.subr.bf16.mxu0 0
    %8562 = vmatpush1.bf16.msra.mxu0 %v8510
    %8563 = vmatprep.subr.bf16.mxu0 0
    %8564 = vmatpush1.bf16.msra.mxu0 %v8509
    %8565 = vmatprep.subr.bf16.mxu0 0
    %8566 = vmatpush1.bf16.msra.mxu0 %v8508
    %8567 = vmatprep.subr.bf16.mxu0 0
    %8568 = vmatpush2.bf16.msra.mxu0 %v8523
    %8569 = vmatprep.subr.bf16.mxu0 0
    %8570 = vmatpush2.bf16.msra.mxu0 %v8522
    %8571 = vmatprep.subr.bf16.mxu0 0
    %8572 = vmatpush2.bf16.msra.mxu0 %v8521
    %8573 = vmatprep.subr.bf16.mxu0 0
    %8574 = vmatpush2.bf16.msra.mxu0 %v8520
    %8575 = vmatprep.subr.bf16.mxu0 0
    %8576 = vmatpush2.bf16.msra.mxu0 %v8519
    %8577 = vmatprep.subr.bf16.mxu0 0
    %8578 = vmatpush2.bf16.msra.mxu0 %v8518
    %8579 = vmatprep.subr.bf16.mxu0 0
    %8580 = vmatpush2.bf16.msra.mxu0 %v8517
    %8581 = vmatprep.subr.bf16.mxu0 0
    %8582 = vmatpush2.bf16.msra.mxu0 %v8516
    %8583 = vmatprep.mubr.bf16.mxu0 %v8424
    %8584 = vmatmul.mubr.bf16.gmra.mxu0 %v8423
    %v8585 = vpop.f32.mrf.mxu0
    %v8586 = vadd.f32 0.0, %v8585
    %v8587 = vpop.f32.mrf.mxu0
    %v8588 = vpop.f32.mrf.mxu0
    %v8589 = vpop.f32.mrf.mxu0
    %8590 = vdwg.mxu0
    %8591 = vmatprep.subr.bf16.mxu0 0
    %8592 = vmatpush1.bf16.msra.mxu0 0
    %8593 = vmatprep.subr.bf16.mxu0 0
    %8594 = vmatpush1.bf16.msra.mxu0 0
    %8595 = vmatprep.subr.bf16.mxu0 0
    %8596 = vmatpush1.bf16.msra.mxu0 0
    %8597 = vmatprep.subr.bf16.mxu0 0
    %8598 = vmatpush1.bf16.msra.mxu0 0
    %8599 = vmatprep.subr.bf16.mxu0 0
    %8600 = vmatpush1.bf16.msra.mxu0 %v8527
    %8601 = vmatprep.subr.bf16.mxu0 0
    %8602 = vmatpush1.bf16.msra.mxu0 %v8526
    %8603 = vmatprep.subr.bf16.mxu0 0
    %8604 = vmatpush1.bf16.msra.mxu0 %v8525
    %8605 = vmatprep.subr.bf16.mxu0 0
    %8606 = vmatpush1.bf16.msra.mxu0 %v8524
    %8607 = vmatprep.subr.bf16.mxu0 0
    %8608 = vmatpush2.bf16.msra.mxu0 0
    %8609 = vmatprep.subr.bf16.mxu0 0
    %8610 = vmatpush2.bf16.msra.mxu0 0
    %8611 = vmatprep.subr.bf16.mxu0 0
    %8612 = vmatpush2.bf16.msra.mxu0 0
    %8613 = vmatprep.subr.bf16.mxu0 0
    %8614 = vmatpush2.bf16.msra.mxu0 0
    %8615 = vmatprep.subr.bf16.mxu0 0
    %8616 = vmatpush2.bf16.msra.mxu0 0
    %8617 = vmatprep.subr.bf16.mxu0 0
    %8618 = vmatpush2.bf16.msra.mxu0 0
    %8619 = vmatprep.subr.bf16.mxu0 0
    %8620 = vmatpush2.bf16.msra.mxu0 0
    %8621 = vmatprep.subr.bf16.mxu0 0
    %8622 = vmatpush2.bf16.msra.mxu0 0
    %8623 = vmatprep.mubr.bf16.mxu0 0
    %8624 = vmatmul.mubr.bf16.gmra.mxu0 %v8549
    %v8625 = vpop.f32.mrf.mxu0
    %v8626 = vadd.f32 %v8586, %v8625
    %v8627 = vpop.f32.mrf.mxu0
    %v8628 = vpop.f32.mrf.mxu0
    %v8629 = vpop.f32.mrf.mxu0
    %8630 = vdwg.mxu0
    %v8631 = vadd.f32 %v8369, %v8626
    %v8632 = vld [vmem:[#allocation4 + $0x60] sm:$0xf0]
    %v8633 = vld [vmem:[#allocation4 + $0x68] sm:$0xf0]
    %v8634 = vld [vmem:[#allocation4 + $0x70] sm:$0xf0]
    %v8635 = vld [vmem:[#allocation4 + $0x78] sm:$0x3]
    %v8636 = vld [vmem:[#allocation4 + $0x80] sm:$0x3]
    %v8637 = vld [vmem:[#allocation4 + $0x88] sm:$0x3]
    %v8638 = vpack.c.bf16 %v8635, %v8632
    %v8639 = vpack.c.bf16 %v8636, %v8633
    %v8640 = vpack.c.bf16 %v8637, %v8634
    %s8641 = scalar_lea.vmem [#allocation5], 960
    %v8642 = vld [vmem:[%s8641] sm:$0xf]
    %v8643 = vld [vmem:[%s8641 + $0x4] sm:$0xf]
    %v8644 = vld [vmem:[%s8641 + $0x8] sm:$0xf]
    %v8645 = vld [vmem:[%s8641 + $0xc] sm:$0xf]
    %v8646 = vld [vmem:[%s8641 + $0x10] sm:$0xf]
    %v8647 = vld [vmem:[%s8641 + $0x14] sm:$0xf]
    %v8648 = vld [vmem:[%s8641 + $0x18] sm:$0xf]
    %v8649 = vld [vmem:[%s8641 + $0x1c] sm:$0xf]
    %v8650 = vld [vmem:[%s8641 + $0x20] sm:$0xf]
    %v8651 = vld [vmem:[%s8641 + $0x24] sm:$0xf]
    %v8652 = vld [vmem:[%s8641 + $0x28] sm:$0xf]
    %v8653 = vld [vmem:[%s8641 + $0x2c] sm:$0xf]
    %v8654 = vld [vmem:[%s8641 + $0x30] sm:$0xf]
    %v8655 = vld [vmem:[%s8641 + $0x34] sm:$0xf]
    %v8656 = vld [vmem:[%s8641 + $0x38] sm:$0xf]
    %v8657 = vld [vmem:[%s8641 + $0x3c] sm:$0xf]
    %v8658 = vld [vmem:[%s8641 + $0x40] sm:$0xf]
    %v8659 = vld [vmem:[%s8641 + $0x44] sm:$0xf]
    %v8660 = vld [vmem:[%s8641 + $0x48] sm:$0xf]
    %v8661 = vld [vmem:[%s8641 + $0x4c] sm:$0xf]
    %v8662 = vld [vmem:[%s8641 + $0x50] sm:$0xf]
    %v8663 = vld [vmem:[%s8641 + $0x54] sm:$0xf]
    %v8664 = vld [vmem:[%s8641 + $0x58] sm:$0xf]
    %v8665 = vld [vmem:[%s8641 + $0x5c] sm:$0xf]
    %v8666 = vld [vmem:[%s8641 + $0x60] sm:$0xf]
    %v8667 = vld [vmem:[%s8641 + $0x64] sm:$0xf]
    %v8668 = vld [vmem:[%s8641 + $0x68] sm:$0xf]
    %v8669 = vld [vmem:[%s8641 + $0x6c] sm:$0xf]
    %v8670 = vld [vmem:[%s8641 + $0x70] sm:$0xf]
    %v8671 = vld [vmem:[%s8641 + $0x74] sm:$0xf]
    %v8672 = vld [vmem:[%s8641 + $0x78] sm:$0xf]
    %v8673 = vld [vmem:[%s8641 + $0x7c] sm:$0xf]
    %v8674 = vld [vmem:[%s8641 + $0x80] sm:$0xf]
    %v8675 = vld [vmem:[%s8641 + $0x84] sm:$0xf]
    %v8676 = vld [vmem:[%s8641 + $0x88] sm:$0xf]
    %v8677 = vld [vmem:[%s8641 + $0x8c] sm:$0xf]
    %v8678 = vld [vmem:[%s8641 + $0x90] sm:$0xf]
    %v8679 = vld [vmem:[%s8641 + $0x94] sm:$0xf]
    %v8680 = vld [vmem:[%s8641 + $0x98] sm:$0xf]
    %v8681 = vld [vmem:[%s8641 + $0x9c] sm:$0xf]
    %v8685 = vrot.slane %v8638, 2
    %v8686 = vrot.slane %v8639, 2
    %v8687 = vrot.slane %v8640, 2
    %v8730 = vunpack.c.l.b16 %v8642
    %v8731 = vunpack.c.l.b16 %v8643
    %v8732 = vunpack.c.l.b16 %v8644
    %v8733 = vunpack.c.l.b16 %v8645
    %v8734 = vunpack.c.l.b16 %v8646
    %v8735 = vunpack.c.l.b16 %v8647
    %v8736 = vunpack.c.l.b16 %v8648
    %v8737 = vunpack.c.l.b16 %v8649
    %v8738 = vunpack.c.l.b16 %v8650
    %v8739 = vunpack.c.l.b16 %v8651
    %v8740 = vunpack.c.l.b16 %v8652
    %v8741 = vunpack.c.l.b16 %v8653
    %v8742 = vunpack.c.l.b16 %v8654
    %v8743 = vunpack.c.l.b16 %v8655
    %v8744 = vunpack.c.l.b16 %v8656
    %v8745 = vunpack.c.l.b16 %v8657
    %v8746 = vunpack.c.l.b16 %v8658
    %v8747 = vunpack.c.l.b16 %v8659
    %v8748 = vunpack.c.l.b16 %v8660
    %v8749 = vunpack.c.l.b16 %v8661
    %v8750 = vunpack.c.l.b16 %v8662
    %v8751 = vunpack.c.l.b16 %v8663
    %v8752 = vunpack.c.l.b16 %v8664
    %v8753 = vunpack.c.l.b16 %v8665
    %v8754 = vunpack.c.l.b16 %v8666
    %v8755 = vunpack.c.l.b16 %v8667
    %v8756 = vunpack.c.l.b16 %v8668
    %v8757 = vunpack.c.l.b16 %v8669
    %v8758 = vunpack.c.l.b16 %v8670
    %v8759 = vunpack.c.l.b16 %v8671
    %v8760 = vunpack.c.l.b16 %v8672
    %v8761 = vunpack.c.l.b16 %v8673
    %v8762 = vunpack.c.l.b16 %v8674
    %v8763 = vunpack.c.l.b16 %v8675
    %v8764 = vunpack.c.l.b16 %v8676
    %v8765 = vunpack.c.l.b16 %v8677
    %v8766 = vunpack.c.l.b16 %v8678
    %v8767 = vunpack.c.l.b16 %v8679
    %v8768 = vunpack.c.l.b16 %v8680
    %v8769 = vunpack.c.l.b16 %v8681
    %v8770 = vpack.c.b16 %v8731, %v8730
    %v8771 = vpack.c.b16 %v8733, %v8732
    %v8772 = vpack.c.b16 %v8735, %v8734
    %v8773 = vpack.c.b16 %v8737, %v8736
    %v8774 = vpack.c.b16 %v8739, %v8738
    %v8775 = vpack.c.b16 %v8741, %v8740
    %v8776 = vpack.c.b16 %v8743, %v8742
    %v8777 = vpack.c.b16 %v8745, %v8744
    %v8778 = vpack.c.b16 %v8747, %v8746
    %v8779 = vpack.c.b16 %v8749, %v8748
    %v8780 = vpack.c.b16 %v8751, %v8750
    %v8781 = vpack.c.b16 %v8753, %v8752
    %v8782 = vpack.c.b16 %v8755, %v8754
    %v8783 = vpack.c.b16 %v8757, %v8756
    %v8784 = vpack.c.b16 %v8759, %v8758
    %v8785 = vpack.c.b16 %v8761, %v8760
    %v8786 = vpack.c.b16 %v8763, %v8762
    %v8787 = vpack.c.b16 %v8765, %v8764
    %v8788 = vpack.c.b16 %v8767, %v8766
    %v8789 = vpack.c.b16 %v8769, %v8768
    %v8811 = vsel %vm3358, %v8687, 0
    %8813 = vmatprep.subr.bf16.mxu0 0
    %8814 = vmatpush1.bf16.msra.mxu0 %v8777
    %8815 = vmatprep.subr.bf16.mxu0 0
    %8816 = vmatpush1.bf16.msra.mxu0 %v8776
    %8817 = vmatprep.subr.bf16.mxu0 0
    %8818 = vmatpush1.bf16.msra.mxu0 %v8775
    %8819 = vmatprep.subr.bf16.mxu0 0
    %8820 = vmatpush1.bf16.msra.mxu0 %v8774
    %8821 = vmatprep.subr.bf16.mxu0 0
    %8822 = vmatpush1.bf16.msra.mxu0 %v8773
    %8823 = vmatprep.subr.bf16.mxu0 0
    %8824 = vmatpush1.bf16.msra.mxu0 %v8772
    %8825 = vmatprep.subr.bf16.mxu0 0
    %8826 = vmatpush1.bf16.msra.mxu0 %v8771
    %8827 = vmatprep.subr.bf16.mxu0 0
    %8828 = vmatpush1.bf16.msra.mxu0 %v8770
    %8829 = vmatprep.subr.bf16.mxu0 0
    %8830 = vmatpush2.bf16.msra.mxu0 %v8785
    %8831 = vmatprep.subr.bf16.mxu0 0
    %8832 = vmatpush2.bf16.msra.mxu0 %v8784
    %8833 = vmatprep.subr.bf16.mxu0 0
    %8834 = vmatpush2.bf16.msra.mxu0 %v8783
    %8835 = vmatprep.subr.bf16.mxu0 0
    %8836 = vmatpush2.bf16.msra.mxu0 %v8782
    %8837 = vmatprep.subr.bf16.mxu0 0
    %8838 = vmatpush2.bf16.msra.mxu0 %v8781
    %8839 = vmatprep.subr.bf16.mxu0 0
    %8840 = vmatpush2.bf16.msra.mxu0 %v8780
    %8841 = vmatprep.subr.bf16.mxu0 0
    %8842 = vmatpush2.bf16.msra.mxu0 %v8779
    %8843 = vmatprep.subr.bf16.mxu0 0
    %8844 = vmatpush2.bf16.msra.mxu0 %v8778
    %8845 = vmatprep.mubr.bf16.mxu0 %v8686
    %8846 = vmatmul.mubr.bf16.gmra.mxu0 %v8685
    %v8847 = vpop.f32.mrf.mxu0
    %v8848 = vadd.f32 0.0, %v8847
    %v8849 = vpop.f32.mrf.mxu0
    %v8850 = vpop.f32.mrf.mxu0
    %v8851 = vpop.f32.mrf.mxu0
    %8852 = vdwg.mxu0
    %8853 = vmatprep.subr.bf16.mxu0 0
    %8854 = vmatpush1.bf16.msra.mxu0 0
    %8855 = vmatprep.subr.bf16.mxu0 0
    %8856 = vmatpush1.bf16.msra.mxu0 0
    %8857 = vmatprep.subr.bf16.mxu0 0
    %8858 = vmatpush1.bf16.msra.mxu0 0
    %8859 = vmatprep.subr.bf16.mxu0 0
    %8860 = vmatpush1.bf16.msra.mxu0 0
    %8861 = vmatprep.subr.bf16.mxu0 0
    %8862 = vmatpush1.bf16.msra.mxu0 %v8789
    %8863 = vmatprep.subr.bf16.mxu0 0
    %8864 = vmatpush1.bf16.msra.mxu0 %v8788
    %8865 = vmatprep.subr.bf16.mxu0 0
    %8866 = vmatpush1.bf16.msra.mxu0 %v8787
    %8867 = vmatprep.subr.bf16.mxu0 0
    %8868 = vmatpush1.bf16.msra.mxu0 %v8786
    %8869 = vmatprep.subr.bf16.mxu0 0
    %8870 = vmatpush2.bf16.msra.mxu0 0
    %8871 = vmatprep.subr.bf16.mxu0 0
    %8872 = vmatpush2.bf16.msra.mxu0 0
    %8873 = vmatprep.subr.bf16.mxu0 0
    %8874 = vmatpush2.bf16.msra.mxu0 0
    %8875 = vmatprep.subr.bf16.mxu0 0
    %8876 = vmatpush2.bf16.msra.mxu0 0
    %8877 = vmatprep.subr.bf16.mxu0 0
    %8878 = vmatpush2.bf16.msra.mxu0 0
    %8879 = vmatprep.subr.bf16.mxu0 0
    %8880 = vmatpush2.bf16.msra.mxu0 0
    %8881 = vmatprep.subr.bf16.mxu0 0
    %8882 = vmatpush2.bf16.msra.mxu0 0
    %8883 = vmatprep.subr.bf16.mxu0 0
    %8884 = vmatpush2.bf16.msra.mxu0 0
    %8885 = vmatprep.mubr.bf16.mxu0 0
    %8886 = vmatmul.mubr.bf16.gmra.mxu0 %v8811
    %v8887 = vpop.f32.mrf.mxu0
    %v8888 = vadd.f32 %v8848, %v8887
    %v8889 = vpop.f32.mrf.mxu0
    %v8890 = vpop.f32.mrf.mxu0
    %v8891 = vpop.f32.mrf.mxu0
    %8892 = vdwg.mxu0
    %v8893 = vadd.f32 %v8631, %v8888
    %v8894 = vld [vmem:[#allocation4 + $0x78] sm:$0xfc]
    %v8895 = vld [vmem:[#allocation4 + $0x80] sm:$0xfc]
    %v8896 = vld [vmem:[#allocation4 + $0x88] sm:$0xfc]
    %v8897 = vpack.c.bf16 %v8894, %v8894
    %v8898 = vpack.c.bf16 %v8895, %v8895
    %v8899 = vpack.c.bf16 %v8896, %v8896
    %s8900 = scalar_lea.vmem [#allocation5], 1120
    %v8901 = vld [vmem:[%s8900] sm:$0xf]
    %v8902 = vld [vmem:[%s8900 + $0x4] sm:$0xf]
    %v8903 = vld [vmem:[%s8900 + $0x8] sm:$0xf]
    %v8904 = vld [vmem:[%s8900 + $0xc] sm:$0xf]
    %v8905 = vld [vmem:[%s8900 + $0x10] sm:$0xf]
    %v8906 = vld [vmem:[%s8900 + $0x14] sm:$0xf]
    %v8907 = vld [vmem:[%s8900 + $0x18] sm:$0xf]
    %v8908 = vld [vmem:[%s8900 + $0x1c] sm:$0xf]
    %v8909 = vld [vmem:[%s8900 + $0x20] sm:$0xf]
    %v8910 = vld [vmem:[%s8900 + $0x24] sm:$0xf]
    %v8911 = vld [vmem:[%s8900 + $0x28] sm:$0xf]
    %v8912 = vld [vmem:[%s8900 + $0x2c] sm:$0xf]
    %v8913 = vld [vmem:[%s8900 + $0x30] sm:$0xf]
    %v8914 = vld [vmem:[%s8900 + $0x34] sm:$0xf]
    %v8915 = vld [vmem:[%s8900 + $0x38] sm:$0xf]
    %v8916 = vld [vmem:[%s8900 + $0x3c] sm:$0xf]
    %v8917 = vld [vmem:[%s8900 + $0x40] sm:$0xf]
    %v8918 = vld [vmem:[%s8900 + $0x44] sm:$0xf]
    %v8919 = vld [vmem:[%s8900 + $0x48] sm:$0xf]
    %v8920 = vld [vmem:[%s8900 + $0x4c] sm:$0xf]
    %v8921 = vld [vmem:[%s8900 + $0x50] sm:$0xf]
    %v8922 = vld [vmem:[%s8900 + $0x54] sm:$0xf]
    %v8923 = vld [vmem:[%s8900 + $0x58] sm:$0xf]
    %v8924 = vld [vmem:[%s8900 + $0x5c] sm:$0xf]
    %v8925 = vld [vmem:[%s8900 + $0x60] sm:$0xf]
    %v8926 = vld [vmem:[%s8900 + $0x64] sm:$0xf]
    %v8927 = vld [vmem:[%s8900 + $0x68] sm:$0xf]
    %v8928 = vld [vmem:[%s8900 + $0x6c] sm:$0xf]
    %v8929 = vld [vmem:[%s8900 + $0x70] sm:$0xf]
    %v8930 = vld [vmem:[%s8900 + $0x74] sm:$0xf]
    %v8931 = vld [vmem:[%s8900 + $0x78] sm:$0xf]
    %v8932 = vld [vmem:[%s8900 + $0x7c] sm:$0xf]
    %v8933 = vld [vmem:[%s8900 + $0x80] sm:$0xf]
    %v8934 = vld [vmem:[%s8900 + $0x84] sm:$0xf]
    %v8935 = vld [vmem:[%s8900 + $0x88] sm:$0xf]
    %v8936 = vld [vmem:[%s8900 + $0x8c] sm:$0xf]
    %v8937 = vld [vmem:[%s8900 + $0x90] sm:$0xf]
    %v8938 = vld [vmem:[%s8900 + $0x94] sm:$0xf]
    %v8939 = vld [vmem:[%s8900 + $0x98] sm:$0xf]
    %v8940 = vld [vmem:[%s8900 + $0x9c] sm:$0xf]
    %v8944 = vrot.slane %v8897, 1
    %v8945 = vrot.slane %v8898, 1
    %v8946 = vrot.slane %v8899, 1
    %v8989 = vunpack.c.l.b16 %v8901
    %v8990 = vunpack.c.l.b16 %v8902
    %v8991 = vunpack.c.l.b16 %v8903
    %v8992 = vunpack.c.l.b16 %v8904
    %v8993 = vunpack.c.l.b16 %v8905
    %v8994 = vunpack.c.l.b16 %v8906
    %v8995 = vunpack.c.l.b16 %v8907
    %v8996 = vunpack.c.l.b16 %v8908
    %v8997 = vunpack.c.l.b16 %v8909
    %v8998 = vunpack.c.l.b16 %v8910
    %v8999 = vunpack.c.l.b16 %v8911
    %v9000 = vunpack.c.l.b16 %v8912
    %v9001 = vunpack.c.l.b16 %v8913
    %v9002 = vunpack.c.l.b16 %v8914
    %v9003 = vunpack.c.l.b16 %v8915
    %v9004 = vunpack.c.l.b16 %v8916
    %v9005 = vunpack.c.l.b16 %v8917
    %v9006 = vunpack.c.l.b16 %v8918
    %v9007 = vunpack.c.l.b16 %v8919
    %v9008 = vunpack.c.l.b16 %v8920
    %v9009 = vunpack.c.l.b16 %v8921
    %v9010 = vunpack.c.l.b16 %v8922
    %v9011 = vunpack.c.l.b16 %v8923
    %v9012 = vunpack.c.l.b16 %v8924
    %v9013 = vunpack.c.l.b16 %v8925
    %v9014 = vunpack.c.l.b16 %v8926
    %v9015 = vunpack.c.l.b16 %v8927
    %v9016 = vunpack.c.l.b16 %v8928
    %v9017 = vunpack.c.l.b16 %v8929
    %v9018 = vunpack.c.l.b16 %v8930
    %v9019 = vunpack.c.l.b16 %v8931
    %v9020 = vunpack.c.l.b16 %v8932
    %v9021 = vunpack.c.l.b16 %v8933
    %v9022 = vunpack.c.l.b16 %v8934
    %v9023 = vunpack.c.l.b16 %v8935
    %v9024 = vunpack.c.l.b16 %v8936
    %v9025 = vunpack.c.l.b16 %v8937
    %v9026 = vunpack.c.l.b16 %v8938
    %v9027 = vunpack.c.l.b16 %v8939
    %v9028 = vunpack.c.l.b16 %v8940
    %v9029 = vpack.c.b16 %v8990, %v8989
    %v9030 = vpack.c.b16 %v8992, %v8991
    %v9031 = vpack.c.b16 %v8994, %v8993
    %v9032 = vpack.c.b16 %v8996, %v8995
    %v9033 = vpack.c.b16 %v8998, %v8997
    %v9034 = vpack.c.b16 %v9000, %v8999
    %v9035 = vpack.c.b16 %v9002, %v9001
    %v9036 = vpack.c.b16 %v9004, %v9003
    %v9037 = vpack.c.b16 %v9006, %v9005
    %v9038 = vpack.c.b16 %v9008, %v9007
    %v9039 = vpack.c.b16 %v9010, %v9009
    %v9040 = vpack.c.b16 %v9012, %v9011
    %v9041 = vpack.c.b16 %v9014, %v9013
    %v9042 = vpack.c.b16 %v9016, %v9015
    %v9043 = vpack.c.b16 %v9018, %v9017
    %v9044 = vpack.c.b16 %v9020, %v9019
    %v9045 = vpack.c.b16 %v9022, %v9021
    %v9046 = vpack.c.b16 %v9024, %v9023
    %v9047 = vpack.c.b16 %v9026, %v9025
    %v9048 = vpack.c.b16 %v9028, %v9027
    %v9070 = vsel %vm3358, %v8946, 0
    %9072 = vmatprep.subr.bf16.mxu0 0
    %9073 = vmatpush1.bf16.msra.mxu0 %v9036
    %9074 = vmatprep.subr.bf16.mxu0 0
    %9075 = vmatpush1.bf16.msra.mxu0 %v9035
    %9076 = vmatprep.subr.bf16.mxu0 0
    %9077 = vmatpush1.bf16.msra.mxu0 %v9034
    %9078 = vmatprep.subr.bf16.mxu0 0
    %9079 = vmatpush1.bf16.msra.mxu0 %v9033
    %9080 = vmatprep.subr.bf16.mxu0 0
    %9081 = vmatpush1.bf16.msra.mxu0 %v9032
    %9082 = vmatprep.subr.bf16.mxu0 0
    %9083 = vmatpush1.bf16.msra.mxu0 %v9031
    %9084 = vmatprep.subr.bf16.mxu0 0
    %9085 = vmatpush1.bf16.msra.mxu0 %v9030
    %9086 = vmatprep.subr.bf16.mxu0 0
    %9087 = vmatpush1.bf16.msra.mxu0 %v9029
    %9088 = vmatprep.subr.bf16.mxu0 0
    %9089 = vmatpush2.bf16.msra.mxu0 %v9044
    %9090 = vmatprep.subr.bf16.mxu0 0
    %9091 = vmatpush2.bf16.msra.mxu0 %v9043
    %9092 = vmatprep.subr.bf16.mxu0 0
    %9093 = vmatpush2.bf16.msra.mxu0 %v9042
    %9094 = vmatprep.subr.bf16.mxu0 0
    %9095 = vmatpush2.bf16.msra.mxu0 %v9041
    %9096 = vmatprep.subr.bf16.mxu0 0
    %9097 = vmatpush2.bf16.msra.mxu0 %v9040
    %9098 = vmatprep.subr.bf16.mxu0 0
    %9099 = vmatpush2.bf16.msra.mxu0 %v9039
    %9100 = vmatprep.subr.bf16.mxu0 0
    %9101 = vmatpush2.bf16.msra.mxu0 %v9038
    %9102 = vmatprep.subr.bf16.mxu0 0
    %9103 = vmatpush2.bf16.msra.mxu0 %v9037
    %9104 = vmatprep.mubr.bf16.mxu0 %v8945
    %9105 = vmatmul.mubr.bf16.gmra.mxu0 %v8944
    %v9106 = vpop.f32.mrf.mxu0
    %v9107 = vadd.f32 0.0, %v9106
    %v9108 = vpop.f32.mrf.mxu0
    %v9109 = vpop.f32.mrf.mxu0
    %v9110 = vpop.f32.mrf.mxu0
    %9111 = vdwg.mxu0
    %9112 = vmatprep.subr.bf16.mxu0 0
    %9113 = vmatpush1.bf16.msra.mxu0 0
    %9114 = vmatprep.subr.bf16.mxu0 0
    %9115 = vmatpush1.bf16.msra.mxu0 0
    %9116 = vmatprep.subr.bf16.mxu0 0
    %9117 = vmatpush1.bf16.msra.mxu0 0
    %9118 = vmatprep.subr.bf16.mxu0 0
    %9119 = vmatpush1.bf16.msra.mxu0 0
    %9120 = vmatprep.subr.bf16.mxu0 0
    %9121 = vmatpush1.bf16.msra.mxu0 %v9048
    %9122 = vmatprep.subr.bf16.mxu0 0
    %9123 = vmatpush1.bf16.msra.mxu0 %v9047
    %9124 = vmatprep.subr.bf16.mxu0 0
    %9125 = vmatpush1.bf16.msra.mxu0 %v9046
    %9126 = vmatprep.subr.bf16.mxu0 0
    %9127 = vmatpush1.bf16.msra.mxu0 %v9045
    %9128 = vmatprep.subr.bf16.mxu0 0
    %9129 = vmatpush2.bf16.msra.mxu0 0
    %9130 = vmatprep.subr.bf16.mxu0 0
    %9131 = vmatpush2.bf16.msra.mxu0 0
    %9132 = vmatprep.subr.bf16.mxu0 0
    %9133 = vmatpush2.bf16.msra.mxu0 0
    %9134 = vmatprep.subr.bf16.mxu0 0
    %9135 = vmatpush2.bf16.msra.mxu0 0
    %9136 = vmatprep.subr.bf16.mxu0 0
    %9137 = vmatpush2.bf16.msra.mxu0 0
    %9138 = vmatprep.subr.bf16.mxu0 0
    %9139 = vmatpush2.bf16.msra.mxu0 0
    %9140 = vmatprep.subr.bf16.mxu0 0
    %9141 = vmatpush2.bf16.msra.mxu0 0
    %9142 = vmatprep.subr.bf16.mxu0 0
    %9143 = vmatpush2.bf16.msra.mxu0 0
    %9144 = vmatprep.mubr.bf16.mxu0 0
    %9145 = vmatmul.mubr.bf16.gmra.mxu0 %v9070
    %v9146 = vpop.f32.mrf.mxu0
    %v9147 = vadd.f32 %v9107, %v9146
    %v9148 = vpop.f32.mrf.mxu0
    %v9149 = vpop.f32.mrf.mxu0
    %v9150 = vpop.f32.mrf.mxu0
    %9151 = vdwg.mxu0
    %v9152 = vadd.f32 %v8893, %v9147
    %v9153 = vld [vmem:[#allocation4 + $0x90] sm:$0x3f]
    %v9154 = vld [vmem:[#allocation4 + $0x98] sm:$0x3f]
    %v9155 = vld [vmem:[#allocation4 + $0xa0] sm:$0x3f]
    %v9156 = vpack.c.bf16 %v9153, %v9153
    %v9157 = vpack.c.bf16 %v9154, %v9154
    %v9158 = vpack.c.bf16 %v9155, %v9155
    %s9159 = scalar_lea.vmem [#allocation5], 1280
    %v9160 = vld [vmem:[%s9159] sm:$0xf]
    %v9161 = vld [vmem:[%s9159 + $0x4] sm:$0xf]
    %v9162 = vld [vmem:[%s9159 + $0x8] sm:$0xf]
    %v9163 = vld [vmem:[%s9159 + $0xc] sm:$0xf]
    %v9164 = vld [vmem:[%s9159 + $0x10] sm:$0xf]
    %v9165 = vld [vmem:[%s9159 + $0x14] sm:$0xf]
    %v9166 = vld [vmem:[%s9159 + $0x18] sm:$0xf]
    %v9167 = vld [vmem:[%s9159 + $0x1c] sm:$0xf]
    %v9168 = vld [vmem:[%s9159 + $0x20] sm:$0xf]
    %v9169 = vld [vmem:[%s9159 + $0x24] sm:$0xf]
    %v9170 = vld [vmem:[%s9159 + $0x28] sm:$0xf]
    %v9171 = vld [vmem:[%s9159 + $0x2c] sm:$0xf]
    %v9172 = vld [vmem:[%s9159 + $0x30] sm:$0xf]
    %v9173 = vld [vmem:[%s9159 + $0x34] sm:$0xf]
    %v9174 = vld [vmem:[%s9159 + $0x38] sm:$0xf]
    %v9175 = vld [vmem:[%s9159 + $0x3c] sm:$0xf]
    %v9176 = vld [vmem:[%s9159 + $0x40] sm:$0xf]
    %v9177 = vld [vmem:[%s9159 + $0x44] sm:$0xf]
    %v9178 = vld [vmem:[%s9159 + $0x48] sm:$0xf]
    %v9179 = vld [vmem:[%s9159 + $0x4c] sm:$0xf]
    %v9180 = vld [vmem:[%s9159 + $0x50] sm:$0xf]
    %v9181 = vld [vmem:[%s9159 + $0x54] sm:$0xf]
    %v9182 = vld [vmem:[%s9159 + $0x58] sm:$0xf]
    %v9183 = vld [vmem:[%s9159 + $0x5c] sm:$0xf]
    %v9184 = vld [vmem:[%s9159 + $0x60] sm:$0xf]
    %v9185 = vld [vmem:[%s9159 + $0x64] sm:$0xf]
    %v9186 = vld [vmem:[%s9159 + $0x68] sm:$0xf]
    %v9187 = vld [vmem:[%s9159 + $0x6c] sm:$0xf]
    %v9188 = vld [vmem:[%s9159 + $0x70] sm:$0xf]
    %v9189 = vld [vmem:[%s9159 + $0x74] sm:$0xf]
    %v9190 = vld [vmem:[%s9159 + $0x78] sm:$0xf]
    %v9191 = vld [vmem:[%s9159 + $0x7c] sm:$0xf]
    %v9192 = vld [vmem:[%s9159 + $0x80] sm:$0xf]
    %v9193 = vld [vmem:[%s9159 + $0x84] sm:$0xf]
    %v9194 = vld [vmem:[%s9159 + $0x88] sm:$0xf]
    %v9195 = vld [vmem:[%s9159 + $0x8c] sm:$0xf]
    %v9196 = vld [vmem:[%s9159 + $0x90] sm:$0xf]
    %v9197 = vld [vmem:[%s9159 + $0x94] sm:$0xf]
    %v9198 = vld [vmem:[%s9159 + $0x98] sm:$0xf]
    %v9199 = vld [vmem:[%s9159 + $0x9c] sm:$0xf]
    %v9240 = vunpack.c.l.b16 %v9160
    %v9241 = vunpack.c.l.b16 %v9161
    %v9242 = vunpack.c.l.b16 %v9162
    %v9243 = vunpack.c.l.b16 %v9163
    %v9244 = vunpack.c.l.b16 %v9164
    %v9245 = vunpack.c.l.b16 %v9165
    %v9246 = vunpack.c.l.b16 %v9166
    %v9247 = vunpack.c.l.b16 %v9167
    %v9248 = vunpack.c.l.b16 %v9168
    %v9249 = vunpack.c.l.b16 %v9169
    %v9250 = vunpack.c.l.b16 %v9170
    %v9251 = vunpack.c.l.b16 %v9171
    %v9252 = vunpack.c.l.b16 %v9172
    %v9253 = vunpack.c.l.b16 %v9173
    %v9254 = vunpack.c.l.b16 %v9174
    %v9255 = vunpack.c.l.b16 %v9175
    %v9256 = vunpack.c.l.b16 %v9176
    %v9257 = vunpack.c.l.b16 %v9177
    %v9258 = vunpack.c.l.b16 %v9178
    %v9259 = vunpack.c.l.b16 %v9179
    %v9260 = vunpack.c.l.b16 %v9180
    %v9261 = vunpack.c.l.b16 %v9181
    %v9262 = vunpack.c.l.b16 %v9182
    %v9263 = vunpack.c.l.b16 %v9183
    %v9264 = vunpack.c.l.b16 %v9184
    %v9265 = vunpack.c.l.b16 %v9185
    %v9266 = vunpack.c.l.b16 %v9186
    %v9267 = vunpack.c.l.b16 %v9187
    %v9268 = vunpack.c.l.b16 %v9188
    %v9269 = vunpack.c.l.b16 %v9189
    %v9270 = vunpack.c.l.b16 %v9190
    %v9271 = vunpack.c.l.b16 %v9191
    %v9272 = vunpack.c.l.b16 %v9192
    %v9273 = vunpack.c.l.b16 %v9193
    %v9274 = vunpack.c.l.b16 %v9194
    %v9275 = vunpack.c.l.b16 %v9195
    %v9276 = vunpack.c.l.b16 %v9196
    %v9277 = vunpack.c.l.b16 %v9197
    %v9278 = vunpack.c.l.b16 %v9198
    %v9279 = vunpack.c.l.b16 %v9199
    %v9280 = vpack.c.b16 %v9241, %v9240
    %v9281 = vpack.c.b16 %v9243, %v9242
    %v9282 = vpack.c.b16 %v9245, %v9244
    %v9283 = vpack.c.b16 %v9247, %v9246
    %v9284 = vpack.c.b16 %v9249, %v9248
    %v9285 = vpack.c.b16 %v9251, %v9250
    %v9286 = vpack.c.b16 %v9253, %v9252
    %v9287 = vpack.c.b16 %v9255, %v9254
    %v9288 = vpack.c.b16 %v9257, %v9256
    %v9289 = vpack.c.b16 %v9259, %v9258
    %v9290 = vpack.c.b16 %v9261, %v9260
    %v9291 = vpack.c.b16 %v9263, %v9262
    %v9292 = vpack.c.b16 %v9265, %v9264
    %v9293 = vpack.c.b16 %v9267, %v9266
    %v9294 = vpack.c.b16 %v9269, %v9268
    %v9295 = vpack.c.b16 %v9271, %v9270
    %v9296 = vpack.c.b16 %v9273, %v9272
    %v9297 = vpack.c.b16 %v9275, %v9274
    %v9298 = vpack.c.b16 %v9277, %v9276
    %v9299 = vpack.c.b16 %v9279, %v9278
    %v9321 = vsel %vm3358, %v9158, 0
    %9323 = vmatprep.subr.bf16.mxu0 0
    %9324 = vmatpush1.bf16.msra.mxu0 %v9287
    %9325 = vmatprep.subr.bf16.mxu0 0
    %9326 = vmatpush1.bf16.msra.mxu0 %v9286
    %9327 = vmatprep.subr.bf16.mxu0 0
    %9328 = vmatpush1.bf16.msra.mxu0 %v9285
    %9329 = vmatprep.subr.bf16.mxu0 0
    %9330 = vmatpush1.bf16.msra.mxu0 %v9284
    %9331 = vmatprep.subr.bf16.mxu0 0
    %9332 = vmatpush1.bf16.msra.mxu0 %v9283
    %9333 = vmatprep.subr.bf16.mxu0 0
    %9334 = vmatpush1.bf16.msra.mxu0 %v9282
    %9335 = vmatprep.subr.bf16.mxu0 0
    %9336 = vmatpush1.bf16.msra.mxu0 %v9281
    %9337 = vmatprep.subr.bf16.mxu0 0
    %9338 = vmatpush1.bf16.msra.mxu0 %v9280
    %9339 = vmatprep.subr.bf16.mxu0 0
    %9340 = vmatpush2.bf16.msra.mxu0 %v9295
    %9341 = vmatprep.subr.bf16.mxu0 0
    %9342 = vmatpush2.bf16.msra.mxu0 %v9294
    %9343 = vmatprep.subr.bf16.mxu0 0
    %9344 = vmatpush2.bf16.msra.mxu0 %v9293
    %9345 = vmatprep.subr.bf16.mxu0 0
    %9346 = vmatpush2.bf16.msra.mxu0 %v9292
    %9347 = vmatprep.subr.bf16.mxu0 0
    %9348 = vmatpush2.bf16.msra.mxu0 %v9291
    %9349 = vmatprep.subr.bf16.mxu0 0
    %9350 = vmatpush2.bf16.msra.mxu0 %v9290
    %9351 = vmatprep.subr.bf16.mxu0 0
    %9352 = vmatpush2.bf16.msra.mxu0 %v9289
    %9353 = vmatprep.subr.bf16.mxu0 0
    %9354 = vmatpush2.bf16.msra.mxu0 %v9288
    %9355 = vmatprep.mubr.bf16.mxu0 %v9157
    %9356 = vmatmul.mubr.bf16.gmra.mxu0 %v9156
    %v9357 = vpop.f32.mrf.mxu0
    %v9358 = vadd.f32 0.0, %v9357
    %v9359 = vpop.f32.mrf.mxu0
    %v9360 = vpop.f32.mrf.mxu0
    %v9361 = vpop.f32.mrf.mxu0
    %9362 = vdwg.mxu0
    %9363 = vmatprep.subr.bf16.mxu0 0
    %9364 = vmatpush1.bf16.msra.mxu0 0
    %9365 = vmatprep.subr.bf16.mxu0 0
    %9366 = vmatpush1.bf16.msra.mxu0 0
    %9367 = vmatprep.subr.bf16.mxu0 0
    %9368 = vmatpush1.bf16.msra.mxu0 0
    %9369 = vmatprep.subr.bf16.mxu0 0
    %9370 = vmatpush1.bf16.msra.mxu0 0
    %9371 = vmatprep.subr.bf16.mxu0 0
    %9372 = vmatpush1.bf16.msra.mxu0 %v9299
    %9373 = vmatprep.subr.bf16.mxu0 0
    %9374 = vmatpush1.bf16.msra.mxu0 %v9298
    %9375 = vmatprep.subr.bf16.mxu0 0
    %9376 = vmatpush1.bf16.msra.mxu0 %v9297
    %9377 = vmatprep.subr.bf16.mxu0 0
    %9378 = vmatpush1.bf16.msra.mxu0 %v9296
    %9379 = vmatprep.subr.bf16.mxu0 0
    %9380 = vmatpush2.bf16.msra.mxu0 0
    %9381 = vmatprep.subr.bf16.mxu0 0
    %9382 = vmatpush2.bf16.msra.mxu0 0
    %9383 = vmatprep.subr.bf16.mxu0 0
    %9384 = vmatpush2.bf16.msra.mxu0 0
    %9385 = vmatprep.subr.bf16.mxu0 0
    %9386 = vmatpush2.bf16.msra.mxu0 0
    %9387 = vmatprep.subr.bf16.mxu0 0
    %9388 = vmatpush2.bf16.msra.mxu0 0
    %9389 = vmatprep.subr.bf16.mxu0 0
    %9390 = vmatpush2.bf16.msra.mxu0 0
    %9391 = vmatprep.subr.bf16.mxu0 0
    %9392 = vmatpush2.bf16.msra.mxu0 0
    %9393 = vmatprep.subr.bf16.mxu0 0
    %9394 = vmatpush2.bf16.msra.mxu0 0
    %9395 = vmatprep.mubr.bf16.mxu0 0
    %9396 = vmatmul.mubr.bf16.gmra.mxu0 %v9321
    %v9397 = vpop.f32.mrf.mxu0
    %v9398 = vadd.f32 %v9358, %v9397
    %v9399 = vpop.f32.mrf.mxu0
    %v9400 = vpop.f32.mrf.mxu0
    %v9401 = vpop.f32.mrf.mxu0
    %9402 = vdwg.mxu0
    %v9403 = vadd.f32 %v9152, %v9398
    %v9404 = vld [vmem:[#allocation4 + $0x90] sm:$0xc0]
    %v9405 = vld [vmem:[#allocation4 + $0x98] sm:$0xc0]
    %v9406 = vld [vmem:[#allocation4 + $0xa0] sm:$0xc0]
    %v9407 = vld [vmem:[#allocation4 + $0xa8] sm:$0xf]
    %v9408 = vld [vmem:[#allocation4 + $0xb0] sm:$0xf]
    %v9409 = vld [vmem:[#allocation4 + $0xb8] sm:$0xf]
    %v9410 = vpack.c.bf16 %v9407, %v9404
    %v9411 = vpack.c.bf16 %v9408, %v9405
    %v9412 = vpack.c.bf16 %v9409, %v9406
    %s9413 = scalar_lea.vmem [#allocation5], 1440
    %v9414 = vld [vmem:[%s9413] sm:$0xf]
    %v9415 = vld [vmem:[%s9413 + $0x4] sm:$0xf]
    %v9416 = vld [vmem:[%s9413 + $0x8] sm:$0xf]
    %v9417 = vld [vmem:[%s9413 + $0xc] sm:$0xf]
    %v9418 = vld [vmem:[%s9413 + $0x10] sm:$0xf]
    %v9419 = vld [vmem:[%s9413 + $0x14] sm:$0xf]
    %v9420 = vld [vmem:[%s9413 + $0x18] sm:$0xf]
    %v9421 = vld [vmem:[%s9413 + $0x1c] sm:$0xf]
    %v9422 = vld [vmem:[%s9413 + $0x20] sm:$0xf]
    %v9423 = vld [vmem:[%s9413 + $0x24] sm:$0xf]
    %v9424 = vld [vmem:[%s9413 + $0x28] sm:$0xf]
    %v9425 = vld [vmem:[%s9413 + $0x2c] sm:$0xf]
    %v9426 = vld [vmem:[%s9413 + $0x30] sm:$0xf]
    %v9427 = vld [vmem:[%s9413 + $0x34] sm:$0xf]
    %v9428 = vld [vmem:[%s9413 + $0x38] sm:$0xf]
    %v9429 = vld [vmem:[%s9413 + $0x3c] sm:$0xf]
    %v9430 = vld [vmem:[%s9413 + $0x40] sm:$0xf]
    %v9431 = vld [vmem:[%s9413 + $0x44] sm:$0xf]
    %v9432 = vld [vmem:[%s9413 + $0x48] sm:$0xf]
    %v9433 = vld [vmem:[%s9413 + $0x4c] sm:$0xf]
    %v9434 = vld [vmem:[%s9413 + $0x50] sm:$0xf]
    %v9435 = vld [vmem:[%s9413 + $0x54] sm:$0xf]
    %v9436 = vld [vmem:[%s9413 + $0x58] sm:$0xf]
    %v9437 = vld [vmem:[%s9413 + $0x5c] sm:$0xf]
    %v9438 = vld [vmem:[%s9413 + $0x60] sm:$0xf]
    %v9439 = vld [vmem:[%s9413 + $0x64] sm:$0xf]
    %v9440 = vld [vmem:[%s9413 + $0x68] sm:$0xf]
    %v9441 = vld [vmem:[%s9413 + $0x6c] sm:$0xf]
    %v9442 = vld [vmem:[%s9413 + $0x70] sm:$0xf]
    %v9443 = vld [vmem:[%s9413 + $0x74] sm:$0xf]
    %v9444 = vld [vmem:[%s9413 + $0x78] sm:$0xf]
    %v9445 = vld [vmem:[%s9413 + $0x7c] sm:$0xf]
    %v9446 = vld [vmem:[%s9413 + $0x80] sm:$0xf]
    %v9447 = vld [vmem:[%s9413 + $0x84] sm:$0xf]
    %v9448 = vld [vmem:[%s9413 + $0x88] sm:$0xf]
    %v9449 = vld [vmem:[%s9413 + $0x8c] sm:$0xf]
    %v9450 = vld [vmem:[%s9413 + $0x90] sm:$0xf]
    %v9451 = vld [vmem:[%s9413 + $0x94] sm:$0xf]
    %v9452 = vld [vmem:[%s9413 + $0x98] sm:$0xf]
    %v9453 = vld [vmem:[%s9413 + $0x9c] sm:$0xf]
    %v9457 = vrot.slane %v9410, 3
    %v9458 = vrot.slane %v9411, 3
    %v9459 = vrot.slane %v9412, 3
    %v9502 = vunpack.c.l.b16 %v9414
    %v9503 = vunpack.c.l.b16 %v9415
    %v9504 = vunpack.c.l.b16 %v9416
    %v9505 = vunpack.c.l.b16 %v9417
    %v9506 = vunpack.c.l.b16 %v9418
    %v9507 = vunpack.c.l.b16 %v9419
    %v9508 = vunpack.c.l.b16 %v9420
    %v9509 = vunpack.c.l.b16 %v9421
    %v9510 = vunpack.c.l.b16 %v9422
    %v9511 = vunpack.c.l.b16 %v9423
    %v9512 = vunpack.c.l.b16 %v9424
    %v9513 = vunpack.c.l.b16 %v9425
    %v9514 = vunpack.c.l.b16 %v9426
    %v9515 = vunpack.c.l.b16 %v9427
    %v9516 = vunpack.c.l.b16 %v9428
    %v9517 = vunpack.c.l.b16 %v9429
    %v9518 = vunpack.c.l.b16 %v9430
    %v9519 = vunpack.c.l.b16 %v9431
    %v9520 = vunpack.c.l.b16 %v9432
    %v9521 = vunpack.c.l.b16 %v9433
    %v9522 = vunpack.c.l.b16 %v9434
    %v9523 = vunpack.c.l.b16 %v9435
    %v9524 = vunpack.c.l.b16 %v9436
    %v9525 = vunpack.c.l.b16 %v9437
    %v9526 = vunpack.c.l.b16 %v9438
    %v9527 = vunpack.c.l.b16 %v9439
    %v9528 = vunpack.c.l.b16 %v9440
    %v9529 = vunpack.c.l.b16 %v9441
    %v9530 = vunpack.c.l.b16 %v9442
    %v9531 = vunpack.c.l.b16 %v9443
    %v9532 = vunpack.c.l.b16 %v9444
    %v9533 = vunpack.c.l.b16 %v9445
    %v9534 = vunpack.c.l.b16 %v9446
    %v9535 = vunpack.c.l.b16 %v9447
    %v9536 = vunpack.c.l.b16 %v9448
    %v9537 = vunpack.c.l.b16 %v9449
    %v9538 = vunpack.c.l.b16 %v9450
    %v9539 = vunpack.c.l.b16 %v9451
    %v9540 = vunpack.c.l.b16 %v9452
    %v9541 = vunpack.c.l.b16 %v9453
    %v9542 = vpack.c.b16 %v9503, %v9502
    %v9543 = vpack.c.b16 %v9505, %v9504
    %v9544 = vpack.c.b16 %v9507, %v9506
    %v9545 = vpack.c.b16 %v9509, %v9508
    %v9546 = vpack.c.b16 %v9511, %v9510
    %v9547 = vpack.c.b16 %v9513, %v9512
    %v9548 = vpack.c.b16 %v9515, %v9514
    %v9549 = vpack.c.b16 %v9517, %v9516
    %v9550 = vpack.c.b16 %v9519, %v9518
    %v9551 = vpack.c.b16 %v9521, %v9520
    %v9552 = vpack.c.b16 %v9523, %v9522
    %v9553 = vpack.c.b16 %v9525, %v9524
    %v9554 = vpack.c.b16 %v9527, %v9526
    %v9555 = vpack.c.b16 %v9529, %v9528
    %v9556 = vpack.c.b16 %v9531, %v9530
    %v9557 = vpack.c.b16 %v9533, %v9532
    %v9558 = vpack.c.b16 %v9535, %v9534
    %v9559 = vpack.c.b16 %v9537, %v9536
    %v9560 = vpack.c.b16 %v9539, %v9538
    %v9561 = vpack.c.b16 %v9541, %v9540
    %v9583 = vsel %vm3358, %v9459, 0
    %9585 = vmatprep.subr.bf16.mxu0 0
    %9586 = vmatpush1.bf16.msra.mxu0 %v9549
    %9587 = vmatprep.subr.bf16.mxu0 0
    %9588 = vmatpush1.bf16.msra.mxu0 %v9548
    %9589 = vmatprep.subr.bf16.mxu0 0
    %9590 = vmatpush1.bf16.msra.mxu0 %v9547
    %9591 = vmatprep.subr.bf16.mxu0 0
    %9592 = vmatpush1.bf16.msra.mxu0 %v9546
    %9593 = vmatprep.subr.bf16.mxu0 0
    %9594 = vmatpush1.bf16.msra.mxu0 %v9545
    %9595 = vmatprep.subr.bf16.mxu0 0
    %9596 = vmatpush1.bf16.msra.mxu0 %v9544
    %9597 = vmatprep.subr.bf16.mxu0 0
    %9598 = vmatpush1.bf16.msra.mxu0 %v9543
    %9599 = vmatprep.subr.bf16.mxu0 0
    %9600 = vmatpush1.bf16.msra.mxu0 %v9542
    %9601 = vmatprep.subr.bf16.mxu0 0
    %9602 = vmatpush2.bf16.msra.mxu0 %v9557
    %9603 = vmatprep.subr.bf16.mxu0 0
    %9604 = vmatpush2.bf16.msra.mxu0 %v9556
    %9605 = vmatprep.subr.bf16.mxu0 0
    %9606 = vmatpush2.bf16.msra.mxu0 %v9555
    %9607 = vmatprep.subr.bf16.mxu0 0
    %9608 = vmatpush2.bf16.msra.mxu0 %v9554
    %9609 = vmatprep.subr.bf16.mxu0 0
    %9610 = vmatpush2.bf16.msra.mxu0 %v9553
    %9611 = vmatprep.subr.bf16.mxu0 0
    %9612 = vmatpush2.bf16.msra.mxu0 %v9552
    %9613 = vmatprep.subr.bf16.mxu0 0
    %9614 = vmatpush2.bf16.msra.mxu0 %v9551
    %9615 = vmatprep.subr.bf16.mxu0 0
    %9616 = vmatpush2.bf16.msra.mxu0 %v9550
    %9617 = vmatprep.mubr.bf16.mxu0 %v9458
    %9618 = vmatmul.mubr.bf16.gmra.mxu0 %v9457
    %v9619 = vpop.f32.mrf.mxu0
    %v9620 = vadd.f32 0.0, %v9619
    %v9621 = vpop.f32.mrf.mxu0
    %v9622 = vpop.f32.mrf.mxu0
    %v9623 = vpop.f32.mrf.mxu0
    %9624 = vdwg.mxu0
    %9625 = vmatprep.subr.bf16.mxu0 0
    %9626 = vmatpush1.bf16.msra.mxu0 0
    %9627 = vmatprep.subr.bf16.mxu0 0
    %9628 = vmatpush1.bf16.msra.mxu0 0
    %9629 = vmatprep.subr.bf16.mxu0 0
    %9630 = vmatpush1.bf16.msra.mxu0 0
    %9631 = vmatprep.subr.bf16.mxu0 0
    %9632 = vmatpush1.bf16.msra.mxu0 0
    %9633 = vmatprep.subr.bf16.mxu0 0
    %9634 = vmatpush1.bf16.msra.mxu0 %v9561
    %9635 = vmatprep.subr.bf16.mxu0 0
    %9636 = vmatpush1.bf16.msra.mxu0 %v9560
    %9637 = vmatprep.subr.bf16.mxu0 0
    %9638 = vmatpush1.bf16.msra.mxu0 %v9559
    %9639 = vmatprep.subr.bf16.mxu0 0
    %9640 = vmatpush1.bf16.msra.mxu0 %v9558
    %9641 = vmatprep.subr.bf16.mxu0 0
    %9642 = vmatpush2.bf16.msra.mxu0 0
    %9643 = vmatprep.subr.bf16.mxu0 0
    %9644 = vmatpush2.bf16.msra.mxu0 0
    %9645 = vmatprep.subr.bf16.mxu0 0
    %9646 = vmatpush2.bf16.msra.mxu0 0
    %9647 = vmatprep.subr.bf16.mxu0 0
    %9648 = vmatpush2.bf16.msra.mxu0 0
    %9649 = vmatprep.subr.bf16.mxu0 0
    %9650 = vmatpush2.bf16.msra.mxu0 0
    %9651 = vmatprep.subr.bf16.mxu0 0
    %9652 = vmatpush2.bf16.msra.mxu0 0
    %9653 = vmatprep.subr.bf16.mxu0 0
    %9654 = vmatpush2.bf16.msra.mxu0 0
    %9655 = vmatprep.subr.bf16.mxu0 0
    %9656 = vmatpush2.bf16.msra.mxu0 0
    %9657 = vmatprep.mubr.bf16.mxu0 0
    %9658 = vmatmul.mubr.bf16.gmra.mxu0 %v9583
    %v9659 = vpop.f32.mrf.mxu0
    %v9660 = vadd.f32 %v9620, %v9659
    %v9661 = vpop.f32.mrf.mxu0
    %v9662 = vpop.f32.mrf.mxu0
    %v9663 = vpop.f32.mrf.mxu0
    %9664 = vdwg.mxu0
    %v9665 = vadd.f32 %v9403, %v9660
    %v9666 = vld [vmem:[%s12] sm:$0x1]
    %v9667 = vld [vmem:[%s11] sm:$0xff]
    %v9668 = vld [vmem:[%s11 + $0x8] sm:$0xff]
    %v9669 = vld [vmem:[%s11 + $0x10] sm:$0xff]
    %v9670 = vld [vmem:[%s11 + $0x18] sm:$0xff]
    %v9672 = vsel %vm3674, 0.0, 0
    %9674 = vmatprep.subr.mxu0 0.0
    %9675 = vmatpush1.msra.mxu0 0.0
    %9676 = vmatprep.subr.mxu0 0.0
    %9677 = vmatpush1.msra.mxu0 0.0
    %9678 = vmatprep.subr.mxu0 0.0
    %9679 = vmatpush1.msra.mxu0 0.0
    %9680 = vmatprep.subr.mxu0 0.0
    %9681 = vmatpush1.msra.mxu0 0.0
    %9682 = vmatprep.subr.mxu0 0.0
    %9683 = vmatpush1.msra.mxu0 0.0
    %9684 = vmatprep.subr.mxu0 0.0
    %9685 = vmatpush1.msra.mxu0 0.0
    %9686 = vmatprep.subr.mxu0 0.0
    %9687 = vmatpush1.msra.mxu0 0.0
    %9688 = vmatprep.subr.mxu0 0.0
    %9689 = vmatpush1.msra.mxu0 0.0
    %9690 = vmatprep.subr.mxu0 0.0
    %9691 = vmatpush1.msra.mxu0 0.0
    %9692 = vmatprep.subr.mxu0 0.0
    %9693 = vmatpush1.msra.mxu0 0.0
    %9694 = vmatprep.subr.mxu0 0.0
    %9695 = vmatpush1.msra.mxu0 0.0
    %9696 = vmatprep.subr.mxu0 0.0
    %9697 = vmatpush1.msra.mxu0 0.0
    %9698 = vmatprep.subr.mxu0 0.0
    %9699 = vmatpush1.msra.mxu0 %v9670
    %9700 = vmatprep.subr.mxu0 0.0
    %9701 = vmatpush1.msra.mxu0 %v9669
    %9702 = vmatprep.subr.mxu0 0.0
    %9703 = vmatpush1.msra.mxu0 %v9668
    %9704 = vmatprep.subr.mxu0 0.0
    %9705 = vmatpush1.msra.mxu0 %v9667
    %9706 = vmatprep.subr.mxu0 0.0
    %9707 = vmatpush2.msra.mxu0 0.0
    %9708 = vmatprep.subr.mxu0 0.0
    %9709 = vmatpush2.msra.mxu0 0.0
    %9710 = vmatprep.subr.mxu0 0.0
    %9711 = vmatpush2.msra.mxu0 0.0
    %9712 = vmatprep.subr.mxu0 0.0
    %9713 = vmatpush2.msra.mxu0 0.0
    %9714 = vmatprep.subr.mxu0 0.0
    %9715 = vmatpush2.msra.mxu0 0.0
    %9716 = vmatprep.subr.mxu0 0.0
    %9717 = vmatpush2.msra.mxu0 0.0
    %9718 = vmatprep.subr.mxu0 0.0
    %9719 = vmatpush2.msra.mxu0 0.0
    %9720 = vmatprep.subr.mxu0 0.0
    %9721 = vmatpush2.msra.mxu0 0.0
    %9722 = vmatprep.subr.mxu0 0.0
    %9723 = vmatpush2.msra.mxu0 0.0
    %9724 = vmatprep.subr.mxu0 0.0
    %9725 = vmatpush2.msra.mxu0 0.0
    %9726 = vmatprep.subr.mxu0 0.0
    %9727 = vmatpush2.msra.mxu0 0.0
    %9728 = vmatprep.subr.mxu0 0.0
    %9729 = vmatpush2.msra.mxu0 0.0
    %9730 = vmatprep.subr.mxu0 0.0
    %9731 = vmatpush2.msra.mxu0 0.0
    %9732 = vmatprep.subr.mxu0 0.0
    %9733 = vmatpush2.msra.mxu0 0.0
    %9734 = vmatprep.subr.mxu0 0.0
    %9735 = vmatpush2.msra.mxu0 0.0
    %9736 = vmatprep.subr.mxu0 0.0
    %9737 = vmatpush2.msra.mxu0 0.0
    %9738 = vmatprep.mubr.f32.mxu0 0.0
    %9739 = vmatmul.mubr.f32.gmra.mxu0 %v9672
    %v9740 = vpop.f32.mrf.mxu0
    %v9741 = vadd.f32 0.0, %v9740
    %v9742 = vpop.f32.mrf.mxu0
    %9743 = vdwg.mxu0
    %v9744 = vadd.f32 %v9665, %v9741
    %v9746 = vlaneseq
    %v9747 = vshrl.u32 %v9746, 7
    %v9748 = vsub.s32 0, %v9747
    %v9749 = vrot.slane %v9666, %v9748
    %v9751 = vadd.f32 %v9744, %v9749
    %v9752 = vxor.u32 %v9751, 2147483648
    %v9753 = vmul.f32 %v9752, 1.442695
    %v9754 = vpow.pop %v9753
    %v9755 = vadd.f32 %v9754, 1.0
    %v9756 = vrcp.pop %v9755
    %v9757 = vmul.f32 1.0, %v9756
    %v9758 = vtanh.pop %v9751
    %v9759 = vmul.f32 %v9757, 0.0
    %9761 = vrot.lane.b32.xlu0 %v9758, 64
    %v9762 = vpop.permute.xlu0 %9761
    %v9764 = vmul.f32 %v9757, %v9762
    %9766 = vrot.lane.b32.xlu0 %v9764, 32
    %v9767 = vpop.permute.xlu0 %9766
    %v9769 = vadd.f32 %v9759, %v9767
    %v9770 = vtanh.pop %v9769
    %9772 = vrot.lane.b32.xlu0 %v9770, 64
    %v9773 = vpop.permute.xlu0 %9772
    %v9775 = vmul.f32 %v9757, %v9773
    %9777 = vrot.lane.b32.xlu0 %v9775, 32
    %v9778 = vpop.permute.xlu0 %9777
    %v9779 = vsel %vm3674, %v9778, 0
    %9781 = vmatprep.subr.mxu0 0.0
    %9782 = vmatpush1.msra.mxu0 0.0
    %9783 = vmatprep.subr.mxu0 0.0
    %9784 = vmatpush1.msra.mxu0 0.0
    %9785 = vmatprep.subr.mxu0 0.0
    %9786 = vmatpush1.msra.mxu0 0.0
    %9787 = vmatprep.subr.mxu0 0.0
    %9788 = vmatpush1.msra.mxu0 0.0
    %9789 = vmatprep.subr.mxu0 0.0
    %9790 = vmatpush1.msra.mxu0 0.0
    %9791 = vmatprep.subr.mxu0 0.0
    %9792 = vmatpush1.msra.mxu0 0.0
    %9793 = vmatprep.subr.mxu0 0.0
    %9794 = vmatpush1.msra.mxu0 0.0
    %9795 = vmatprep.subr.mxu0 0.0
    %9796 = vmatpush1.msra.mxu0 0.0
    %9797 = vmatprep.subr.mxu0 0.0
    %9798 = vmatpush1.msra.mxu0 0.0
    %9799 = vmatprep.subr.mxu0 0.0
    %9800 = vmatpush1.msra.mxu0 0.0
    %9801 = vmatprep.subr.mxu0 0.0
    %9802 = vmatpush1.msra.mxu0 0.0
    %9803 = vmatprep.subr.mxu0 0.0
    %9804 = vmatpush1.msra.mxu0 0.0
    %9805 = vmatprep.subr.mxu0 0.0
    %9806 = vmatpush1.msra.mxu0 %v9670
    %9807 = vmatprep.subr.mxu0 0.0
    %9808 = vmatpush1.msra.mxu0 %v9669
    %9809 = vmatprep.subr.mxu0 0.0
    %9810 = vmatpush1.msra.mxu0 %v9668
    %9811 = vmatprep.subr.mxu0 0.0
    %9812 = vmatpush1.msra.mxu0 %v9667
    %9813 = vmatprep.subr.mxu0 0.0
    %9814 = vmatpush2.msra.mxu0 0.0
    %9815 = vmatprep.subr.mxu0 0.0
    %9816 = vmatpush2.msra.mxu0 0.0
    %9817 = vmatprep.subr.mxu0 0.0
    %9818 = vmatpush2.msra.mxu0 0.0
    %9819 = vmatprep.subr.mxu0 0.0
    %9820 = vmatpush2.msra.mxu0 0.0
    %9821 = vmatprep.subr.mxu0 0.0
    %9822 = vmatpush2.msra.mxu0 0.0
    %9823 = vmatprep.subr.mxu0 0.0
    %9824 = vmatpush2.msra.mxu0 0.0
    %9825 = vmatprep.subr.mxu0 0.0
    %9826 = vmatpush2.msra.mxu0 0.0
    %9827 = vmatprep.subr.mxu0 0.0
    %9828 = vmatpush2.msra.mxu0 0.0
    %9829 = vmatprep.subr.mxu0 0.0
    %9830 = vmatpush2.msra.mxu0 0.0
    %9831 = vmatprep.subr.mxu0 0.0
    %9832 = vmatpush2.msra.mxu0 0.0
    %9833 = vmatprep.subr.mxu0 0.0
    %9834 = vmatpush2.msra.mxu0 0.0
    %9835 = vmatprep.subr.mxu0 0.0
    %9836 = vmatpush2.msra.mxu0 0.0
    %9837 = vmatprep.subr.mxu0 0.0
    %9838 = vmatpush2.msra.mxu0 0.0
    %9839 = vmatprep.subr.mxu0 0.0
    %9840 = vmatpush2.msra.mxu0 0.0
    %9841 = vmatprep.subr.mxu0 0.0
    %9842 = vmatpush2.msra.mxu0 0.0
    %9843 = vmatprep.subr.mxu0 0.0
    %9844 = vmatpush2.msra.mxu0 0.0
    %9845 = vmatprep.mubr.f32.mxu0 0.0
    %9846 = vmatmul.mubr.f32.gmra.mxu0 %v9779
    %v9847 = vpop.f32.mrf.mxu0
    %v9848 = vadd.f32 0.0, %v9847
    %v9849 = vpop.f32.mrf.mxu0
    %9850 = vdwg.mxu0
    %v9852 = vrot.slane %v9848, 6
    %v9854 = vadd.f32 %v9665, %v9852
    %v9855 = vadd.f32 %v9854, %v9749
    %v9856 = vxor.u32 %v9855, 2147483648
    %v9857 = vmul.f32 %v9856, 1.442695
    %v9858 = vpow.pop %v9857
    %v9859 = vadd.f32 %v9858, 1.0
    %v9860 = vrcp.pop %v9859
    %v9861 = vmul.f32 1.0, %v9860
    %v9862 = vtanh.pop %v9855
    %v9864 = vrot.slane %v9769, 6
    %v9866 = vmul.f32 %v9861, %v9864
    %9868 = vrot.lane.b32.xlu0 %v9862, 64
    %v9869 = vpop.permute.xlu0 %9868
    %v9871 = vmul.f32 %v9861, %v9869
    %9873 = vrot.lane.b32.xlu0 %v9871, 32
    %v9874 = vpop.permute.xlu0 %9873
    %v9876 = vadd.f32 %v9866, %v9874
    %v9877 = vtanh.pop %v9876
    %9879 = vrot.lane.b32.xlu0 %v9877, 64
    %v9880 = vpop.permute.xlu0 %9879
    %v9882 = vmul.f32 %v9861, %v9880
    %v9884 = vrot.slane %v9882, 2
    %9885 = vrot.lane.b32.xlu0 %v9884, 32
    %v9886 = vpop.permute.xlu0 %9885
    %v9887 = vsel %vm3674, %v9886, 0
    %9889 = vmatprep.subr.mxu0 0.0
    %9890 = vmatpush1.msra.mxu0 0.0
    %9891 = vmatprep.subr.mxu0 0.0
    %9892 = vmatpush1.msra.mxu0 0.0
    %9893 = vmatprep.subr.mxu0 0.0
    %9894 = vmatpush1.msra.mxu0 0.0
    %9895 = vmatprep.subr.mxu0 0.0
    %9896 = vmatpush1.msra.mxu0 0.0
    %9897 = vmatprep.subr.mxu0 0.0
    %9898 = vmatpush1.msra.mxu0 0.0
    %9899 = vmatprep.subr.mxu0 0.0
    %9900 = vmatpush1.msra.mxu0 0.0
    %9901 = vmatprep.subr.mxu0 0.0
    %9902 = vmatpush1.msra.mxu0 0.0
    %9903 = vmatprep.subr.mxu0 0.0
    %9904 = vmatpush1.msra.mxu0 0.0
    %9905 = vmatprep.subr.mxu0 0.0
    %9906 = vmatpush1.msra.mxu0 0.0
    %9907 = vmatprep.subr.mxu0 0.0
    %9908 = vmatpush1.msra.mxu0 0.0
    %9909 = vmatprep.subr.mxu0 0.0
    %9910 = vmatpush1.msra.mxu0 0.0
    %9911 = vmatprep.subr.mxu0 0.0
    %9912 = vmatpush1.msra.mxu0 0.0
    %9913 = vmatprep.subr.mxu0 0.0
    %9914 = vmatpush1.msra.mxu0 %v9670
    %9915 = vmatprep.subr.mxu0 0.0
    %9916 = vmatpush1.msra.mxu0 %v9669
    %9917 = vmatprep.subr.mxu0 0.0
    %9918 = vmatpush1.msra.mxu0 %v9668
    %9919 = vmatprep.subr.mxu0 0.0
    %9920 = vmatpush1.msra.mxu0 %v9667
    %9921 = vmatprep.subr.mxu0 0.0
    %9922 = vmatpush2.msra.mxu0 0.0
    %9923 = vmatprep.subr.mxu0 0.0
    %9924 = vmatpush2.msra.mxu0 0.0
    %9925 = vmatprep.subr.mxu0 0.0
    %9926 = vmatpush2.msra.mxu0 0.0
    %9927 = vmatprep.subr.mxu0 0.0
    %9928 = vmatpush2.msra.mxu0 0.0
    %9929 = vmatprep.subr.mxu0 0.0
    %9930 = vmatpush2.msra.mxu0 0.0
    %9931 = vmatprep.subr.mxu0 0.0
    %9932 = vmatpush2.msra.mxu0 0.0
    %9933 = vmatprep.subr.mxu0 0.0
    %9934 = vmatpush2.msra.mxu0 0.0
    %9935 = vmatprep.subr.mxu0 0.0
    %9936 = vmatpush2.msra.mxu0 0.0
    %9937 = vmatprep.subr.mxu0 0.0
    %9938 = vmatpush2.msra.mxu0 0.0
    %9939 = vmatprep.subr.mxu0 0.0
    %9940 = vmatpush2.msra.mxu0 0.0
    %9941 = vmatprep.subr.mxu0 0.0
    %9942 = vmatpush2.msra.mxu0 0.0
    %9943 = vmatprep.subr.mxu0 0.0
    %9944 = vmatpush2.msra.mxu0 0.0
    %9945 = vmatprep.subr.mxu0 0.0
    %9946 = vmatpush2.msra.mxu0 0.0
    %9947 = vmatprep.subr.mxu0 0.0
    %9948 = vmatpush2.msra.mxu0 0.0
    %9949 = vmatprep.subr.mxu0 0.0
    %9950 = vmatpush2.msra.mxu0 0.0
    %9951 = vmatprep.subr.mxu0 0.0
    %9952 = vmatpush2.msra.mxu0 0.0
    %9953 = vmatprep.mubr.f32.mxu0 0.0
    %9954 = vmatmul.mubr.f32.gmra.mxu0 %v9887
    %v9955 = vpop.f32.mrf.mxu0
    %v9956 = vadd.f32 0.0, %v9955
    %v9957 = vpop.f32.mrf.mxu0
    %9958 = vdwg.mxu0
    %v9960 = vrot.slane %v9956, 4
    %v9962 = vadd.f32 %v9665, %v9960
    %v9963 = vadd.f32 %v9962, %v9749
    %v9964 = vxor.u32 %v9963, 2147483648
    %v9965 = vmul.f32 %v9964, 1.442695
    %v9966 = vpow.pop %v9965
    %v9967 = vadd.f32 %v9966, 1.0
    %v9968 = vrcp.pop %v9967
    %v9969 = vmul.f32 1.0, %v9968
    %v9970 = vtanh.pop %v9963
    %v9972 = vrot.slane %v9876, 6
    %v9974 = vmul.f32 %v9969, %v9972
    %9976 = vrot.lane.b32.xlu0 %v9970, 64
    %v9977 = vpop.permute.xlu0 %9976
    %v9979 = vmul.f32 %v9969, %v9977
    %9981 = vrot.lane.b32.xlu0 %v9979, 32
    %v9982 = vpop.permute.xlu0 %9981
    %v9984 = vadd.f32 %v9974, %v9982
    %v9985 = vtanh.pop %v9984
    %9987 = vrot.lane.b32.xlu0 %v9985, 64
    %v9988 = vpop.permute.xlu0 %9987
    %v9990 = vmul.f32 %v9969, %v9988
    %v9991 = vld [vmem:[%s13] sm:$0xff]
    %v9992 = vld [vmem:[%s13 + $0x8] sm:$0xff]
    %v9993 = vld [vmem:[%s13 + $0x10] sm:$0xff]
    %v9994 = vld [vmem:[%s13 + $0x18] sm:$0xff]
    %v9995 = vld [vmem:[%s14] sm:$0x1]
    %v9997 = vlaneseq
    %v9998 = vshrl.u32 %v9997, 7
    %v9999 = vsub.s32 0, %v9998
    %v10000 = vrot.slane %v9995, %v9999
    %v10003 = vrot.slane %v9990, 4
    %10004 = vrot.lane.b32.xlu0 %v10003, 32
    %v10005 = vpop.permute.xlu0 %10004
    %v10006 = vsel %vm3674, %v10005, 0
    %10008 = vmatprep.subr.mxu0 0.0
    %10009 = vmatpush1.msra.mxu0 0.0
    %10010 = vmatprep.subr.mxu0 0.0
    %10011 = vmatpush1.msra.mxu0 0.0
    %10012 = vmatprep.subr.mxu0 0.0
    %10013 = vmatpush1.msra.mxu0 0.0
    %10014 = vmatprep.subr.mxu0 0.0
    %10015 = vmatpush1.msra.mxu0 0.0
    %10016 = vmatprep.subr.mxu0 0.0
    %10017 = vmatpush1.msra.mxu0 0.0
    %10018 = vmatprep.subr.mxu0 0.0
    %10019 = vmatpush1.msra.mxu0 0.0
    %10020 = vmatprep.subr.mxu0 0.0
    %10021 = vmatpush1.msra.mxu0 0.0
    %10022 = vmatprep.subr.mxu0 0.0
    %10023 = vmatpush1.msra.mxu0 0.0
    %10024 = vmatprep.subr.mxu0 0.0
    %10025 = vmatpush1.msra.mxu0 0.0
    %10026 = vmatprep.subr.mxu0 0.0
    %10027 = vmatpush1.msra.mxu0 0.0
    %10028 = vmatprep.subr.mxu0 0.0
    %10029 = vmatpush1.msra.mxu0 0.0
    %10030 = vmatprep.subr.mxu0 0.0
    %10031 = vmatpush1.msra.mxu0 0.0
    %10032 = vmatprep.subr.mxu0 0.0
    %10033 = vmatpush1.msra.mxu0 %v9994
    %10034 = vmatprep.subr.mxu0 0.0
    %10035 = vmatpush1.msra.mxu0 %v9993
    %10036 = vmatprep.subr.mxu0 0.0
    %10037 = vmatpush1.msra.mxu0 %v9992
    %10038 = vmatprep.subr.mxu0 0.0
    %10039 = vmatpush1.msra.mxu0 %v9991
    %10040 = vmatprep.subr.mxu0 0.0
    %10041 = vmatpush2.msra.mxu0 0.0
    %10042 = vmatprep.subr.mxu0 0.0
    %10043 = vmatpush2.msra.mxu0 0.0
    %10044 = vmatprep.subr.mxu0 0.0
    %10045 = vmatpush2.msra.mxu0 0.0
    %10046 = vmatprep.subr.mxu0 0.0
    %10047 = vmatpush2.msra.mxu0 0.0
    %10048 = vmatprep.subr.mxu0 0.0
    %10049 = vmatpush2.msra.mxu0 0.0
    %10050 = vmatprep.subr.mxu0 0.0
    %10051 = vmatpush2.msra.mxu0 0.0
    %10052 = vmatprep.subr.mxu0 0.0
    %10053 = vmatpush2.msra.mxu0 0.0
    %10054 = vmatprep.subr.mxu0 0.0
    %10055 = vmatpush2.msra.mxu0 0.0
    %10056 = vmatprep.subr.mxu0 0.0
    %10057 = vmatpush2.msra.mxu0 0.0
    %10058 = vmatprep.subr.mxu0 0.0
    %10059 = vmatpush2.msra.mxu0 0.0
    %10060 = vmatprep.subr.mxu0 0.0
    %10061 = vmatpush2.msra.mxu0 0.0
    %10062 = vmatprep.subr.mxu0 0.0
    %10063 = vmatpush2.msra.mxu0 0.0
    %10064 = vmatprep.subr.mxu0 0.0
    %10065 = vmatpush2.msra.mxu0 0.0
    %10066 = vmatprep.subr.mxu0 0.0
    %10067 = vmatpush2.msra.mxu0 0.0
    %10068 = vmatprep.subr.mxu0 0.0
    %10069 = vmatpush2.msra.mxu0 0.0
    %10070 = vmatprep.subr.mxu0 0.0
    %10071 = vmatpush2.msra.mxu0 0.0
    %10072 = vmatprep.mubr.f32.mxu0 0.0
    %10073 = vmatmul.mubr.f32.gmra.mxu0 %v10006
    %v10074 = vpop.f32.mrf.mxu0
    %v10075 = vadd.f32 %v10000, %v10074
    %v10076 = vpop.f32.mrf.mxu0
    %10077 = vdwg.mxu0
    %vm10078 = vcmask 33792
    %10079 = vst.msk [vmem:[#allocation8] sm:$0x3] %vm10078, %v10075
    // Predicated region
    $region66: #{rsna_forward.1} parent=1 // pred_check
      _
    $region67: #{rsna_forward.1} parent=1 // pred_check_branch
      %10081 = sbr.rel (0) target = $region69
    $region68: #{rsna_forward.1} parent=1 // pred_region
      %s10083 = ssub.s32 32, 32
      %10084 = vsyncadd [#allocation7], %s10083
      %s10086 = sshll.u32 [#allocation8], 4
      %s10087 = int_to_ptr.vmem [resolvable:$true] %s10086
      %10089 = dma.vmem_to_hbm [thread:$0]  %s10087, 32, %s15, [#allocation7]
    $region69: #{rsna_forward.1} parent=1 // pred_fallthru
      _
    // Predicated region
    $region70: #{rsna_forward.1} parent=1 // pred_check
      _
    $region71: #{rsna_forward.1} parent=1 // pred_check_branch
      %10091 = sbr.rel (0) target = $region73
    $region72: #{rsna_forward.1} parent=1 // pred_region
      %10092 = dma.done [#allocation7], 32
    $region73: #{rsna_forward.1} parent=1 // pred_fallthru
      _
    %10093 = vsyncpa [#allocation6], 1
    %10094 = vsyncpa [#allocation7], 1

</llo_original>
